<compile_context>
chip_gen: v5e
topology: v5e:2x2
jax: 0.10.0
libtpu: 0.0.40
codegen_flags: <defaults>
</compile_context>

<pallas_src>
import math
from functools import partial

import jax
import jax.numpy as jnp
from jax import lax
from jax.experimental import pallas as pl
from jax.experimental.pallas import tpu as pltpu

NEG_INF = -1e30   # finite stand-in for float('-inf') in the causal mask
LN_EPS = 1e-5


# ------------------------- in-kernel building blocks -------------------------

def _layer_norm(y, gamma, beta):
    mu = jnp.mean(y, axis=-1, keepdims=True)
    var = jnp.mean((y - mu) * (y - mu), axis=-1, keepdims=True)
    return (y - mu) * lax.rsqrt(var + LN_EPS) * gamma + beta


def _causal_mask(T):
    qi = lax.broadcasted_iota(jnp.int32, (T, T), 0)
    kj = lax.broadcasted_iota(jnp.int32, (T, T), 1)
    return jnp.where(kj <= qi, 0.0, NEG_INF).astype(jnp.float32)


def _mha(q, k, v, wo, bo, nhead, mask):
    """Multi-head attention on VMEM-resident values.

    q: [Tq, E], k/v: [Tk, E], wo: [E, E], bo: [1, E], mask: [Tq, Tk] or None.
    Heads are contiguous E/nhead chunks (PyTorch nn.MultiheadAttention layout).
    The output projection is accumulated per head (ctx_h @ wo[rows_h]) so no
    concatenate / relayout is needed.
    """
    Tq, E = q.shape
    hd = E // nhead
    scale = 1.0 / math.sqrt(hd)

    acc = None
    for h in range(nhead):
        sl = slice(h * hd, (h + 1) * hd)
        # scores = q_h @ k_h^T  (contract on last dim of both -> no transpose op)
        s = lax.dot_general(q[:, sl], k[:, sl], (((1,), (1,)), ((), ())),
                            preferred_element_type=jnp.float32) * scale
        if mask is not None:
            s = s + mask
        s = s - jnp.max(s, axis=-1, keepdims=True)
        p = jnp.exp(s)
        p = p / jnp.sum(p, axis=-1, keepdims=True)
        ctx = jnp.dot(p, v[:, sl], preferred_element_type=jnp.float32)      # [Tq, hd]
        proj = jnp.dot(ctx, wo[sl, :], preferred_element_type=jnp.float32)  # [Tq, E]
        acc = proj if acc is None else acc + proj
    return acc + bo


# ------------------------------ fused kernel ---------------------------------

def _transformer_kernel(
    # tokens / embeddings / positional encoding
    src_ids_ref, tgt_ids_ref, src_emb_ref, tgt_emb_ref, pe_ref,
    # encoder layer stacks (leading dim = nlayers)
    e_wqkv, e_bqkv, e_wo, e_bo, e_ln1, e_w1, e_b1, e_w2, e_b2, e_ln2,
    # decoder layer stacks
    d_wqkv, d_bqkv, d_wo, d_bo,
    d_cqw, d_cqb, d_ckvw, d_ckvb, d_cwo, d_cbo,
    d_ln1, d_ln2, d_ln3, d_w1, d_b1, d_w2, d_b2,
    # classifier (lane-padded)
    fc_w, fc_b,
    # output
    out_ref,
    *, nlayers, nhead, ninp, vocab_src, vocab_tgt):
    S = src_ids_ref.shape[0]
    T = tgt_ids_ref.shape[0]
    E = ninp
    emb_scale = math.sqrt(ninp)
    pe = pe_ref[...]

    # causal masks computed once, reused by every layer
    enc_mask = _causal_mask(S)   # reference encoder uses a square-subsequent mask
    dec_mask = enc_mask if T == S else _causal_mask(T)

    # ------------------ encoder (TransEncoder.forward) ------------------
    # embedding lookup as one-hot matmul (keeps everything in VMEM / on MXU)
    src_oh = (lax.broadcasted_iota(jnp.int32, (S, vocab_src), 1)
              == src_ids_ref[...]).astype(jnp.float32)
    x = jnp.dot(src_oh, src_emb_ref[...], preferred_element_type=jnp.float32)
    x = x * emb_scale + pe[:S]          # *sqrt(ninp) + PE (dropout = identity)

    for l in range(nlayers):
        # fused QKV projection: one [E, 3E] matmul
        qkv = jnp.dot(x, e_wqkv[l], preferred_element_type=jnp.float32) + e_bqkv[l]
        a = _mha(qkv[:, :E], qkv[:, E:2 * E], qkv[:, 2 * E:],
                 e_wo[l], e_bo[l], nhead, enc_mask)
        x = _layer_norm(x + a, e_ln1[l][0:1], e_ln1[l][1:2])
        h = jnp.maximum(
            jnp.dot(x, e_w1[l], preferred_element_type=jnp.float32) + e_b1[l], 0.0)
        f = jnp.dot(h, e_w2[l], preferred_element_type=jnp.float32) + e_b2[l]
        x = _layer_norm(x + f, e_ln2[l][0:1], e_ln2[l][1:2])
    memory = x

    # ------------------ decoder (TransDecoder.forward) ------------------
    tgt_oh = (lax.broadcasted_iota(jnp.int32, (T, vocab_tgt), 1)
              == tgt_ids_ref[...]).astype(jnp.float32)
    y = jnp.dot(tgt_oh, tgt_emb_ref[...], preferred_element_type=jnp.float32)
    y = y * emb_scale + pe[:T]

    for l in range(nlayers):
        # masked self-attention
        qkv = jnp.dot(y, d_wqkv[l], preferred_element_type=jnp.float32) + d_bqkv[l]
        a = _mha(qkv[:, :E], qkv[:, E:2 * E], qkv[:, 2 * E:],
                 d_wo[l], d_bo[l], nhead, dec_mask)
        y = _layer_norm(y + a, d_ln1[l][0:1], d_ln1[l][1:2])

        # cross-attention over encoder memory (no mask)
        q = jnp.dot(y, d_cqw[l], preferred_element_type=jnp.float32) + d_cqb[l]
        kv = jnp.dot(memory, d_ckvw[l], preferred_element_type=jnp.float32) + d_ckvb[l]
        a2 = _mha(q, kv[:, :E], kv[:, E:], d_cwo[l], d_cbo[l], nhead, None)
        y = _layer_norm(y + a2, d_ln2[l][0:1], d_ln2[l][1:2])

        # feed-forward
        h = jnp.maximum(
            jnp.dot(y, d_w1[l], preferred_element_type=jnp.float32) + d_b1[l], 0.0)
        f = jnp.dot(h, d_w2[l], preferred_element_type=jnp.float32) + d_b2[l]
        y = _layer_norm(y + f, d_ln3[l][0:1], d_ln3[l][1:2])

    # final classifier -> dense (T, 128) lane-padded store
    out_ref[...] = jnp.dot(y, fc_w[...], preferred_element_type=jnp.float32) + fc_b[...]


# ------------------------------ host wrapper ----------------------------------

def _zero_map(ndim):
    return lambda i: (0,) * ndim


def transformer_forward(src_ids, tgt_ids, params, pe_table,
                        *, ninp, nhead, nlayers, vocab_src, vocab_tgt):
    """src_ids: [S] int32, tgt_ids: [T] int32 -> logits [T, 1, vocab_tgt]."""
    S = int(src_ids.shape[0])
    T = int(tgt_ids.shape[0])
    assert max(S, T) <= pe_table.shape[0], "positional encoding table too short"
    pe = pe_table[:max(S, T)]
    vocab_pad = params["fc_w"].shape[1]          # padded to a multiple of 128

    inputs = (
        src_ids.reshape(S, 1).astype(jnp.int32),
        tgt_ids.reshape(T, 1).astype(jnp.int32),
        params["src_emb"], params["tgt_emb"], pe,
        params["e_wqkv"], params["e_bqkv"], params["e_wo"], params["e_bo"],
        params["e_ln1"], params["e_w1"], params["e_b1"], params["e_w2"],
        params["e_b2"], params["e_ln2"],
        params["d_wqkv"], params["d_bqkv"], params["d_wo"], params["d_bo"],
        params["d_cqw"], params["d_cqb"], params["d_ckvw"], params["d_ckvb"],
        params["d_cwo"], params["d_cbo"],
        params["d_ln1"], params["d_ln2"], params["d_ln3"],
        params["d_w1"], params["d_b1"], params["d_w2"], params["d_b2"],
        params["fc_w"], params["fc_b"],
    )

    # Everything is tiny: whole-array VMEM blocks, single grid step.
    in_specs = [pl.BlockSpec(a.shape, _zero_map(a.ndim)) for a in inputs]

    out = pl.pallas_call(
        partial(_transformer_kernel, nlayers=nlayers, nhead=nhead, ninp=ninp,
                vocab_src=vocab_src, vocab_tgt=vocab_tgt),
        out_shape=jax.ShapeDtypeStruct((T, vocab_pad), jnp.float32),
        grid=(1,),
        in_specs=in_specs,
        out_specs=pl.BlockSpec((T, vocab_pad), lambda i: (0, 0)),
        compiler_params=pltpu.CompilerParams(
            dimension_semantics=("arbitrary",)),
    )(*inputs)

    # strip lane padding, restore [T, B=1, vocab_tgt] like the PyTorch module
    return out[:, :vocab_tgt].reshape(T, 1, vocab_tgt)


# --------------------------- parameters / tables ------------------------------

def positional_encoding_table(max_len, d_model):
    position = jnp.arange(max_len, dtype=jnp.float32)[:, None]
    div_term = jnp.exp(jnp.arange(0, d_model, 2, dtype=jnp.float32)
                       * (-math.log(10000.0) / d_model))
    pe = jnp.zeros((max_len, d_model), jnp.float32)
    pe = pe.at[:, 0::2].set(jnp.sin(position * div_term))
    pe = pe.at[:, 1::2].set(jnp.cos(position * div_term))
    return pe


def init_params(key, vocab_src, vocab_tgt, ninp, nhid, nlayers, vocab_pad):
    E, H, L = ninp, nhid, nlayers
    keys = iter(jax.random.split(key, 32))

    def u(shape, scale):
        return jax.random.uniform(next(keys), shape, jnp.float32, -scale, scale)

    sE = 1.0 / math.sqrt(E)
    sH = 1.0 / math.sqrt(H)
    # LayerNorm params stacked as (L, 2, E): row 0 = gamma, row 1 = beta
    ln = jnp.stack([jnp.ones((L, E), jnp.float32),
                    jnp.zeros((L, E), jnp.float32)], axis=1)

    p = {
        "src_emb": u((vocab_src, E), 0.1),
        "tgt_emb": u((vocab_tgt, E), 0.1),
        # encoder layers (QKV fused into [E, 3E])
        "e_wqkv": u((L, E, 3 * E), sE), "e_bqkv": jnp.zeros((L, 1, 3 * E), jnp.float32),
        "e_wo": u((L, E, E), sE),       "e_bo": jnp.zeros((L, 1, E), jnp.float32),
        "e_ln1": ln,                    "e_ln2": ln,
        "e_w1": u((L, E, H), sE),       "e_b1": jnp.zeros((L, 1, H), jnp.float32),
        "e_w2": u((L, H, E), sH),       "e_b2": jnp.zeros((L, 1, E), jnp.float32),
        # decoder layers (self-attn QKV fused, cross-attn KV fused)
        "d_wqkv": u((L, E, 3 * E), sE), "d_bqkv": jnp.zeros((L, 1, 3 * E), jnp.float32),
        "d_wo": u((L, E, E), sE),       "d_bo": jnp.zeros((L, 1, E), jnp.float32),
        "d_cqw": u((L, E, E), sE),      "d_cqb": jnp.zeros((L, 1, E), jnp.float32),
        "d_ckvw": u((L, E, 2 * E), sE), "d_ckvb": jnp.zeros((L, 1, 2 * E), jnp.float32),
        "d_cwo": u((L, E, E), sE),      "d_cbo": jnp.zeros((L, 1, E), jnp.float32),
        "d_ln1": ln, "d_ln2": ln, "d_ln3": ln,
        "d_w1": u((L, E, H), sE),       "d_b1": jnp.zeros((L, 1, H), jnp.float32),
        "d_w2": u((L, H, E), sH),       "d_b2": jnp.zeros((L, 1, E), jnp.float32),
    }
    # classifier, lane-padded to a multiple of 128 for dense stores
    fc_w = u((E, vocab_tgt), sE)
    p["fc_w"] = jnp.pad(fc_w, ((0, 0), (0, vocab_pad - vocab_tgt)))
    p["fc_b"] = jnp.zeros((1, vocab_pad), jnp.float32)
    return p


# ------------------------------- token helpers --------------------------------

def attach_eos(src, eos_id):
    # TODO(synk): attach_eos is undefined in the reference module; appending EOS id.
    return jnp.concatenate([src, jnp.array([eos_id], src.dtype)])


def insert_sos(tgt, sos_id):
    # TODO(synk): insert_sos is undefined in the reference module; prepending SOS id.
    return jnp.concatenate([jnp.array([sos_id], tgt.dtype), tgt])


# ----------------------------------- main --------------------------------------

if __name__ == "__main__":
    vocab_src, vocab_tgt = 40, 48
    ninp, nhead, nhid, nlayers = 32, 4, 64, 2
    vocab_pad = ((vocab_tgt + 127) // 128) * 128   # 128

    key = jax.random.PRNGKey(0)
    kp, ks, kt = jax.random.split(key, 3)

    params = init_params(kp, vocab_src, vocab_tgt, ninp, nhid, nlayers, vocab_pad)
    pe_table = positional_encoding_table(64, ninp)

    src = jax.random.randint(ks, (7,), 0, vocab_src - 1, dtype=jnp.int32)
    tgt = jax.random.randint(kt, (7,), 1, vocab_tgt, dtype=jnp.int32)

    src_with_eos = attach_eos(src, vocab_src - 1)   # [8]
    tgt_with_sos = insert_sos(tgt, 0)               # [8]

    fwd = jax.jit(partial(transformer_forward,
                          ninp=ninp, nhead=nhead, nlayers=nlayers,
                          vocab_src=vocab_src, vocab_tgt=vocab_tgt))
    out = fwd(src_with_eos, tgt_with_sos, params, pe_table)
    jax.block_until_ready(out)
    assert out.shape == (8, 1, vocab_tgt)
    print("KERNEL_OK")
</pallas_src>

<mosaic_0001>
module attributes {stable_mosaic.version = 11 : i64} {
  func.func @_transformer_kernel(%arg0: i32, %arg1: memref<8x1xi32, #tpu.memory_space<vmem>>, %arg2: memref<8x1xi32, #tpu.memory_space<vmem>>, %arg3: memref<40x32xf32, #tpu.memory_space<vmem>>, %arg4: memref<48x32xf32, #tpu.memory_space<vmem>>, %arg5: memref<8x32xf32, #tpu.memory_space<vmem>>, %arg6: memref<2x32x96xf32, #tpu.memory_space<vmem>>, %arg7: memref<2x1x96xf32, #tpu.memory_space<vmem>>, %arg8: memref<2x32x32xf32, #tpu.memory_space<vmem>>, %arg9: memref<2x1x32xf32, #tpu.memory_space<vmem>>, %arg10: memref<2x2x32xf32, #tpu.memory_space<vmem>>, %arg11: memref<2x32x64xf32, #tpu.memory_space<vmem>>, %arg12: memref<2x1x64xf32, #tpu.memory_space<vmem>>, %arg13: memref<2x64x32xf32, #tpu.memory_space<vmem>>, %arg14: memref<2x1x32xf32, #tpu.memory_space<vmem>>, %arg15: memref<2x2x32xf32, #tpu.memory_space<vmem>>, %arg16: memref<2x32x96xf32, #tpu.memory_space<vmem>>, %arg17: memref<2x1x96xf32, #tpu.memory_space<vmem>>, %arg18: memref<2x32x32xf32, #tpu.memory_space<vmem>>, %arg19: memref<2x1x32xf32, #tpu.memory_space<vmem>>, %arg20: memref<2x32x32xf32, #tpu.memory_space<vmem>>, %arg21: memref<2x1x32xf32, #tpu.memory_space<vmem>>, %arg22: memref<2x32x64xf32, #tpu.memory_space<vmem>>, %arg23: memref<2x1x64xf32, #tpu.memory_space<vmem>>, %arg24: memref<2x32x32xf32, #tpu.memory_space<vmem>>, %arg25: memref<2x1x32xf32, #tpu.memory_space<vmem>>, %arg26: memref<2x2x32xf32, #tpu.memory_space<vmem>>, %arg27: memref<2x2x32xf32, #tpu.memory_space<vmem>>, %arg28: memref<2x2x32xf32, #tpu.memory_space<vmem>>, %arg29: memref<2x32x64xf32, #tpu.memory_space<vmem>>, %arg30: memref<2x1x64xf32, #tpu.memory_space<vmem>>, %arg31: memref<2x64x32xf32, #tpu.memory_space<vmem>>, %arg32: memref<2x1x32xf32, #tpu.memory_space<vmem>>, %arg33: memref<32x128xf32, #tpu.memory_space<vmem>>, %arg34: memref<1x128xf32, #tpu.memory_space<vmem>>, %arg35: memref<8x128xf32, #tpu.memory_space<vmem>>) attributes {dimension_semantics = [#tpu.dimension_semantics<arbitrary>], iteration_bounds = array<i64: 1>, scalar_prefetch = 0 : i64, scratch_operands = 0 : i64, tpu.core_type = #tpu.core_type<tc>, window_params = [{pipeline_mode = #tpu.pipeline_mode<synchronous>, transform_indices = @transform_0, window_bounds = array<i64: 8, 1>}, {pipeline_mode = #tpu.pipeline_mode<synchronous>, transform_indices = @transform_1, window_bounds = array<i64: 8, 1>}, {pipeline_mode = #tpu.pipeline_mode<synchronous>, transform_indices = @transform_2, window_bounds = array<i64: 40, 32>}, {pipeline_mode = #tpu.pipeline_mode<synchronous>, transform_indices = @transform_3, window_bounds = array<i64: 48, 32>}, {pipeline_mode = #tpu.pipeline_mode<synchronous>, transform_indices = @transform_4, window_bounds = array<i64: 8, 32>}, {pipeline_mode = #tpu.pipeline_mode<synchronous>, transform_indices = @transform_5, window_bounds = array<i64: 2, 32, 96>}, {pipeline_mode = #tpu.pipeline_mode<synchronous>, transform_indices = @transform_6, window_bounds = array<i64: 2, 1, 96>}, {pipeline_mode = #tpu.pipeline_mode<synchronous>, transform_indices = @transform_7, window_bounds = array<i64: 2, 32, 32>}, {pipeline_mode = #tpu.pipeline_mode<synchronous>, transform_indices = @transform_8, window_bounds = array<i64: 2, 1, 32>}, {pipeline_mode = #tpu.pipeline_mode<synchronous>, transform_indices = @transform_9, window_bounds = array<i64: 2, 2, 32>}, {pipeline_mode = #tpu.pipeline_mode<synchronous>, transform_indices = @transform_10, window_bounds = array<i64: 2, 32, 64>}, {pipeline_mode = #tpu.pipeline_mode<synchronous>, transform_indices = @transform_11, window_bounds = array<i64: 2, 1, 64>}, {pipeline_mode = #tpu.pipeline_mode<synchronous>, transform_indices = @transform_12, window_bounds = array<i64: 2, 64, 32>}, {pipeline_mode = #tpu.pipeline_mode<synchronous>, transform_indices = @transform_13, window_bounds = array<i64: 2, 1, 32>}, {pipeline_mode = #tpu.pipeline_mode<synchronous>, transform_indices = @transform_14, window_bounds = array<i64: 2, 2, 32>}, {pipeline_mode = #tpu.pipeline_mode<synchronous>, transform_indices = @transform_15, window_bounds = array<i64: 2, 32, 96>}, {pipeline_mode = #tpu.pipeline_mode<synchronous>, transform_indices = @transform_16, window_bounds = array<i64: 2, 1, 96>}, {pipeline_mode = #tpu.pipeline_mode<synchronous>, transform_indices = @transform_17, window_bounds = array<i64: 2, 32, 32>}, {pipeline_mode = #tpu.pipeline_mode<synchronous>, transform_indices = @transform_18, window_bounds = array<i64: 2, 1, 32>}, {pipeline_mode = #tpu.pipeline_mode<synchronous>, transform_indices = @transform_19, window_bounds = array<i64: 2, 32, 32>}, {pipeline_mode = #tpu.pipeline_mode<synchronous>, transform_indices = @transform_20, window_bounds = array<i64: 2, 1, 32>}, {pipeline_mode = #tpu.pipeline_mode<synchronous>, transform_indices = @transform_21, window_bounds = array<i64: 2, 32, 64>}, {pipeline_mode = #tpu.pipeline_mode<synchronous>, transform_indices = @transform_22, window_bounds = array<i64: 2, 1, 64>}, {pipeline_mode = #tpu.pipeline_mode<synchronous>, transform_indices = @transform_23, window_bounds = array<i64: 2, 32, 32>}, {pipeline_mode = #tpu.pipeline_mode<synchronous>, transform_indices = @transform_24, window_bounds = array<i64: 2, 1, 32>}, {pipeline_mode = #tpu.pipeline_mode<synchronous>, transform_indices = @transform_25, window_bounds = array<i64: 2, 2, 32>}, {pipeline_mode = #tpu.pipeline_mode<synchronous>, transform_indices = @transform_26, window_bounds = array<i64: 2, 2, 32>}, {pipeline_mode = #tpu.pipeline_mode<synchronous>, transform_indices = @transform_27, window_bounds = array<i64: 2, 2, 32>}, {pipeline_mode = #tpu.pipeline_mode<synchronous>, transform_indices = @transform_28, window_bounds = array<i64: 2, 32, 64>}, {pipeline_mode = #tpu.pipeline_mode<synchronous>, transform_indices = @transform_29, window_bounds = array<i64: 2, 1, 64>}, {pipeline_mode = #tpu.pipeline_mode<synchronous>, transform_indices = @transform_30, window_bounds = array<i64: 2, 64, 32>}, {pipeline_mode = #tpu.pipeline_mode<synchronous>, transform_indices = @transform_31, window_bounds = array<i64: 2, 1, 32>}, {pipeline_mode = #tpu.pipeline_mode<synchronous>, transform_indices = @transform_32, window_bounds = array<i64: 32, 128>}, {pipeline_mode = #tpu.pipeline_mode<synchronous>, transform_indices = @transform_33, window_bounds = array<i64: 1, 128>}, {pipeline_mode = #tpu.pipeline_mode<synchronous>, transform_indices = @transform_34, window_bounds = array<i64: 8, 128>}]} {
    %c0 = arith.constant 0 : index
    %c0_0 = arith.constant 0 : index
    %0 = vector.load %arg5[%c0, %c0_0] : memref<8x32xf32, #tpu.memory_space<vmem>>, vector<8x32xf32>
    %1 = tpu.iota {dimensions = array<i32: 0>} : vector<8x8xi32>
    %2 = tpu.iota {dimensions = array<i32: 1>} : vector<8x8xi32>
    %3 = arith.cmpi sle, %2, %1 : vector<8x8xi32>
    %cst = arith.constant 0.000000e+00 : f32
    %cst_1 = arith.constant -1.000000e+30 : f32
    %4 = vector.broadcast %cst : f32 to vector<8x8xf32>
    %5 = vector.broadcast %cst_1 : f32 to vector<8x8xf32>
    %6 = arith.select %3, %4, %5 : vector<8x8xi1>, vector<8x8xf32>
    %7 = tpu.iota {dimensions = array<i32: 1>} : vector<8x40xi32>
    %c0_2 = arith.constant 0 : index
    %c0_3 = arith.constant 0 : index
    %8 = vector.load %arg1[%c0_2, %c0_3] : memref<8x1xi32, #tpu.memory_space<vmem>>, vector<8x1xi32>
    %9 = vector.broadcast %8 : vector<8x1xi32> to vector<8x40xi32>
    %10 = arith.cmpi eq, %7, %9 : vector<8x40xi32>
    %11 = arith.extui %10 : vector<8x40xi1> to vector<8x40xi32>
    %12 = arith.sitofp %11 : vector<8x40xi32> to vector<8x40xf32>
    %c0_4 = arith.constant 0 : index
    %c0_5 = arith.constant 0 : index
    %13 = vector.load %arg3[%c0_4, %c0_5] : memref<40x32xf32, #tpu.memory_space<vmem>>, vector<40x32xf32>
    %cst_6 = arith.constant dense<0.000000e+00> : vector<8x32xf32>
    %14 = tpu.matmul %12, %13, %cst_6 {dimension_numbers = #tpu.dot_dimension_numbers<[1], [0], [0], [1], [0, 0, 1, 1], [], []>} : vector<8x40xf32>, vector<40x32xf32>, vector<8x32xf32> -> vector<8x32xf32>
    %cst_7 = arith.constant 5.65685415 : f32
    %15 = vector.broadcast %cst_7 : f32 to vector<8x32xf32>
    %16 = arith.mulf %14, %15 : vector<8x32xf32>
    %17 = arith.addf %16, %0 : vector<8x32xf32>
    %c0_8 = arith.constant 0 : index
    %c0_9 = arith.constant 0 : index
    %c0_10 = arith.constant 0 : index
    %18 = vector.load %arg6[%c0_8, %c0_9, %c0_10] : memref<2x32x96xf32, #tpu.memory_space<vmem>>, vector<1x32x96xf32>
    %19 = vector.shape_cast %18 : vector<1x32x96xf32> to vector<32x96xf32>
    %cst_11 = arith.constant dense<0.000000e+00> : vector<8x96xf32>
    %20 = tpu.matmul %17, %19, %cst_11 {dimension_numbers = #tpu.dot_dimension_numbers<[1], [0], [0], [1], [0, 0, 1, 1], [], []>} : vector<8x32xf32>, vector<32x96xf32>, vector<8x96xf32> -> vector<8x96xf32>
    %c0_12 = arith.constant 0 : index
    %c0_13 = arith.constant 0 : index
    %c0_14 = arith.constant 0 : index
    %21 = vector.load %arg7[%c0_12, %c0_13, %c0_14] : memref<2x1x96xf32, #tpu.memory_space<vmem>>, vector<1x1x96xf32>
    %22 = vector.shape_cast %21 : vector<1x1x96xf32> to vector<1x96xf32>
    %23 = vector.broadcast %22 : vector<1x96xf32> to vector<8x96xf32>
    %24 = arith.addf %20, %23 : vector<8x96xf32>
    %25 = vector.extract_strided_slice %24 {offsets = [0, 0], sizes = [8, 32], strides = [1, 1]} : vector<8x96xf32> to vector<8x32xf32>
    %26 = vector.extract_strided_slice %24 {offsets = [0, 32], sizes = [8, 32], strides = [1, 1]} : vector<8x96xf32> to vector<8x32xf32>
    %27 = vector.extract_strided_slice %24 {offsets = [0, 64], sizes = [8, 32], strides = [1, 1]} : vector<8x96xf32> to vector<8x32xf32>
    %c0_15 = arith.constant 0 : index
    %c0_16 = arith.constant 0 : index
    %c0_17 = arith.constant 0 : index
    %28 = vector.load %arg8[%c0_15, %c0_16, %c0_17] : memref<2x32x32xf32, #tpu.memory_space<vmem>>, vector<1x32x32xf32>
    %29 = vector.shape_cast %28 : vector<1x32x32xf32> to vector<32x32xf32>
    %c0_18 = arith.constant 0 : index
    %c0_19 = arith.constant 0 : index
    %c0_20 = arith.constant 0 : index
    %30 = vector.load %arg9[%c0_18, %c0_19, %c0_20] : memref<2x1x32xf32, #tpu.memory_space<vmem>>, vector<1x1x32xf32>
    %31 = vector.shape_cast %30 : vector<1x1x32xf32> to vector<1x32xf32>
    %32 = vector.extract_strided_slice %25 {offsets = [0, 0], sizes = [8, 8], strides = [1, 1]} : vector<8x32xf32> to vector<8x8xf32>
    %33 = vector.extract_strided_slice %26 {offsets = [0, 0], sizes = [8, 8], strides = [1, 1]} : vector<8x32xf32> to vector<8x8xf32>
    %cst_21 = arith.constant dense<0.000000e+00> : vector<8x8xf32>
    %34 = tpu.matmul %32, %33, %cst_21 {dimension_numbers = #tpu.dot_dimension_numbers<[1], [1], [0], [0], [0, 0, 1, 0], [], []>} : vector<8x8xf32>, vector<8x8xf32>, vector<8x8xf32> -> vector<8x8xf32>
    %cst_22 = arith.constant 0.353553385 : f32
    %35 = vector.broadcast %cst_22 : f32 to vector<8x8xf32>
    %36 = arith.mulf %34, %35 : vector<8x8xf32>
    %37 = arith.addf %36, %6 : vector<8x8xf32>
    %cst_23 = arith.constant dense<0xFF800000> : vector<8xf32>
    %38 = vector.multi_reduction <maximumf>, %37, %cst_23 [1] : vector<8x8xf32> to vector<8xf32>
    %39 = vector.shape_cast %38 : vector<8xf32> to vector<8x1xf32>
    %40 = vector.broadcast %39 : vector<8x1xf32> to vector<8x8xf32>
    %41 = arith.subf %37, %40 : vector<8x8xf32>
    %42 = math.exp %41 : vector<8x8xf32>
    %cst_24 = arith.constant dense<0.000000e+00> : vector<8xf32>
    %43 = vector.multi_reduction <add>, %42, %cst_24 [1] : vector<8x8xf32> to vector<8xf32>
    %44 = vector.shape_cast %43 : vector<8xf32> to vector<8x1xf32>
    %45 = vector.broadcast %44 : vector<8x1xf32> to vector<8x8xf32>
    %46 = arith.divf %42, %45 : vector<8x8xf32>
    %47 = vector.extract_strided_slice %27 {offsets = [0, 0], sizes = [8, 8], strides = [1, 1]} : vector<8x32xf32> to vector<8x8xf32>
    %cst_25 = arith.constant dense<0.000000e+00> : vector<8x8xf32>
    %48 = tpu.matmul %46, %47, %cst_25 {dimension_numbers = #tpu.dot_dimension_numbers<[1], [0], [0], [1], [0, 0, 1, 1], [], []>} : vector<8x8xf32>, vector<8x8xf32>, vector<8x8xf32> -> vector<8x8xf32>
    %49 = vector.extract_strided_slice %29 {offsets = [0, 0], sizes = [8, 32], strides = [1, 1]} : vector<32x32xf32> to vector<8x32xf32>
    %cst_26 = arith.constant dense<0.000000e+00> : vector<8x32xf32>
    %50 = tpu.matmul %48, %49, %cst_26 {dimension_numbers = #tpu.dot_dimension_numbers<[1], [0], [0], [1], [0, 0, 1, 1], [], []>} : vector<8x8xf32>, vector<8x32xf32>, vector<8x32xf32> -> vector<8x32xf32>
    %51 = vector.extract_strided_slice %25 {offsets = [0, 8], sizes = [8, 8], strides = [1, 1]} : vector<8x32xf32> to vector<8x8xf32>
    %52 = vector.extract_strided_slice %26 {offsets = [0, 8], sizes = [8, 8], strides = [1, 1]} : vector<8x32xf32> to vector<8x8xf32>
    %cst_27 = arith.constant dense<0.000000e+00> : vector<8x8xf32>
    %53 = tpu.matmul %51, %52, %cst_27 {dimension_numbers = #tpu.dot_dimension_numbers<[1], [1], [0], [0], [0, 0, 1, 0], [], []>} : vector<8x8xf32>, vector<8x8xf32>, vector<8x8xf32> -> vector<8x8xf32>
    %cst_28 = arith.constant 0.353553385 : f32
    %54 = vector.broadcast %cst_28 : f32 to vector<8x8xf32>
    %55 = arith.mulf %53, %54 : vector<8x8xf32>
    %56 = arith.addf %55, %6 : vector<8x8xf32>
    %cst_29 = arith.constant dense<0xFF800000> : vector<8xf32>
    %57 = vector.multi_reduction <maximumf>, %56, %cst_29 [1] : vector<8x8xf32> to vector<8xf32>
    %58 = vector.shape_cast %57 : vector<8xf32> to vector<8x1xf32>
    %59 = vector.broadcast %58 : vector<8x1xf32> to vector<8x8xf32>
    %60 = arith.subf %56, %59 : vector<8x8xf32>
    %61 = math.exp %60 : vector<8x8xf32>
    %cst_30 = arith.constant dense<0.000000e+00> : vector<8xf32>
    %62 = vector.multi_reduction <add>, %61, %cst_30 [1] : vector<8x8xf32> to vector<8xf32>
    %63 = vector.shape_cast %62 : vector<8xf32> to vector<8x1xf32>
    %64 = vector.broadcast %63 : vector<8x1xf32> to vector<8x8xf32>
    %65 = arith.divf %61, %64 : vector<8x8xf32>
    %66 = vector.extract_strided_slice %27 {offsets = [0, 8], sizes = [8, 8], strides = [1, 1]} : vector<8x32xf32> to vector<8x8xf32>
    %cst_31 = arith.constant dense<0.000000e+00> : vector<8x8xf32>
    %67 = tpu.matmul %65, %66, %cst_31 {dimension_numbers = #tpu.dot_dimension_numbers<[1], [0], [0], [1], [0, 0, 1, 1], [], []>} : vector<8x8xf32>, vector<8x8xf32>, vector<8x8xf32> -> vector<8x8xf32>
    %68 = vector.extract_strided_slice %29 {offsets = [8, 0], sizes = [8, 32], strides = [1, 1]} : vector<32x32xf32> to vector<8x32xf32>
    %cst_32 = arith.constant dense<0.000000e+00> : vector<8x32xf32>
    %69 = tpu.matmul %67, %68, %cst_32 {dimension_numbers = #tpu.dot_dimension_numbers<[1], [0], [0], [1], [0, 0, 1, 1], [], []>} : vector<8x8xf32>, vector<8x32xf32>, vector<8x32xf32> -> vector<8x32xf32>
    %70 = arith.addf %50, %69 : vector<8x32xf32>
    %71 = vector.extract_strided_slice %25 {offsets = [0, 16], sizes = [8, 8], strides = [1, 1]} : vector<8x32xf32> to vector<8x8xf32>
    %72 = vector.extract_strided_slice %26 {offsets = [0, 16], sizes = [8, 8], strides = [1, 1]} : vector<8x32xf32> to vector<8x8xf32>
    %cst_33 = arith.constant dense<0.000000e+00> : vector<8x8xf32>
    %73 = tpu.matmul %71, %72, %cst_33 {dimension_numbers = #tpu.dot_dimension_numbers<[1], [1], [0], [0], [0, 0, 1, 0], [], []>} : vector<8x8xf32>, vector<8x8xf32>, vector<8x8xf32> -> vector<8x8xf32>
    %cst_34 = arith.constant 0.353553385 : f32
    %74 = vector.broadcast %cst_34 : f32 to vector<8x8xf32>
    %75 = arith.mulf %73, %74 : vector<8x8xf32>
    %76 = arith.addf %75, %6 : vector<8x8xf32>
    %cst_35 = arith.constant dense<0xFF800000> : vector<8xf32>
    %77 = vector.multi_reduction <maximumf>, %76, %cst_35 [1] : vector<8x8xf32> to vector<8xf32>
    %78 = vector.shape_cast %77 : vector<8xf32> to vector<8x1xf32>
    %79 = vector.broadcast %78 : vector<8x1xf32> to vector<8x8xf32>
    %80 = arith.subf %76, %79 : vector<8x8xf32>
    %81 = math.exp %80 : vector<8x8xf32>
    %cst_36 = arith.constant dense<0.000000e+00> : vector<8xf32>
    %82 = vector.multi_reduction <add>, %81, %cst_36 [1] : vector<8x8xf32> to vector<8xf32>
    %83 = vector.shape_cast %82 : vector<8xf32> to vector<8x1xf32>
    %84 = vector.broadcast %83 : vector<8x1xf32> to vector<8x8xf32>
    %85 = arith.divf %81, %84 : vector<8x8xf32>
    %86 = vector.extract_strided_slice %27 {offsets = [0, 16], sizes = [8, 8], strides = [1, 1]} : vector<8x32xf32> to vector<8x8xf32>
    %cst_37 = arith.constant dense<0.000000e+00> : vector<8x8xf32>
    %87 = tpu.matmul %85, %86, %cst_37 {dimension_numbers = #tpu.dot_dimension_numbers<[1], [0], [0], [1], [0, 0, 1, 1], [], []>} : vector<8x8xf32>, vector<8x8xf32>, vector<8x8xf32> -> vector<8x8xf32>
    %88 = vector.extract_strided_slice %29 {offsets = [16, 0], sizes = [8, 32], strides = [1, 1]} : vector<32x32xf32> to vector<8x32xf32>
    %cst_38 = arith.constant dense<0.000000e+00> : vector<8x32xf32>
    %89 = tpu.matmul %87, %88, %cst_38 {dimension_numbers = #tpu.dot_dimension_numbers<[1], [0], [0], [1], [0, 0, 1, 1], [], []>} : vector<8x8xf32>, vector<8x32xf32>, vector<8x32xf32> -> vector<8x32xf32>
    %90 = arith.addf %70, %89 : vector<8x32xf32>
    %91 = vector.extract_strided_slice %25 {offsets = [0, 24], sizes = [8, 8], strides = [1, 1]} : vector<8x32xf32> to vector<8x8xf32>
    %92 = vector.extract_strided_slice %26 {offsets = [0, 24], sizes = [8, 8], strides = [1, 1]} : vector<8x32xf32> to vector<8x8xf32>
    %cst_39 = arith.constant dense<0.000000e+00> : vector<8x8xf32>
    %93 = tpu.matmul %91, %92, %cst_39 {dimension_numbers = #tpu.dot_dimension_numbers<[1], [1], [0], [0], [0, 0, 1, 0], [], []>} : vector<8x8xf32>, vector<8x8xf32>, vector<8x8xf32> -> vector<8x8xf32>
    %cst_40 = arith.constant 0.353553385 : f32
    %94 = vector.broadcast %cst_40 : f32 to vector<8x8xf32>
    %95 = arith.mulf %93, %94 : vector<8x8xf32>
    %96 = arith.addf %95, %6 : vector<8x8xf32>
    %cst_41 = arith.constant dense<0xFF800000> : vector<8xf32>
    %97 = vector.multi_reduction <maximumf>, %96, %cst_41 [1] : vector<8x8xf32> to vector<8xf32>
    %98 = vector.shape_cast %97 : vector<8xf32> to vector<8x1xf32>
    %99 = vector.broadcast %98 : vector<8x1xf32> to vector<8x8xf32>
    %100 = arith.subf %96, %99 : vector<8x8xf32>
    %101 = math.exp %100 : vector<8x8xf32>
    %cst_42 = arith.constant dense<0.000000e+00> : vector<8xf32>
    %102 = vector.multi_reduction <add>, %101, %cst_42 [1] : vector<8x8xf32> to vector<8xf32>
    %103 = vector.shape_cast %102 : vector<8xf32> to vector<8x1xf32>
    %104 = vector.broadcast %103 : vector<8x1xf32> to vector<8x8xf32>
    %105 = arith.divf %101, %104 : vector<8x8xf32>
    %106 = vector.extract_strided_slice %27 {offsets = [0, 24], sizes = [8, 8], strides = [1, 1]} : vector<8x32xf32> to vector<8x8xf32>
    %cst_43 = arith.constant dense<0.000000e+00> : vector<8x8xf32>
    %107 = tpu.matmul %105, %106, %cst_43 {dimension_numbers = #tpu.dot_dimension_numbers<[1], [0], [0], [1], [0, 0, 1, 1], [], []>} : vector<8x8xf32>, vector<8x8xf32>, vector<8x8xf32> -> vector<8x8xf32>
    %108 = vector.extract_strided_slice %29 {offsets = [24, 0], sizes = [8, 32], strides = [1, 1]} : vector<32x32xf32> to vector<8x32xf32>
    %cst_44 = arith.constant dense<0.000000e+00> : vector<8x32xf32>
    %109 = tpu.matmul %107, %108, %cst_44 {dimension_numbers = #tpu.dot_dimension_numbers<[1], [0], [0], [1], [0, 0, 1, 1], [], []>} : vector<8x8xf32>, vector<8x32xf32>, vector<8x32xf32> -> vector<8x32xf32>
    %110 = arith.addf %90, %109 : vector<8x32xf32>
    %111 = vector.broadcast %31 : vector<1x32xf32> to vector<8x32xf32>
    %112 = arith.addf %110, %111 : vector<8x32xf32>
    %113 = arith.addf %17, %112 : vector<8x32xf32>
    %c0_45 = arith.constant 0 : index
    %c0_46 = arith.constant 0 : index
    %c0_47 = arith.constant 0 : index
    %114 = vector.load %arg10[%c0_45, %c0_46, %c0_47] : memref<2x2x32xf32, #tpu.memory_space<vmem>>, vector<1x2x32xf32>
    %115 = vector.shape_cast %114 : vector<1x2x32xf32> to vector<2x32xf32>
    %116 = vector.extract_strided_slice %115 {offsets = [0, 0], sizes = [1, 32], strides = [1, 1]} : vector<2x32xf32> to vector<1x32xf32>
    %c0_48 = arith.constant 0 : index
    %c0_49 = arith.constant 0 : index
    %c0_50 = arith.constant 0 : index
    %117 = vector.load %arg10[%c0_48, %c0_49, %c0_50] : memref<2x2x32xf32, #tpu.memory_space<vmem>>, vector<1x2x32xf32>
    %118 = vector.shape_cast %117 : vector<1x2x32xf32> to vector<2x32xf32>
    %119 = vector.extract_strided_slice %118 {offsets = [1, 0], sizes = [1, 32], strides = [1, 1]} : vector<2x32xf32> to vector<1x32xf32>
    %cst_51 = arith.constant dense<0.000000e+00> : vector<8xf32>
    %120 = vector.multi_reduction <add>, %113, %cst_51 [1] : vector<8x32xf32> to vector<8xf32>
    %121 = vector.shape_cast %120 : vector<8xf32> to vector<8x1xf32>
    %cst_52 = arith.constant 3.200000e+01 : f32
    %122 = vector.broadcast %cst_52 : f32 to vector<8x1xf32>
    %123 = arith.divf %121, %122 : vector<8x1xf32>
    %124 = vector.broadcast %123 : vector<8x1xf32> to vector<8x32xf32>
    %125 = arith.subf %113, %124 : vector<8x32xf32>
    %126 = vector.broadcast %123 : vector<8x1xf32> to vector<8x32xf32>
    %127 = arith.subf %113, %126 : vector<8x32xf32>
    %128 = arith.mulf %125, %127 : vector<8x32xf32>
    %cst_53 = arith.constant dense<0.000000e+00> : vector<8xf32>
    %129 = vector.multi_reduction <add>, %128, %cst_53 [1] : vector<8x32xf32> to vector<8xf32>
    %130 = vector.shape_cast %129 : vector<8xf32> to vector<8x1xf32>
    %cst_54 = arith.constant 3.200000e+01 : f32
    %131 = vector.broadcast %cst_54 : f32 to vector<8x1xf32>
    %132 = arith.divf %130, %131 : vector<8x1xf32>
    %133 = vector.broadcast %123 : vector<8x1xf32> to vector<8x32xf32>
    %134 = arith.subf %113, %133 : vector<8x32xf32>
    %cst_55 = arith.constant 9.99999974E-6 : f32
    %135 = vector.broadcast %cst_55 : f32 to vector<8x1xf32>
    %136 = arith.addf %132, %135 : vector<8x1xf32>
    %137 = math.rsqrt %136 : vector<8x1xf32>
    %138 = vector.broadcast %137 : vector<8x1xf32> to vector<8x32xf32>
    %139 = arith.mulf %134, %138 : vector<8x32xf32>
    %140 = vector.broadcast %116 : vector<1x32xf32> to vector<8x32xf32>
    %141 = arith.mulf %139, %140 : vector<8x32xf32>
    %142 = vector.broadcast %119 : vector<1x32xf32> to vector<8x32xf32>
    %143 = arith.addf %141, %142 : vector<8x32xf32>
    %c0_56 = arith.constant 0 : index
    %c0_57 = arith.constant 0 : index
    %c0_58 = arith.constant 0 : index
    %144 = vector.load %arg11[%c0_56, %c0_57, %c0_58] : memref<2x32x64xf32, #tpu.memory_space<vmem>>, vector<1x32x64xf32>
    %145 = vector.shape_cast %144 : vector<1x32x64xf32> to vector<32x64xf32>
    %cst_59 = arith.constant dense<0.000000e+00> : vector<8x64xf32>
    %146 = tpu.matmul %143, %145, %cst_59 {dimension_numbers = #tpu.dot_dimension_numbers<[1], [0], [0], [1], [0, 0, 1, 1], [], []>} : vector<8x32xf32>, vector<32x64xf32>, vector<8x64xf32> -> vector<8x64xf32>
    %c0_60 = arith.constant 0 : index
    %c0_61 = arith.constant 0 : index
    %c0_62 = arith.constant 0 : index
    %147 = vector.load %arg12[%c0_60, %c0_61, %c0_62] : memref<2x1x64xf32, #tpu.memory_space<vmem>>, vector<1x1x64xf32>
    %148 = vector.shape_cast %147 : vector<1x1x64xf32> to vector<1x64xf32>
    %149 = vector.broadcast %148 : vector<1x64xf32> to vector<8x64xf32>
    %150 = arith.addf %146, %149 : vector<8x64xf32>
    %cst_63 = arith.constant 0.000000e+00 : f32
    %151 = vector.broadcast %cst_63 : f32 to vector<8x64xf32>
    %152 = arith.maximumf %150, %151 : vector<8x64xf32>
    %c0_64 = arith.constant 0 : index
    %c0_65 = arith.constant 0 : index
    %c0_66 = arith.constant 0 : index
    %153 = vector.load %arg13[%c0_64, %c0_65, %c0_66] : memref<2x64x32xf32, #tpu.memory_space<vmem>>, vector<1x64x32xf32>
    %154 = vector.shape_cast %153 : vector<1x64x32xf32> to vector<64x32xf32>
    %cst_67 = arith.constant dense<0.000000e+00> : vector<8x32xf32>
    %155 = tpu.matmul %152, %154, %cst_67 {dimension_numbers = #tpu.dot_dimension_numbers<[1], [0], [0], [1], [0, 0, 1, 1], [], []>} : vector<8x64xf32>, vector<64x32xf32>, vector<8x32xf32> -> vector<8x32xf32>
    %c0_68 = arith.constant 0 : index
    %c0_69 = arith.constant 0 : index
    %c0_70 = arith.constant 0 : index
    %156 = vector.load %arg14[%c0_68, %c0_69, %c0_70] : memref<2x1x32xf32, #tpu.memory_space<vmem>>, vector<1x1x32xf32>
    %157 = vector.shape_cast %156 : vector<1x1x32xf32> to vector<1x32xf32>
    %158 = vector.broadcast %157 : vector<1x32xf32> to vector<8x32xf32>
    %159 = arith.addf %155, %158 : vector<8x32xf32>
    %160 = arith.addf %143, %159 : vector<8x32xf32>
    %c0_71 = arith.constant 0 : index
    %c0_72 = arith.constant 0 : index
    %c0_73 = arith.constant 0 : index
    %161 = vector.load %arg15[%c0_71, %c0_72, %c0_73] : memref<2x2x32xf32, #tpu.memory_space<vmem>>, vector<1x2x32xf32>
    %162 = vector.shape_cast %161 : vector<1x2x32xf32> to vector<2x32xf32>
    %163 = vector.extract_strided_slice %162 {offsets = [0, 0], sizes = [1, 32], strides = [1, 1]} : vector<2x32xf32> to vector<1x32xf32>
    %c0_74 = arith.constant 0 : index
    %c0_75 = arith.constant 0 : index
    %c0_76 = arith.constant 0 : index
    %164 = vector.load %arg15[%c0_74, %c0_75, %c0_76] : memref<2x2x32xf32, #tpu.memory_space<vmem>>, vector<1x2x32xf32>
    %165 = vector.shape_cast %164 : vector<1x2x32xf32> to vector<2x32xf32>
    %166 = vector.extract_strided_slice %165 {offsets = [1, 0], sizes = [1, 32], strides = [1, 1]} : vector<2x32xf32> to vector<1x32xf32>
    %cst_77 = arith.constant dense<0.000000e+00> : vector<8xf32>
    %167 = vector.multi_reduction <add>, %160, %cst_77 [1] : vector<8x32xf32> to vector<8xf32>
    %168 = vector.shape_cast %167 : vector<8xf32> to vector<8x1xf32>
    %cst_78 = arith.constant 3.200000e+01 : f32
    %169 = vector.broadcast %cst_78 : f32 to vector<8x1xf32>
    %170 = arith.divf %168, %169 : vector<8x1xf32>
    %171 = vector.broadcast %170 : vector<8x1xf32> to vector<8x32xf32>
    %172 = arith.subf %160, %171 : vector<8x32xf32>
    %173 = vector.broadcast %170 : vector<8x1xf32> to vector<8x32xf32>
    %174 = arith.subf %160, %173 : vector<8x32xf32>
    %175 = arith.mulf %172, %174 : vector<8x32xf32>
    %cst_79 = arith.constant dense<0.000000e+00> : vector<8xf32>
    %176 = vector.multi_reduction <add>, %175, %cst_79 [1] : vector<8x32xf32> to vector<8xf32>
    %177 = vector.shape_cast %176 : vector<8xf32> to vector<8x1xf32>
    %cst_80 = arith.constant 3.200000e+01 : f32
    %178 = vector.broadcast %cst_80 : f32 to vector<8x1xf32>
    %179 = arith.divf %177, %178 : vector<8x1xf32>
    %180 = vector.broadcast %170 : vector<8x1xf32> to vector<8x32xf32>
    %181 = arith.subf %160, %180 : vector<8x32xf32>
    %cst_81 = arith.constant 9.99999974E-6 : f32
    %182 = vector.broadcast %cst_81 : f32 to vector<8x1xf32>
    %183 = arith.addf %179, %182 : vector<8x1xf32>
    %184 = math.rsqrt %183 : vector<8x1xf32>
    %185 = vector.broadcast %184 : vector<8x1xf32> to vector<8x32xf32>
    %186 = arith.mulf %181, %185 : vector<8x32xf32>
    %187 = vector.broadcast %163 : vector<1x32xf32> to vector<8x32xf32>
    %188 = arith.mulf %186, %187 : vector<8x32xf32>
    %189 = vector.broadcast %166 : vector<1x32xf32> to vector<8x32xf32>
    %190 = arith.addf %188, %189 : vector<8x32xf32>
    %c1 = arith.constant 1 : index
    %c0_82 = arith.constant 0 : index
    %c0_83 = arith.constant 0 : index
    %191 = vector.load %arg6[%c1, %c0_82, %c0_83] : memref<2x32x96xf32, #tpu.memory_space<vmem>>, vector<1x32x96xf32>
    %192 = vector.shape_cast %191 : vector<1x32x96xf32> to vector<32x96xf32>
    %cst_84 = arith.constant dense<0.000000e+00> : vector<8x96xf32>
    %193 = tpu.matmul %190, %192, %cst_84 {dimension_numbers = #tpu.dot_dimension_numbers<[1], [0], [0], [1], [0, 0, 1, 1], [], []>} : vector<8x32xf32>, vector<32x96xf32>, vector<8x96xf32> -> vector<8x96xf32>
    %c1_85 = arith.constant 1 : index
    %c0_86 = arith.constant 0 : index
    %c0_87 = arith.constant 0 : index
    %194 = vector.load %arg7[%c1_85, %c0_86, %c0_87] : memref<2x1x96xf32, #tpu.memory_space<vmem>>, vector<1x1x96xf32>
    %195 = vector.shape_cast %194 : vector<1x1x96xf32> to vector<1x96xf32>
    %196 = vector.broadcast %195 : vector<1x96xf32> to vector<8x96xf32>
    %197 = arith.addf %193, %196 : vector<8x96xf32>
    %198 = vector.extract_strided_slice %197 {offsets = [0, 0], sizes = [8, 32], strides = [1, 1]} : vector<8x96xf32> to vector<8x32xf32>
    %199 = vector.extract_strided_slice %197 {offsets = [0, 32], sizes = [8, 32], strides = [1, 1]} : vector<8x96xf32> to vector<8x32xf32>
    %200 = vector.extract_strided_slice %197 {offsets = [0, 64], sizes = [8, 32], strides = [1, 1]} : vector<8x96xf32> to vector<8x32xf32>
    %c1_88 = arith.constant 1 : index
    %c0_89 = arith.constant 0 : index
    %c0_90 = arith.constant 0 : index
    %201 = vector.load %arg8[%c1_88, %c0_89, %c0_90] : memref<2x32x32xf32, #tpu.memory_space<vmem>>, vector<1x32x32xf32>
    %202 = vector.shape_cast %201 : vector<1x32x32xf32> to vector<32x32xf32>
    %c1_91 = arith.constant 1 : index
    %c0_92 = arith.constant 0 : index
    %c0_93 = arith.constant 0 : index
    %203 = vector.load %arg9[%c1_91, %c0_92, %c0_93] : memref<2x1x32xf32, #tpu.memory_space<vmem>>, vector<1x1x32xf32>
    %204 = vector.shape_cast %203 : vector<1x1x32xf32> to vector<1x32xf32>
    %205 = vector.extract_strided_slice %198 {offsets = [0, 0], sizes = [8, 8], strides = [1, 1]} : vector<8x32xf32> to vector<8x8xf32>
    %206 = vector.extract_strided_slice %199 {offsets = [0, 0], sizes = [8, 8], strides = [1, 1]} : vector<8x32xf32> to vector<8x8xf32>
    %cst_94 = arith.constant dense<0.000000e+00> : vector<8x8xf32>
    %207 = tpu.matmul %205, %206, %cst_94 {dimension_numbers = #tpu.dot_dimension_numbers<[1], [1], [0], [0], [0, 0, 1, 0], [], []>} : vector<8x8xf32>, vector<8x8xf32>, vector<8x8xf32> -> vector<8x8xf32>
    %cst_95 = arith.constant 0.353553385 : f32
    %208 = vector.broadcast %cst_95 : f32 to vector<8x8xf32>
    %209 = arith.mulf %207, %208 : vector<8x8xf32>
    %210 = arith.addf %209, %6 : vector<8x8xf32>
    %cst_96 = arith.constant dense<0xFF800000> : vector<8xf32>
    %211 = vector.multi_reduction <maximumf>, %210, %cst_96 [1] : vector<8x8xf32> to vector<8xf32>
    %212 = vector.shape_cast %211 : vector<8xf32> to vector<8x1xf32>
    %213 = vector.broadcast %212 : vector<8x1xf32> to vector<8x8xf32>
    %214 = arith.subf %210, %213 : vector<8x8xf32>
    %215 = math.exp %214 : vector<8x8xf32>
    %cst_97 = arith.constant dense<0.000000e+00> : vector<8xf32>
    %216 = vector.multi_reduction <add>, %215, %cst_97 [1] : vector<8x8xf32> to vector<8xf32>
    %217 = vector.shape_cast %216 : vector<8xf32> to vector<8x1xf32>
    %218 = vector.broadcast %217 : vector<8x1xf32> to vector<8x8xf32>
    %219 = arith.divf %215, %218 : vector<8x8xf32>
    %220 = vector.extract_strided_slice %200 {offsets = [0, 0], sizes = [8, 8], strides = [1, 1]} : vector<8x32xf32> to vector<8x8xf32>
    %cst_98 = arith.constant dense<0.000000e+00> : vector<8x8xf32>
    %221 = tpu.matmul %219, %220, %cst_98 {dimension_numbers = #tpu.dot_dimension_numbers<[1], [0], [0], [1], [0, 0, 1, 1], [], []>} : vector<8x8xf32>, vector<8x8xf32>, vector<8x8xf32> -> vector<8x8xf32>
    %222 = vector.extract_strided_slice %202 {offsets = [0, 0], sizes = [8, 32], strides = [1, 1]} : vector<32x32xf32> to vector<8x32xf32>
    %cst_99 = arith.constant dense<0.000000e+00> : vector<8x32xf32>
    %223 = tpu.matmul %221, %222, %cst_99 {dimension_numbers = #tpu.dot_dimension_numbers<[1], [0], [0], [1], [0, 0, 1, 1], [], []>} : vector<8x8xf32>, vector<8x32xf32>, vector<8x32xf32> -> vector<8x32xf32>
    %224 = vector.extract_strided_slice %198 {offsets = [0, 8], sizes = [8, 8], strides = [1, 1]} : vector<8x32xf32> to vector<8x8xf32>
    %225 = vector.extract_strided_slice %199 {offsets = [0, 8], sizes = [8, 8], strides = [1, 1]} : vector<8x32xf32> to vector<8x8xf32>
    %cst_100 = arith.constant dense<0.000000e+00> : vector<8x8xf32>
    %226 = tpu.matmul %224, %225, %cst_100 {dimension_numbers = #tpu.dot_dimension_numbers<[1], [1], [0], [0], [0, 0, 1, 0], [], []>} : vector<8x8xf32>, vector<8x8xf32>, vector<8x8xf32> -> vector<8x8xf32>
    %cst_101 = arith.constant 0.353553385 : f32
    %227 = vector.broadcast %cst_101 : f32 to vector<8x8xf32>
    %228 = arith.mulf %226, %227 : vector<8x8xf32>
    %229 = arith.addf %228, %6 : vector<8x8xf32>
    %cst_102 = arith.constant dense<0xFF800000> : vector<8xf32>
    %230 = vector.multi_reduction <maximumf>, %229, %cst_102 [1] : vector<8x8xf32> to vector<8xf32>
    %231 = vector.shape_cast %230 : vector<8xf32> to vector<8x1xf32>
    %232 = vector.broadcast %231 : vector<8x1xf32> to vector<8x8xf32>
    %233 = arith.subf %229, %232 : vector<8x8xf32>
    %234 = math.exp %233 : vector<8x8xf32>
    %cst_103 = arith.constant dense<0.000000e+00> : vector<8xf32>
    %235 = vector.multi_reduction <add>, %234, %cst_103 [1] : vector<8x8xf32> to vector<8xf32>
    %236 = vector.shape_cast %235 : vector<8xf32> to vector<8x1xf32>
    %237 = vector.broadcast %236 : vector<8x1xf32> to vector<8x8xf32>
    %238 = arith.divf %234, %237 : vector<8x8xf32>
    %239 = vector.extract_strided_slice %200 {offsets = [0, 8], sizes = [8, 8], strides = [1, 1]} : vector<8x32xf32> to vector<8x8xf32>
    %cst_104 = arith.constant dense<0.000000e+00> : vector<8x8xf32>
    %240 = tpu.matmul %238, %239, %cst_104 {dimension_numbers = #tpu.dot_dimension_numbers<[1], [0], [0], [1], [0, 0, 1, 1], [], []>} : vector<8x8xf32>, vector<8x8xf32>, vector<8x8xf32> -> vector<8x8xf32>
    %241 = vector.extract_strided_slice %202 {offsets = [8, 0], sizes = [8, 32], strides = [1, 1]} : vector<32x32xf32> to vector<8x32xf32>
    %cst_105 = arith.constant dense<0.000000e+00> : vector<8x32xf32>
    %242 = tpu.matmul %240, %241, %cst_105 {dimension_numbers = #tpu.dot_dimension_numbers<[1], [0], [0], [1], [0, 0, 1, 1], [], []>} : vector<8x8xf32>, vector<8x32xf32>, vector<8x32xf32> -> vector<8x32xf32>
    %243 = arith.addf %223, %242 : vector<8x32xf32>
    %244 = vector.extract_strided_slice %198 {offsets = [0, 16], sizes = [8, 8], strides = [1, 1]} : vector<8x32xf32> to vector<8x8xf32>
    %245 = vector.extract_strided_slice %199 {offsets = [0, 16], sizes = [8, 8], strides = [1, 1]} : vector<8x32xf32> to vector<8x8xf32>
    %cst_106 = arith.constant dense<0.000000e+00> : vector<8x8xf32>
    %246 = tpu.matmul %244, %245, %cst_106 {dimension_numbers = #tpu.dot_dimension_numbers<[1], [1], [0], [0], [0, 0, 1, 0], [], []>} : vector<8x8xf32>, vector<8x8xf32>, vector<8x8xf32> -> vector<8x8xf32>
    %cst_107 = arith.constant 0.353553385 : f32
    %247 = vector.broadcast %cst_107 : f32 to vector<8x8xf32>
    %248 = arith.mulf %246, %247 : vector<8x8xf32>
    %249 = arith.addf %248, %6 : vector<8x8xf32>
    %cst_108 = arith.constant dense<0xFF800000> : vector<8xf32>
    %250 = vector.multi_reduction <maximumf>, %249, %cst_108 [1] : vector<8x8xf32> to vector<8xf32>
    %251 = vector.shape_cast %250 : vector<8xf32> to vector<8x1xf32>
    %252 = vector.broadcast %251 : vector<8x1xf32> to vector<8x8xf32>
    %253 = arith.subf %249, %252 : vector<8x8xf32>
    %254 = math.exp %253 : vector<8x8xf32>
    %cst_109 = arith.constant dense<0.000000e+00> : vector<8xf32>
    %255 = vector.multi_reduction <add>, %254, %cst_109 [1] : vector<8x8xf32> to vector<8xf32>
    %256 = vector.shape_cast %255 : vector<8xf32> to vector<8x1xf32>
    %257 = vector.broadcast %256 : vector<8x1xf32> to vector<8x8xf32>
    %258 = arith.divf %254, %257 : vector<8x8xf32>
    %259 = vector.extract_strided_slice %200 {offsets = [0, 16], sizes = [8, 8], strides = [1, 1]} : vector<8x32xf32> to vector<8x8xf32>
    %cst_110 = arith.constant dense<0.000000e+00> : vector<8x8xf32>
    %260 = tpu.matmul %258, %259, %cst_110 {dimension_numbers = #tpu.dot_dimension_numbers<[1], [0], [0], [1], [0, 0, 1, 1], [], []>} : vector<8x8xf32>, vector<8x8xf32>, vector<8x8xf32> -> vector<8x8xf32>
    %261 = vector.extract_strided_slice %202 {offsets = [16, 0], sizes = [8, 32], strides = [1, 1]} : vector<32x32xf32> to vector<8x32xf32>
    %cst_111 = arith.constant dense<0.000000e+00> : vector<8x32xf32>
    %262 = tpu.matmul %260, %261, %cst_111 {dimension_numbers = #tpu.dot_dimension_numbers<[1], [0], [0], [1], [0, 0, 1, 1], [], []>} : vector<8x8xf32>, vector<8x32xf32>, vector<8x32xf32> -> vector<8x32xf32>
    %263 = arith.addf %243, %262 : vector<8x32xf32>
    %264 = vector.extract_strided_slice %198 {offsets = [0, 24], sizes = [8, 8], strides = [1, 1]} : vector<8x32xf32> to vector<8x8xf32>
    %265 = vector.extract_strided_slice %199 {offsets = [0, 24], sizes = [8, 8], strides = [1, 1]} : vector<8x32xf32> to vector<8x8xf32>
    %cst_112 = arith.constant dense<0.000000e+00> : vector<8x8xf32>
    %266 = tpu.matmul %264, %265, %cst_112 {dimension_numbers = #tpu.dot_dimension_numbers<[1], [1], [0], [0], [0, 0, 1, 0], [], []>} : vector<8x8xf32>, vector<8x8xf32>, vector<8x8xf32> -> vector<8x8xf32>
    %cst_113 = arith.constant 0.353553385 : f32
    %267 = vector.broadcast %cst_113 : f32 to vector<8x8xf32>
    %268 = arith.mulf %266, %267 : vector<8x8xf32>
    %269 = arith.addf %268, %6 : vector<8x8xf32>
    %cst_114 = arith.constant dense<0xFF800000> : vector<8xf32>
    %270 = vector.multi_reduction <maximumf>, %269, %cst_114 [1] : vector<8x8xf32> to vector<8xf32>
    %271 = vector.shape_cast %270 : vector<8xf32> to vector<8x1xf32>
    %272 = vector.broadcast %271 : vector<8x1xf32> to vector<8x8xf32>
    %273 = arith.subf %269, %272 : vector<8x8xf32>
    %274 = math.exp %273 : vector<8x8xf32>
    %cst_115 = arith.constant dense<0.000000e+00> : vector<8xf32>
    %275 = vector.multi_reduction <add>, %274, %cst_115 [1] : vector<8x8xf32> to vector<8xf32>
    %276 = vector.shape_cast %275 : vector<8xf32> to vector<8x1xf32>
    %277 = vector.broadcast %276 : vector<8x1xf32> to vector<8x8xf32>
    %278 = arith.divf %274, %277 : vector<8x8xf32>
    %279 = vector.extract_strided_slice %200 {offsets = [0, 24], sizes = [8, 8], strides = [1, 1]} : vector<8x32xf32> to vector<8x8xf32>
    %cst_116 = arith.constant dense<0.000000e+00> : vector<8x8xf32>
    %280 = tpu.matmul %278, %279, %cst_116 {dimension_numbers = #tpu.dot_dimension_numbers<[1], [0], [0], [1], [0, 0, 1, 1], [], []>} : vector<8x8xf32>, vector<8x8xf32>, vector<8x8xf32> -> vector<8x8xf32>
    %281 = vector.extract_strided_slice %202 {offsets = [24, 0], sizes = [8, 32], strides = [1, 1]} : vector<32x32xf32> to vector<8x32xf32>
    %cst_117 = arith.constant dense<0.000000e+00> : vector<8x32xf32>
    %282 = tpu.matmul %280, %281, %cst_117 {dimension_numbers = #tpu.dot_dimension_numbers<[1], [0], [0], [1], [0, 0, 1, 1], [], []>} : vector<8x8xf32>, vector<8x32xf32>, vector<8x32xf32> -> vector<8x32xf32>
    %283 = arith.addf %263, %282 : vector<8x32xf32>
    %284 = vector.broadcast %204 : vector<1x32xf32> to vector<8x32xf32>
    %285 = arith.addf %283, %284 : vector<8x32xf32>
    %286 = arith.addf %190, %285 : vector<8x32xf32>
    %c1_118 = arith.constant 1 : index
    %c0_119 = arith.constant 0 : index
    %c0_120 = arith.constant 0 : index
    %287 = vector.load %arg10[%c1_118, %c0_119, %c0_120] : memref<2x2x32xf32, #tpu.memory_space<vmem>>, vector<1x2x32xf32>
    %288 = vector.shape_cast %287 : vector<1x2x32xf32> to vector<2x32xf32>
    %289 = vector.extract_strided_slice %288 {offsets = [0, 0], sizes = [1, 32], strides = [1, 1]} : vector<2x32xf32> to vector<1x32xf32>
    %c1_121 = arith.constant 1 : index
    %c0_122 = arith.constant 0 : index
    %c0_123 = arith.constant 0 : index
    %290 = vector.load %arg10[%c1_121, %c0_122, %c0_123] : memref<2x2x32xf32, #tpu.memory_space<vmem>>, vector<1x2x32xf32>
    %291 = vector.shape_cast %290 : vector<1x2x32xf32> to vector<2x32xf32>
    %292 = vector.extract_strided_slice %291 {offsets = [1, 0], sizes = [1, 32], strides = [1, 1]} : vector<2x32xf32> to vector<1x32xf32>
    %cst_124 = arith.constant dense<0.000000e+00> : vector<8xf32>
    %293 = vector.multi_reduction <add>, %286, %cst_124 [1] : vector<8x32xf32> to vector<8xf32>
    %294 = vector.shape_cast %293 : vector<8xf32> to vector<8x1xf32>
    %cst_125 = arith.constant 3.200000e+01 : f32
    %295 = vector.broadcast %cst_125 : f32 to vector<8x1xf32>
    %296 = arith.divf %294, %295 : vector<8x1xf32>
    %297 = vector.broadcast %296 : vector<8x1xf32> to vector<8x32xf32>
    %298 = arith.subf %286, %297 : vector<8x32xf32>
    %299 = vector.broadcast %296 : vector<8x1xf32> to vector<8x32xf32>
    %300 = arith.subf %286, %299 : vector<8x32xf32>
    %301 = arith.mulf %298, %300 : vector<8x32xf32>
    %cst_126 = arith.constant dense<0.000000e+00> : vector<8xf32>
    %302 = vector.multi_reduction <add>, %301, %cst_126 [1] : vector<8x32xf32> to vector<8xf32>
    %303 = vector.shape_cast %302 : vector<8xf32> to vector<8x1xf32>
    %cst_127 = arith.constant 3.200000e+01 : f32
    %304 = vector.broadcast %cst_127 : f32 to vector<8x1xf32>
    %305 = arith.divf %303, %304 : vector<8x1xf32>
    %306 = vector.broadcast %296 : vector<8x1xf32> to vector<8x32xf32>
    %307 = arith.subf %286, %306 : vector<8x32xf32>
    %cst_128 = arith.constant 9.99999974E-6 : f32
    %308 = vector.broadcast %cst_128 : f32 to vector<8x1xf32>
    %309 = arith.addf %305, %308 : vector<8x1xf32>
    %310 = math.rsqrt %309 : vector<8x1xf32>
    %311 = vector.broadcast %310 : vector<8x1xf32> to vector<8x32xf32>
    %312 = arith.mulf %307, %311 : vector<8x32xf32>
    %313 = vector.broadcast %289 : vector<1x32xf32> to vector<8x32xf32>
    %314 = arith.mulf %312, %313 : vector<8x32xf32>
    %315 = vector.broadcast %292 : vector<1x32xf32> to vector<8x32xf32>
    %316 = arith.addf %314, %315 : vector<8x32xf32>
    %c1_129 = arith.constant 1 : index
    %c0_130 = arith.constant 0 : index
    %c0_131 = arith.constant 0 : index
    %317 = vector.load %arg11[%c1_129, %c0_130, %c0_131] : memref<2x32x64xf32, #tpu.memory_space<vmem>>, vector<1x32x64xf32>
    %318 = vector.shape_cast %317 : vector<1x32x64xf32> to vector<32x64xf32>
    %cst_132 = arith.constant dense<0.000000e+00> : vector<8x64xf32>
    %319 = tpu.matmul %316, %318, %cst_132 {dimension_numbers = #tpu.dot_dimension_numbers<[1], [0], [0], [1], [0, 0, 1, 1], [], []>} : vector<8x32xf32>, vector<32x64xf32>, vector<8x64xf32> -> vector<8x64xf32>
    %c1_133 = arith.constant 1 : index
    %c0_134 = arith.constant 0 : index
    %c0_135 = arith.constant 0 : index
    %320 = vector.load %arg12[%c1_133, %c0_134, %c0_135] : memref<2x1x64xf32, #tpu.memory_space<vmem>>, vector<1x1x64xf32>
    %321 = vector.shape_cast %320 : vector<1x1x64xf32> to vector<1x64xf32>
    %322 = vector.broadcast %321 : vector<1x64xf32> to vector<8x64xf32>
    %323 = arith.addf %319, %322 : vector<8x64xf32>
    %cst_136 = arith.constant 0.000000e+00 : f32
    %324 = vector.broadcast %cst_136 : f32 to vector<8x64xf32>
    %325 = arith.maximumf %323, %324 : vector<8x64xf32>
    %c1_137 = arith.constant 1 : index
    %c0_138 = arith.constant 0 : index
    %c0_139 = arith.constant 0 : index
    %326 = vector.load %arg13[%c1_137, %c0_138, %c0_139] : memref<2x64x32xf32, #tpu.memory_space<vmem>>, vector<1x64x32xf32>
    %327 = vector.shape_cast %326 : vector<1x64x32xf32> to vector<64x32xf32>
    %cst_140 = arith.constant dense<0.000000e+00> : vector<8x32xf32>
    %328 = tpu.matmul %325, %327, %cst_140 {dimension_numbers = #tpu.dot_dimension_numbers<[1], [0], [0], [1], [0, 0, 1, 1], [], []>} : vector<8x64xf32>, vector<64x32xf32>, vector<8x32xf32> -> vector<8x32xf32>
    %c1_141 = arith.constant 1 : index
    %c0_142 = arith.constant 0 : index
    %c0_143 = arith.constant 0 : index
    %329 = vector.load %arg14[%c1_141, %c0_142, %c0_143] : memref<2x1x32xf32, #tpu.memory_space<vmem>>, vector<1x1x32xf32>
    %330 = vector.shape_cast %329 : vector<1x1x32xf32> to vector<1x32xf32>
    %331 = vector.broadcast %330 : vector<1x32xf32> to vector<8x32xf32>
    %332 = arith.addf %328, %331 : vector<8x32xf32>
    %333 = arith.addf %316, %332 : vector<8x32xf32>
    %c1_144 = arith.constant 1 : index
    %c0_145 = arith.constant 0 : index
    %c0_146 = arith.constant 0 : index
    %334 = vector.load %arg15[%c1_144, %c0_145, %c0_146] : memref<2x2x32xf32, #tpu.memory_space<vmem>>, vector<1x2x32xf32>
    %335 = vector.shape_cast %334 : vector<1x2x32xf32> to vector<2x32xf32>
    %336 = vector.extract_strided_slice %335 {offsets = [0, 0], sizes = [1, 32], strides = [1, 1]} : vector<2x32xf32> to vector<1x32xf32>
    %c1_147 = arith.constant 1 : index
    %c0_148 = arith.constant 0 : index
    %c0_149 = arith.constant 0 : index
    %337 = vector.load %arg15[%c1_147, %c0_148, %c0_149] : memref<2x2x32xf32, #tpu.memory_space<vmem>>, vector<1x2x32xf32>
    %338 = vector.shape_cast %337 : vector<1x2x32xf32> to vector<2x32xf32>
    %339 = vector.extract_strided_slice %338 {offsets = [1, 0], sizes = [1, 32], strides = [1, 1]} : vector<2x32xf32> to vector<1x32xf32>
    %cst_150 = arith.constant dense<0.000000e+00> : vector<8xf32>
    %340 = vector.multi_reduction <add>, %333, %cst_150 [1] : vector<8x32xf32> to vector<8xf32>
    %341 = vector.shape_cast %340 : vector<8xf32> to vector<8x1xf32>
    %cst_151 = arith.constant 3.200000e+01 : f32
    %342 = vector.broadcast %cst_151 : f32 to vector<8x1xf32>
    %343 = arith.divf %341, %342 : vector<8x1xf32>
    %344 = vector.broadcast %343 : vector<8x1xf32> to vector<8x32xf32>
    %345 = arith.subf %333, %344 : vector<8x32xf32>
    %346 = vector.broadcast %343 : vector<8x1xf32> to vector<8x32xf32>
    %347 = arith.subf %333, %346 : vector<8x32xf32>
    %348 = arith.mulf %345, %347 : vector<8x32xf32>
    %cst_152 = arith.constant dense<0.000000e+00> : vector<8xf32>
    %349 = vector.multi_reduction <add>, %348, %cst_152 [1] : vector<8x32xf32> to vector<8xf32>
    %350 = vector.shape_cast %349 : vector<8xf32> to vector<8x1xf32>
    %cst_153 = arith.constant 3.200000e+01 : f32
    %351 = vector.broadcast %cst_153 : f32 to vector<8x1xf32>
    %352 = arith.divf %350, %351 : vector<8x1xf32>
    %353 = vector.broadcast %343 : vector<8x1xf32> to vector<8x32xf32>
    %354 = arith.subf %333, %353 : vector<8x32xf32>
    %cst_154 = arith.constant 9.99999974E-6 : f32
    %355 = vector.broadcast %cst_154 : f32 to vector<8x1xf32>
    %356 = arith.addf %352, %355 : vector<8x1xf32>
    %357 = math.rsqrt %356 : vector<8x1xf32>
    %358 = vector.broadcast %357 : vector<8x1xf32> to vector<8x32xf32>
    %359 = arith.mulf %354, %358 : vector<8x32xf32>
    %360 = vector.broadcast %336 : vector<1x32xf32> to vector<8x32xf32>
    %361 = arith.mulf %359, %360 : vector<8x32xf32>
    %362 = vector.broadcast %339 : vector<1x32xf32> to vector<8x32xf32>
    %363 = arith.addf %361, %362 : vector<8x32xf32>
    %364 = tpu.iota {dimensions = array<i32: 1>} : vector<8x48xi32>
    %c0_155 = arith.constant 0 : index
    %c0_156 = arith.constant 0 : index
    %365 = vector.load %arg2[%c0_155, %c0_156] : memref<8x1xi32, #tpu.memory_space<vmem>>, vector<8x1xi32>
    %366 = vector.broadcast %365 : vector<8x1xi32> to vector<8x48xi32>
    %367 = arith.cmpi eq, %364, %366 : vector<8x48xi32>
    %368 = arith.extui %367 : vector<8x48xi1> to vector<8x48xi32>
    %369 = arith.sitofp %368 : vector<8x48xi32> to vector<8x48xf32>
    %c0_157 = arith.constant 0 : index
    %c0_158 = arith.constant 0 : index
    %370 = vector.load %arg4[%c0_157, %c0_158] : memref<48x32xf32, #tpu.memory_space<vmem>>, vector<48x32xf32>
    %cst_159 = arith.constant dense<0.000000e+00> : vector<8x32xf32>
    %371 = tpu.matmul %369, %370, %cst_159 {dimension_numbers = #tpu.dot_dimension_numbers<[1], [0], [0], [1], [0, 0, 1, 1], [], []>} : vector<8x48xf32>, vector<48x32xf32>, vector<8x32xf32> -> vector<8x32xf32>
    %cst_160 = arith.constant 5.65685415 : f32
    %372 = vector.broadcast %cst_160 : f32 to vector<8x32xf32>
    %373 = arith.mulf %371, %372 : vector<8x32xf32>
    %374 = arith.addf %373, %0 : vector<8x32xf32>
    %c0_161 = arith.constant 0 : index
    %c0_162 = arith.constant 0 : index
    %c0_163 = arith.constant 0 : index
    %375 = vector.load %arg16[%c0_161, %c0_162, %c0_163] : memref<2x32x96xf32, #tpu.memory_space<vmem>>, vector<1x32x96xf32>
    %376 = vector.shape_cast %375 : vector<1x32x96xf32> to vector<32x96xf32>
    %cst_164 = arith.constant dense<0.000000e+00> : vector<8x96xf32>
    %377 = tpu.matmul %374, %376, %cst_164 {dimension_numbers = #tpu.dot_dimension_numbers<[1], [0], [0], [1], [0, 0, 1, 1], [], []>} : vector<8x32xf32>, vector<32x96xf32>, vector<8x96xf32> -> vector<8x96xf32>
    %c0_165 = arith.constant 0 : index
    %c0_166 = arith.constant 0 : index
    %c0_167 = arith.constant 0 : index
    %378 = vector.load %arg17[%c0_165, %c0_166, %c0_167] : memref<2x1x96xf32, #tpu.memory_space<vmem>>, vector<1x1x96xf32>
    %379 = vector.shape_cast %378 : vector<1x1x96xf32> to vector<1x96xf32>
    %380 = vector.broadcast %379 : vector<1x96xf32> to vector<8x96xf32>
    %381 = arith.addf %377, %380 : vector<8x96xf32>
    %382 = vector.extract_strided_slice %381 {offsets = [0, 0], sizes = [8, 32], strides = [1, 1]} : vector<8x96xf32> to vector<8x32xf32>
    %383 = vector.extract_strided_slice %381 {offsets = [0, 32], sizes = [8, 32], strides = [1, 1]} : vector<8x96xf32> to vector<8x32xf32>
    %384 = vector.extract_strided_slice %381 {offsets = [0, 64], sizes = [8, 32], strides = [1, 1]} : vector<8x96xf32> to vector<8x32xf32>
    %c0_168 = arith.constant 0 : index
    %c0_169 = arith.constant 0 : index
    %c0_170 = arith.constant 0 : index
    %385 = vector.load %arg18[%c0_168, %c0_169, %c0_170] : memref<2x32x32xf32, #tpu.memory_space<vmem>>, vector<1x32x32xf32>
    %386 = vector.shape_cast %385 : vector<1x32x32xf32> to vector<32x32xf32>
    %c0_171 = arith.constant 0 : index
    %c0_172 = arith.constant 0 : index
    %c0_173 = arith.constant 0 : index
    %387 = vector.load %arg19[%c0_171, %c0_172, %c0_173] : memref<2x1x32xf32, #tpu.memory_space<vmem>>, vector<1x1x32xf32>
    %388 = vector.shape_cast %387 : vector<1x1x32xf32> to vector<1x32xf32>
    %389 = vector.extract_strided_slice %382 {offsets = [0, 0], sizes = [8, 8], strides = [1, 1]} : vector<8x32xf32> to vector<8x8xf32>
    %390 = vector.extract_strided_slice %383 {offsets = [0, 0], sizes = [8, 8], strides = [1, 1]} : vector<8x32xf32> to vector<8x8xf32>
    %cst_174 = arith.constant dense<0.000000e+00> : vector<8x8xf32>
    %391 = tpu.matmul %389, %390, %cst_174 {dimension_numbers = #tpu.dot_dimension_numbers<[1], [1], [0], [0], [0, 0, 1, 0], [], []>} : vector<8x8xf32>, vector<8x8xf32>, vector<8x8xf32> -> vector<8x8xf32>
    %cst_175 = arith.constant 0.353553385 : f32
    %392 = vector.broadcast %cst_175 : f32 to vector<8x8xf32>
    %393 = arith.mulf %391, %392 : vector<8x8xf32>
    %394 = arith.addf %393, %6 : vector<8x8xf32>
    %cst_176 = arith.constant dense<0xFF800000> : vector<8xf32>
    %395 = vector.multi_reduction <maximumf>, %394, %cst_176 [1] : vector<8x8xf32> to vector<8xf32>
    %396 = vector.shape_cast %395 : vector<8xf32> to vector<8x1xf32>
    %397 = vector.broadcast %396 : vector<8x1xf32> to vector<8x8xf32>
    %398 = arith.subf %394, %397 : vector<8x8xf32>
    %399 = math.exp %398 : vector<8x8xf32>
    %cst_177 = arith.constant dense<0.000000e+00> : vector<8xf32>
    %400 = vector.multi_reduction <add>, %399, %cst_177 [1] : vector<8x8xf32> to vector<8xf32>
    %401 = vector.shape_cast %400 : vector<8xf32> to vector<8x1xf32>
    %402 = vector.broadcast %401 : vector<8x1xf32> to vector<8x8xf32>
    %403 = arith.divf %399, %402 : vector<8x8xf32>
    %404 = vector.extract_strided_slice %384 {offsets = [0, 0], sizes = [8, 8], strides = [1, 1]} : vector<8x32xf32> to vector<8x8xf32>
    %cst_178 = arith.constant dense<0.000000e+00> : vector<8x8xf32>
    %405 = tpu.matmul %403, %404, %cst_178 {dimension_numbers = #tpu.dot_dimension_numbers<[1], [0], [0], [1], [0, 0, 1, 1], [], []>} : vector<8x8xf32>, vector<8x8xf32>, vector<8x8xf32> -> vector<8x8xf32>
    %406 = vector.extract_strided_slice %386 {offsets = [0, 0], sizes = [8, 32], strides = [1, 1]} : vector<32x32xf32> to vector<8x32xf32>
    %cst_179 = arith.constant dense<0.000000e+00> : vector<8x32xf32>
    %407 = tpu.matmul %405, %406, %cst_179 {dimension_numbers = #tpu.dot_dimension_numbers<[1], [0], [0], [1], [0, 0, 1, 1], [], []>} : vector<8x8xf32>, vector<8x32xf32>, vector<8x32xf32> -> vector<8x32xf32>
    %408 = vector.extract_strided_slice %382 {offsets = [0, 8], sizes = [8, 8], strides = [1, 1]} : vector<8x32xf32> to vector<8x8xf32>
    %409 = vector.extract_strided_slice %383 {offsets = [0, 8], sizes = [8, 8], strides = [1, 1]} : vector<8x32xf32> to vector<8x8xf32>
    %cst_180 = arith.constant dense<0.000000e+00> : vector<8x8xf32>
    %410 = tpu.matmul %408, %409, %cst_180 {dimension_numbers = #tpu.dot_dimension_numbers<[1], [1], [0], [0], [0, 0, 1, 0], [], []>} : vector<8x8xf32>, vector<8x8xf32>, vector<8x8xf32> -> vector<8x8xf32>
    %cst_181 = arith.constant 0.353553385 : f32
    %411 = vector.broadcast %cst_181 : f32 to vector<8x8xf32>
    %412 = arith.mulf %410, %411 : vector<8x8xf32>
    %413 = arith.addf %412, %6 : vector<8x8xf32>
    %cst_182 = arith.constant dense<0xFF800000> : vector<8xf32>
    %414 = vector.multi_reduction <maximumf>, %413, %cst_182 [1] : vector<8x8xf32> to vector<8xf32>
    %415 = vector.shape_cast %414 : vector<8xf32> to vector<8x1xf32>
    %416 = vector.broadcast %415 : vector<8x1xf32> to vector<8x8xf32>
    %417 = arith.subf %413, %416 : vector<8x8xf32>
    %418 = math.exp %417 : vector<8x8xf32>
    %cst_183 = arith.constant dense<0.000000e+00> : vector<8xf32>
    %419 = vector.multi_reduction <add>, %418, %cst_183 [1] : vector<8x8xf32> to vector<8xf32>
    %420 = vector.shape_cast %419 : vector<8xf32> to vector<8x1xf32>
    %421 = vector.broadcast %420 : vector<8x1xf32> to vector<8x8xf32>
    %422 = arith.divf %418, %421 : vector<8x8xf32>
    %423 = vector.extract_strided_slice %384 {offsets = [0, 8], sizes = [8, 8], strides = [1, 1]} : vector<8x32xf32> to vector<8x8xf32>
    %cst_184 = arith.constant dense<0.000000e+00> : vector<8x8xf32>
    %424 = tpu.matmul %422, %423, %cst_184 {dimension_numbers = #tpu.dot_dimension_numbers<[1], [0], [0], [1], [0, 0, 1, 1], [], []>} : vector<8x8xf32>, vector<8x8xf32>, vector<8x8xf32> -> vector<8x8xf32>
    %425 = vector.extract_strided_slice %386 {offsets = [8, 0], sizes = [8, 32], strides = [1, 1]} : vector<32x32xf32> to vector<8x32xf32>
    %cst_185 = arith.constant dense<0.000000e+00> : vector<8x32xf32>
    %426 = tpu.matmul %424, %425, %cst_185 {dimension_numbers = #tpu.dot_dimension_numbers<[1], [0], [0], [1], [0, 0, 1, 1], [], []>} : vector<8x8xf32>, vector<8x32xf32>, vector<8x32xf32> -> vector<8x32xf32>
    %427 = arith.addf %407, %426 : vector<8x32xf32>
    %428 = vector.extract_strided_slice %382 {offsets = [0, 16], sizes = [8, 8], strides = [1, 1]} : vector<8x32xf32> to vector<8x8xf32>
    %429 = vector.extract_strided_slice %383 {offsets = [0, 16], sizes = [8, 8], strides = [1, 1]} : vector<8x32xf32> to vector<8x8xf32>
    %cst_186 = arith.constant dense<0.000000e+00> : vector<8x8xf32>
    %430 = tpu.matmul %428, %429, %cst_186 {dimension_numbers = #tpu.dot_dimension_numbers<[1], [1], [0], [0], [0, 0, 1, 0], [], []>} : vector<8x8xf32>, vector<8x8xf32>, vector<8x8xf32> -> vector<8x8xf32>
    %cst_187 = arith.constant 0.353553385 : f32
    %431 = vector.broadcast %cst_187 : f32 to vector<8x8xf32>
    %432 = arith.mulf %430, %431 : vector<8x8xf32>
    %433 = arith.addf %432, %6 : vector<8x8xf32>
    %cst_188 = arith.constant dense<0xFF800000> : vector<8xf32>
    %434 = vector.multi_reduction <maximumf>, %433, %cst_188 [1] : vector<8x8xf32> to vector<8xf32>
    %435 = vector.shape_cast %434 : vector<8xf32> to vector<8x1xf32>
    %436 = vector.broadcast %435 : vector<8x1xf32> to vector<8x8xf32>
    %437 = arith.subf %433, %436 : vector<8x8xf32>
    %438 = math.exp %437 : vector<8x8xf32>
    %cst_189 = arith.constant dense<0.000000e+00> : vector<8xf32>
    %439 = vector.multi_reduction <add>, %438, %cst_189 [1] : vector<8x8xf32> to vector<8xf32>
    %440 = vector.shape_cast %439 : vector<8xf32> to vector<8x1xf32>
    %441 = vector.broadcast %440 : vector<8x1xf32> to vector<8x8xf32>
    %442 = arith.divf %438, %441 : vector<8x8xf32>
    %443 = vector.extract_strided_slice %384 {offsets = [0, 16], sizes = [8, 8], strides = [1, 1]} : vector<8x32xf32> to vector<8x8xf32>
    %cst_190 = arith.constant dense<0.000000e+00> : vector<8x8xf32>
    %444 = tpu.matmul %442, %443, %cst_190 {dimension_numbers = #tpu.dot_dimension_numbers<[1], [0], [0], [1], [0, 0, 1, 1], [], []>} : vector<8x8xf32>, vector<8x8xf32>, vector<8x8xf32> -> vector<8x8xf32>
    %445 = vector.extract_strided_slice %386 {offsets = [16, 0], sizes = [8, 32], strides = [1, 1]} : vector<32x32xf32> to vector<8x32xf32>
    %cst_191 = arith.constant dense<0.000000e+00> : vector<8x32xf32>
    %446 = tpu.matmul %444, %445, %cst_191 {dimension_numbers = #tpu.dot_dimension_numbers<[1], [0], [0], [1], [0, 0, 1, 1], [], []>} : vector<8x8xf32>, vector<8x32xf32>, vector<8x32xf32> -> vector<8x32xf32>
    %447 = arith.addf %427, %446 : vector<8x32xf32>
    %448 = vector.extract_strided_slice %382 {offsets = [0, 24], sizes = [8, 8], strides = [1, 1]} : vector<8x32xf32> to vector<8x8xf32>
    %449 = vector.extract_strided_slice %383 {offsets = [0, 24], sizes = [8, 8], strides = [1, 1]} : vector<8x32xf32> to vector<8x8xf32>
    %cst_192 = arith.constant dense<0.000000e+00> : vector<8x8xf32>
    %450 = tpu.matmul %448, %449, %cst_192 {dimension_numbers = #tpu.dot_dimension_numbers<[1], [1], [0], [0], [0, 0, 1, 0], [], []>} : vector<8x8xf32>, vector<8x8xf32>, vector<8x8xf32> -> vector<8x8xf32>
    %cst_193 = arith.constant 0.353553385 : f32
    %451 = vector.broadcast %cst_193 : f32 to vector<8x8xf32>
    %452 = arith.mulf %450, %451 : vector<8x8xf32>
    %453 = arith.addf %452, %6 : vector<8x8xf32>
    %cst_194 = arith.constant dense<0xFF800000> : vector<8xf32>
    %454 = vector.multi_reduction <maximumf>, %453, %cst_194 [1] : vector<8x8xf32> to vector<8xf32>
    %455 = vector.shape_cast %454 : vector<8xf32> to vector<8x1xf32>
    %456 = vector.broadcast %455 : vector<8x1xf32> to vector<8x8xf32>
    %457 = arith.subf %453, %456 : vector<8x8xf32>
    %458 = math.exp %457 : vector<8x8xf32>
    %cst_195 = arith.constant dense<0.000000e+00> : vector<8xf32>
    %459 = vector.multi_reduction <add>, %458, %cst_195 [1] : vector<8x8xf32> to vector<8xf32>
    %460 = vector.shape_cast %459 : vector<8xf32> to vector<8x1xf32>
    %461 = vector.broadcast %460 : vector<8x1xf32> to vector<8x8xf32>
    %462 = arith.divf %458, %461 : vector<8x8xf32>
    %463 = vector.extract_strided_slice %384 {offsets = [0, 24], sizes = [8, 8], strides = [1, 1]} : vector<8x32xf32> to vector<8x8xf32>
    %cst_196 = arith.constant dense<0.000000e+00> : vector<8x8xf32>
    %464 = tpu.matmul %462, %463, %cst_196 {dimension_numbers = #tpu.dot_dimension_numbers<[1], [0], [0], [1], [0, 0, 1, 1], [], []>} : vector<8x8xf32>, vector<8x8xf32>, vector<8x8xf32> -> vector<8x8xf32>
    %465 = vector.extract_strided_slice %386 {offsets = [24, 0], sizes = [8, 32], strides = [1, 1]} : vector<32x32xf32> to vector<8x32xf32>
    %cst_197 = arith.constant dense<0.000000e+00> : vector<8x32xf32>
    %466 = tpu.matmul %464, %465, %cst_197 {dimension_numbers = #tpu.dot_dimension_numbers<[1], [0], [0], [1], [0, 0, 1, 1], [], []>} : vector<8x8xf32>, vector<8x32xf32>, vector<8x32xf32> -> vector<8x32xf32>
    %467 = arith.addf %447, %466 : vector<8x32xf32>
    %468 = vector.broadcast %388 : vector<1x32xf32> to vector<8x32xf32>
    %469 = arith.addf %467, %468 : vector<8x32xf32>
    %470 = arith.addf %374, %469 : vector<8x32xf32>
    %c0_198 = arith.constant 0 : index
    %c0_199 = arith.constant 0 : index
    %c0_200 = arith.constant 0 : index
    %471 = vector.load %arg26[%c0_198, %c0_199, %c0_200] : memref<2x2x32xf32, #tpu.memory_space<vmem>>, vector<1x2x32xf32>
    %472 = vector.shape_cast %471 : vector<1x2x32xf32> to vector<2x32xf32>
    %473 = vector.extract_strided_slice %472 {offsets = [0, 0], sizes = [1, 32], strides = [1, 1]} : vector<2x32xf32> to vector<1x32xf32>
    %c0_201 = arith.constant 0 : index
    %c0_202 = arith.constant 0 : index
    %c0_203 = arith.constant 0 : index
    %474 = vector.load %arg26[%c0_201, %c0_202, %c0_203] : memref<2x2x32xf32, #tpu.memory_space<vmem>>, vector<1x2x32xf32>
    %475 = vector.shape_cast %474 : vector<1x2x32xf32> to vector<2x32xf32>
    %476 = vector.extract_strided_slice %475 {offsets = [1, 0], sizes = [1, 32], strides = [1, 1]} : vector<2x32xf32> to vector<1x32xf32>
    %cst_204 = arith.constant dense<0.000000e+00> : vector<8xf32>
    %477 = vector.multi_reduction <add>, %470, %cst_204 [1] : vector<8x32xf32> to vector<8xf32>
    %478 = vector.shape_cast %477 : vector<8xf32> to vector<8x1xf32>
    %cst_205 = arith.constant 3.200000e+01 : f32
    %479 = vector.broadcast %cst_205 : f32 to vector<8x1xf32>
    %480 = arith.divf %478, %479 : vector<8x1xf32>
    %481 = vector.broadcast %480 : vector<8x1xf32> to vector<8x32xf32>
    %482 = arith.subf %470, %481 : vector<8x32xf32>
    %483 = vector.broadcast %480 : vector<8x1xf32> to vector<8x32xf32>
    %484 = arith.subf %470, %483 : vector<8x32xf32>
    %485 = arith.mulf %482, %484 : vector<8x32xf32>
    %cst_206 = arith.constant dense<0.000000e+00> : vector<8xf32>
    %486 = vector.multi_reduction <add>, %485, %cst_206 [1] : vector<8x32xf32> to vector<8xf32>
    %487 = vector.shape_cast %486 : vector<8xf32> to vector<8x1xf32>
    %cst_207 = arith.constant 3.200000e+01 : f32
    %488 = vector.broadcast %cst_207 : f32 to vector<8x1xf32>
    %489 = arith.divf %487, %488 : vector<8x1xf32>
    %490 = vector.broadcast %480 : vector<8x1xf32> to vector<8x32xf32>
    %491 = arith.subf %470, %490 : vector<8x32xf32>
    %cst_208 = arith.constant 9.99999974E-6 : f32
    %492 = vector.broadcast %cst_208 : f32 to vector<8x1xf32>
    %493 = arith.addf %489, %492 : vector<8x1xf32>
    %494 = math.rsqrt %493 : vector<8x1xf32>
    %495 = vector.broadcast %494 : vector<8x1xf32> to vector<8x32xf32>
    %496 = arith.mulf %491, %495 : vector<8x32xf32>
    %497 = vector.broadcast %473 : vector<1x32xf32> to vector<8x32xf32>
    %498 = arith.mulf %496, %497 : vector<8x32xf32>
    %499 = vector.broadcast %476 : vector<1x32xf32> to vector<8x32xf32>
    %500 = arith.addf %498, %499 : vector<8x32xf32>
    %c0_209 = arith.constant 0 : index
    %c0_210 = arith.constant 0 : index
    %c0_211 = arith.constant 0 : index
    %501 = vector.load %arg20[%c0_209, %c0_210, %c0_211] : memref<2x32x32xf32, #tpu.memory_space<vmem>>, vector<1x32x32xf32>
    %502 = vector.shape_cast %501 : vector<1x32x32xf32> to vector<32x32xf32>
    %cst_212 = arith.constant dense<0.000000e+00> : vector<8x32xf32>
    %503 = tpu.matmul %500, %502, %cst_212 {dimension_numbers = #tpu.dot_dimension_numbers<[1], [0], [0], [1], [0, 0, 1, 1], [], []>} : vector<8x32xf32>, vector<32x32xf32>, vector<8x32xf32> -> vector<8x32xf32>
    %c0_213 = arith.constant 0 : index
    %c0_214 = arith.constant 0 : index
    %c0_215 = arith.constant 0 : index
    %504 = vector.load %arg21[%c0_213, %c0_214, %c0_215] : memref<2x1x32xf32, #tpu.memory_space<vmem>>, vector<1x1x32xf32>
    %505 = vector.shape_cast %504 : vector<1x1x32xf32> to vector<1x32xf32>
    %506 = vector.broadcast %505 : vector<1x32xf32> to vector<8x32xf32>
    %507 = arith.addf %503, %506 : vector<8x32xf32>
    %c0_216 = arith.constant 0 : index
    %c0_217 = arith.constant 0 : index
    %c0_218 = arith.constant 0 : index
    %508 = vector.load %arg22[%c0_216, %c0_217, %c0_218] : memref<2x32x64xf32, #tpu.memory_space<vmem>>, vector<1x32x64xf32>
    %509 = vector.shape_cast %508 : vector<1x32x64xf32> to vector<32x64xf32>
    %cst_219 = arith.constant dense<0.000000e+00> : vector<8x64xf32>
    %510 = tpu.matmul %363, %509, %cst_219 {dimension_numbers = #tpu.dot_dimension_numbers<[1], [0], [0], [1], [0, 0, 1, 1], [], []>} : vector<8x32xf32>, vector<32x64xf32>, vector<8x64xf32> -> vector<8x64xf32>
    %c0_220 = arith.constant 0 : index
    %c0_221 = arith.constant 0 : index
    %c0_222 = arith.constant 0 : index
    %511 = vector.load %arg23[%c0_220, %c0_221, %c0_222] : memref<2x1x64xf32, #tpu.memory_space<vmem>>, vector<1x1x64xf32>
    %512 = vector.shape_cast %511 : vector<1x1x64xf32> to vector<1x64xf32>
    %513 = vector.broadcast %512 : vector<1x64xf32> to vector<8x64xf32>
    %514 = arith.addf %510, %513 : vector<8x64xf32>
    %515 = vector.extract_strided_slice %514 {offsets = [0, 0], sizes = [8, 32], strides = [1, 1]} : vector<8x64xf32> to vector<8x32xf32>
    %516 = vector.extract_strided_slice %514 {offsets = [0, 32], sizes = [8, 32], strides = [1, 1]} : vector<8x64xf32> to vector<8x32xf32>
    %c0_223 = arith.constant 0 : index
    %c0_224 = arith.constant 0 : index
    %c0_225 = arith.constant 0 : index
    %517 = vector.load %arg24[%c0_223, %c0_224, %c0_225] : memref<2x32x32xf32, #tpu.memory_space<vmem>>, vector<1x32x32xf32>
    %518 = vector.shape_cast %517 : vector<1x32x32xf32> to vector<32x32xf32>
    %c0_226 = arith.constant 0 : index
    %c0_227 = arith.constant 0 : index
    %c0_228 = arith.constant 0 : index
    %519 = vector.load %arg25[%c0_226, %c0_227, %c0_228] : memref<2x1x32xf32, #tpu.memory_space<vmem>>, vector<1x1x32xf32>
    %520 = vector.shape_cast %519 : vector<1x1x32xf32> to vector<1x32xf32>
    %521 = vector.extract_strided_slice %507 {offsets = [0, 0], sizes = [8, 8], strides = [1, 1]} : vector<8x32xf32> to vector<8x8xf32>
    %522 = vector.extract_strided_slice %515 {offsets = [0, 0], sizes = [8, 8], strides = [1, 1]} : vector<8x32xf32> to vector<8x8xf32>
    %cst_229 = arith.constant dense<0.000000e+00> : vector<8x8xf32>
    %523 = tpu.matmul %521, %522, %cst_229 {dimension_numbers = #tpu.dot_dimension_numbers<[1], [1], [0], [0], [0, 0, 1, 0], [], []>} : vector<8x8xf32>, vector<8x8xf32>, vector<8x8xf32> -> vector<8x8xf32>
    %cst_230 = arith.constant 0.353553385 : f32
    %524 = vector.broadcast %cst_230 : f32 to vector<8x8xf32>
    %525 = arith.mulf %523, %524 : vector<8x8xf32>
    %cst_231 = arith.constant dense<0xFF800000> : vector<8xf32>
    %526 = vector.multi_reduction <maximumf>, %525, %cst_231 [1] : vector<8x8xf32> to vector<8xf32>
    %527 = vector.shape_cast %526 : vector<8xf32> to vector<8x1xf32>
    %528 = vector.broadcast %527 : vector<8x1xf32> to vector<8x8xf32>
    %529 = arith.subf %525, %528 : vector<8x8xf32>
    %530 = math.exp %529 : vector<8x8xf32>
    %cst_232 = arith.constant dense<0.000000e+00> : vector<8xf32>
    %531 = vector.multi_reduction <add>, %530, %cst_232 [1] : vector<8x8xf32> to vector<8xf32>
    %532 = vector.shape_cast %531 : vector<8xf32> to vector<8x1xf32>
    %533 = vector.broadcast %532 : vector<8x1xf32> to vector<8x8xf32>
    %534 = arith.divf %530, %533 : vector<8x8xf32>
    %535 = vector.extract_strided_slice %516 {offsets = [0, 0], sizes = [8, 8], strides = [1, 1]} : vector<8x32xf32> to vector<8x8xf32>
    %cst_233 = arith.constant dense<0.000000e+00> : vector<8x8xf32>
    %536 = tpu.matmul %534, %535, %cst_233 {dimension_numbers = #tpu.dot_dimension_numbers<[1], [0], [0], [1], [0, 0, 1, 1], [], []>} : vector<8x8xf32>, vector<8x8xf32>, vector<8x8xf32> -> vector<8x8xf32>
    %537 = vector.extract_strided_slice %518 {offsets = [0, 0], sizes = [8, 32], strides = [1, 1]} : vector<32x32xf32> to vector<8x32xf32>
    %cst_234 = arith.constant dense<0.000000e+00> : vector<8x32xf32>
    %538 = tpu.matmul %536, %537, %cst_234 {dimension_numbers = #tpu.dot_dimension_numbers<[1], [0], [0], [1], [0, 0, 1, 1], [], []>} : vector<8x8xf32>, vector<8x32xf32>, vector<8x32xf32> -> vector<8x32xf32>
    %539 = vector.extract_strided_slice %507 {offsets = [0, 8], sizes = [8, 8], strides = [1, 1]} : vector<8x32xf32> to vector<8x8xf32>
    %540 = vector.extract_strided_slice %515 {offsets = [0, 8], sizes = [8, 8], strides = [1, 1]} : vector<8x32xf32> to vector<8x8xf32>
    %cst_235 = arith.constant dense<0.000000e+00> : vector<8x8xf32>
    %541 = tpu.matmul %539, %540, %cst_235 {dimension_numbers = #tpu.dot_dimension_numbers<[1], [1], [0], [0], [0, 0, 1, 0], [], []>} : vector<8x8xf32>, vector<8x8xf32>, vector<8x8xf32> -> vector<8x8xf32>
    %cst_236 = arith.constant 0.353553385 : f32
    %542 = vector.broadcast %cst_236 : f32 to vector<8x8xf32>
    %543 = arith.mulf %541, %542 : vector<8x8xf32>
    %cst_237 = arith.constant dense<0xFF800000> : vector<8xf32>
    %544 = vector.multi_reduction <maximumf>, %543, %cst_237 [1] : vector<8x8xf32> to vector<8xf32>
    %545 = vector.shape_cast %544 : vector<8xf32> to vector<8x1xf32>
    %546 = vector.broadcast %545 : vector<8x1xf32> to vector<8x8xf32>
    %547 = arith.subf %543, %546 : vector<8x8xf32>
    %548 = math.exp %547 : vector<8x8xf32>
    %cst_238 = arith.constant dense<0.000000e+00> : vector<8xf32>
    %549 = vector.multi_reduction <add>, %548, %cst_238 [1] : vector<8x8xf32> to vector<8xf32>
    %550 = vector.shape_cast %549 : vector<8xf32> to vector<8x1xf32>
    %551 = vector.broadcast %550 : vector<8x1xf32> to vector<8x8xf32>
    %552 = arith.divf %548, %551 : vector<8x8xf32>
    %553 = vector.extract_strided_slice %516 {offsets = [0, 8], sizes = [8, 8], strides = [1, 1]} : vector<8x32xf32> to vector<8x8xf32>
    %cst_239 = arith.constant dense<0.000000e+00> : vector<8x8xf32>
    %554 = tpu.matmul %552, %553, %cst_239 {dimension_numbers = #tpu.dot_dimension_numbers<[1], [0], [0], [1], [0, 0, 1, 1], [], []>} : vector<8x8xf32>, vector<8x8xf32>, vector<8x8xf32> -> vector<8x8xf32>
    %555 = vector.extract_strided_slice %518 {offsets = [8, 0], sizes = [8, 32], strides = [1, 1]} : vector<32x32xf32> to vector<8x32xf32>
    %cst_240 = arith.constant dense<0.000000e+00> : vector<8x32xf32>
    %556 = tpu.matmul %554, %555, %cst_240 {dimension_numbers = #tpu.dot_dimension_numbers<[1], [0], [0], [1], [0, 0, 1, 1], [], []>} : vector<8x8xf32>, vector<8x32xf32>, vector<8x32xf32> -> vector<8x32xf32>
    %557 = arith.addf %538, %556 : vector<8x32xf32>
    %558 = vector.extract_strided_slice %507 {offsets = [0, 16], sizes = [8, 8], strides = [1, 1]} : vector<8x32xf32> to vector<8x8xf32>
    %559 = vector.extract_strided_slice %515 {offsets = [0, 16], sizes = [8, 8], strides = [1, 1]} : vector<8x32xf32> to vector<8x8xf32>
    %cst_241 = arith.constant dense<0.000000e+00> : vector<8x8xf32>
    %560 = tpu.matmul %558, %559, %cst_241 {dimension_numbers = #tpu.dot_dimension_numbers<[1], [1], [0], [0], [0, 0, 1, 0], [], []>} : vector<8x8xf32>, vector<8x8xf32>, vector<8x8xf32> -> vector<8x8xf32>
    %cst_242 = arith.constant 0.353553385 : f32
    %561 = vector.broadcast %cst_242 : f32 to vector<8x8xf32>
    %562 = arith.mulf %560, %561 : vector<8x8xf32>
    %cst_243 = arith.constant dense<0xFF800000> : vector<8xf32>
    %563 = vector.multi_reduction <maximumf>, %562, %cst_243 [1] : vector<8x8xf32> to vector<8xf32>
    %564 = vector.shape_cast %563 : vector<8xf32> to vector<8x1xf32>
    %565 = vector.broadcast %564 : vector<8x1xf32> to vector<8x8xf32>
    %566 = arith.subf %562, %565 : vector<8x8xf32>
    %567 = math.exp %566 : vector<8x8xf32>
    %cst_244 = arith.constant dense<0.000000e+00> : vector<8xf32>
    %568 = vector.multi_reduction <add>, %567, %cst_244 [1] : vector<8x8xf32> to vector<8xf32>
    %569 = vector.shape_cast %568 : vector<8xf32> to vector<8x1xf32>
    %570 = vector.broadcast %569 : vector<8x1xf32> to vector<8x8xf32>
    %571 = arith.divf %567, %570 : vector<8x8xf32>
    %572 = vector.extract_strided_slice %516 {offsets = [0, 16], sizes = [8, 8], strides = [1, 1]} : vector<8x32xf32> to vector<8x8xf32>
    %cst_245 = arith.constant dense<0.000000e+00> : vector<8x8xf32>
    %573 = tpu.matmul %571, %572, %cst_245 {dimension_numbers = #tpu.dot_dimension_numbers<[1], [0], [0], [1], [0, 0, 1, 1], [], []>} : vector<8x8xf32>, vector<8x8xf32>, vector<8x8xf32> -> vector<8x8xf32>
    %574 = vector.extract_strided_slice %518 {offsets = [16, 0], sizes = [8, 32], strides = [1, 1]} : vector<32x32xf32> to vector<8x32xf32>
    %cst_246 = arith.constant dense<0.000000e+00> : vector<8x32xf32>
    %575 = tpu.matmul %573, %574, %cst_246 {dimension_numbers = #tpu.dot_dimension_numbers<[1], [0], [0], [1], [0, 0, 1, 1], [], []>} : vector<8x8xf32>, vector<8x32xf32>, vector<8x32xf32> -> vector<8x32xf32>
    %576 = arith.addf %557, %575 : vector<8x32xf32>
    %577 = vector.extract_strided_slice %507 {offsets = [0, 24], sizes = [8, 8], strides = [1, 1]} : vector<8x32xf32> to vector<8x8xf32>
    %578 = vector.extract_strided_slice %515 {offsets = [0, 24], sizes = [8, 8], strides = [1, 1]} : vector<8x32xf32> to vector<8x8xf32>
    %cst_247 = arith.constant dense<0.000000e+00> : vector<8x8xf32>
    %579 = tpu.matmul %577, %578, %cst_247 {dimension_numbers = #tpu.dot_dimension_numbers<[1], [1], [0], [0], [0, 0, 1, 0], [], []>} : vector<8x8xf32>, vector<8x8xf32>, vector<8x8xf32> -> vector<8x8xf32>
    %cst_248 = arith.constant 0.353553385 : f32
    %580 = vector.broadcast %cst_248 : f32 to vector<8x8xf32>
    %581 = arith.mulf %579, %580 : vector<8x8xf32>
    %cst_249 = arith.constant dense<0xFF800000> : vector<8xf32>
    %582 = vector.multi_reduction <maximumf>, %581, %cst_249 [1] : vector<8x8xf32> to vector<8xf32>
    %583 = vector.shape_cast %582 : vector<8xf32> to vector<8x1xf32>
    %584 = vector.broadcast %583 : vector<8x1xf32> to vector<8x8xf32>
    %585 = arith.subf %581, %584 : vector<8x8xf32>
    %586 = math.exp %585 : vector<8x8xf32>
    %cst_250 = arith.constant dense<0.000000e+00> : vector<8xf32>
    %587 = vector.multi_reduction <add>, %586, %cst_250 [1] : vector<8x8xf32> to vector<8xf32>
    %588 = vector.shape_cast %587 : vector<8xf32> to vector<8x1xf32>
    %589 = vector.broadcast %588 : vector<8x1xf32> to vector<8x8xf32>
    %590 = arith.divf %586, %589 : vector<8x8xf32>
    %591 = vector.extract_strided_slice %516 {offsets = [0, 24], sizes = [8, 8], strides = [1, 1]} : vector<8x32xf32> to vector<8x8xf32>
    %cst_251 = arith.constant dense<0.000000e+00> : vector<8x8xf32>
    %592 = tpu.matmul %590, %591, %cst_251 {dimension_numbers = #tpu.dot_dimension_numbers<[1], [0], [0], [1], [0, 0, 1, 1], [], []>} : vector<8x8xf32>, vector<8x8xf32>, vector<8x8xf32> -> vector<8x8xf32>
    %593 = vector.extract_strided_slice %518 {offsets = [24, 0], sizes = [8, 32], strides = [1, 1]} : vector<32x32xf32> to vector<8x32xf32>
    %cst_252 = arith.constant dense<0.000000e+00> : vector<8x32xf32>
    %594 = tpu.matmul %592, %593, %cst_252 {dimension_numbers = #tpu.dot_dimension_numbers<[1], [0], [0], [1], [0, 0, 1, 1], [], []>} : vector<8x8xf32>, vector<8x32xf32>, vector<8x32xf32> -> vector<8x32xf32>
    %595 = arith.addf %576, %594 : vector<8x32xf32>
    %596 = vector.broadcast %520 : vector<1x32xf32> to vector<8x32xf32>
    %597 = arith.addf %595, %596 : vector<8x32xf32>
    %598 = arith.addf %500, %597 : vector<8x32xf32>
    %c0_253 = arith.constant 0 : index
    %c0_254 = arith.constant 0 : index
    %c0_255 = arith.constant 0 : index
    %599 = vector.load %arg27[%c0_253, %c0_254, %c0_255] : memref<2x2x32xf32, #tpu.memory_space<vmem>>, vector<1x2x32xf32>
    %600 = vector.shape_cast %599 : vector<1x2x32xf32> to vector<2x32xf32>
    %601 = vector.extract_strided_slice %600 {offsets = [0, 0], sizes = [1, 32], strides = [1, 1]} : vector<2x32xf32> to vector<1x32xf32>
    %c0_256 = arith.constant 0 : index
    %c0_257 = arith.constant 0 : index
    %c0_258 = arith.constant 0 : index
    %602 = vector.load %arg27[%c0_256, %c0_257, %c0_258] : memref<2x2x32xf32, #tpu.memory_space<vmem>>, vector<1x2x32xf32>
    %603 = vector.shape_cast %602 : vector<1x2x32xf32> to vector<2x32xf32>
    %604 = vector.extract_strided_slice %603 {offsets = [1, 0], sizes = [1, 32], strides = [1, 1]} : vector<2x32xf32> to vector<1x32xf32>
    %cst_259 = arith.constant dense<0.000000e+00> : vector<8xf32>
    %605 = vector.multi_reduction <add>, %598, %cst_259 [1] : vector<8x32xf32> to vector<8xf32>
    %606 = vector.shape_cast %605 : vector<8xf32> to vector<8x1xf32>
    %cst_260 = arith.constant 3.200000e+01 : f32
    %607 = vector.broadcast %cst_260 : f32 to vector<8x1xf32>
    %608 = arith.divf %606, %607 : vector<8x1xf32>
    %609 = vector.broadcast %608 : vector<8x1xf32> to vector<8x32xf32>
    %610 = arith.subf %598, %609 : vector<8x32xf32>
    %611 = vector.broadcast %608 : vector<8x1xf32> to vector<8x32xf32>
    %612 = arith.subf %598, %611 : vector<8x32xf32>
    %613 = arith.mulf %610, %612 : vector<8x32xf32>
    %cst_261 = arith.constant dense<0.000000e+00> : vector<8xf32>
    %614 = vector.multi_reduction <add>, %613, %cst_261 [1] : vector<8x32xf32> to vector<8xf32>
    %615 = vector.shape_cast %614 : vector<8xf32> to vector<8x1xf32>
    %cst_262 = arith.constant 3.200000e+01 : f32
    %616 = vector.broadcast %cst_262 : f32 to vector<8x1xf32>
    %617 = arith.divf %615, %616 : vector<8x1xf32>
    %618 = vector.broadcast %608 : vector<8x1xf32> to vector<8x32xf32>
    %619 = arith.subf %598, %618 : vector<8x32xf32>
    %cst_263 = arith.constant 9.99999974E-6 : f32
    %620 = vector.broadcast %cst_263 : f32 to vector<8x1xf32>
    %621 = arith.addf %617, %620 : vector<8x1xf32>
    %622 = math.rsqrt %621 : vector<8x1xf32>
    %623 = vector.broadcast %622 : vector<8x1xf32> to vector<8x32xf32>
    %624 = arith.mulf %619, %623 : vector<8x32xf32>
    %625 = vector.broadcast %601 : vector<1x32xf32> to vector<8x32xf32>
    %626 = arith.mulf %624, %625 : vector<8x32xf32>
    %627 = vector.broadcast %604 : vector<1x32xf32> to vector<8x32xf32>
    %628 = arith.addf %626, %627 : vector<8x32xf32>
    %c0_264 = arith.constant 0 : index
    %c0_265 = arith.constant 0 : index
    %c0_266 = arith.constant 0 : index
    %629 = vector.load %arg29[%c0_264, %c0_265, %c0_266] : memref<2x32x64xf32, #tpu.memory_space<vmem>>, vector<1x32x64xf32>
    %630 = vector.shape_cast %629 : vector<1x32x64xf32> to vector<32x64xf32>
    %cst_267 = arith.constant dense<0.000000e+00> : vector<8x64xf32>
    %631 = tpu.matmul %628, %630, %cst_267 {dimension_numbers = #tpu.dot_dimension_numbers<[1], [0], [0], [1], [0, 0, 1, 1], [], []>} : vector<8x32xf32>, vector<32x64xf32>, vector<8x64xf32> -> vector<8x64xf32>
    %c0_268 = arith.constant 0 : index
    %c0_269 = arith.constant 0 : index
    %c0_270 = arith.constant 0 : index
    %632 = vector.load %arg30[%c0_268, %c0_269, %c0_270] : memref<2x1x64xf32, #tpu.memory_space<vmem>>, vector<1x1x64xf32>
    %633 = vector.shape_cast %632 : vector<1x1x64xf32> to vector<1x64xf32>
    %634 = vector.broadcast %633 : vector<1x64xf32> to vector<8x64xf32>
    %635 = arith.addf %631, %634 : vector<8x64xf32>
    %cst_271 = arith.constant 0.000000e+00 : f32
    %636 = vector.broadcast %cst_271 : f32 to vector<8x64xf32>
    %637 = arith.maximumf %635, %636 : vector<8x64xf32>
    %c0_272 = arith.constant 0 : index
    %c0_273 = arith.constant 0 : index
    %c0_274 = arith.constant 0 : index
    %638 = vector.load %arg31[%c0_272, %c0_273, %c0_274] : memref<2x64x32xf32, #tpu.memory_space<vmem>>, vector<1x64x32xf32>
    %639 = vector.shape_cast %638 : vector<1x64x32xf32> to vector<64x32xf32>
    %cst_275 = arith.constant dense<0.000000e+00> : vector<8x32xf32>
    %640 = tpu.matmul %637, %639, %cst_275 {dimension_numbers = #tpu.dot_dimension_numbers<[1], [0], [0], [1], [0, 0, 1, 1], [], []>} : vector<8x64xf32>, vector<64x32xf32>, vector<8x32xf32> -> vector<8x32xf32>
    %c0_276 = arith.constant 0 : index
    %c0_277 = arith.constant 0 : index
    %c0_278 = arith.constant 0 : index
    %641 = vector.load %arg32[%c0_276, %c0_277, %c0_278] : memref<2x1x32xf32, #tpu.memory_space<vmem>>, vector<1x1x32xf32>
    %642 = vector.shape_cast %641 : vector<1x1x32xf32> to vector<1x32xf32>
    %643 = vector.broadcast %642 : vector<1x32xf32> to vector<8x32xf32>
    %644 = arith.addf %640, %643 : vector<8x32xf32>
    %645 = arith.addf %628, %644 : vector<8x32xf32>
    %c0_279 = arith.constant 0 : index
    %c0_280 = arith.constant 0 : index
    %c0_281 = arith.constant 0 : index
    %646 = vector.load %arg28[%c0_279, %c0_280, %c0_281] : memref<2x2x32xf32, #tpu.memory_space<vmem>>, vector<1x2x32xf32>
    %647 = vector.shape_cast %646 : vector<1x2x32xf32> to vector<2x32xf32>
    %648 = vector.extract_strided_slice %647 {offsets = [0, 0], sizes = [1, 32], strides = [1, 1]} : vector<2x32xf32> to vector<1x32xf32>
    %c0_282 = arith.constant 0 : index
    %c0_283 = arith.constant 0 : index
    %c0_284 = arith.constant 0 : index
    %649 = vector.load %arg28[%c0_282, %c0_283, %c0_284] : memref<2x2x32xf32, #tpu.memory_space<vmem>>, vector<1x2x32xf32>
    %650 = vector.shape_cast %649 : vector<1x2x32xf32> to vector<2x32xf32>
    %651 = vector.extract_strided_slice %650 {offsets = [1, 0], sizes = [1, 32], strides = [1, 1]} : vector<2x32xf32> to vector<1x32xf32>
    %cst_285 = arith.constant dense<0.000000e+00> : vector<8xf32>
    %652 = vector.multi_reduction <add>, %645, %cst_285 [1] : vector<8x32xf32> to vector<8xf32>
    %653 = vector.shape_cast %652 : vector<8xf32> to vector<8x1xf32>
    %cst_286 = arith.constant 3.200000e+01 : f32
    %654 = vector.broadcast %cst_286 : f32 to vector<8x1xf32>
    %655 = arith.divf %653, %654 : vector<8x1xf32>
    %656 = vector.broadcast %655 : vector<8x1xf32> to vector<8x32xf32>
    %657 = arith.subf %645, %656 : vector<8x32xf32>
    %658 = vector.broadcast %655 : vector<8x1xf32> to vector<8x32xf32>
    %659 = arith.subf %645, %658 : vector<8x32xf32>
    %660 = arith.mulf %657, %659 : vector<8x32xf32>
    %cst_287 = arith.constant dense<0.000000e+00> : vector<8xf32>
    %661 = vector.multi_reduction <add>, %660, %cst_287 [1] : vector<8x32xf32> to vector<8xf32>
    %662 = vector.shape_cast %661 : vector<8xf32> to vector<8x1xf32>
    %cst_288 = arith.constant 3.200000e+01 : f32
    %663 = vector.broadcast %cst_288 : f32 to vector<8x1xf32>
    %664 = arith.divf %662, %663 : vector<8x1xf32>
    %665 = vector.broadcast %655 : vector<8x1xf32> to vector<8x32xf32>
    %666 = arith.subf %645, %665 : vector<8x32xf32>
    %cst_289 = arith.constant 9.99999974E-6 : f32
    %667 = vector.broadcast %cst_289 : f32 to vector<8x1xf32>
    %668 = arith.addf %664, %667 : vector<8x1xf32>
    %669 = math.rsqrt %668 : vector<8x1xf32>
    %670 = vector.broadcast %669 : vector<8x1xf32> to vector<8x32xf32>
    %671 = arith.mulf %666, %670 : vector<8x32xf32>
    %672 = vector.broadcast %648 : vector<1x32xf32> to vector<8x32xf32>
    %673 = arith.mulf %671, %672 : vector<8x32xf32>
    %674 = vector.broadcast %651 : vector<1x32xf32> to vector<8x32xf32>
    %675 = arith.addf %673, %674 : vector<8x32xf32>
    %c1_290 = arith.constant 1 : index
    %c0_291 = arith.constant 0 : index
    %c0_292 = arith.constant 0 : index
    %676 = vector.load %arg16[%c1_290, %c0_291, %c0_292] : memref<2x32x96xf32, #tpu.memory_space<vmem>>, vector<1x32x96xf32>
    %677 = vector.shape_cast %676 : vector<1x32x96xf32> to vector<32x96xf32>
    %cst_293 = arith.constant dense<0.000000e+00> : vector<8x96xf32>
    %678 = tpu.matmul %675, %677, %cst_293 {dimension_numbers = #tpu.dot_dimension_numbers<[1], [0], [0], [1], [0, 0, 1, 1], [], []>} : vector<8x32xf32>, vector<32x96xf32>, vector<8x96xf32> -> vector<8x96xf32>
    %c1_294 = arith.constant 1 : index
    %c0_295 = arith.constant 0 : index
    %c0_296 = arith.constant 0 : index
    %679 = vector.load %arg17[%c1_294, %c0_295, %c0_296] : memref<2x1x96xf32, #tpu.memory_space<vmem>>, vector<1x1x96xf32>
    %680 = vector.shape_cast %679 : vector<1x1x96xf32> to vector<1x96xf32>
    %681 = vector.broadcast %680 : vector<1x96xf32> to vector<8x96xf32>
    %682 = arith.addf %678, %681 : vector<8x96xf32>
    %683 = vector.extract_strided_slice %682 {offsets = [0, 0], sizes = [8, 32], strides = [1, 1]} : vector<8x96xf32> to vector<8x32xf32>
    %684 = vector.extract_strided_slice %682 {offsets = [0, 32], sizes = [8, 32], strides = [1, 1]} : vector<8x96xf32> to vector<8x32xf32>
    %685 = vector.extract_strided_slice %682 {offsets = [0, 64], sizes = [8, 32], strides = [1, 1]} : vector<8x96xf32> to vector<8x32xf32>
    %c1_297 = arith.constant 1 : index
    %c0_298 = arith.constant 0 : index
    %c0_299 = arith.constant 0 : index
    %686 = vector.load %arg18[%c1_297, %c0_298, %c0_299] : memref<2x32x32xf32, #tpu.memory_space<vmem>>, vector<1x32x32xf32>
    %687 = vector.shape_cast %686 : vector<1x32x32xf32> to vector<32x32xf32>
    %c1_300 = arith.constant 1 : index
    %c0_301 = arith.constant 0 : index
    %c0_302 = arith.constant 0 : index
    %688 = vector.load %arg19[%c1_300, %c0_301, %c0_302] : memref<2x1x32xf32, #tpu.memory_space<vmem>>, vector<1x1x32xf32>
    %689 = vector.shape_cast %688 : vector<1x1x32xf32> to vector<1x32xf32>
    %690 = vector.extract_strided_slice %683 {offsets = [0, 0], sizes = [8, 8], strides = [1, 1]} : vector<8x32xf32> to vector<8x8xf32>
    %691 = vector.extract_strided_slice %684 {offsets = [0, 0], sizes = [8, 8], strides = [1, 1]} : vector<8x32xf32> to vector<8x8xf32>
    %cst_303 = arith.constant dense<0.000000e+00> : vector<8x8xf32>
    %692 = tpu.matmul %690, %691, %cst_303 {dimension_numbers = #tpu.dot_dimension_numbers<[1], [1], [0], [0], [0, 0, 1, 0], [], []>} : vector<8x8xf32>, vector<8x8xf32>, vector<8x8xf32> -> vector<8x8xf32>
    %cst_304 = arith.constant 0.353553385 : f32
    %693 = vector.broadcast %cst_304 : f32 to vector<8x8xf32>
    %694 = arith.mulf %692, %693 : vector<8x8xf32>
    %695 = arith.addf %694, %6 : vector<8x8xf32>
    %cst_305 = arith.constant dense<0xFF800000> : vector<8xf32>
    %696 = vector.multi_reduction <maximumf>, %695, %cst_305 [1] : vector<8x8xf32> to vector<8xf32>
    %697 = vector.shape_cast %696 : vector<8xf32> to vector<8x1xf32>
    %698 = vector.broadcast %697 : vector<8x1xf32> to vector<8x8xf32>
    %699 = arith.subf %695, %698 : vector<8x8xf32>
    %700 = math.exp %699 : vector<8x8xf32>
    %cst_306 = arith.constant dense<0.000000e+00> : vector<8xf32>
    %701 = vector.multi_reduction <add>, %700, %cst_306 [1] : vector<8x8xf32> to vector<8xf32>
    %702 = vector.shape_cast %701 : vector<8xf32> to vector<8x1xf32>
    %703 = vector.broadcast %702 : vector<8x1xf32> to vector<8x8xf32>
    %704 = arith.divf %700, %703 : vector<8x8xf32>
    %705 = vector.extract_strided_slice %685 {offsets = [0, 0], sizes = [8, 8], strides = [1, 1]} : vector<8x32xf32> to vector<8x8xf32>
    %cst_307 = arith.constant dense<0.000000e+00> : vector<8x8xf32>
    %706 = tpu.matmul %704, %705, %cst_307 {dimension_numbers = #tpu.dot_dimension_numbers<[1], [0], [0], [1], [0, 0, 1, 1], [], []>} : vector<8x8xf32>, vector<8x8xf32>, vector<8x8xf32> -> vector<8x8xf32>
    %707 = vector.extract_strided_slice %687 {offsets = [0, 0], sizes = [8, 32], strides = [1, 1]} : vector<32x32xf32> to vector<8x32xf32>
    %cst_308 = arith.constant dense<0.000000e+00> : vector<8x32xf32>
    %708 = tpu.matmul %706, %707, %cst_308 {dimension_numbers = #tpu.dot_dimension_numbers<[1], [0], [0], [1], [0, 0, 1, 1], [], []>} : vector<8x8xf32>, vector<8x32xf32>, vector<8x32xf32> -> vector<8x32xf32>
    %709 = vector.extract_strided_slice %683 {offsets = [0, 8], sizes = [8, 8], strides = [1, 1]} : vector<8x32xf32> to vector<8x8xf32>
    %710 = vector.extract_strided_slice %684 {offsets = [0, 8], sizes = [8, 8], strides = [1, 1]} : vector<8x32xf32> to vector<8x8xf32>
    %cst_309 = arith.constant dense<0.000000e+00> : vector<8x8xf32>
    %711 = tpu.matmul %709, %710, %cst_309 {dimension_numbers = #tpu.dot_dimension_numbers<[1], [1], [0], [0], [0, 0, 1, 0], [], []>} : vector<8x8xf32>, vector<8x8xf32>, vector<8x8xf32> -> vector<8x8xf32>
    %cst_310 = arith.constant 0.353553385 : f32
    %712 = vector.broadcast %cst_310 : f32 to vector<8x8xf32>
    %713 = arith.mulf %711, %712 : vector<8x8xf32>
    %714 = arith.addf %713, %6 : vector<8x8xf32>
    %cst_311 = arith.constant dense<0xFF800000> : vector<8xf32>
    %715 = vector.multi_reduction <maximumf>, %714, %cst_311 [1] : vector<8x8xf32> to vector<8xf32>
    %716 = vector.shape_cast %715 : vector<8xf32> to vector<8x1xf32>
    %717 = vector.broadcast %716 : vector<8x1xf32> to vector<8x8xf32>
    %718 = arith.subf %714, %717 : vector<8x8xf32>
    %719 = math.exp %718 : vector<8x8xf32>
    %cst_312 = arith.constant dense<0.000000e+00> : vector<8xf32>
    %720 = vector.multi_reduction <add>, %719, %cst_312 [1] : vector<8x8xf32> to vector<8xf32>
    %721 = vector.shape_cast %720 : vector<8xf32> to vector<8x1xf32>
    %722 = vector.broadcast %721 : vector<8x1xf32> to vector<8x8xf32>
    %723 = arith.divf %719, %722 : vector<8x8xf32>
    %724 = vector.extract_strided_slice %685 {offsets = [0, 8], sizes = [8, 8], strides = [1, 1]} : vector<8x32xf32> to vector<8x8xf32>
    %cst_313 = arith.constant dense<0.000000e+00> : vector<8x8xf32>
    %725 = tpu.matmul %723, %724, %cst_313 {dimension_numbers = #tpu.dot_dimension_numbers<[1], [0], [0], [1], [0, 0, 1, 1], [], []>} : vector<8x8xf32>, vector<8x8xf32>, vector<8x8xf32> -> vector<8x8xf32>
    %726 = vector.extract_strided_slice %687 {offsets = [8, 0], sizes = [8, 32], strides = [1, 1]} : vector<32x32xf32> to vector<8x32xf32>
    %cst_314 = arith.constant dense<0.000000e+00> : vector<8x32xf32>
    %727 = tpu.matmul %725, %726, %cst_314 {dimension_numbers = #tpu.dot_dimension_numbers<[1], [0], [0], [1], [0, 0, 1, 1], [], []>} : vector<8x8xf32>, vector<8x32xf32>, vector<8x32xf32> -> vector<8x32xf32>
    %728 = arith.addf %708, %727 : vector<8x32xf32>
    %729 = vector.extract_strided_slice %683 {offsets = [0, 16], sizes = [8, 8], strides = [1, 1]} : vector<8x32xf32> to vector<8x8xf32>
    %730 = vector.extract_strided_slice %684 {offsets = [0, 16], sizes = [8, 8], strides = [1, 1]} : vector<8x32xf32> to vector<8x8xf32>
    %cst_315 = arith.constant dense<0.000000e+00> : vector<8x8xf32>
    %731 = tpu.matmul %729, %730, %cst_315 {dimension_numbers = #tpu.dot_dimension_numbers<[1], [1], [0], [0], [0, 0, 1, 0], [], []>} : vector<8x8xf32>, vector<8x8xf32>, vector<8x8xf32> -> vector<8x8xf32>
    %cst_316 = arith.constant 0.353553385 : f32
    %732 = vector.broadcast %cst_316 : f32 to vector<8x8xf32>
    %733 = arith.mulf %731, %732 : vector<8x8xf32>
    %734 = arith.addf %733, %6 : vector<8x8xf32>
    %cst_317 = arith.constant dense<0xFF800000> : vector<8xf32>
    %735 = vector.multi_reduction <maximumf>, %734, %cst_317 [1] : vector<8x8xf32> to vector<8xf32>
    %736 = vector.shape_cast %735 : vector<8xf32> to vector<8x1xf32>
    %737 = vector.broadcast %736 : vector<8x1xf32> to vector<8x8xf32>
    %738 = arith.subf %734, %737 : vector<8x8xf32>
    %739 = math.exp %738 : vector<8x8xf32>
    %cst_318 = arith.constant dense<0.000000e+00> : vector<8xf32>
    %740 = vector.multi_reduction <add>, %739, %cst_318 [1] : vector<8x8xf32> to vector<8xf32>
    %741 = vector.shape_cast %740 : vector<8xf32> to vector<8x1xf32>
    %742 = vector.broadcast %741 : vector<8x1xf32> to vector<8x8xf32>
    %743 = arith.divf %739, %742 : vector<8x8xf32>
    %744 = vector.extract_strided_slice %685 {offsets = [0, 16], sizes = [8, 8], strides = [1, 1]} : vector<8x32xf32> to vector<8x8xf32>
    %cst_319 = arith.constant dense<0.000000e+00> : vector<8x8xf32>
    %745 = tpu.matmul %743, %744, %cst_319 {dimension_numbers = #tpu.dot_dimension_numbers<[1], [0], [0], [1], [0, 0, 1, 1], [], []>} : vector<8x8xf32>, vector<8x8xf32>, vector<8x8xf32> -> vector<8x8xf32>
    %746 = vector.extract_strided_slice %687 {offsets = [16, 0], sizes = [8, 32], strides = [1, 1]} : vector<32x32xf32> to vector<8x32xf32>
    %cst_320 = arith.constant dense<0.000000e+00> : vector<8x32xf32>
    %747 = tpu.matmul %745, %746, %cst_320 {dimension_numbers = #tpu.dot_dimension_numbers<[1], [0], [0], [1], [0, 0, 1, 1], [], []>} : vector<8x8xf32>, vector<8x32xf32>, vector<8x32xf32> -> vector<8x32xf32>
    %748 = arith.addf %728, %747 : vector<8x32xf32>
    %749 = vector.extract_strided_slice %683 {offsets = [0, 24], sizes = [8, 8], strides = [1, 1]} : vector<8x32xf32> to vector<8x8xf32>
    %750 = vector.extract_strided_slice %684 {offsets = [0, 24], sizes = [8, 8], strides = [1, 1]} : vector<8x32xf32> to vector<8x8xf32>
    %cst_321 = arith.constant dense<0.000000e+00> : vector<8x8xf32>
    %751 = tpu.matmul %749, %750, %cst_321 {dimension_numbers = #tpu.dot_dimension_numbers<[1], [1], [0], [0], [0, 0, 1, 0], [], []>} : vector<8x8xf32>, vector<8x8xf32>, vector<8x8xf32> -> vector<8x8xf32>
    %cst_322 = arith.constant 0.353553385 : f32
    %752 = vector.broadcast %cst_322 : f32 to vector<8x8xf32>
    %753 = arith.mulf %751, %752 : vector<8x8xf32>
    %754 = arith.addf %753, %6 : vector<8x8xf32>
    %cst_323 = arith.constant dense<0xFF800000> : vector<8xf32>
    %755 = vector.multi_reduction <maximumf>, %754, %cst_323 [1] : vector<8x8xf32> to vector<8xf32>
    %756 = vector.shape_cast %755 : vector<8xf32> to vector<8x1xf32>
    %757 = vector.broadcast %756 : vector<8x1xf32> to vector<8x8xf32>
    %758 = arith.subf %754, %757 : vector<8x8xf32>
    %759 = math.exp %758 : vector<8x8xf32>
    %cst_324 = arith.constant dense<0.000000e+00> : vector<8xf32>
    %760 = vector.multi_reduction <add>, %759, %cst_324 [1] : vector<8x8xf32> to vector<8xf32>
    %761 = vector.shape_cast %760 : vector<8xf32> to vector<8x1xf32>
    %762 = vector.broadcast %761 : vector<8x1xf32> to vector<8x8xf32>
    %763 = arith.divf %759, %762 : vector<8x8xf32>
    %764 = vector.extract_strided_slice %685 {offsets = [0, 24], sizes = [8, 8], strides = [1, 1]} : vector<8x32xf32> to vector<8x8xf32>
    %cst_325 = arith.constant dense<0.000000e+00> : vector<8x8xf32>
    %765 = tpu.matmul %763, %764, %cst_325 {dimension_numbers = #tpu.dot_dimension_numbers<[1], [0], [0], [1], [0, 0, 1, 1], [], []>} : vector<8x8xf32>, vector<8x8xf32>, vector<8x8xf32> -> vector<8x8xf32>
    %766 = vector.extract_strided_slice %687 {offsets = [24, 0], sizes = [8, 32], strides = [1, 1]} : vector<32x32xf32> to vector<8x32xf32>
    %cst_326 = arith.constant dense<0.000000e+00> : vector<8x32xf32>
    %767 = tpu.matmul %765, %766, %cst_326 {dimension_numbers = #tpu.dot_dimension_numbers<[1], [0], [0], [1], [0, 0, 1, 1], [], []>} : vector<8x8xf32>, vector<8x32xf32>, vector<8x32xf32> -> vector<8x32xf32>
    %768 = arith.addf %748, %767 : vector<8x32xf32>
    %769 = vector.broadcast %689 : vector<1x32xf32> to vector<8x32xf32>
    %770 = arith.addf %768, %769 : vector<8x32xf32>
    %771 = arith.addf %675, %770 : vector<8x32xf32>
    %c1_327 = arith.constant 1 : index
    %c0_328 = arith.constant 0 : index
    %c0_329 = arith.constant 0 : index
    %772 = vector.load %arg26[%c1_327, %c0_328, %c0_329] : memref<2x2x32xf32, #tpu.memory_space<vmem>>, vector<1x2x32xf32>
    %773 = vector.shape_cast %772 : vector<1x2x32xf32> to vector<2x32xf32>
    %774 = vector.extract_strided_slice %773 {offsets = [0, 0], sizes = [1, 32], strides = [1, 1]} : vector<2x32xf32> to vector<1x32xf32>
    %c1_330 = arith.constant 1 : index
    %c0_331 = arith.constant 0 : index
    %c0_332 = arith.constant 0 : index
    %775 = vector.load %arg26[%c1_330, %c0_331, %c0_332] : memref<2x2x32xf32, #tpu.memory_space<vmem>>, vector<1x2x32xf32>
    %776 = vector.shape_cast %775 : vector<1x2x32xf32> to vector<2x32xf32>
    %777 = vector.extract_strided_slice %776 {offsets = [1, 0], sizes = [1, 32], strides = [1, 1]} : vector<2x32xf32> to vector<1x32xf32>
    %cst_333 = arith.constant dense<0.000000e+00> : vector<8xf32>
    %778 = vector.multi_reduction <add>, %771, %cst_333 [1] : vector<8x32xf32> to vector<8xf32>
    %779 = vector.shape_cast %778 : vector<8xf32> to vector<8x1xf32>
    %cst_334 = arith.constant 3.200000e+01 : f32
    %780 = vector.broadcast %cst_334 : f32 to vector<8x1xf32>
    %781 = arith.divf %779, %780 : vector<8x1xf32>
    %782 = vector.broadcast %781 : vector<8x1xf32> to vector<8x32xf32>
    %783 = arith.subf %771, %782 : vector<8x32xf32>
    %784 = vector.broadcast %781 : vector<8x1xf32> to vector<8x32xf32>
    %785 = arith.subf %771, %784 : vector<8x32xf32>
    %786 = arith.mulf %783, %785 : vector<8x32xf32>
    %cst_335 = arith.constant dense<0.000000e+00> : vector<8xf32>
    %787 = vector.multi_reduction <add>, %786, %cst_335 [1] : vector<8x32xf32> to vector<8xf32>
    %788 = vector.shape_cast %787 : vector<8xf32> to vector<8x1xf32>
    %cst_336 = arith.constant 3.200000e+01 : f32
    %789 = vector.broadcast %cst_336 : f32 to vector<8x1xf32>
    %790 = arith.divf %788, %789 : vector<8x1xf32>
    %791 = vector.broadcast %781 : vector<8x1xf32> to vector<8x32xf32>
    %792 = arith.subf %771, %791 : vector<8x32xf32>
    %cst_337 = arith.constant 9.99999974E-6 : f32
    %793 = vector.broadcast %cst_337 : f32 to vector<8x1xf32>
    %794 = arith.addf %790, %793 : vector<8x1xf32>
    %795 = math.rsqrt %794 : vector<8x1xf32>
    %796 = vector.broadcast %795 : vector<8x1xf32> to vector<8x32xf32>
    %797 = arith.mulf %792, %796 : vector<8x32xf32>
    %798 = vector.broadcast %774 : vector<1x32xf32> to vector<8x32xf32>
    %799 = arith.mulf %797, %798 : vector<8x32xf32>
    %800 = vector.broadcast %777 : vector<1x32xf32> to vector<8x32xf32>
    %801 = arith.addf %799, %800 : vector<8x32xf32>
    %c1_338 = arith.constant 1 : index
    %c0_339 = arith.constant 0 : index
    %c0_340 = arith.constant 0 : index
    %802 = vector.load %arg20[%c1_338, %c0_339, %c0_340] : memref<2x32x32xf32, #tpu.memory_space<vmem>>, vector<1x32x32xf32>
    %803 = vector.shape_cast %802 : vector<1x32x32xf32> to vector<32x32xf32>
    %cst_341 = arith.constant dense<0.000000e+00> : vector<8x32xf32>
    %804 = tpu.matmul %801, %803, %cst_341 {dimension_numbers = #tpu.dot_dimension_numbers<[1], [0], [0], [1], [0, 0, 1, 1], [], []>} : vector<8x32xf32>, vector<32x32xf32>, vector<8x32xf32> -> vector<8x32xf32>
    %c1_342 = arith.constant 1 : index
    %c0_343 = arith.constant 0 : index
    %c0_344 = arith.constant 0 : index
    %805 = vector.load %arg21[%c1_342, %c0_343, %c0_344] : memref<2x1x32xf32, #tpu.memory_space<vmem>>, vector<1x1x32xf32>
    %806 = vector.shape_cast %805 : vector<1x1x32xf32> to vector<1x32xf32>
    %807 = vector.broadcast %806 : vector<1x32xf32> to vector<8x32xf32>
    %808 = arith.addf %804, %807 : vector<8x32xf32>
    %c1_345 = arith.constant 1 : index
    %c0_346 = arith.constant 0 : index
    %c0_347 = arith.constant 0 : index
    %809 = vector.load %arg22[%c1_345, %c0_346, %c0_347] : memref<2x32x64xf32, #tpu.memory_space<vmem>>, vector<1x32x64xf32>
    %810 = vector.shape_cast %809 : vector<1x32x64xf32> to vector<32x64xf32>
    %cst_348 = arith.constant dense<0.000000e+00> : vector<8x64xf32>
    %811 = tpu.matmul %363, %810, %cst_348 {dimension_numbers = #tpu.dot_dimension_numbers<[1], [0], [0], [1], [0, 0, 1, 1], [], []>} : vector<8x32xf32>, vector<32x64xf32>, vector<8x64xf32> -> vector<8x64xf32>
    %c1_349 = arith.constant 1 : index
    %c0_350 = arith.constant 0 : index
    %c0_351 = arith.constant 0 : index
    %812 = vector.load %arg23[%c1_349, %c0_350, %c0_351] : memref<2x1x64xf32, #tpu.memory_space<vmem>>, vector<1x1x64xf32>
    %813 = vector.shape_cast %812 : vector<1x1x64xf32> to vector<1x64xf32>
    %814 = vector.broadcast %813 : vector<1x64xf32> to vector<8x64xf32>
    %815 = arith.addf %811, %814 : vector<8x64xf32>
    %816 = vector.extract_strided_slice %815 {offsets = [0, 0], sizes = [8, 32], strides = [1, 1]} : vector<8x64xf32> to vector<8x32xf32>
    %817 = vector.extract_strided_slice %815 {offsets = [0, 32], sizes = [8, 32], strides = [1, 1]} : vector<8x64xf32> to vector<8x32xf32>
    %c1_352 = arith.constant 1 : index
    %c0_353 = arith.constant 0 : index
    %c0_354 = arith.constant 0 : index
    %818 = vector.load %arg24[%c1_352, %c0_353, %c0_354] : memref<2x32x32xf32, #tpu.memory_space<vmem>>, vector<1x32x32xf32>
    %819 = vector.shape_cast %818 : vector<1x32x32xf32> to vector<32x32xf32>
    %c1_355 = arith.constant 1 : index
    %c0_356 = arith.constant 0 : index
    %c0_357 = arith.constant 0 : index
    %820 = vector.load %arg25[%c1_355, %c0_356, %c0_357] : memref<2x1x32xf32, #tpu.memory_space<vmem>>, vector<1x1x32xf32>
    %821 = vector.shape_cast %820 : vector<1x1x32xf32> to vector<1x32xf32>
    %822 = vector.extract_strided_slice %808 {offsets = [0, 0], sizes = [8, 8], strides = [1, 1]} : vector<8x32xf32> to vector<8x8xf32>
    %823 = vector.extract_strided_slice %816 {offsets = [0, 0], sizes = [8, 8], strides = [1, 1]} : vector<8x32xf32> to vector<8x8xf32>
    %cst_358 = arith.constant dense<0.000000e+00> : vector<8x8xf32>
    %824 = tpu.matmul %822, %823, %cst_358 {dimension_numbers = #tpu.dot_dimension_numbers<[1], [1], [0], [0], [0, 0, 1, 0], [], []>} : vector<8x8xf32>, vector<8x8xf32>, vector<8x8xf32> -> vector<8x8xf32>
    %cst_359 = arith.constant 0.353553385 : f32
    %825 = vector.broadcast %cst_359 : f32 to vector<8x8xf32>
    %826 = arith.mulf %824, %825 : vector<8x8xf32>
    %cst_360 = arith.constant dense<0xFF800000> : vector<8xf32>
    %827 = vector.multi_reduction <maximumf>, %826, %cst_360 [1] : vector<8x8xf32> to vector<8xf32>
    %828 = vector.shape_cast %827 : vector<8xf32> to vector<8x1xf32>
    %829 = vector.broadcast %828 : vector<8x1xf32> to vector<8x8xf32>
    %830 = arith.subf %826, %829 : vector<8x8xf32>
    %831 = math.exp %830 : vector<8x8xf32>
    %cst_361 = arith.constant dense<0.000000e+00> : vector<8xf32>
    %832 = vector.multi_reduction <add>, %831, %cst_361 [1] : vector<8x8xf32> to vector<8xf32>
    %833 = vector.shape_cast %832 : vector<8xf32> to vector<8x1xf32>
    %834 = vector.broadcast %833 : vector<8x1xf32> to vector<8x8xf32>
    %835 = arith.divf %831, %834 : vector<8x8xf32>
    %836 = vector.extract_strided_slice %817 {offsets = [0, 0], sizes = [8, 8], strides = [1, 1]} : vector<8x32xf32> to vector<8x8xf32>
    %cst_362 = arith.constant dense<0.000000e+00> : vector<8x8xf32>
    %837 = tpu.matmul %835, %836, %cst_362 {dimension_numbers = #tpu.dot_dimension_numbers<[1], [0], [0], [1], [0, 0, 1, 1], [], []>} : vector<8x8xf32>, vector<8x8xf32>, vector<8x8xf32> -> vector<8x8xf32>
    %838 = vector.extract_strided_slice %819 {offsets = [0, 0], sizes = [8, 32], strides = [1, 1]} : vector<32x32xf32> to vector<8x32xf32>
    %cst_363 = arith.constant dense<0.000000e+00> : vector<8x32xf32>
    %839 = tpu.matmul %837, %838, %cst_363 {dimension_numbers = #tpu.dot_dimension_numbers<[1], [0], [0], [1], [0, 0, 1, 1], [], []>} : vector<8x8xf32>, vector<8x32xf32>, vector<8x32xf32> -> vector<8x32xf32>
    %840 = vector.extract_strided_slice %808 {offsets = [0, 8], sizes = [8, 8], strides = [1, 1]} : vector<8x32xf32> to vector<8x8xf32>
    %841 = vector.extract_strided_slice %816 {offsets = [0, 8], sizes = [8, 8], strides = [1, 1]} : vector<8x32xf32> to vector<8x8xf32>
    %cst_364 = arith.constant dense<0.000000e+00> : vector<8x8xf32>
    %842 = tpu.matmul %840, %841, %cst_364 {dimension_numbers = #tpu.dot_dimension_numbers<[1], [1], [0], [0], [0, 0, 1, 0], [], []>} : vector<8x8xf32>, vector<8x8xf32>, vector<8x8xf32> -> vector<8x8xf32>
    %cst_365 = arith.constant 0.353553385 : f32
    %843 = vector.broadcast %cst_365 : f32 to vector<8x8xf32>
    %844 = arith.mulf %842, %843 : vector<8x8xf32>
    %cst_366 = arith.constant dense<0xFF800000> : vector<8xf32>
    %845 = vector.multi_reduction <maximumf>, %844, %cst_366 [1] : vector<8x8xf32> to vector<8xf32>
    %846 = vector.shape_cast %845 : vector<8xf32> to vector<8x1xf32>
    %847 = vector.broadcast %846 : vector<8x1xf32> to vector<8x8xf32>
    %848 = arith.subf %844, %847 : vector<8x8xf32>
    %849 = math.exp %848 : vector<8x8xf32>
    %cst_367 = arith.constant dense<0.000000e+00> : vector<8xf32>
    %850 = vector.multi_reduction <add>, %849, %cst_367 [1] : vector<8x8xf32> to vector<8xf32>
    %851 = vector.shape_cast %850 : vector<8xf32> to vector<8x1xf32>
    %852 = vector.broadcast %851 : vector<8x1xf32> to vector<8x8xf32>
    %853 = arith.divf %849, %852 : vector<8x8xf32>
    %854 = vector.extract_strided_slice %817 {offsets = [0, 8], sizes = [8, 8], strides = [1, 1]} : vector<8x32xf32> to vector<8x8xf32>
    %cst_368 = arith.constant dense<0.000000e+00> : vector<8x8xf32>
    %855 = tpu.matmul %853, %854, %cst_368 {dimension_numbers = #tpu.dot_dimension_numbers<[1], [0], [0], [1], [0, 0, 1, 1], [], []>} : vector<8x8xf32>, vector<8x8xf32>, vector<8x8xf32> -> vector<8x8xf32>
    %856 = vector.extract_strided_slice %819 {offsets = [8, 0], sizes = [8, 32], strides = [1, 1]} : vector<32x32xf32> to vector<8x32xf32>
    %cst_369 = arith.constant dense<0.000000e+00> : vector<8x32xf32>
    %857 = tpu.matmul %855, %856, %cst_369 {dimension_numbers = #tpu.dot_dimension_numbers<[1], [0], [0], [1], [0, 0, 1, 1], [], []>} : vector<8x8xf32>, vector<8x32xf32>, vector<8x32xf32> -> vector<8x32xf32>
    %858 = arith.addf %839, %857 : vector<8x32xf32>
    %859 = vector.extract_strided_slice %808 {offsets = [0, 16], sizes = [8, 8], strides = [1, 1]} : vector<8x32xf32> to vector<8x8xf32>
    %860 = vector.extract_strided_slice %816 {offsets = [0, 16], sizes = [8, 8], strides = [1, 1]} : vector<8x32xf32> to vector<8x8xf32>
    %cst_370 = arith.constant dense<0.000000e+00> : vector<8x8xf32>
    %861 = tpu.matmul %859, %860, %cst_370 {dimension_numbers = #tpu.dot_dimension_numbers<[1], [1], [0], [0], [0, 0, 1, 0], [], []>} : vector<8x8xf32>, vector<8x8xf32>, vector<8x8xf32> -> vector<8x8xf32>
    %cst_371 = arith.constant 0.353553385 : f32
    %862 = vector.broadcast %cst_371 : f32 to vector<8x8xf32>
    %863 = arith.mulf %861, %862 : vector<8x8xf32>
    %cst_372 = arith.constant dense<0xFF800000> : vector<8xf32>
    %864 = vector.multi_reduction <maximumf>, %863, %cst_372 [1] : vector<8x8xf32> to vector<8xf32>
    %865 = vector.shape_cast %864 : vector<8xf32> to vector<8x1xf32>
    %866 = vector.broadcast %865 : vector<8x1xf32> to vector<8x8xf32>
    %867 = arith.subf %863, %866 : vector<8x8xf32>
    %868 = math.exp %867 : vector<8x8xf32>
    %cst_373 = arith.constant dense<0.000000e+00> : vector<8xf32>
    %869 = vector.multi_reduction <add>, %868, %cst_373 [1] : vector<8x8xf32> to vector<8xf32>
    %870 = vector.shape_cast %869 : vector<8xf32> to vector<8x1xf32>
    %871 = vector.broadcast %870 : vector<8x1xf32> to vector<8x8xf32>
    %872 = arith.divf %868, %871 : vector<8x8xf32>
    %873 = vector.extract_strided_slice %817 {offsets = [0, 16], sizes = [8, 8], strides = [1, 1]} : vector<8x32xf32> to vector<8x8xf32>
    %cst_374 = arith.constant dense<0.000000e+00> : vector<8x8xf32>
    %874 = tpu.matmul %872, %873, %cst_374 {dimension_numbers = #tpu.dot_dimension_numbers<[1], [0], [0], [1], [0, 0, 1, 1], [], []>} : vector<8x8xf32>, vector<8x8xf32>, vector<8x8xf32> -> vector<8x8xf32>
    %875 = vector.extract_strided_slice %819 {offsets = [16, 0], sizes = [8, 32], strides = [1, 1]} : vector<32x32xf32> to vector<8x32xf32>
    %cst_375 = arith.constant dense<0.000000e+00> : vector<8x32xf32>
    %876 = tpu.matmul %874, %875, %cst_375 {dimension_numbers = #tpu.dot_dimension_numbers<[1], [0], [0], [1], [0, 0, 1, 1], [], []>} : vector<8x8xf32>, vector<8x32xf32>, vector<8x32xf32> -> vector<8x32xf32>
    %877 = arith.addf %858, %876 : vector<8x32xf32>
    %878 = vector.extract_strided_slice %808 {offsets = [0, 24], sizes = [8, 8], strides = [1, 1]} : vector<8x32xf32> to vector<8x8xf32>
    %879 = vector.extract_strided_slice %816 {offsets = [0, 24], sizes = [8, 8], strides = [1, 1]} : vector<8x32xf32> to vector<8x8xf32>
    %cst_376 = arith.constant dense<0.000000e+00> : vector<8x8xf32>
    %880 = tpu.matmul %878, %879, %cst_376 {dimension_numbers = #tpu.dot_dimension_numbers<[1], [1], [0], [0], [0, 0, 1, 0], [], []>} : vector<8x8xf32>, vector<8x8xf32>, vector<8x8xf32> -> vector<8x8xf32>
    %cst_377 = arith.constant 0.353553385 : f32
    %881 = vector.broadcast %cst_377 : f32 to vector<8x8xf32>
    %882 = arith.mulf %880, %881 : vector<8x8xf32>
    %cst_378 = arith.constant dense<0xFF800000> : vector<8xf32>
    %883 = vector.multi_reduction <maximumf>, %882, %cst_378 [1] : vector<8x8xf32> to vector<8xf32>
    %884 = vector.shape_cast %883 : vector<8xf32> to vector<8x1xf32>
    %885 = vector.broadcast %884 : vector<8x1xf32> to vector<8x8xf32>
    %886 = arith.subf %882, %885 : vector<8x8xf32>
    %887 = math.exp %886 : vector<8x8xf32>
    %cst_379 = arith.constant dense<0.000000e+00> : vector<8xf32>
    %888 = vector.multi_reduction <add>, %887, %cst_379 [1] : vector<8x8xf32> to vector<8xf32>
    %889 = vector.shape_cast %888 : vector<8xf32> to vector<8x1xf32>
    %890 = vector.broadcast %889 : vector<8x1xf32> to vector<8x8xf32>
    %891 = arith.divf %887, %890 : vector<8x8xf32>
    %892 = vector.extract_strided_slice %817 {offsets = [0, 24], sizes = [8, 8], strides = [1, 1]} : vector<8x32xf32> to vector<8x8xf32>
    %cst_380 = arith.constant dense<0.000000e+00> : vector<8x8xf32>
    %893 = tpu.matmul %891, %892, %cst_380 {dimension_numbers = #tpu.dot_dimension_numbers<[1], [0], [0], [1], [0, 0, 1, 1], [], []>} : vector<8x8xf32>, vector<8x8xf32>, vector<8x8xf32> -> vector<8x8xf32>
    %894 = vector.extract_strided_slice %819 {offsets = [24, 0], sizes = [8, 32], strides = [1, 1]} : vector<32x32xf32> to vector<8x32xf32>
    %cst_381 = arith.constant dense<0.000000e+00> : vector<8x32xf32>
    %895 = tpu.matmul %893, %894, %cst_381 {dimension_numbers = #tpu.dot_dimension_numbers<[1], [0], [0], [1], [0, 0, 1, 1], [], []>} : vector<8x8xf32>, vector<8x32xf32>, vector<8x32xf32> -> vector<8x32xf32>
    %896 = arith.addf %877, %895 : vector<8x32xf32>
    %897 = vector.broadcast %821 : vector<1x32xf32> to vector<8x32xf32>
    %898 = arith.addf %896, %897 : vector<8x32xf32>
    %899 = arith.addf %801, %898 : vector<8x32xf32>
    %c1_382 = arith.constant 1 : index
    %c0_383 = arith.constant 0 : index
    %c0_384 = arith.constant 0 : index
    %900 = vector.load %arg27[%c1_382, %c0_383, %c0_384] : memref<2x2x32xf32, #tpu.memory_space<vmem>>, vector<1x2x32xf32>
    %901 = vector.shape_cast %900 : vector<1x2x32xf32> to vector<2x32xf32>
    %902 = vector.extract_strided_slice %901 {offsets = [0, 0], sizes = [1, 32], strides = [1, 1]} : vector<2x32xf32> to vector<1x32xf32>
    %c1_385 = arith.constant 1 : index
    %c0_386 = arith.constant 0 : index
    %c0_387 = arith.constant 0 : index
    %903 = vector.load %arg27[%c1_385, %c0_386, %c0_387] : memref<2x2x32xf32, #tpu.memory_space<vmem>>, vector<1x2x32xf32>
    %904 = vector.shape_cast %903 : vector<1x2x32xf32> to vector<2x32xf32>
    %905 = vector.extract_strided_slice %904 {offsets = [1, 0], sizes = [1, 32], strides = [1, 1]} : vector<2x32xf32> to vector<1x32xf32>
    %cst_388 = arith.constant dense<0.000000e+00> : vector<8xf32>
    %906 = vector.multi_reduction <add>, %899, %cst_388 [1] : vector<8x32xf32> to vector<8xf32>
    %907 = vector.shape_cast %906 : vector<8xf32> to vector<8x1xf32>
    %cst_389 = arith.constant 3.200000e+01 : f32
    %908 = vector.broadcast %cst_389 : f32 to vector<8x1xf32>
    %909 = arith.divf %907, %908 : vector<8x1xf32>
    %910 = vector.broadcast %909 : vector<8x1xf32> to vector<8x32xf32>
    %911 = arith.subf %899, %910 : vector<8x32xf32>
    %912 = vector.broadcast %909 : vector<8x1xf32> to vector<8x32xf32>
    %913 = arith.subf %899, %912 : vector<8x32xf32>
    %914 = arith.mulf %911, %913 : vector<8x32xf32>
    %cst_390 = arith.constant dense<0.000000e+00> : vector<8xf32>
    %915 = vector.multi_reduction <add>, %914, %cst_390 [1] : vector<8x32xf32> to vector<8xf32>
    %916 = vector.shape_cast %915 : vector<8xf32> to vector<8x1xf32>
    %cst_391 = arith.constant 3.200000e+01 : f32
    %917 = vector.broadcast %cst_391 : f32 to vector<8x1xf32>
    %918 = arith.divf %916, %917 : vector<8x1xf32>
    %919 = vector.broadcast %909 : vector<8x1xf32> to vector<8x32xf32>
    %920 = arith.subf %899, %919 : vector<8x32xf32>
    %cst_392 = arith.constant 9.99999974E-6 : f32
    %921 = vector.broadcast %cst_392 : f32 to vector<8x1xf32>
    %922 = arith.addf %918, %921 : vector<8x1xf32>
    %923 = math.rsqrt %922 : vector<8x1xf32>
    %924 = vector.broadcast %923 : vector<8x1xf32> to vector<8x32xf32>
    %925 = arith.mulf %920, %924 : vector<8x32xf32>
    %926 = vector.broadcast %902 : vector<1x32xf32> to vector<8x32xf32>
    %927 = arith.mulf %925, %926 : vector<8x32xf32>
    %928 = vector.broadcast %905 : vector<1x32xf32> to vector<8x32xf32>
    %929 = arith.addf %927, %928 : vector<8x32xf32>
    %c1_393 = arith.constant 1 : index
    %c0_394 = arith.constant 0 : index
    %c0_395 = arith.constant 0 : index
    %930 = vector.load %arg29[%c1_393, %c0_394, %c0_395] : memref<2x32x64xf32, #tpu.memory_space<vmem>>, vector<1x32x64xf32>
    %931 = vector.shape_cast %930 : vector<1x32x64xf32> to vector<32x64xf32>
    %cst_396 = arith.constant dense<0.000000e+00> : vector<8x64xf32>
    %932 = tpu.matmul %929, %931, %cst_396 {dimension_numbers = #tpu.dot_dimension_numbers<[1], [0], [0], [1], [0, 0, 1, 1], [], []>} : vector<8x32xf32>, vector<32x64xf32>, vector<8x64xf32> -> vector<8x64xf32>
    %c1_397 = arith.constant 1 : index
    %c0_398 = arith.constant 0 : index
    %c0_399 = arith.constant 0 : index
    %933 = vector.load %arg30[%c1_397, %c0_398, %c0_399] : memref<2x1x64xf32, #tpu.memory_space<vmem>>, vector<1x1x64xf32>
    %934 = vector.shape_cast %933 : vector<1x1x64xf32> to vector<1x64xf32>
    %935 = vector.broadcast %934 : vector<1x64xf32> to vector<8x64xf32>
    %936 = arith.addf %932, %935 : vector<8x64xf32>
    %cst_400 = arith.constant 0.000000e+00 : f32
    %937 = vector.broadcast %cst_400 : f32 to vector<8x64xf32>
    %938 = arith.maximumf %936, %937 : vector<8x64xf32>
    %c1_401 = arith.constant 1 : index
    %c0_402 = arith.constant 0 : index
    %c0_403 = arith.constant 0 : index
    %939 = vector.load %arg31[%c1_401, %c0_402, %c0_403] : memref<2x64x32xf32, #tpu.memory_space<vmem>>, vector<1x64x32xf32>
    %940 = vector.shape_cast %939 : vector<1x64x32xf32> to vector<64x32xf32>
    %cst_404 = arith.constant dense<0.000000e+00> : vector<8x32xf32>
    %941 = tpu.matmul %938, %940, %cst_404 {dimension_numbers = #tpu.dot_dimension_numbers<[1], [0], [0], [1], [0, 0, 1, 1], [], []>} : vector<8x64xf32>, vector<64x32xf32>, vector<8x32xf32> -> vector<8x32xf32>
    %c1_405 = arith.constant 1 : index
    %c0_406 = arith.constant 0 : index
    %c0_407 = arith.constant 0 : index
    %942 = vector.load %arg32[%c1_405, %c0_406, %c0_407] : memref<2x1x32xf32, #tpu.memory_space<vmem>>, vector<1x1x32xf32>
    %943 = vector.shape_cast %942 : vector<1x1x32xf32> to vector<1x32xf32>
    %944 = vector.broadcast %943 : vector<1x32xf32> to vector<8x32xf32>
    %945 = arith.addf %941, %944 : vector<8x32xf32>
    %946 = arith.addf %929, %945 : vector<8x32xf32>
    %c1_408 = arith.constant 1 : index
    %c0_409 = arith.constant 0 : index
    %c0_410 = arith.constant 0 : index
    %947 = vector.load %arg28[%c1_408, %c0_409, %c0_410] : memref<2x2x32xf32, #tpu.memory_space<vmem>>, vector<1x2x32xf32>
    %948 = vector.shape_cast %947 : vector<1x2x32xf32> to vector<2x32xf32>
    %949 = vector.extract_strided_slice %948 {offsets = [0, 0], sizes = [1, 32], strides = [1, 1]} : vector<2x32xf32> to vector<1x32xf32>
    %c1_411 = arith.constant 1 : index
    %c0_412 = arith.constant 0 : index
    %c0_413 = arith.constant 0 : index
    %950 = vector.load %arg28[%c1_411, %c0_412, %c0_413] : memref<2x2x32xf32, #tpu.memory_space<vmem>>, vector<1x2x32xf32>
    %951 = vector.shape_cast %950 : vector<1x2x32xf32> to vector<2x32xf32>
    %952 = vector.extract_strided_slice %951 {offsets = [1, 0], sizes = [1, 32], strides = [1, 1]} : vector<2x32xf32> to vector<1x32xf32>
    %cst_414 = arith.constant dense<0.000000e+00> : vector<8xf32>
    %953 = vector.multi_reduction <add>, %946, %cst_414 [1] : vector<8x32xf32> to vector<8xf32>
    %954 = vector.shape_cast %953 : vector<8xf32> to vector<8x1xf32>
    %cst_415 = arith.constant 3.200000e+01 : f32
    %955 = vector.broadcast %cst_415 : f32 to vector<8x1xf32>
    %956 = arith.divf %954, %955 : vector<8x1xf32>
    %957 = vector.broadcast %956 : vector<8x1xf32> to vector<8x32xf32>
    %958 = arith.subf %946, %957 : vector<8x32xf32>
    %959 = vector.broadcast %956 : vector<8x1xf32> to vector<8x32xf32>
    %960 = arith.subf %946, %959 : vector<8x32xf32>
    %961 = arith.mulf %958, %960 : vector<8x32xf32>
    %cst_416 = arith.constant dense<0.000000e+00> : vector<8xf32>
    %962 = vector.multi_reduction <add>, %961, %cst_416 [1] : vector<8x32xf32> to vector<8xf32>
    %963 = vector.shape_cast %962 : vector<8xf32> to vector<8x1xf32>
    %cst_417 = arith.constant 3.200000e+01 : f32
    %964 = vector.broadcast %cst_417 : f32 to vector<8x1xf32>
    %965 = arith.divf %963, %964 : vector<8x1xf32>
    %966 = vector.broadcast %956 : vector<8x1xf32> to vector<8x32xf32>
    %967 = arith.subf %946, %966 : vector<8x32xf32>
    %cst_418 = arith.constant 9.99999974E-6 : f32
    %968 = vector.broadcast %cst_418 : f32 to vector<8x1xf32>
    %969 = arith.addf %965, %968 : vector<8x1xf32>
    %970 = math.rsqrt %969 : vector<8x1xf32>
    %971 = vector.broadcast %970 : vector<8x1xf32> to vector<8x32xf32>
    %972 = arith.mulf %967, %971 : vector<8x32xf32>
    %973 = vector.broadcast %949 : vector<1x32xf32> to vector<8x32xf32>
    %974 = arith.mulf %972, %973 : vector<8x32xf32>
    %975 = vector.broadcast %952 : vector<1x32xf32> to vector<8x32xf32>
    %976 = arith.addf %974, %975 : vector<8x32xf32>
    %c0_419 = arith.constant 0 : index
    %c0_420 = arith.constant 0 : index
    %977 = vector.load %arg33[%c0_419, %c0_420] : memref<32x128xf32, #tpu.memory_space<vmem>>, vector<32x128xf32>
    %cst_421 = arith.constant dense<0.000000e+00> : vector<8x128xf32>
    %978 = tpu.matmul %976, %977, %cst_421 {dimension_numbers = #tpu.dot_dimension_numbers<[1], [0], [0], [1], [0, 0, 1, 1], [], []>} : vector<8x32xf32>, vector<32x128xf32>, vector<8x128xf32> -> vector<8x128xf32>
    %c0_422 = arith.constant 0 : index
    %c0_423 = arith.constant 0 : index
    %979 = vector.load %arg34[%c0_422, %c0_423] : memref<1x128xf32, #tpu.memory_space<vmem>>, vector<1x128xf32>
    %980 = vector.broadcast %979 : vector<1x128xf32> to vector<8x128xf32>
    %981 = arith.addf %978, %980 : vector<8x128xf32>
    %c0_424 = arith.constant 0 : index
    %c0_425 = arith.constant 0 : index
    %982 = vector.load %arg35[%c0_424, %c0_425] : memref<8x128xf32, #tpu.memory_space<vmem>>, vector<8x128xf32>
    tpu.vector_store %arg35[%c0_424, %c0_425], %981 {strides = array<i32>} : memref<8x128xf32, #tpu.memory_space<vmem>>, vector<8x128xf32>,
    return
  }
  func.func @transform_0(%arg0: i32) -> (i32, i32) {
    %c0_i32 = arith.constant 0 : i32
    %c0_i32_0 = arith.constant 0 : i32
    %c0_i32_1 = arith.constant 0 : i32
    return %c0_i32, %c0_i32_0 : i32, i32
  }
  func.func @transform_1(%arg0: i32) -> (i32, i32) {
    %c0_i32 = arith.constant 0 : i32
    %c0_i32_0 = arith.constant 0 : i32
    %c0_i32_1 = arith.constant 0 : i32
    return %c0_i32, %c0_i32_0 : i32, i32
  }
  func.func @transform_2(%arg0: i32) -> (i32, i32) {
    %c0_i32 = arith.constant 0 : i32
    %c0_i32_0 = arith.constant 0 : i32
    %c0_i32_1 = arith.constant 0 : i32
    return %c0_i32, %c0_i32_0 : i32, i32
  }
  func.func @transform_3(%arg0: i32) -> (i32, i32) {
    %c0_i32 = arith.constant 0 : i32
    %c0_i32_0 = arith.constant 0 : i32
    %c0_i32_1 = arith.constant 0 : i32
    return %c0_i32, %c0_i32_0 : i32, i32
  }
  func.func @transform_4(%arg0: i32) -> (i32, i32) {
    %c0_i32 = arith.constant 0 : i32
    %c0_i32_0 = arith.constant 0 : i32
    %c0_i32_1 = arith.constant 0 : i32
    return %c0_i32, %c0_i32_0 : i32, i32
  }
  func.func @transform_5(%arg0: i32) -> (i32, i32, i32) {
    %c0_i32 = arith.constant 0 : i32
    %c0_i32_0 = arith.constant 0 : i32
    %c0_i32_1 = arith.constant 0 : i32
    %c0_i32_2 = arith.constant 0 : i32
    return %c0_i32, %c0_i32_0, %c0_i32_1 : i32, i32, i32
  }
  func.func @transform_6(%arg0: i32) -> (i32, i32, i32) {
    %c0_i32 = arith.constant 0 : i32
    %c0_i32_0 = arith.constant 0 : i32
    %c0_i32_1 = arith.constant 0 : i32
    %c0_i32_2 = arith.constant 0 : i32
    return %c0_i32, %c0_i32_0, %c0_i32_1 : i32, i32, i32
  }
  func.func @transform_7(%arg0: i32) -> (i32, i32, i32) {
    %c0_i32 = arith.constant 0 : i32
    %c0_i32_0 = arith.constant 0 : i32
    %c0_i32_1 = arith.constant 0 : i32
    %c0_i32_2 = arith.constant 0 : i32
    return %c0_i32, %c0_i32_0, %c0_i32_1 : i32, i32, i32
  }
  func.func @transform_8(%arg0: i32) -> (i32, i32, i32) {
    %c0_i32 = arith.constant 0 : i32
    %c0_i32_0 = arith.constant 0 : i32
    %c0_i32_1 = arith.constant 0 : i32
    %c0_i32_2 = arith.constant 0 : i32
    return %c0_i32, %c0_i32_0, %c0_i32_1 : i32, i32, i32
  }
  func.func @transform_9(%arg0: i32) -> (i32, i32, i32) {
    %c0_i32 = arith.constant 0 : i32
    %c0_i32_0 = arith.constant 0 : i32
    %c0_i32_1 = arith.constant 0 : i32
    %c0_i32_2 = arith.constant 0 : i32
    return %c0_i32, %c0_i32_0, %c0_i32_1 : i32, i32, i32
  }
  func.func @transform_10(%arg0: i32) -> (i32, i32, i32) {
    %c0_i32 = arith.constant 0 : i32
    %c0_i32_0 = arith.constant 0 : i32
    %c0_i32_1 = arith.constant 0 : i32
    %c0_i32_2 = arith.constant 0 : i32
    return %c0_i32, %c0_i32_0, %c0_i32_1 : i32, i32, i32
  }
  func.func @transform_11(%arg0: i32) -> (i32, i32, i32) {
    %c0_i32 = arith.constant 0 : i32
    %c0_i32_0 = arith.constant 0 : i32
    %c0_i32_1 = arith.constant 0 : i32
    %c0_i32_2 = arith.constant 0 : i32
    return %c0_i32, %c0_i32_0, %c0_i32_1 : i32, i32, i32
  }
  func.func @transform_12(%arg0: i32) -> (i32, i32, i32) {
    %c0_i32 = arith.constant 0 : i32
    %c0_i32_0 = arith.constant 0 : i32
    %c0_i32_1 = arith.constant 0 : i32
    %c0_i32_2 = arith.constant 0 : i32
    return %c0_i32, %c0_i32_0, %c0_i32_1 : i32, i32, i32
  }
  func.func @transform_13(%arg0: i32) -> (i32, i32, i32) {
    %c0_i32 = arith.constant 0 : i32
    %c0_i32_0 = arith.constant 0 : i32
    %c0_i32_1 = arith.constant 0 : i32
    %c0_i32_2 = arith.constant 0 : i32
    return %c0_i32, %c0_i32_0, %c0_i32_1 : i32, i32, i32
  }
  func.func @transform_14(%arg0: i32) -> (i32, i32, i32) {
    %c0_i32 = arith.constant 0 : i32
    %c0_i32_0 = arith.constant 0 : i32
    %c0_i32_1 = arith.constant 0 : i32
    %c0_i32_2 = arith.constant 0 : i32
    return %c0_i32, %c0_i32_0, %c0_i32_1 : i32, i32, i32
  }
  func.func @transform_15(%arg0: i32) -> (i32, i32, i32) {
    %c0_i32 = arith.constant 0 : i32
    %c0_i32_0 = arith.constant 0 : i32
    %c0_i32_1 = arith.constant 0 : i32
    %c0_i32_2 = arith.constant 0 : i32
    return %c0_i32, %c0_i32_0, %c0_i32_1 : i32, i32, i32
  }
  func.func @transform_16(%arg0: i32) -> (i32, i32, i32) {
    %c0_i32 = arith.constant 0 : i32
    %c0_i32_0 = arith.constant 0 : i32
    %c0_i32_1 = arith.constant 0 : i32
    %c0_i32_2 = arith.constant 0 : i32
    return %c0_i32, %c0_i32_0, %c0_i32_1 : i32, i32, i32
  }
  func.func @transform_17(%arg0: i32) -> (i32, i32, i32) {
    %c0_i32 = arith.constant 0 : i32
    %c0_i32_0 = arith.constant 0 : i32
    %c0_i32_1 = arith.constant 0 : i32
    %c0_i32_2 = arith.constant 0 : i32
    return %c0_i32, %c0_i32_0, %c0_i32_1 : i32, i32, i32
  }
  func.func @transform_18(%arg0: i32) -> (i32, i32, i32) {
    %c0_i32 = arith.constant 0 : i32
    %c0_i32_0 = arith.constant 0 : i32
    %c0_i32_1 = arith.constant 0 : i32
    %c0_i32_2 = arith.constant 0 : i32
    return %c0_i32, %c0_i32_0, %c0_i32_1 : i32, i32, i32
  }
  func.func @transform_19(%arg0: i32) -> (i32, i32, i32) {
    %c0_i32 = arith.constant 0 : i32
    %c0_i32_0 = arith.constant 0 : i32
    %c0_i32_1 = arith.constant 0 : i32
    %c0_i32_2 = arith.constant 0 : i32
    return %c0_i32, %c0_i32_0, %c0_i32_1 : i32, i32, i32
  }
  func.func @transform_20(%arg0: i32) -> (i32, i32, i32) {
    %c0_i32 = arith.constant 0 : i32
    %c0_i32_0 = arith.constant 0 : i32
    %c0_i32_1 = arith.constant 0 : i32
    %c0_i32_2 = arith.constant 0 : i32
    return %c0_i32, %c0_i32_0, %c0_i32_1 : i32, i32, i32
  }
  func.func @transform_21(%arg0: i32) -> (i32, i32, i32) {
    %c0_i32 = arith.constant 0 : i32
    %c0_i32_0 = arith.constant 0 : i32
    %c0_i32_1 = arith.constant 0 : i32
    %c0_i32_2 = arith.constant 0 : i32
    return %c0_i32, %c0_i32_0, %c0_i32_1 : i32, i32, i32
  }
  func.func @transform_22(%arg0: i32) -> (i32, i32, i32) {
    %c0_i32 = arith.constant 0 : i32
    %c0_i32_0 = arith.constant 0 : i32
    %c0_i32_1 = arith.constant 0 : i32
    %c0_i32_2 = arith.constant 0 : i32
    return %c0_i32, %c0_i32_0, %c0_i32_1 : i32, i32, i32
  }
  func.func @transform_23(%arg0: i32) -> (i32, i32, i32) {
    %c0_i32 = arith.constant 0 : i32
    %c0_i32_0 = arith.constant 0 : i32
    %c0_i32_1 = arith.constant 0 : i32
    %c0_i32_2 = arith.constant 0 : i32
    return %c0_i32, %c0_i32_0, %c0_i32_1 : i32, i32, i32
  }
  func.func @transform_24(%arg0: i32) -> (i32, i32, i32) {
    %c0_i32 = arith.constant 0 : i32
    %c0_i32_0 = arith.constant 0 : i32
    %c0_i32_1 = arith.constant 0 : i32
    %c0_i32_2 = arith.constant 0 : i32
    return %c0_i32, %c0_i32_0, %c0_i32_1 : i32, i32, i32
  }
  func.func @transform_25(%arg0: i32) -> (i32, i32, i32) {
    %c0_i32 = arith.constant 0 : i32
    %c0_i32_0 = arith.constant 0 : i32
    %c0_i32_1 = arith.constant 0 : i32
    %c0_i32_2 = arith.constant 0 : i32
    return %c0_i32, %c0_i32_0, %c0_i32_1 : i32, i32, i32
  }
  func.func @transform_26(%arg0: i32) -> (i32, i32, i32) {
    %c0_i32 = arith.constant 0 : i32
    %c0_i32_0 = arith.constant 0 : i32
    %c0_i32_1 = arith.constant 0 : i32
    %c0_i32_2 = arith.constant 0 : i32
    return %c0_i32, %c0_i32_0, %c0_i32_1 : i32, i32, i32
  }
  func.func @transform_27(%arg0: i32) -> (i32, i32, i32) {
    %c0_i32 = arith.constant 0 : i32
    %c0_i32_0 = arith.constant 0 : i32
    %c0_i32_1 = arith.constant 0 : i32
    %c0_i32_2 = arith.constant 0 : i32
    return %c0_i32, %c0_i32_0, %c0_i32_1 : i32, i32, i32
  }
  func.func @transform_28(%arg0: i32) -> (i32, i32, i32) {
    %c0_i32 = arith.constant 0 : i32
    %c0_i32_0 = arith.constant 0 : i32
    %c0_i32_1 = arith.constant 0 : i32
    %c0_i32_2 = arith.constant 0 : i32
    return %c0_i32, %c0_i32_0, %c0_i32_1 : i32, i32, i32
  }
  func.func @transform_29(%arg0: i32) -> (i32, i32, i32) {
    %c0_i32 = arith.constant 0 : i32
    %c0_i32_0 = arith.constant 0 : i32
    %c0_i32_1 = arith.constant 0 : i32
    %c0_i32_2 = arith.constant 0 : i32
    return %c0_i32, %c0_i32_0, %c0_i32_1 : i32, i32, i32
  }
  func.func @transform_30(%arg0: i32) -> (i32, i32, i32) {
    %c0_i32 = arith.constant 0 : i32
    %c0_i32_0 = arith.constant 0 : i32
    %c0_i32_1 = arith.constant 0 : i32
    %c0_i32_2 = arith.constant 0 : i32
    return %c0_i32, %c0_i32_0, %c0_i32_1 : i32, i32, i32
  }
  func.func @transform_31(%arg0: i32) -> (i32, i32, i32) {
    %c0_i32 = arith.constant 0 : i32
    %c0_i32_0 = arith.constant 0 : i32
    %c0_i32_1 = arith.constant 0 : i32
    %c0_i32_2 = arith.constant 0 : i32
    return %c0_i32, %c0_i32_0, %c0_i32_1 : i32, i32, i32
  }
  func.func @transform_32(%arg0: i32) -> (i32, i32) {
    %c0_i32 = arith.constant 0 : i32
    %c0_i32_0 = arith.constant 0 : i32
    %c0_i32_1 = arith.constant 0 : i32
    return %c0_i32, %c0_i32_0 : i32, i32
  }
  func.func @transform_33(%arg0: i32) -> (i32, i32) {
    %c0_i32 = arith.constant 0 : i32
    %c0_i32_0 = arith.constant 0 : i32
    %c0_i32_1 = arith.constant 0 : i32
    return %c0_i32, %c0_i32_0 : i32, i32
  }
  func.func @transform_34(%arg0: i32) -> (i32, i32) {
    %c0_i32 = arith.constant 0 : i32
    %c0_i32_0 = arith.constant 0 : i32
    %c0_i32_1 = arith.constant 0 : i32
    return %c0_i32, %c0_i32_0 : i32, i32
  }
}

</mosaic_0001>

<llo_original>
// kernel: transformer_forward.1
$region0: #{transformer_forward.1}
  #allocation0 [shape = 'u32[]', space=smem, size = 0x4, offset = 0x4, fixed_abs, tag = 'smem constant byte address 0x4 - core index']
  #allocation1 [shape = 'u32[72,128]{1,0:T(1,128)}', space=vmem, size = 0x9000, scoped, tag = 'internal scratch']
  %s0 = inlined_call_operand.smem [shape: u32[35], index: -1, kind: input, shape index: {}]
  %s1 = sld [smem:[%s0]]
  %s2 = scalar_lea.smem %s0, 1
  %s3 = sld [smem:[%s2]]
  %s4 = scalar_lea.smem %s0, 2
  %s5 = sld [smem:[%s4]]
  %s6 = scalar_lea.smem %s0, 3
  %s7 = sld [smem:[%s6]]
  %s8 = scalar_lea.smem %s0, 4
  %s9 = sld [smem:[%s8]]
  %s10 = scalar_lea.smem %s0, 5
  %s11 = sld [smem:[%s10]]
  %s12 = scalar_lea.smem %s0, 6
  %s13 = sld [smem:[%s12]]
  %s14 = scalar_lea.smem %s0, 7
  %s15 = sld [smem:[%s14]]
  %s16 = scalar_lea.smem %s0, 8
  %s17 = sld [smem:[%s16]]
  %s18 = scalar_lea.smem %s0, 9
  %s19 = sld [smem:[%s18]]
  %s20 = scalar_lea.smem %s0, 10
  %s21 = sld [smem:[%s20]]
  %s22 = scalar_lea.smem %s0, 11
  %s23 = sld [smem:[%s22]]
  %s24 = scalar_lea.smem %s0, 12
  %s25 = sld [smem:[%s24]]
  %s26 = scalar_lea.smem %s0, 13
  %s27 = sld [smem:[%s26]]
  %s28 = scalar_lea.smem %s0, 14
  %s29 = sld [smem:[%s28]]
  %s30 = scalar_lea.smem %s0, 15
  %s31 = sld [smem:[%s30]]
  %s32 = scalar_lea.smem %s0, 16
  %s33 = sld [smem:[%s32]]
  %s34 = scalar_lea.smem %s0, 17
  %s35 = sld [smem:[%s34]]
  %s36 = scalar_lea.smem %s0, 18
  %s37 = sld [smem:[%s36]]
  %s38 = scalar_lea.smem %s0, 19
  %s39 = sld [smem:[%s38]]
  %s40 = scalar_lea.smem %s0, 20
  %s41 = sld [smem:[%s40]]
  %s42 = scalar_lea.smem %s0, 21
  %s43 = sld [smem:[%s42]]
  %s44 = scalar_lea.smem %s0, 22
  %s45 = sld [smem:[%s44]]
  %s46 = scalar_lea.smem %s0, 23
  %s47 = sld [smem:[%s46]]
  %s48 = scalar_lea.smem %s0, 24
  %s49 = sld [smem:[%s48]]
  %s50 = scalar_lea.smem %s0, 25
  %s51 = sld [smem:[%s50]]
  %s52 = scalar_lea.smem %s0, 26
  %s53 = sld [smem:[%s52]]
  %s54 = scalar_lea.smem %s0, 27
  %s55 = sld [smem:[%s54]]
  %s56 = scalar_lea.smem %s0, 28
  %s57 = sld [smem:[%s56]]
  %s58 = scalar_lea.smem %s0, 29
  %s59 = sld [smem:[%s58]]
  %s60 = scalar_lea.smem %s0, 30
  %s61 = sld [smem:[%s60]]
  %s62 = scalar_lea.smem %s0, 31
  %s63 = sld [smem:[%s62]]
  %s64 = scalar_lea.smem %s0, 32
  %s65 = sld [smem:[%s64]]
  %s66 = scalar_lea.smem %s0, 33
  %s67 = sld [smem:[%s66]]
  %s68 = scalar_lea.smem %s0, 34
  %s69 = sld [smem:[%s68]]
  %s70 = sld [smem:[#allocation0]]
  $region210: #{transformer_forward.1} parent=0
    _
  %s72 = ssub.s32 1, %s70
  %s73 = scalar_select 0, %s72, %s70
  $region1: #{transformer_forward.1} parent=0
    #allocation2 [shape = 'u8[1024]{0}', space=vmem, size = 0x400, scoped, tag = 'input window, operand 6, single buffered']
    #allocation3 [shape = 's32[1]{0}', space=sflag, size = 0x4, scoped, tag = 'scoped memory for transformer_forward.1']
    #allocation4 [shape = 's32[1]{0}', space=sflag, size = 0x4, scoped, tag = 'scoped memory for transformer_forward.1']
    #allocation5 [shape = 'u8[1024]{0}', space=vmem, size = 0x400, scoped, tag = 'input window, operand 8, single buffered']
    #allocation6 [shape = 's32[1]{0}', space=sflag, size = 0x4, scoped, tag = 'scoped memory for transformer_forward.1']
    #allocation7 [shape = 'u8[1024]{0}', space=vmem, size = 0x400, scoped, tag = 'input window, operand 11, single buffered']
    #allocation8 [shape = 'u8[1024]{0}', space=vmem, size = 0x400, scoped, tag = 'input window, operand 13, single buffered']
    #allocation9 [shape = 's32[1]{0}', space=sflag, size = 0x4, scoped, tag = 'scoped memory for transformer_forward.1']
    #allocation10 [shape = 'u8[1024]{0}', space=vmem, size = 0x400, scoped, tag = 'input window, operand 16, single buffered']
    #allocation11 [shape = 'u8[1024]{0}', space=vmem, size = 0x400, scoped, tag = 'input window, operand 18, single buffered']
    #allocation12 [shape = 's32[1]{0}', space=sflag, size = 0x4, scoped, tag = 'scoped memory for transformer_forward.1']
    #allocation13 [shape = 'u8[1024]{0}', space=vmem, size = 0x400, scoped, tag = 'input window, operand 20, single buffered']
    #allocation14 [shape = 'u8[32768]{0}', space=vmem, size = 0x8000, scoped, tag = 'input window, operand 21, single buffered']
    #allocation15 [shape = 's32[1]{0}', space=sflag, size = 0x4, scoped, tag = 'scoped memory for transformer_forward.1']
    #allocation16 [shape = 'u8[1024]{0}', space=vmem, size = 0x400, scoped, tag = 'input window, operand 22, single buffered']
    #allocation17 [shape = 'u8[32768]{0}', space=vmem, size = 0x8000, scoped, tag = 'input window, operand 23, single buffered']
    #allocation18 [shape = 's32[1]{0}', space=sflag, size = 0x4, scoped, tag = 'scoped memory for transformer_forward.1']
    #allocation19 [shape = 'u8[1024]{0}', space=vmem, size = 0x400, scoped, tag = 'input window, operand 24, single buffered']
    #allocation20 [shape = 'u8[32768]{0}', space=vmem, size = 0x8000, scoped, tag = 'input window, operand 28, single buffered']
    #allocation21 [shape = 's32[1]{0}', space=sflag, size = 0x4, scoped, tag = 'scoped memory for transformer_forward.1']
    #allocation22 [shape = 'u8[1024]{0}', space=vmem, size = 0x400, scoped, tag = 'input window, operand 29, single buffered']
    #allocation23 [shape = 'u8[1024]{0}', space=vmem, size = 0x400, scoped, tag = 'input window, operand 31, single buffered']
    #allocation24 [shape = 's32[1]{0}', space=sflag, size = 0x4, scoped, tag = 'scoped memory for transformer_forward.1']
    #allocation25 [shape = 'u8[16384]{0}', space=vmem, size = 0x4000, scoped, tag = 'input window, operand 32, single buffered']
    #allocation26 [shape = 'u8[512]{0}', space=vmem, size = 0x400, scoped, tag = 'input window, operand 33, single buffered']
    #allocation27 [shape = 's32[1]{0}', space=sflag, size = 0x4, scoped, tag = 'scoped memory for transformer_forward.1']
    #allocation28 [shape = 'u8[4096]{0}', space=vmem, size = 0x1000, scoped, tag = 'output window, operand 0, single buffered']
    %74 = vsyncpa [#allocation3], 0
    %75 = vsyncpa [#allocation6], 0
    %76 = vsyncpa [#allocation9], 0
    %77 = vsyncpa [#allocation12], 0
    %78 = vsyncpa [#allocation15], 0
    %79 = vsyncpa [#allocation18], 0
    %80 = vsyncpa [#allocation21], 0
    %81 = vsyncpa [#allocation24], 0
    %82 = vsyncpa [#allocation27], 0
    %83 = vsyncpa [#allocation4], 0
    // Predicated region
    $region2: #{transformer_forward.1} parent=1 // pred_check
      _
    $region3: #{transformer_forward.1} parent=1 // pred_check_branch
      %85 = sbr.rel (0) target = $region5
    $region4: #{transformer_forward.1} parent=1 // pred_region
      _
    $region5: #{transformer_forward.1} parent=1 // pred_fallthru
      _
    // Predicated region
    $region6: #{transformer_forward.1} parent=1 // pred_check
      _
    $region7: #{transformer_forward.1} parent=1 // pred_check_branch
      %87 = sbr.rel (0) target = $region9
    $region8: #{transformer_forward.1} parent=1 // pred_region
      _
    $region9: #{transformer_forward.1} parent=1 // pred_fallthru
      _
    // Predicated region
    $region10: #{transformer_forward.1} parent=1 // pred_check
      _
    $region11: #{transformer_forward.1} parent=1 // pred_check_branch
      %89 = sbr.rel (0) target = $region13
    $region12: #{transformer_forward.1} parent=1 // pred_region
      _
    $region13: #{transformer_forward.1} parent=1 // pred_fallthru
      _
    // Predicated region
    $region14: #{transformer_forward.1} parent=1 // pred_check
      _
    $region15: #{transformer_forward.1} parent=1 // pred_check_branch
      %91 = sbr.rel (0) target = $region17
    $region16: #{transformer_forward.1} parent=1 // pred_region
      _
    $region17: #{transformer_forward.1} parent=1 // pred_fallthru
      _
    // Predicated region
    $region18: #{transformer_forward.1} parent=1 // pred_check
      _
    $region19: #{transformer_forward.1} parent=1 // pred_check_branch
      %93 = sbr.rel (0) target = $region21
    $region20: #{transformer_forward.1} parent=1 // pred_region
      _
    $region21: #{transformer_forward.1} parent=1 // pred_fallthru
      _
    // Predicated region
    $region22: #{transformer_forward.1} parent=1 // pred_check
      _
    $region23: #{transformer_forward.1} parent=1 // pred_check_branch
      %95 = sbr.rel (0) target = $region25
    $region24: #{transformer_forward.1} parent=1 // pred_region
      _
    $region25: #{transformer_forward.1} parent=1 // pred_fallthru
      _
    // Predicated region
    $region26: #{transformer_forward.1} parent=1 // pred_check
      _
    $region27: #{transformer_forward.1} parent=1 // pred_check_branch
      %97 = sbr.rel (0) target = $region29
    $region28: #{transformer_forward.1} parent=1 // pred_region
      %99 = vsyncadd [#allocation3], 0
      %s100 = sshll.u32 %s13, 4
      %s101 = int_to_ptr.hbm [resolvable:$true] %s100
      %s102 = sshll.u32 [#allocation2], 4
      %s103 = int_to_ptr.vmem [resolvable:$true] %s102
      %108 = dma.hbm_to_vmem [thread:$0]  %s101, 32, %s103, [#allocation3], 16, 16, 1
    $region29: #{transformer_forward.1} parent=1 // pred_fallthru
      _
    // Predicated region
    $region30: #{transformer_forward.1} parent=1 // pred_check
      _
    $region31: #{transformer_forward.1} parent=1 // pred_check_branch
      %110 = sbr.rel (0) target = $region33
    $region32: #{transformer_forward.1} parent=1 // pred_region
      _
    $region33: #{transformer_forward.1} parent=1 // pred_fallthru
      _
    // Predicated region
    $region34: #{transformer_forward.1} parent=1 // pred_check
      _
    $region35: #{transformer_forward.1} parent=1 // pred_check_branch
      %112 = sbr.rel (0) target = $region37
    $region36: #{transformer_forward.1} parent=1 // pred_region
      %114 = vsyncadd [#allocation6], 0
      %s115 = sshll.u32 %s17, 4
      %s116 = int_to_ptr.hbm [resolvable:$true] %s115
      %s117 = sshll.u32 [#allocation5], 4
      %s118 = int_to_ptr.vmem [resolvable:$true] %s117
      %123 = dma.hbm_to_vmem [thread:$0]  %s116, 32, %s118, [#allocation6], 16, 16, 1
    $region37: #{transformer_forward.1} parent=1 // pred_fallthru
      _
    // Predicated region
    $region38: #{transformer_forward.1} parent=1 // pred_check
      _
    $region39: #{transformer_forward.1} parent=1 // pred_check_branch
      %125 = sbr.rel (0) target = $region41
    $region40: #{transformer_forward.1} parent=1 // pred_region
      _
    $region41: #{transformer_forward.1} parent=1 // pred_fallthru
      _
    // Predicated region
    $region42: #{transformer_forward.1} parent=1 // pred_check
      _
    $region43: #{transformer_forward.1} parent=1 // pred_check_branch
      %127 = sbr.rel (0) target = $region45
    $region44: #{transformer_forward.1} parent=1 // pred_region
      _
    $region45: #{transformer_forward.1} parent=1 // pred_fallthru
      _
    // Predicated region
    $region46: #{transformer_forward.1} parent=1 // pred_check
      _
    $region47: #{transformer_forward.1} parent=1 // pred_check_branch
      %129 = sbr.rel (0) target = $region49
    $region48: #{transformer_forward.1} parent=1 // pred_region
      %131 = vsyncadd [#allocation6], 0
      %s132 = sshll.u32 %s23, 4
      %s133 = int_to_ptr.hbm [resolvable:$true] %s132
      %s134 = sshll.u32 [#allocation7], 4
      %s135 = int_to_ptr.vmem [resolvable:$true] %s134
      %140 = dma.hbm_to_vmem [thread:$0]  %s133, 32, %s135, [#allocation6], 16, 16, 1
    $region49: #{transformer_forward.1} parent=1 // pred_fallthru
      _
    // Predicated region
    $region50: #{transformer_forward.1} parent=1 // pred_check
      _
    $region51: #{transformer_forward.1} parent=1 // pred_check_branch
      %142 = sbr.rel (0) target = $region53
    $region52: #{transformer_forward.1} parent=1 // pred_region
      _
    $region53: #{transformer_forward.1} parent=1 // pred_fallthru
      _
    // Predicated region
    $region54: #{transformer_forward.1} parent=1 // pred_check
      _
    $region55: #{transformer_forward.1} parent=1 // pred_check_branch
      %144 = sbr.rel (0) target = $region57
    $region56: #{transformer_forward.1} parent=1 // pred_region
      %146 = vsyncadd [#allocation9], 0
      %s147 = sshll.u32 %s27, 4
      %s148 = int_to_ptr.hbm [resolvable:$true] %s147
      %s149 = sshll.u32 [#allocation8], 4
      %s150 = int_to_ptr.vmem [resolvable:$true] %s149
      %155 = dma.hbm_to_vmem [thread:$0]  %s148, 32, %s150, [#allocation9], 16, 16, 1
    $region57: #{transformer_forward.1} parent=1 // pred_fallthru
      _
    // Predicated region
    $region58: #{transformer_forward.1} parent=1 // pred_check
      _
    $region59: #{transformer_forward.1} parent=1 // pred_check_branch
      %157 = sbr.rel (0) target = $region61
    $region60: #{transformer_forward.1} parent=1 // pred_region
      _
    $region61: #{transformer_forward.1} parent=1 // pred_fallthru
      _
    // Predicated region
    $region62: #{transformer_forward.1} parent=1 // pred_check
      _
    $region63: #{transformer_forward.1} parent=1 // pred_check_branch
      %159 = sbr.rel (0) target = $region65
    $region64: #{transformer_forward.1} parent=1 // pred_region
      _
    $region65: #{transformer_forward.1} parent=1 // pred_fallthru
      _
    // Predicated region
    $region66: #{transformer_forward.1} parent=1 // pred_check
      _
    $region67: #{transformer_forward.1} parent=1 // pred_check_branch
      %161 = sbr.rel (0) target = $region69
    $region68: #{transformer_forward.1} parent=1 // pred_region
      %163 = vsyncadd [#allocation9], 0
      %s164 = sshll.u32 %s33, 4
      %s165 = int_to_ptr.hbm [resolvable:$true] %s164
      %s166 = sshll.u32 [#allocation10], 4
      %s167 = int_to_ptr.vmem [resolvable:$true] %s166
      %172 = dma.hbm_to_vmem [thread:$0]  %s165, 32, %s167, [#allocation9], 16, 16, 1
    $region69: #{transformer_forward.1} parent=1 // pred_fallthru
      _
    // Predicated region
    $region70: #{transformer_forward.1} parent=1 // pred_check
      _
    $region71: #{transformer_forward.1} parent=1 // pred_check_branch
      %174 = sbr.rel (0) target = $region73
    $region72: #{transformer_forward.1} parent=1 // pred_region
      _
    $region73: #{transformer_forward.1} parent=1 // pred_fallthru
      _
    // Predicated region
    $region74: #{transformer_forward.1} parent=1 // pred_check
      _
    $region75: #{transformer_forward.1} parent=1 // pred_check_branch
      %176 = sbr.rel (0) target = $region77
    $region76: #{transformer_forward.1} parent=1 // pred_region
      %178 = vsyncadd [#allocation12], 0
      %s179 = sshll.u32 %s37, 4
      %s180 = int_to_ptr.hbm [resolvable:$true] %s179
      %s181 = sshll.u32 [#allocation11], 4
      %s182 = int_to_ptr.vmem [resolvable:$true] %s181
      %187 = dma.hbm_to_vmem [thread:$0]  %s180, 32, %s182, [#allocation12], 16, 16, 1
    $region77: #{transformer_forward.1} parent=1 // pred_fallthru
      _
    // Predicated region
    $region78: #{transformer_forward.1} parent=1 // pred_check
      _
    $region79: #{transformer_forward.1} parent=1 // pred_check_branch
      %189 = sbr.rel (0) target = $region81
    $region80: #{transformer_forward.1} parent=1 // pred_region
      _
    $region81: #{transformer_forward.1} parent=1 // pred_fallthru
      _
    // Predicated region
    $region82: #{transformer_forward.1} parent=1 // pred_check
      _
    $region83: #{transformer_forward.1} parent=1 // pred_check_branch
      %191 = sbr.rel (0) target = $region85
    $region84: #{transformer_forward.1} parent=1 // pred_region
      %193 = vsyncadd [#allocation12], 0
      %s194 = sshll.u32 %s41, 4
      %s195 = int_to_ptr.hbm [resolvable:$true] %s194
      %s196 = sshll.u32 [#allocation13], 4
      %s197 = int_to_ptr.vmem [resolvable:$true] %s196
      %202 = dma.hbm_to_vmem [thread:$0]  %s195, 32, %s197, [#allocation12], 16, 16, 1
    $region85: #{transformer_forward.1} parent=1 // pred_fallthru
      _
    // Predicated region
    $region86: #{transformer_forward.1} parent=1 // pred_check
      _
    $region87: #{transformer_forward.1} parent=1 // pred_check_branch
      %204 = sbr.rel (0) target = $region89
    $region88: #{transformer_forward.1} parent=1 // pred_region
      %206 = vsyncadd [#allocation15], 0
      %s207 = sshll.u32 %s43, 4
      %s208 = int_to_ptr.hbm [resolvable:$true] %s207
      %s209 = sshll.u32 [#allocation14], 4
      %s210 = int_to_ptr.vmem [resolvable:$true] %s209
      %215 = dma.hbm_to_vmem [thread:$0]  %s208, 1024, %s210, [#allocation15], 128, 128, 8
    $region89: #{transformer_forward.1} parent=1 // pred_fallthru
      _
    // Predicated region
    $region90: #{transformer_forward.1} parent=1 // pred_check
      _
    $region91: #{transformer_forward.1} parent=1 // pred_check_branch
      %217 = sbr.rel (0) target = $region93
    $region92: #{transformer_forward.1} parent=1 // pred_region
      %219 = vsyncadd [#allocation15], 0
      %s220 = sshll.u32 %s45, 4
      %s221 = int_to_ptr.hbm [resolvable:$true] %s220
      %s222 = sshll.u32 [#allocation16], 4
      %s223 = int_to_ptr.vmem [resolvable:$true] %s222
      %228 = dma.hbm_to_vmem [thread:$0]  %s221, 32, %s223, [#allocation15], 16, 16, 1
    $region93: #{transformer_forward.1} parent=1 // pred_fallthru
      _
    // Predicated region
    $region94: #{transformer_forward.1} parent=1 // pred_check
      _
    $region95: #{transformer_forward.1} parent=1 // pred_check_branch
      %230 = sbr.rel (0) target = $region97
    $region96: #{transformer_forward.1} parent=1 // pred_region
      %232 = vsyncadd [#allocation18], 0
      %s233 = sshll.u32 %s47, 4
      %s234 = int_to_ptr.hbm [resolvable:$true] %s233
      %s235 = sshll.u32 [#allocation17], 4
      %s236 = int_to_ptr.vmem [resolvable:$true] %s235
      %241 = dma.hbm_to_vmem [thread:$0]  %s234, 1024, %s236, [#allocation18], 128, 128, 8
    $region97: #{transformer_forward.1} parent=1 // pred_fallthru
      _
    // Predicated region
    $region98: #{transformer_forward.1} parent=1 // pred_check
      _
    $region99: #{transformer_forward.1} parent=1 // pred_check_branch
      %243 = sbr.rel (0) target = $region101
    $region100: #{transformer_forward.1} parent=1 // pred_region
      %245 = vsyncadd [#allocation18], 0
      %s246 = sshll.u32 %s49, 4
      %s247 = int_to_ptr.hbm [resolvable:$true] %s246
      %s248 = sshll.u32 [#allocation19], 4
      %s249 = int_to_ptr.vmem [resolvable:$true] %s248
      %254 = dma.hbm_to_vmem [thread:$0]  %s247, 32, %s249, [#allocation18], 16, 16, 1
    $region101: #{transformer_forward.1} parent=1 // pred_fallthru
      _
    // Predicated region
    $region102: #{transformer_forward.1} parent=1 // pred_check
      _
    $region103: #{transformer_forward.1} parent=1 // pred_check_branch
      %256 = sbr.rel (0) target = $region105
    $region104: #{transformer_forward.1} parent=1 // pred_region
      _
    $region105: #{transformer_forward.1} parent=1 // pred_fallthru
      _
    // Predicated region
    $region106: #{transformer_forward.1} parent=1 // pred_check
      _
    $region107: #{transformer_forward.1} parent=1 // pred_check_branch
      %258 = sbr.rel (0) target = $region109
    $region108: #{transformer_forward.1} parent=1 // pred_region
      _
    $region109: #{transformer_forward.1} parent=1 // pred_fallthru
      _
    // Predicated region
    $region110: #{transformer_forward.1} parent=1 // pred_check
      _
    $region111: #{transformer_forward.1} parent=1 // pred_check_branch
      %260 = sbr.rel (0) target = $region113
    $region112: #{transformer_forward.1} parent=1 // pred_region
      _
    $region113: #{transformer_forward.1} parent=1 // pred_fallthru
      _
    // Predicated region
    $region114: #{transformer_forward.1} parent=1 // pred_check
      _
    $region115: #{transformer_forward.1} parent=1 // pred_check_branch
      %262 = sbr.rel (0) target = $region117
    $region116: #{transformer_forward.1} parent=1 // pred_region
      %264 = vsyncadd [#allocation21], 0
      %s265 = sshll.u32 %s57, 4
      %s266 = int_to_ptr.hbm [resolvable:$true] %s265
      %s267 = sshll.u32 [#allocation20], 4
      %s268 = int_to_ptr.vmem [resolvable:$true] %s267
      %273 = dma.hbm_to_vmem [thread:$0]  %s266, 1024, %s268, [#allocation21], 128, 128, 8
    $region117: #{transformer_forward.1} parent=1 // pred_fallthru
      _
    // Predicated region
    $region118: #{transformer_forward.1} parent=1 // pred_check
      _
    $region119: #{transformer_forward.1} parent=1 // pred_check_branch
      %275 = sbr.rel (0) target = $region121
    $region120: #{transformer_forward.1} parent=1 // pred_region
      %277 = vsyncadd [#allocation21], 0
      %s278 = sshll.u32 %s59, 4
      %s279 = int_to_ptr.hbm [resolvable:$true] %s278
      %s280 = sshll.u32 [#allocation22], 4
      %s281 = int_to_ptr.vmem [resolvable:$true] %s280
      %286 = dma.hbm_to_vmem [thread:$0]  %s279, 32, %s281, [#allocation21], 16, 16, 1
    $region121: #{transformer_forward.1} parent=1 // pred_fallthru
      _
    // Predicated region
    $region122: #{transformer_forward.1} parent=1 // pred_check
      _
    $region123: #{transformer_forward.1} parent=1 // pred_check_branch
      %288 = sbr.rel (0) target = $region125
    $region124: #{transformer_forward.1} parent=1 // pred_region
      _
    $region125: #{transformer_forward.1} parent=1 // pred_fallthru
      _
    // Predicated region
    $region126: #{transformer_forward.1} parent=1 // pred_check
      _
    $region127: #{transformer_forward.1} parent=1 // pred_check_branch
      %290 = sbr.rel (0) target = $region129
    $region128: #{transformer_forward.1} parent=1 // pred_region
      %292 = vsyncadd [#allocation24], 0
      %s293 = sshll.u32 %s63, 4
      %s294 = int_to_ptr.hbm [resolvable:$true] %s293
      %s295 = sshll.u32 [#allocation23], 4
      %s296 = int_to_ptr.vmem [resolvable:$true] %s295
      %301 = dma.hbm_to_vmem [thread:$0]  %s294, 32, %s296, [#allocation24], 16, 16, 1
    $region129: #{transformer_forward.1} parent=1 // pred_fallthru
      _
    // Predicated region
    $region130: #{transformer_forward.1} parent=1 // pred_check
      _
    $region131: #{transformer_forward.1} parent=1 // pred_check_branch
      %303 = sbr.rel (0) target = $region133
    $region132: #{transformer_forward.1} parent=1 // pred_region
      %305 = vsyncadd [#allocation24], 0
      %s306 = sshll.u32 %s65, 4
      %s307 = int_to_ptr.hbm [resolvable:$true] %s306
      %s308 = sshll.u32 [#allocation25], 4
      %s309 = int_to_ptr.vmem [resolvable:$true] %s308
      %314 = dma.hbm_to_vmem [thread:$0]  %s307, 512, %s309, [#allocation24], 128, 128, 8
    $region133: #{transformer_forward.1} parent=1 // pred_fallthru
      _
    // Predicated region
    $region134: #{transformer_forward.1} parent=1 // pred_check
      _
    $region135: #{transformer_forward.1} parent=1 // pred_check_branch
      %316 = sbr.rel (0) target = $region137
    $region136: #{transformer_forward.1} parent=1 // pred_region
      %318 = vsyncadd [#allocation27], 0
      %s320 = sshll.u32 %s67, 4
      %s321 = int_to_ptr.hbm [resolvable:$true] %s320
      %s322 = sshll.u32 [#allocation26], 4
      %s323 = int_to_ptr.vmem [resolvable:$true] %s322
      %325 = dma.hbm_to_vmem [thread:$0]  %s321, 16, %s323, [#allocation27]
    $region137: #{transformer_forward.1} parent=1 // pred_fallthru
      _
    // Predicated region
    $region138: #{transformer_forward.1} parent=1 // pred_check
      _
    $region139: #{transformer_forward.1} parent=1 // pred_check_branch
      %327 = sbr.rel (0) target = $region141
    $region140: #{transformer_forward.1} parent=1 // pred_region
      %329 = dma.done [#allocation3], 32
    $region141: #{transformer_forward.1} parent=1 // pred_fallthru
      _
    // Predicated region
    $region142: #{transformer_forward.1} parent=1 // pred_check
      _
    $region143: #{transformer_forward.1} parent=1 // pred_check_branch
      %331 = sbr.rel (0) target = $region145
    $region144: #{transformer_forward.1} parent=1 // pred_region
      %333 = dma.done [#allocation6], 32
    $region145: #{transformer_forward.1} parent=1 // pred_fallthru
      _
    // Predicated region
    $region146: #{transformer_forward.1} parent=1 // pred_check
      _
    $region147: #{transformer_forward.1} parent=1 // pred_check_branch
      %335 = sbr.rel (0) target = $region149
    $region148: #{transformer_forward.1} parent=1 // pred_region
      %337 = dma.done [#allocation6], 32
    $region149: #{transformer_forward.1} parent=1 // pred_fallthru
      _
    // Predicated region
    $region150: #{transformer_forward.1} parent=1 // pred_check
      _
    $region151: #{transformer_forward.1} parent=1 // pred_check_branch
      %339 = sbr.rel (0) target = $region153
    $region152: #{transformer_forward.1} parent=1 // pred_region
      %341 = dma.done [#allocation9], 32
    $region153: #{transformer_forward.1} parent=1 // pred_fallthru
      _
    // Predicated region
    $region154: #{transformer_forward.1} parent=1 // pred_check
      _
    $region155: #{transformer_forward.1} parent=1 // pred_check_branch
      %343 = sbr.rel (0) target = $region157
    $region156: #{transformer_forward.1} parent=1 // pred_region
      %345 = dma.done [#allocation9], 32
    $region157: #{transformer_forward.1} parent=1 // pred_fallthru
      _
    // Predicated region
    $region158: #{transformer_forward.1} parent=1 // pred_check
      _
    $region159: #{transformer_forward.1} parent=1 // pred_check_branch
      %347 = sbr.rel (0) target = $region161
    $region160: #{transformer_forward.1} parent=1 // pred_region
      %349 = dma.done [#allocation12], 32
    $region161: #{transformer_forward.1} parent=1 // pred_fallthru
      _
    // Predicated region
    $region162: #{transformer_forward.1} parent=1 // pred_check
      _
    $region163: #{transformer_forward.1} parent=1 // pred_check_branch
      %351 = sbr.rel (0) target = $region165
    $region164: #{transformer_forward.1} parent=1 // pred_region
      %353 = dma.done [#allocation12], 32
    $region165: #{transformer_forward.1} parent=1 // pred_fallthru
      _
    // Predicated region
    $region166: #{transformer_forward.1} parent=1 // pred_check
      _
    $region167: #{transformer_forward.1} parent=1 // pred_check_branch
      %355 = sbr.rel (0) target = $region169
    $region168: #{transformer_forward.1} parent=1 // pred_region
      %357 = dma.done [#allocation15], 1024
    $region169: #{transformer_forward.1} parent=1 // pred_fallthru
      _
    // Predicated region
    $region170: #{transformer_forward.1} parent=1 // pred_check
      _
    $region171: #{transformer_forward.1} parent=1 // pred_check_branch
      %359 = sbr.rel (0) target = $region173
    $region172: #{transformer_forward.1} parent=1 // pred_region
      %361 = dma.done [#allocation15], 32
    $region173: #{transformer_forward.1} parent=1 // pred_fallthru
      _
    // Predicated region
    $region174: #{transformer_forward.1} parent=1 // pred_check
      _
    $region175: #{transformer_forward.1} parent=1 // pred_check_branch
      %363 = sbr.rel (0) target = $region177
    $region176: #{transformer_forward.1} parent=1 // pred_region
      %365 = dma.done [#allocation18], 1024
    $region177: #{transformer_forward.1} parent=1 // pred_fallthru
      _
    // Predicated region
    $region178: #{transformer_forward.1} parent=1 // pred_check
      _
    $region179: #{transformer_forward.1} parent=1 // pred_check_branch
      %367 = sbr.rel (0) target = $region181
    $region180: #{transformer_forward.1} parent=1 // pred_region
      %369 = dma.done [#allocation18], 32
    $region181: #{transformer_forward.1} parent=1 // pred_fallthru
      _
    // Predicated region
    $region182: #{transformer_forward.1} parent=1 // pred_check
      _
    $region183: #{transformer_forward.1} parent=1 // pred_check_branch
      %371 = sbr.rel (0) target = $region185
    $region184: #{transformer_forward.1} parent=1 // pred_region
      %373 = dma.done [#allocation21], 1024
    $region185: #{transformer_forward.1} parent=1 // pred_fallthru
      _
    // Predicated region
    $region186: #{transformer_forward.1} parent=1 // pred_check
      _
    $region187: #{transformer_forward.1} parent=1 // pred_check_branch
      %375 = sbr.rel (0) target = $region189
    $region188: #{transformer_forward.1} parent=1 // pred_region
      %377 = dma.done [#allocation21], 32
    $region189: #{transformer_forward.1} parent=1 // pred_fallthru
      _
    // Predicated region
    $region190: #{transformer_forward.1} parent=1 // pred_check
      _
    $region191: #{transformer_forward.1} parent=1 // pred_check_branch
      %379 = sbr.rel (0) target = $region193
    $region192: #{transformer_forward.1} parent=1 // pred_region
      %381 = dma.done [#allocation24], 32
    $region193: #{transformer_forward.1} parent=1 // pred_fallthru
      _
    // Predicated region
    $region194: #{transformer_forward.1} parent=1 // pred_check
      _
    $region195: #{transformer_forward.1} parent=1 // pred_check_branch
      %383 = sbr.rel (0) target = $region197
    $region196: #{transformer_forward.1} parent=1 // pred_region
      %385 = dma.done [#allocation24], 512
    $region197: #{transformer_forward.1} parent=1 // pred_fallthru
      _
    // Predicated region
    $region198: #{transformer_forward.1} parent=1 // pred_check
      _
    $region199: #{transformer_forward.1} parent=1 // pred_check_branch
      %387 = sbr.rel (0) target = $region201
    $region200: #{transformer_forward.1} parent=1 // pred_region
      %389 = dma.done [#allocation27], 16
    $region201: #{transformer_forward.1} parent=1 // pred_fallthru
      _
    %v390 = vld [vmem:[%s9] sm:$0xff]
    %v391 = vlaneseq
    %v392 = vshrl.u32 %v391, 7
    %v393 = vlaneseq
    %v394 = vand.u32 %v393, 127
    %vm395 = vcmp.le.s32.totalorder %v394, %v392
    %v396 = vsel %vm395, 0.0, -1e+30
    %v397 = vld [vmem:[%s1] sm:$0xff]
    %398 = vset.pattern.permute.xlu0 0
    %399 = vperm.xlu0 %398, %v397
    %v400 = vpop.permute.xlu0 %399
    %vm401 = vcmp.eq.s32.totalorder %v394, %v400
    %v402 = vsel %vm401, 1, 0
    %v403 = vcvt.s32.f32 %v402
    %v404 = vld [vmem:[%s5] sm:$0xff]
    %v405 = vld [vmem:[%s5 + $0x8] sm:$0xff]
    %v406 = vld [vmem:[%s5 + $0x10] sm:$0xff]
    %v407 = vld [vmem:[%s5 + $0x18] sm:$0xff]
    %v408 = vld [vmem:[%s5 + $0x20] sm:$0xff]
    %vm409 = vcmask 326656
    %v411 = vsel %vm409, %v403, 0
    %413 = vmatpush.msra.mxu0 0.0
    %414 = vmatpush.msra.mxu0 0.0
    %415 = vmatpush.msra.mxu0 0.0
    %416 = vmatpush.msra.mxu0 0.0
    %417 = vmatpush.msra.mxu0 0.0
    %418 = vmatpush.msra.mxu0 0.0
    %419 = vmatpush.msra.mxu0 0.0
    %420 = vmatpush.msra.mxu0 0.0
    %421 = vmatpush.msra.mxu0 0.0
    %422 = vmatpush.msra.mxu0 0.0
    %423 = vmatpush.msra.mxu0 0.0
    %424 = vmatpush.msra.mxu0 %v408
    %425 = vmatpush.msra.mxu0 %v407
    %426 = vmatpush.msra.mxu0 %v406
    %427 = vmatpush.msra.mxu0 %v405
    %428 = vmatpush.msra.mxu0 %v404
    %429 = vmatmul.f32.gmra.mxu0 %v411
    %v430 = vpop.f32.mrf.mxu0
    %v431 = vadd.f32 0.0, %v430
    %432 = vdwg.mxu0
    %v433 = vmul.f32 %v431, 5.656854
    %v434 = vadd.f32 %v433, %v390
    %v435 = vld [vmem:[%s11] sm:$0xff]
    %v436 = vld [vmem:[%s11 + $0x8] sm:$0xff]
    %v437 = vld [vmem:[%s11 + $0x10] sm:$0xff]
    %v438 = vld [vmem:[%s11 + $0x18] sm:$0xff]
    %v439 = vld [vmem:[#allocation2] sm:$0x1]
    %v441 = vperm.slane %v439, 0
    %vm443 = vcmask 261120
    %v445 = vsel %vm443, %v434, 0
    %447 = vmatpush.msra.mxu0 0.0
    %448 = vmatpush.msra.mxu0 0.0
    %449 = vmatpush.msra.mxu0 0.0
    %450 = vmatpush.msra.mxu0 0.0
    %451 = vmatpush.msra.mxu0 0.0
    %452 = vmatpush.msra.mxu0 0.0
    %453 = vmatpush.msra.mxu0 0.0
    %454 = vmatpush.msra.mxu0 0.0
    %455 = vmatpush.msra.mxu0 0.0
    %456 = vmatpush.msra.mxu0 0.0
    %457 = vmatpush.msra.mxu0 0.0
    %458 = vmatpush.msra.mxu0 0.0
    %459 = vmatpush.msra.mxu0 %v438
    %460 = vmatpush.msra.mxu0 %v437
    %461 = vmatpush.msra.mxu0 %v436
    %462 = vmatpush.msra.mxu0 %v435
    %463 = vmatmul.f32.gmra.mxu0 %v445
    %v464 = vpop.f32.mrf.mxu0
    %v465 = vadd.f32 %v441, %v464
    %466 = vdwg.mxu0
    %v467 = vld [vmem:[%s15] sm:$0xff]
    %v468 = vld [vmem:[%s15 + $0x8] sm:$0xff]
    %v469 = vld [vmem:[%s15 + $0x10] sm:$0xff]
    %v470 = vld [vmem:[%s15 + $0x18] sm:$0xff]
    %v471 = vld [vmem:[#allocation5] sm:$0x1]
    %473 = vrot.lane.b32.xlu0 %v465, 96
    %v474 = vpop.permute.xlu0 %473
    %vm475 = vcmask 64512
    %v476 = vsel %vm475, %v465, 0
    %v478 = vsel %vm475, %v474, 0
    %480 = vmatpush.xpose.msra.mxu0 0.0
    %481 = vmatpush.xpose.msra.mxu0 0.0
    %482 = vmatpush.xpose.msra.mxu0 0.0
    %483 = vmatpush.xpose.msra.mxu0 0.0
    %484 = vmatpush.xpose.msra.mxu0 0.0
    %485 = vmatpush.xpose.msra.mxu0 0.0
    %486 = vmatpush.xpose.msra.mxu0 0.0
    %487 = vmatpush.xpose.msra.mxu0 0.0
    %488 = vmatpush.xpose.msra.mxu0 0.0
    %489 = vmatpush.xpose.msra.mxu0 0.0
    %490 = vmatpush.xpose.msra.mxu0 0.0
    %491 = vmatpush.xpose.msra.mxu0 0.0
    %492 = vmatpush.xpose.msra.mxu0 0.0
    %493 = vmatpush.xpose.msra.mxu0 0.0
    %494 = vmatpush.xpose.msra.mxu0 0.0
    %495 = vmatpush.xpose.msra.mxu0 %v478
    %496 = vmatmul.f32.gmra.mxu0 %v476
    %v497 = vpop.f32.mrf.mxu0
    %v498 = vadd.f32 0.0, %v497
    %499 = vdwg.mxu0
    %v500 = vmul.f32 %v498, 0.35355338
    %v501 = vadd.f32 %v500, %v396
    %v502 = vsel %vm475, %v501, -inf
    %503 = vmax.xlane.f32.xlu0 %v502
    %v504 = vpop.xlane.xlu0 %503
    %v505 = vsub.f32 %v501, %v504
    %v506 = vmul.f32 %v505, 1.442695
    %v507 = vpow.pop %v506
    %v508 = vsel %vm475, %v507, 0.0
    %509 = vadd.xlane.f32.xlu0 %v508
    %v510 = vpop.xlane.xlu0 %509
    %v511 = vrcp.pop %v510
    %v512 = vmul.f32 %v510, %v511
    %v513 = vsub.f32 1.0, %v512
    %v514 = vmul.f32 %v511, %v513
    %v515 = vadd.f32 %v511, %v514
    %vm516 = vweird.f32 %v510
    %vm517 = vweird.f32 %v511
    %vm518 = vmor %vm516, %vm517
    %v519 = vsel %vm518, %v511, %v515
    %v520 = vand.u32 2147483647, %v510
    %vm521 = vcmp.eq.f32.partialorder %v520, 8.507059e+37
    %v522 = vand.u32 %v510, 2147483648
    %v523 = vor.u32 1.1754944e-38, %v522
    %v524 = vsel %vm521, %v523, %v519
    %v525 = vmul.f32 %v507, %v524
    %526 = vrot.lane.b32.xlu0 %v465, 64
    %v527 = vpop.permute.xlu0 %526
    %v530 = vsel %vm475, %v525, 0
    %532 = vmatpush.msra.mxu0 0.0
    %533 = vmatpush.msra.mxu0 0.0
    %534 = vmatpush.msra.mxu0 0.0
    %535 = vmatpush.msra.mxu0 0.0
    %536 = vmatpush.msra.mxu0 0.0
    %537 = vmatpush.msra.mxu0 0.0
    %538 = vmatpush.msra.mxu0 0.0
    %539 = vmatpush.msra.mxu0 0.0
    %540 = vmatpush.msra.mxu0 0.0
    %541 = vmatpush.msra.mxu0 0.0
    %542 = vmatpush.msra.mxu0 0.0
    %543 = vmatpush.msra.mxu0 0.0
    %544 = vmatpush.msra.mxu0 0.0
    %545 = vmatpush.msra.mxu0 0.0
    %546 = vmatpush.msra.mxu0 0.0
    %547 = vmatpush.msra.mxu0 %v527
    %548 = vmatmul.f32.gmra.mxu0 %v530
    %v549 = vpop.f32.mrf.mxu0
    %v550 = vadd.f32 0.0, %v549
    %551 = vdwg.mxu0
    %552 = vrot.lane.b32.xlu0 %v465, 120
    %v553 = vpop.permute.xlu0 %552
    %554 = vrot.lane.b32.xlu0 %v465, 88
    %v555 = vpop.permute.xlu0 %554
    %v556 = vsel %vm475, %v553, 0
    %v558 = vsel %vm475, %v555, 0
    %560 = vmatpush.xpose.msra.mxu0 0.0
    %561 = vmatpush.xpose.msra.mxu0 0.0
    %562 = vmatpush.xpose.msra.mxu0 0.0
    %563 = vmatpush.xpose.msra.mxu0 0.0
    %564 = vmatpush.xpose.msra.mxu0 0.0
    %565 = vmatpush.xpose.msra.mxu0 0.0
    %566 = vmatpush.xpose.msra.mxu0 0.0
    %567 = vmatpush.xpose.msra.mxu0 0.0
    %568 = vmatpush.xpose.msra.mxu0 0.0
    %569 = vmatpush.xpose.msra.mxu0 0.0
    %570 = vmatpush.xpose.msra.mxu0 0.0
    %571 = vmatpush.xpose.msra.mxu0 0.0
    %572 = vmatpush.xpose.msra.mxu0 0.0
    %573 = vmatpush.xpose.msra.mxu0 0.0
    %574 = vmatpush.xpose.msra.mxu0 0.0
    %575 = vmatpush.xpose.msra.mxu0 %v558
    %576 = vmatmul.f32.gmra.mxu0 %v556
    %v577 = vpop.f32.mrf.mxu0
    %v578 = vadd.f32 0.0, %v577
    %579 = vdwg.mxu0
    %v580 = vmul.f32 %v578, 0.35355338
    %v581 = vadd.f32 %v580, %v396
    %v582 = vsel %vm475, %v581, -inf
    %583 = vmax.xlane.f32.xlu0 %v582
    %v584 = vpop.xlane.xlu0 %583
    %v585 = vsub.f32 %v581, %v584
    %v586 = vmul.f32 %v585, 1.442695
    %v587 = vpow.pop %v586
    %v588 = vsel %vm475, %v587, 0.0
    %589 = vadd.xlane.f32.xlu0 %v588
    %v590 = vpop.xlane.xlu0 %589
    %v591 = vrcp.pop %v590
    %v592 = vmul.f32 %v590, %v591
    %v593 = vsub.f32 1.0, %v592
    %v594 = vmul.f32 %v591, %v593
    %v595 = vadd.f32 %v591, %v594
    %vm596 = vweird.f32 %v590
    %vm597 = vweird.f32 %v591
    %vm598 = vmor %vm596, %vm597
    %v599 = vsel %vm598, %v591, %v595
    %v600 = vand.u32 2147483647, %v590
    %vm601 = vcmp.eq.f32.partialorder %v600, 8.507059e+37
    %v602 = vand.u32 %v590, 2147483648
    %v603 = vor.u32 1.1754944e-38, %v602
    %v604 = vsel %vm601, %v603, %v599
    %v605 = vmul.f32 %v587, %v604
    %606 = vrot.lane.b32.xlu0 %v465, 56
    %v607 = vpop.permute.xlu0 %606
    %v610 = vsel %vm475, %v605, 0
    %612 = vmatpush.msra.mxu0 0.0
    %613 = vmatpush.msra.mxu0 0.0
    %614 = vmatpush.msra.mxu0 0.0
    %615 = vmatpush.msra.mxu0 0.0
    %616 = vmatpush.msra.mxu0 0.0
    %617 = vmatpush.msra.mxu0 0.0
    %618 = vmatpush.msra.mxu0 0.0
    %619 = vmatpush.msra.mxu0 0.0
    %620 = vmatpush.msra.mxu0 0.0
    %621 = vmatpush.msra.mxu0 0.0
    %622 = vmatpush.msra.mxu0 0.0
    %623 = vmatpush.msra.mxu0 0.0
    %624 = vmatpush.msra.mxu0 0.0
    %625 = vmatpush.msra.mxu0 0.0
    %626 = vmatpush.msra.mxu0 0.0
    %627 = vmatpush.msra.mxu0 %v607
    %628 = vmatmul.f32.gmra.mxu0 %v610
    %v629 = vpop.f32.mrf.mxu0
    %v630 = vadd.f32 0.0, %v629
    %631 = vdwg.mxu0
    %v633 = vsel %vm475, %v630, 0
    %635 = vmatpush.msra.mxu0 0.0
    %636 = vmatpush.msra.mxu0 0.0
    %637 = vmatpush.msra.mxu0 0.0
    %638 = vmatpush.msra.mxu0 0.0
    %639 = vmatpush.msra.mxu0 0.0
    %640 = vmatpush.msra.mxu0 0.0
    %641 = vmatpush.msra.mxu0 0.0
    %642 = vmatpush.msra.mxu0 0.0
    %643 = vmatpush.msra.mxu0 0.0
    %644 = vmatpush.msra.mxu0 0.0
    %645 = vmatpush.msra.mxu0 0.0
    %646 = vmatpush.msra.mxu0 0.0
    %647 = vmatpush.msra.mxu0 0.0
    %648 = vmatpush.msra.mxu0 0.0
    %649 = vmatpush.msra.mxu0 0.0
    %650 = vmatpush.msra.mxu0 %v468
    %651 = vmatmul.f32.gmra.mxu0 %v633
    %v652 = vpop.f32.mrf.mxu0
    %v653 = vadd.f32 0.0, %v652
    %654 = vdwg.mxu0
    %v656 = vsel %vm475, %v550, 0
    %658 = vmatpush.msra.mxu0 0.0
    %659 = vmatpush.msra.mxu0 0.0
    %660 = vmatpush.msra.mxu0 0.0
    %661 = vmatpush.msra.mxu0 0.0
    %662 = vmatpush.msra.mxu0 0.0
    %663 = vmatpush.msra.mxu0 0.0
    %664 = vmatpush.msra.mxu0 0.0
    %665 = vmatpush.msra.mxu0 0.0
    %666 = vmatpush.msra.mxu0 0.0
    %667 = vmatpush.msra.mxu0 0.0
    %668 = vmatpush.msra.mxu0 0.0
    %669 = vmatpush.msra.mxu0 0.0
    %670 = vmatpush.msra.mxu0 0.0
    %671 = vmatpush.msra.mxu0 0.0
    %672 = vmatpush.msra.mxu0 0.0
    %673 = vmatpush.msra.mxu0 %v467
    %674 = vmatmul.f32.gmra.mxu0 %v656
    %v675 = vpop.f32.mrf.mxu0
    %v676 = vadd.f32 %v653, %v675
    %677 = vdwg.mxu0
    %678 = vrot.lane.b32.xlu0 %v465, 112
    %v679 = vpop.permute.xlu0 %678
    %680 = vrot.lane.b32.xlu0 %v465, 80
    %v681 = vpop.permute.xlu0 %680
    %v682 = vsel %vm475, %v679, 0
    %v684 = vsel %vm475, %v681, 0
    %686 = vmatpush.xpose.msra.mxu0 0.0
    %687 = vmatpush.xpose.msra.mxu0 0.0
    %688 = vmatpush.xpose.msra.mxu0 0.0
    %689 = vmatpush.xpose.msra.mxu0 0.0
    %690 = vmatpush.xpose.msra.mxu0 0.0
    %691 = vmatpush.xpose.msra.mxu0 0.0
    %692 = vmatpush.xpose.msra.mxu0 0.0
    %693 = vmatpush.xpose.msra.mxu0 0.0
    %694 = vmatpush.xpose.msra.mxu0 0.0
    %695 = vmatpush.xpose.msra.mxu0 0.0
    %696 = vmatpush.xpose.msra.mxu0 0.0
    %697 = vmatpush.xpose.msra.mxu0 0.0
    %698 = vmatpush.xpose.msra.mxu0 0.0
    %699 = vmatpush.xpose.msra.mxu0 0.0
    %700 = vmatpush.xpose.msra.mxu0 0.0
    %701 = vmatpush.xpose.msra.mxu0 %v684
    %702 = vmatmul.f32.gmra.mxu0 %v682
    %v703 = vpop.f32.mrf.mxu0
    %v704 = vadd.f32 0.0, %v703
    %705 = vdwg.mxu0
    %v706 = vmul.f32 %v704, 0.35355338
    %v707 = vadd.f32 %v706, %v396
    %v708 = vsel %vm475, %v707, -inf
    %709 = vmax.xlane.f32.xlu0 %v708
    %v710 = vpop.xlane.xlu0 %709
    %v711 = vsub.f32 %v707, %v710
    %v712 = vmul.f32 %v711, 1.442695
    %v713 = vpow.pop %v712
    %v714 = vsel %vm475, %v713, 0.0
    %715 = vadd.xlane.f32.xlu0 %v714
    %v716 = vpop.xlane.xlu0 %715
    %v717 = vrcp.pop %v716
    %v718 = vmul.f32 %v716, %v717
    %v719 = vsub.f32 1.0, %v718
    %v720 = vmul.f32 %v717, %v719
    %v721 = vadd.f32 %v717, %v720
    %vm722 = vweird.f32 %v716
    %vm723 = vweird.f32 %v717
    %vm724 = vmor %vm722, %vm723
    %v725 = vsel %vm724, %v717, %v721
    %v726 = vand.u32 2147483647, %v716
    %vm727 = vcmp.eq.f32.partialorder %v726, 8.507059e+37
    %v728 = vand.u32 %v716, 2147483648
    %v729 = vor.u32 1.1754944e-38, %v728
    %v730 = vsel %vm727, %v729, %v725
    %v731 = vmul.f32 %v713, %v730
    %732 = vrot.lane.b32.xlu0 %v465, 48
    %v733 = vpop.permute.xlu0 %732
    %v736 = vsel %vm475, %v731, 0
    %738 = vmatpush.msra.mxu0 0.0
    %739 = vmatpush.msra.mxu0 0.0
    %740 = vmatpush.msra.mxu0 0.0
    %741 = vmatpush.msra.mxu0 0.0
    %742 = vmatpush.msra.mxu0 0.0
    %743 = vmatpush.msra.mxu0 0.0
    %744 = vmatpush.msra.mxu0 0.0
    %745 = vmatpush.msra.mxu0 0.0
    %746 = vmatpush.msra.mxu0 0.0
    %747 = vmatpush.msra.mxu0 0.0
    %748 = vmatpush.msra.mxu0 0.0
    %749 = vmatpush.msra.mxu0 0.0
    %750 = vmatpush.msra.mxu0 0.0
    %751 = vmatpush.msra.mxu0 0.0
    %752 = vmatpush.msra.mxu0 0.0
    %753 = vmatpush.msra.mxu0 %v733
    %754 = vmatmul.f32.gmra.mxu0 %v736
    %v755 = vpop.f32.mrf.mxu0
    %v756 = vadd.f32 0.0, %v755
    %757 = vdwg.mxu0
    %v759 = vsel %vm475, %v756, 0
    %761 = vmatpush.msra.mxu0 0.0
    %762 = vmatpush.msra.mxu0 0.0
    %763 = vmatpush.msra.mxu0 0.0
    %764 = vmatpush.msra.mxu0 0.0
    %765 = vmatpush.msra.mxu0 0.0
    %766 = vmatpush.msra.mxu0 0.0
    %767 = vmatpush.msra.mxu0 0.0
    %768 = vmatpush.msra.mxu0 0.0
    %769 = vmatpush.msra.mxu0 0.0
    %770 = vmatpush.msra.mxu0 0.0
    %771 = vmatpush.msra.mxu0 0.0
    %772 = vmatpush.msra.mxu0 0.0
    %773 = vmatpush.msra.mxu0 0.0
    %774 = vmatpush.msra.mxu0 0.0
    %775 = vmatpush.msra.mxu0 0.0
    %776 = vmatpush.msra.mxu0 %v469
    %777 = vmatmul.f32.gmra.mxu0 %v759
    %v778 = vpop.f32.mrf.mxu0
    %v779 = vadd.f32 0.0, %v778
    %780 = vdwg.mxu0
    %v781 = vadd.f32 %v676, %v779
    %782 = vrot.lane.b32.xlu0 %v465, 104
    %v783 = vpop.permute.xlu0 %782
    %784 = vrot.lane.b32.xlu0 %v465, 72
    %v785 = vpop.permute.xlu0 %784
    %v786 = vsel %vm475, %v783, 0
    %v788 = vsel %vm475, %v785, 0
    %790 = vmatpush.xpose.msra.mxu0 0.0
    %791 = vmatpush.xpose.msra.mxu0 0.0
    %792 = vmatpush.xpose.msra.mxu0 0.0
    %793 = vmatpush.xpose.msra.mxu0 0.0
    %794 = vmatpush.xpose.msra.mxu0 0.0
    %795 = vmatpush.xpose.msra.mxu0 0.0
    %796 = vmatpush.xpose.msra.mxu0 0.0
    %797 = vmatpush.xpose.msra.mxu0 0.0
    %798 = vmatpush.xpose.msra.mxu0 0.0
    %799 = vmatpush.xpose.msra.mxu0 0.0
    %800 = vmatpush.xpose.msra.mxu0 0.0
    %801 = vmatpush.xpose.msra.mxu0 0.0
    %802 = vmatpush.xpose.msra.mxu0 0.0
    %803 = vmatpush.xpose.msra.mxu0 0.0
    %804 = vmatpush.xpose.msra.mxu0 0.0
    %805 = vmatpush.xpose.msra.mxu0 %v788
    %806 = vmatmul.f32.gmra.mxu0 %v786
    %v807 = vpop.f32.mrf.mxu0
    %v808 = vadd.f32 0.0, %v807
    %809 = vdwg.mxu0
    %v810 = vmul.f32 %v808, 0.35355338
    %v811 = vadd.f32 %v810, %v396
    %v812 = vsel %vm475, %v811, -inf
    %813 = vmax.xlane.f32.xlu0 %v812
    %v814 = vpop.xlane.xlu0 %813
    %v815 = vsub.f32 %v811, %v814
    %v816 = vmul.f32 %v815, 1.442695
    %v817 = vpow.pop %v816
    %v818 = vsel %vm475, %v817, 0.0
    %819 = vadd.xlane.f32.xlu0 %v818
    %v820 = vpop.xlane.xlu0 %819
    %v821 = vrcp.pop %v820
    %v822 = vmul.f32 %v820, %v821
    %v823 = vsub.f32 1.0, %v822
    %v824 = vmul.f32 %v821, %v823
    %v825 = vadd.f32 %v821, %v824
    %vm826 = vweird.f32 %v820
    %vm827 = vweird.f32 %v821
    %vm828 = vmor %vm826, %vm827
    %v829 = vsel %vm828, %v821, %v825
    %v830 = vand.u32 2147483647, %v820
    %vm831 = vcmp.eq.f32.partialorder %v830, 8.507059e+37
    %v832 = vand.u32 %v820, 2147483648
    %v833 = vor.u32 1.1754944e-38, %v832
    %v834 = vsel %vm831, %v833, %v829
    %v835 = vmul.f32 %v817, %v834
    %836 = vrot.lane.b32.xlu0 %v465, 40
    %v837 = vpop.permute.xlu0 %836
    %v840 = vsel %vm475, %v835, 0
    %842 = vmatpush.msra.mxu0 0.0
    %843 = vmatpush.msra.mxu0 0.0
    %844 = vmatpush.msra.mxu0 0.0
    %845 = vmatpush.msra.mxu0 0.0
    %846 = vmatpush.msra.mxu0 0.0
    %847 = vmatpush.msra.mxu0 0.0
    %848 = vmatpush.msra.mxu0 0.0
    %849 = vmatpush.msra.mxu0 0.0
    %850 = vmatpush.msra.mxu0 0.0
    %851 = vmatpush.msra.mxu0 0.0
    %852 = vmatpush.msra.mxu0 0.0
    %853 = vmatpush.msra.mxu0 0.0
    %854 = vmatpush.msra.mxu0 0.0
    %855 = vmatpush.msra.mxu0 0.0
    %856 = vmatpush.msra.mxu0 0.0
    %857 = vmatpush.msra.mxu0 %v837
    %858 = vmatmul.f32.gmra.mxu0 %v840
    %v859 = vpop.f32.mrf.mxu0
    %v860 = vadd.f32 0.0, %v859
    %861 = vdwg.mxu0
    %v863 = vsel %vm475, %v860, 0
    %865 = vmatpush.msra.mxu0 0.0
    %866 = vmatpush.msra.mxu0 0.0
    %867 = vmatpush.msra.mxu0 0.0
    %868 = vmatpush.msra.mxu0 0.0
    %869 = vmatpush.msra.mxu0 0.0
    %870 = vmatpush.msra.mxu0 0.0
    %871 = vmatpush.msra.mxu0 0.0
    %872 = vmatpush.msra.mxu0 0.0
    %873 = vmatpush.msra.mxu0 0.0
    %874 = vmatpush.msra.mxu0 0.0
    %875 = vmatpush.msra.mxu0 0.0
    %876 = vmatpush.msra.mxu0 0.0
    %877 = vmatpush.msra.mxu0 0.0
    %878 = vmatpush.msra.mxu0 0.0
    %879 = vmatpush.msra.mxu0 0.0
    %880 = vmatpush.msra.mxu0 %v470
    %881 = vmatmul.f32.gmra.mxu0 %v863
    %v882 = vpop.f32.mrf.mxu0
    %v883 = vadd.f32 0.0, %v882
    %884 = vdwg.mxu0
    %v885 = vadd.f32 %v781, %v883
    %v887 = vperm.slane %v471, 0
    %v889 = vadd.f32 %v885, %v887
    %v890 = vadd.f32 %v434, %v889
    %v891 = vld [vmem:[%s19] sm:$0x3]
    %v892 = vsel %vm443, %v890, 0.0
    %893 = vadd.xlane.f32.xlu0 %v892
    %v894 = vpop.xlane.xlu0 %893
    %v895 = vrcp.pop 32.0
    %v896 = vmul.f32 32.0, %v895
    %v897 = vsub.f32 1.0, %v896
    %v898 = vmul.f32 %v895, %v897
    %v899 = vadd.f32 %v895, %v898
    %vm900 = vweird.f32 %v895
    %v901 = vsel %vm900, %v895, %v899
    %v902 = vmul.f32 %v894, %v901
    %v903 = vsub.f32 %v890, %v902
    %v904 = vmul.f32 %v903, %v903
    %v905 = vsel %vm443, %v904, 0.0
    %906 = vadd.xlane.f32.xlu0 %v905
    %v907 = vpop.xlane.xlu0 %906
    %v908 = vmul.f32 %v907, %v901
    %v909 = vadd.f32 %v908, 1e-05
    %v910 = vrsqrt.pop %v909
    %v911 = vmul.f32 %v910, %v909
    %v912 = vmul.f32 %v911, %v910
    %v913 = vmul.f32 0.5, %v912
    %v914 = vsub.f32 1.5, %v913
    %v915 = vmul.f32 %v910, %v914
    %vm916 = vweird.f32 %v909
    %vm917 = vweird.f32 %v910
    %vm918 = vmor %vm916, %vm917
    %v919 = vsel %vm918, %v910, %v915
    %v920 = vmul.f32 %v903, %v919
    %v921 = vperm.slane %v891, 0
    %v922 = vmul.f32 %v920, %v921
    %v923 = vperm.slane %v891, 1
    %v924 = vadd.f32 %v922, %v923
    %v925 = vld [vmem:[%s21] sm:$0xff]
    %v926 = vld [vmem:[%s21 + $0x8] sm:$0xff]
    %v927 = vld [vmem:[%s21 + $0x10] sm:$0xff]
    %v928 = vld [vmem:[%s21 + $0x18] sm:$0xff]
    %v929 = vld [vmem:[#allocation7] sm:$0x1]
    %v931 = vperm.slane %v929, 0
    %v934 = vsel %vm443, %v924, 0
    %936 = vmatpush.msra.mxu0 0.0
    %937 = vmatpush.msra.mxu0 0.0
    %938 = vmatpush.msra.mxu0 0.0
    %939 = vmatpush.msra.mxu0 0.0
    %940 = vmatpush.msra.mxu0 0.0
    %941 = vmatpush.msra.mxu0 0.0
    %942 = vmatpush.msra.mxu0 0.0
    %943 = vmatpush.msra.mxu0 0.0
    %944 = vmatpush.msra.mxu0 0.0
    %945 = vmatpush.msra.mxu0 0.0
    %946 = vmatpush.msra.mxu0 0.0
    %947 = vmatpush.msra.mxu0 0.0
    %948 = vmatpush.msra.mxu0 %v928
    %949 = vmatpush.msra.mxu0 %v927
    %950 = vmatpush.msra.mxu0 %v926
    %951 = vmatpush.msra.mxu0 %v925
    %952 = vmatmul.f32.gmra.mxu0 %v934
    %v953 = vpop.f32.mrf.mxu0
    %v954 = vadd.f32 %v931, %v953
    %955 = vdwg.mxu0
    %v956 = vmax.f32 %v954, 0.0
    %v957 = vld [vmem:[%s25] sm:$0xff]
    %v958 = vld [vmem:[%s25 + $0x8] sm:$0xff]
    %v959 = vld [vmem:[%s25 + $0x10] sm:$0xff]
    %v960 = vld [vmem:[%s25 + $0x18] sm:$0xff]
    %v961 = vld [vmem:[%s25 + $0x20] sm:$0xff]
    %v962 = vld [vmem:[%s25 + $0x28] sm:$0xff]
    %v963 = vld [vmem:[%s25 + $0x30] sm:$0xff]
    %v964 = vld [vmem:[%s25 + $0x38] sm:$0xff]
    %v965 = vld [vmem:[#allocation8] sm:$0x1]
    %v967 = vperm.slane %v965, 0
    %vm969 = vcmask 523264
    %v971 = vsel %vm969, %v956, 0
    %973 = vmatpush.msra.mxu0 0.0
    %974 = vmatpush.msra.mxu0 0.0
    %975 = vmatpush.msra.mxu0 0.0
    %976 = vmatpush.msra.mxu0 0.0
    %977 = vmatpush.msra.mxu0 0.0
    %978 = vmatpush.msra.mxu0 0.0
    %979 = vmatpush.msra.mxu0 0.0
    %980 = vmatpush.msra.mxu0 0.0
    %981 = vmatpush.msra.mxu0 %v964
    %982 = vmatpush.msra.mxu0 %v963
    %983 = vmatpush.msra.mxu0 %v962
    %984 = vmatpush.msra.mxu0 %v961
    %985 = vmatpush.msra.mxu0 %v960
    %986 = vmatpush.msra.mxu0 %v959
    %987 = vmatpush.msra.mxu0 %v958
    %988 = vmatpush.msra.mxu0 %v957
    %989 = vmatmul.f32.gmra.mxu0 %v971
    %v990 = vpop.f32.mrf.mxu0
    %v991 = vadd.f32 %v967, %v990
    %992 = vdwg.mxu0
    %v993 = vadd.f32 %v924, %v991
    %v994 = vld [vmem:[%s29] sm:$0x3]
    %v995 = vsel %vm443, %v993, 0.0
    %996 = vadd.xlane.f32.xlu0 %v995
    %v997 = vpop.xlane.xlu0 %996
    %v998 = vmul.f32 %v997, %v901
    %v999 = vsub.f32 %v993, %v998
    %v1000 = vmul.f32 %v999, %v999
    %v1001 = vsel %vm443, %v1000, 0.0
    %1002 = vadd.xlane.f32.xlu0 %v1001
    %v1003 = vpop.xlane.xlu0 %1002
    %v1004 = vmul.f32 %v1003, %v901
    %v1005 = vadd.f32 %v1004, 1e-05
    %v1006 = vrsqrt.pop %v1005
    %v1007 = vmul.f32 %v1006, %v1005
    %v1008 = vmul.f32 %v1007, %v1006
    %v1009 = vmul.f32 0.5, %v1008
    %v1010 = vsub.f32 1.5, %v1009
    %v1011 = vmul.f32 %v1006, %v1010
    %vm1012 = vweird.f32 %v1005
    %vm1013 = vweird.f32 %v1006
    %vm1014 = vmor %vm1012, %vm1013
    %v1015 = vsel %vm1014, %v1006, %v1011
    %v1016 = vmul.f32 %v999, %v1015
    %v1017 = vperm.slane %v994, 0
    %v1018 = vmul.f32 %v1016, %v1017
    %v1019 = vperm.slane %v994, 1
    %v1020 = vadd.f32 %v1018, %v1019
    %s1021 = scalar_lea.vmem %s11, 32
    %v1022 = vld [vmem:[%s1021] sm:$0xff]
    %v1023 = vld [vmem:[%s1021 + $0x8] sm:$0xff]
    %v1024 = vld [vmem:[%s1021 + $0x10] sm:$0xff]
    %v1025 = vld [vmem:[%s1021 + $0x18] sm:$0xff]
    %s1026 = scalar_lea.vmem [#allocation2], 1
    %v1027 = vld [vmem:[%s1026] sm:$0x1]
    %v1029 = vperm.slane %v1027, 0
    %v1032 = vsel %vm443, %v1020, 0
    %1034 = vmatpush.msra.mxu0 0.0
    %1035 = vmatpush.msra.mxu0 0.0
    %1036 = vmatpush.msra.mxu0 0.0
    %1037 = vmatpush.msra.mxu0 0.0
    %1038 = vmatpush.msra.mxu0 0.0
    %1039 = vmatpush.msra.mxu0 0.0
    %1040 = vmatpush.msra.mxu0 0.0
    %1041 = vmatpush.msra.mxu0 0.0
    %1042 = vmatpush.msra.mxu0 0.0
    %1043 = vmatpush.msra.mxu0 0.0
    %1044 = vmatpush.msra.mxu0 0.0
    %1045 = vmatpush.msra.mxu0 0.0
    %1046 = vmatpush.msra.mxu0 %v1025
    %1047 = vmatpush.msra.mxu0 %v1024
    %1048 = vmatpush.msra.mxu0 %v1023
    %1049 = vmatpush.msra.mxu0 %v1022
    %1050 = vmatmul.f32.gmra.mxu0 %v1032
    %v1051 = vpop.f32.mrf.mxu0
    %v1052 = vadd.f32 %v1029, %v1051
    %1053 = vdwg.mxu0
    %s1054 = scalar_lea.vmem %s15, 32
    %v1055 = vld [vmem:[%s1054] sm:$0xff]
    %v1056 = vld [vmem:[%s1054 + $0x8] sm:$0xff]
    %v1057 = vld [vmem:[%s1054 + $0x10] sm:$0xff]
    %v1058 = vld [vmem:[%s1054 + $0x18] sm:$0xff]
    %s1059 = scalar_lea.vmem [#allocation5], 1
    %v1060 = vld [vmem:[%s1059] sm:$0x1]
    %1062 = vrot.lane.b32.xlu0 %v1052, 96
    %v1063 = vpop.permute.xlu0 %1062
    %v1064 = vsel %vm475, %v1052, 0
    %v1066 = vsel %vm475, %v1063, 0
    %1068 = vmatpush.xpose.msra.mxu0 0.0
    %1069 = vmatpush.xpose.msra.mxu0 0.0
    %1070 = vmatpush.xpose.msra.mxu0 0.0
    %1071 = vmatpush.xpose.msra.mxu0 0.0
    %1072 = vmatpush.xpose.msra.mxu0 0.0
    %1073 = vmatpush.xpose.msra.mxu0 0.0
    %1074 = vmatpush.xpose.msra.mxu0 0.0
    %1075 = vmatpush.xpose.msra.mxu0 0.0
    %1076 = vmatpush.xpose.msra.mxu0 0.0
    %1077 = vmatpush.xpose.msra.mxu0 0.0
    %1078 = vmatpush.xpose.msra.mxu0 0.0
    %1079 = vmatpush.xpose.msra.mxu0 0.0
    %1080 = vmatpush.xpose.msra.mxu0 0.0
    %1081 = vmatpush.xpose.msra.mxu0 0.0
    %1082 = vmatpush.xpose.msra.mxu0 0.0
    %1083 = vmatpush.xpose.msra.mxu0 %v1066
    %1084 = vmatmul.f32.gmra.mxu0 %v1064
    %v1085 = vpop.f32.mrf.mxu0
    %v1086 = vadd.f32 0.0, %v1085
    %1087 = vdwg.mxu0
    %v1088 = vmul.f32 %v1086, 0.35355338
    %v1089 = vadd.f32 %v1088, %v396
    %v1090 = vsel %vm475, %v1089, -inf
    %1091 = vmax.xlane.f32.xlu0 %v1090
    %v1092 = vpop.xlane.xlu0 %1091
    %v1093 = vsub.f32 %v1089, %v1092
    %v1094 = vmul.f32 %v1093, 1.442695
    %v1095 = vpow.pop %v1094
    %v1096 = vsel %vm475, %v1095, 0.0
    %1097 = vadd.xlane.f32.xlu0 %v1096
    %v1098 = vpop.xlane.xlu0 %1097
    %v1099 = vrcp.pop %v1098
    %v1100 = vmul.f32 %v1098, %v1099
    %v1101 = vsub.f32 1.0, %v1100
    %v1102 = vmul.f32 %v1099, %v1101
    %v1103 = vadd.f32 %v1099, %v1102
    %vm1104 = vweird.f32 %v1098
    %vm1105 = vweird.f32 %v1099
    %vm1106 = vmor %vm1104, %vm1105
    %v1107 = vsel %vm1106, %v1099, %v1103
    %v1108 = vand.u32 2147483647, %v1098
    %vm1109 = vcmp.eq.f32.partialorder %v1108, 8.507059e+37
    %v1110 = vand.u32 %v1098, 2147483648
    %v1111 = vor.u32 1.1754944e-38, %v1110
    %v1112 = vsel %vm1109, %v1111, %v1107
    %v1113 = vmul.f32 %v1095, %v1112
    %1114 = vrot.lane.b32.xlu0 %v1052, 64
    %v1115 = vpop.permute.xlu0 %1114
    %v1118 = vsel %vm475, %v1113, 0
    %1120 = vmatpush.msra.mxu0 0.0
    %1121 = vmatpush.msra.mxu0 0.0
    %1122 = vmatpush.msra.mxu0 0.0
    %1123 = vmatpush.msra.mxu0 0.0
    %1124 = vmatpush.msra.mxu0 0.0
    %1125 = vmatpush.msra.mxu0 0.0
    %1126 = vmatpush.msra.mxu0 0.0
    %1127 = vmatpush.msra.mxu0 0.0
    %1128 = vmatpush.msra.mxu0 0.0
    %1129 = vmatpush.msra.mxu0 0.0
    %1130 = vmatpush.msra.mxu0 0.0
    %1131 = vmatpush.msra.mxu0 0.0
    %1132 = vmatpush.msra.mxu0 0.0
    %1133 = vmatpush.msra.mxu0 0.0
    %1134 = vmatpush.msra.mxu0 0.0
    %1135 = vmatpush.msra.mxu0 %v1115
    %1136 = vmatmul.f32.gmra.mxu0 %v1118
    %v1137 = vpop.f32.mrf.mxu0
    %v1138 = vadd.f32 0.0, %v1137
    %1139 = vdwg.mxu0
    %1140 = vrot.lane.b32.xlu0 %v1052, 120
    %v1141 = vpop.permute.xlu0 %1140
    %1142 = vrot.lane.b32.xlu0 %v1052, 88
    %v1143 = vpop.permute.xlu0 %1142
    %v1144 = vsel %vm475, %v1141, 0
    %v1146 = vsel %vm475, %v1143, 0
    %1148 = vmatpush.xpose.msra.mxu0 0.0
    %1149 = vmatpush.xpose.msra.mxu0 0.0
    %1150 = vmatpush.xpose.msra.mxu0 0.0
    %1151 = vmatpush.xpose.msra.mxu0 0.0
    %1152 = vmatpush.xpose.msra.mxu0 0.0
    %1153 = vmatpush.xpose.msra.mxu0 0.0
    %1154 = vmatpush.xpose.msra.mxu0 0.0
    %1155 = vmatpush.xpose.msra.mxu0 0.0
    %1156 = vmatpush.xpose.msra.mxu0 0.0
    %1157 = vmatpush.xpose.msra.mxu0 0.0
    %1158 = vmatpush.xpose.msra.mxu0 0.0
    %1159 = vmatpush.xpose.msra.mxu0 0.0
    %1160 = vmatpush.xpose.msra.mxu0 0.0
    %1161 = vmatpush.xpose.msra.mxu0 0.0
    %1162 = vmatpush.xpose.msra.mxu0 0.0
    %1163 = vmatpush.xpose.msra.mxu0 %v1146
    %1164 = vmatmul.f32.gmra.mxu0 %v1144
    %v1165 = vpop.f32.mrf.mxu0
    %v1166 = vadd.f32 0.0, %v1165
    %1167 = vdwg.mxu0
    %v1168 = vmul.f32 %v1166, 0.35355338
    %v1169 = vadd.f32 %v1168, %v396
    %v1170 = vsel %vm475, %v1169, -inf
    %1171 = vmax.xlane.f32.xlu0 %v1170
    %v1172 = vpop.xlane.xlu0 %1171
    %v1173 = vsub.f32 %v1169, %v1172
    %v1174 = vmul.f32 %v1173, 1.442695
    %v1175 = vpow.pop %v1174
    %v1176 = vsel %vm475, %v1175, 0.0
    %1177 = vadd.xlane.f32.xlu0 %v1176
    %v1178 = vpop.xlane.xlu0 %1177
    %v1179 = vrcp.pop %v1178
    %v1180 = vmul.f32 %v1178, %v1179
    %v1181 = vsub.f32 1.0, %v1180
    %v1182 = vmul.f32 %v1179, %v1181
    %v1183 = vadd.f32 %v1179, %v1182
    %vm1184 = vweird.f32 %v1178
    %vm1185 = vweird.f32 %v1179
    %vm1186 = vmor %vm1184, %vm1185
    %v1187 = vsel %vm1186, %v1179, %v1183
    %v1188 = vand.u32 2147483647, %v1178
    %vm1189 = vcmp.eq.f32.partialorder %v1188, 8.507059e+37
    %v1190 = vand.u32 %v1178, 2147483648
    %v1191 = vor.u32 1.1754944e-38, %v1190
    %v1192 = vsel %vm1189, %v1191, %v1187
    %v1193 = vmul.f32 %v1175, %v1192
    %1194 = vrot.lane.b32.xlu0 %v1052, 56
    %v1195 = vpop.permute.xlu0 %1194
    %v1198 = vsel %vm475, %v1193, 0
    %1200 = vmatpush.msra.mxu0 0.0
    %1201 = vmatpush.msra.mxu0 0.0
    %1202 = vmatpush.msra.mxu0 0.0
    %1203 = vmatpush.msra.mxu0 0.0
    %1204 = vmatpush.msra.mxu0 0.0
    %1205 = vmatpush.msra.mxu0 0.0
    %1206 = vmatpush.msra.mxu0 0.0
    %1207 = vmatpush.msra.mxu0 0.0
    %1208 = vmatpush.msra.mxu0 0.0
    %1209 = vmatpush.msra.mxu0 0.0
    %1210 = vmatpush.msra.mxu0 0.0
    %1211 = vmatpush.msra.mxu0 0.0
    %1212 = vmatpush.msra.mxu0 0.0
    %1213 = vmatpush.msra.mxu0 0.0
    %1214 = vmatpush.msra.mxu0 0.0
    %1215 = vmatpush.msra.mxu0 %v1195
    %1216 = vmatmul.f32.gmra.mxu0 %v1198
    %v1217 = vpop.f32.mrf.mxu0
    %v1218 = vadd.f32 0.0, %v1217
    %1219 = vdwg.mxu0
    %v1221 = vsel %vm475, %v1218, 0
    %1223 = vmatpush.msra.mxu0 0.0
    %1224 = vmatpush.msra.mxu0 0.0
    %1225 = vmatpush.msra.mxu0 0.0
    %1226 = vmatpush.msra.mxu0 0.0
    %1227 = vmatpush.msra.mxu0 0.0
    %1228 = vmatpush.msra.mxu0 0.0
    %1229 = vmatpush.msra.mxu0 0.0
    %1230 = vmatpush.msra.mxu0 0.0
    %1231 = vmatpush.msra.mxu0 0.0
    %1232 = vmatpush.msra.mxu0 0.0
    %1233 = vmatpush.msra.mxu0 0.0
    %1234 = vmatpush.msra.mxu0 0.0
    %1235 = vmatpush.msra.mxu0 0.0
    %1236 = vmatpush.msra.mxu0 0.0
    %1237 = vmatpush.msra.mxu0 0.0
    %1238 = vmatpush.msra.mxu0 %v1056
    %1239 = vmatmul.f32.gmra.mxu0 %v1221
    %v1240 = vpop.f32.mrf.mxu0
    %v1241 = vadd.f32 0.0, %v1240
    %1242 = vdwg.mxu0
    %v1244 = vsel %vm475, %v1138, 0
    %1246 = vmatpush.msra.mxu0 0.0
    %1247 = vmatpush.msra.mxu0 0.0
    %1248 = vmatpush.msra.mxu0 0.0
    %1249 = vmatpush.msra.mxu0 0.0
    %1250 = vmatpush.msra.mxu0 0.0
    %1251 = vmatpush.msra.mxu0 0.0
    %1252 = vmatpush.msra.mxu0 0.0
    %1253 = vmatpush.msra.mxu0 0.0
    %1254 = vmatpush.msra.mxu0 0.0
    %1255 = vmatpush.msra.mxu0 0.0
    %1256 = vmatpush.msra.mxu0 0.0
    %1257 = vmatpush.msra.mxu0 0.0
    %1258 = vmatpush.msra.mxu0 0.0
    %1259 = vmatpush.msra.mxu0 0.0
    %1260 = vmatpush.msra.mxu0 0.0
    %1261 = vmatpush.msra.mxu0 %v1055
    %1262 = vmatmul.f32.gmra.mxu0 %v1244
    %v1263 = vpop.f32.mrf.mxu0
    %v1264 = vadd.f32 %v1241, %v1263
    %1265 = vdwg.mxu0
    %1266 = vrot.lane.b32.xlu0 %v1052, 112
    %v1267 = vpop.permute.xlu0 %1266
    %1268 = vrot.lane.b32.xlu0 %v1052, 80
    %v1269 = vpop.permute.xlu0 %1268
    %v1270 = vsel %vm475, %v1267, 0
    %v1272 = vsel %vm475, %v1269, 0
    %1274 = vmatpush.xpose.msra.mxu0 0.0
    %1275 = vmatpush.xpose.msra.mxu0 0.0
    %1276 = vmatpush.xpose.msra.mxu0 0.0
    %1277 = vmatpush.xpose.msra.mxu0 0.0
    %1278 = vmatpush.xpose.msra.mxu0 0.0
    %1279 = vmatpush.xpose.msra.mxu0 0.0
    %1280 = vmatpush.xpose.msra.mxu0 0.0
    %1281 = vmatpush.xpose.msra.mxu0 0.0
    %1282 = vmatpush.xpose.msra.mxu0 0.0
    %1283 = vmatpush.xpose.msra.mxu0 0.0
    %1284 = vmatpush.xpose.msra.mxu0 0.0
    %1285 = vmatpush.xpose.msra.mxu0 0.0
    %1286 = vmatpush.xpose.msra.mxu0 0.0
    %1287 = vmatpush.xpose.msra.mxu0 0.0
    %1288 = vmatpush.xpose.msra.mxu0 0.0
    %1289 = vmatpush.xpose.msra.mxu0 %v1272
    %1290 = vmatmul.f32.gmra.mxu0 %v1270
    %v1291 = vpop.f32.mrf.mxu0
    %v1292 = vadd.f32 0.0, %v1291
    %1293 = vdwg.mxu0
    %v1294 = vmul.f32 %v1292, 0.35355338
    %v1295 = vadd.f32 %v1294, %v396
    %v1296 = vsel %vm475, %v1295, -inf
    %1297 = vmax.xlane.f32.xlu0 %v1296
    %v1298 = vpop.xlane.xlu0 %1297
    %v1299 = vsub.f32 %v1295, %v1298
    %v1300 = vmul.f32 %v1299, 1.442695
    %v1301 = vpow.pop %v1300
    %v1302 = vsel %vm475, %v1301, 0.0
    %1303 = vadd.xlane.f32.xlu0 %v1302
    %v1304 = vpop.xlane.xlu0 %1303
    %v1305 = vrcp.pop %v1304
    %v1306 = vmul.f32 %v1304, %v1305
    %v1307 = vsub.f32 1.0, %v1306
    %v1308 = vmul.f32 %v1305, %v1307
    %v1309 = vadd.f32 %v1305, %v1308
    %vm1310 = vweird.f32 %v1304
    %vm1311 = vweird.f32 %v1305
    %vm1312 = vmor %vm1310, %vm1311
    %v1313 = vsel %vm1312, %v1305, %v1309
    %v1314 = vand.u32 2147483647, %v1304
    %vm1315 = vcmp.eq.f32.partialorder %v1314, 8.507059e+37
    %v1316 = vand.u32 %v1304, 2147483648
    %v1317 = vor.u32 1.1754944e-38, %v1316
    %v1318 = vsel %vm1315, %v1317, %v1313
    %v1319 = vmul.f32 %v1301, %v1318
    %1320 = vrot.lane.b32.xlu0 %v1052, 48
    %v1321 = vpop.permute.xlu0 %1320
    %v1324 = vsel %vm475, %v1319, 0
    %1326 = vmatpush.msra.mxu0 0.0
    %1327 = vmatpush.msra.mxu0 0.0
    %1328 = vmatpush.msra.mxu0 0.0
    %1329 = vmatpush.msra.mxu0 0.0
    %1330 = vmatpush.msra.mxu0 0.0
    %1331 = vmatpush.msra.mxu0 0.0
    %1332 = vmatpush.msra.mxu0 0.0
    %1333 = vmatpush.msra.mxu0 0.0
    %1334 = vmatpush.msra.mxu0 0.0
    %1335 = vmatpush.msra.mxu0 0.0
    %1336 = vmatpush.msra.mxu0 0.0
    %1337 = vmatpush.msra.mxu0 0.0
    %1338 = vmatpush.msra.mxu0 0.0
    %1339 = vmatpush.msra.mxu0 0.0
    %1340 = vmatpush.msra.mxu0 0.0
    %1341 = vmatpush.msra.mxu0 %v1321
    %1342 = vmatmul.f32.gmra.mxu0 %v1324
    %v1343 = vpop.f32.mrf.mxu0
    %v1344 = vadd.f32 0.0, %v1343
    %1345 = vdwg.mxu0
    %v1347 = vsel %vm475, %v1344, 0
    %1349 = vmatpush.msra.mxu0 0.0
    %1350 = vmatpush.msra.mxu0 0.0
    %1351 = vmatpush.msra.mxu0 0.0
    %1352 = vmatpush.msra.mxu0 0.0
    %1353 = vmatpush.msra.mxu0 0.0
    %1354 = vmatpush.msra.mxu0 0.0
    %1355 = vmatpush.msra.mxu0 0.0
    %1356 = vmatpush.msra.mxu0 0.0
    %1357 = vmatpush.msra.mxu0 0.0
    %1358 = vmatpush.msra.mxu0 0.0
    %1359 = vmatpush.msra.mxu0 0.0
    %1360 = vmatpush.msra.mxu0 0.0
    %1361 = vmatpush.msra.mxu0 0.0
    %1362 = vmatpush.msra.mxu0 0.0
    %1363 = vmatpush.msra.mxu0 0.0
    %1364 = vmatpush.msra.mxu0 %v1057
    %1365 = vmatmul.f32.gmra.mxu0 %v1347
    %v1366 = vpop.f32.mrf.mxu0
    %v1367 = vadd.f32 0.0, %v1366
    %1368 = vdwg.mxu0
    %v1369 = vadd.f32 %v1264, %v1367
    %1370 = vrot.lane.b32.xlu0 %v1052, 104
    %v1371 = vpop.permute.xlu0 %1370
    %1372 = vrot.lane.b32.xlu0 %v1052, 72
    %v1373 = vpop.permute.xlu0 %1372
    %v1374 = vsel %vm475, %v1371, 0
    %v1376 = vsel %vm475, %v1373, 0
    %1378 = vmatpush.xpose.msra.mxu0 0.0
    %1379 = vmatpush.xpose.msra.mxu0 0.0
    %1380 = vmatpush.xpose.msra.mxu0 0.0
    %1381 = vmatpush.xpose.msra.mxu0 0.0
    %1382 = vmatpush.xpose.msra.mxu0 0.0
    %1383 = vmatpush.xpose.msra.mxu0 0.0
    %1384 = vmatpush.xpose.msra.mxu0 0.0
    %1385 = vmatpush.xpose.msra.mxu0 0.0
    %1386 = vmatpush.xpose.msra.mxu0 0.0
    %1387 = vmatpush.xpose.msra.mxu0 0.0
    %1388 = vmatpush.xpose.msra.mxu0 0.0
    %1389 = vmatpush.xpose.msra.mxu0 0.0
    %1390 = vmatpush.xpose.msra.mxu0 0.0
    %1391 = vmatpush.xpose.msra.mxu0 0.0
    %1392 = vmatpush.xpose.msra.mxu0 0.0
    %1393 = vmatpush.xpose.msra.mxu0 %v1376
    %1394 = vmatmul.f32.gmra.mxu0 %v1374
    %v1395 = vpop.f32.mrf.mxu0
    %v1396 = vadd.f32 0.0, %v1395
    %1397 = vdwg.mxu0
    %v1398 = vmul.f32 %v1396, 0.35355338
    %v1399 = vadd.f32 %v1398, %v396
    %v1400 = vsel %vm475, %v1399, -inf
    %1401 = vmax.xlane.f32.xlu0 %v1400
    %v1402 = vpop.xlane.xlu0 %1401
    %v1403 = vsub.f32 %v1399, %v1402
    %v1404 = vmul.f32 %v1403, 1.442695
    %v1405 = vpow.pop %v1404
    %v1406 = vsel %vm475, %v1405, 0.0
    %1407 = vadd.xlane.f32.xlu0 %v1406
    %v1408 = vpop.xlane.xlu0 %1407
    %v1409 = vrcp.pop %v1408
    %v1410 = vmul.f32 %v1408, %v1409
    %v1411 = vsub.f32 1.0, %v1410
    %v1412 = vmul.f32 %v1409, %v1411
    %v1413 = vadd.f32 %v1409, %v1412
    %vm1414 = vweird.f32 %v1408
    %vm1415 = vweird.f32 %v1409
    %vm1416 = vmor %vm1414, %vm1415
    %v1417 = vsel %vm1416, %v1409, %v1413
    %v1418 = vand.u32 2147483647, %v1408
    %vm1419 = vcmp.eq.f32.partialorder %v1418, 8.507059e+37
    %v1420 = vand.u32 %v1408, 2147483648
    %v1421 = vor.u32 1.1754944e-38, %v1420
    %v1422 = vsel %vm1419, %v1421, %v1417
    %v1423 = vmul.f32 %v1405, %v1422
    %1424 = vrot.lane.b32.xlu0 %v1052, 40
    %v1425 = vpop.permute.xlu0 %1424
    %v1428 = vsel %vm475, %v1423, 0
    %1430 = vmatpush.msra.mxu0 0.0
    %1431 = vmatpush.msra.mxu0 0.0
    %1432 = vmatpush.msra.mxu0 0.0
    %1433 = vmatpush.msra.mxu0 0.0
    %1434 = vmatpush.msra.mxu0 0.0
    %1435 = vmatpush.msra.mxu0 0.0
    %1436 = vmatpush.msra.mxu0 0.0
    %1437 = vmatpush.msra.mxu0 0.0
    %1438 = vmatpush.msra.mxu0 0.0
    %1439 = vmatpush.msra.mxu0 0.0
    %1440 = vmatpush.msra.mxu0 0.0
    %1441 = vmatpush.msra.mxu0 0.0
    %1442 = vmatpush.msra.mxu0 0.0
    %1443 = vmatpush.msra.mxu0 0.0
    %1444 = vmatpush.msra.mxu0 0.0
    %1445 = vmatpush.msra.mxu0 %v1425
    %1446 = vmatmul.f32.gmra.mxu0 %v1428
    %v1447 = vpop.f32.mrf.mxu0
    %v1448 = vadd.f32 0.0, %v1447
    %1449 = vdwg.mxu0
    %v1451 = vsel %vm475, %v1448, 0
    %1453 = vmatpush.msra.mxu0 0.0
    %1454 = vmatpush.msra.mxu0 0.0
    %1455 = vmatpush.msra.mxu0 0.0
    %1456 = vmatpush.msra.mxu0 0.0
    %1457 = vmatpush.msra.mxu0 0.0
    %1458 = vmatpush.msra.mxu0 0.0
    %1459 = vmatpush.msra.mxu0 0.0
    %1460 = vmatpush.msra.mxu0 0.0
    %1461 = vmatpush.msra.mxu0 0.0
    %1462 = vmatpush.msra.mxu0 0.0
    %1463 = vmatpush.msra.mxu0 0.0
    %1464 = vmatpush.msra.mxu0 0.0
    %1465 = vmatpush.msra.mxu0 0.0
    %1466 = vmatpush.msra.mxu0 0.0
    %1467 = vmatpush.msra.mxu0 0.0
    %1468 = vmatpush.msra.mxu0 %v1058
    %1469 = vmatmul.f32.gmra.mxu0 %v1451
    %v1470 = vpop.f32.mrf.mxu0
    %v1471 = vadd.f32 0.0, %v1470
    %1472 = vdwg.mxu0
    %v1473 = vadd.f32 %v1369, %v1471
    %v1475 = vperm.slane %v1060, 0
    %v1477 = vadd.f32 %v1473, %v1475
    %v1478 = vadd.f32 %v1020, %v1477
    %s1479 = scalar_lea.vmem %s19, 2
    %v1480 = vld [vmem:[%s1479] sm:$0x3]
    %v1481 = vsel %vm443, %v1478, 0.0
    %1482 = vadd.xlane.f32.xlu0 %v1481
    %v1483 = vpop.xlane.xlu0 %1482
    %v1484 = vmul.f32 %v1483, %v901
    %v1485 = vsub.f32 %v1478, %v1484
    %v1486 = vmul.f32 %v1485, %v1485
    %v1487 = vsel %vm443, %v1486, 0.0
    %1488 = vadd.xlane.f32.xlu0 %v1487
    %v1489 = vpop.xlane.xlu0 %1488
    %v1490 = vmul.f32 %v1489, %v901
    %v1491 = vadd.f32 %v1490, 1e-05
    %v1492 = vrsqrt.pop %v1491
    %v1493 = vmul.f32 %v1492, %v1491
    %v1494 = vmul.f32 %v1493, %v1492
    %v1495 = vmul.f32 0.5, %v1494
    %v1496 = vsub.f32 1.5, %v1495
    %v1497 = vmul.f32 %v1492, %v1496
    %vm1498 = vweird.f32 %v1491
    %vm1499 = vweird.f32 %v1492
    %vm1500 = vmor %vm1498, %vm1499
    %v1501 = vsel %vm1500, %v1492, %v1497
    %v1502 = vmul.f32 %v1485, %v1501
    %v1503 = vperm.slane %v1480, 0
    %v1504 = vmul.f32 %v1502, %v1503
    %v1505 = vperm.slane %v1480, 1
    %v1506 = vadd.f32 %v1504, %v1505
    %s1507 = scalar_lea.vmem %s21, 32
    %v1508 = vld [vmem:[%s1507] sm:$0xff]
    %v1509 = vld [vmem:[%s1507 + $0x8] sm:$0xff]
    %v1510 = vld [vmem:[%s1507 + $0x10] sm:$0xff]
    %v1511 = vld [vmem:[%s1507 + $0x18] sm:$0xff]
    %s1512 = scalar_lea.vmem [#allocation7], 1
    %v1513 = vld [vmem:[%s1512] sm:$0x1]
    %v1515 = vperm.slane %v1513, 0
    %v1518 = vsel %vm443, %v1506, 0
    %1520 = vmatpush.msra.mxu0 0.0
    %1521 = vmatpush.msra.mxu0 0.0
    %1522 = vmatpush.msra.mxu0 0.0
    %1523 = vmatpush.msra.mxu0 0.0
    %1524 = vmatpush.msra.mxu0 0.0
    %1525 = vmatpush.msra.mxu0 0.0
    %1526 = vmatpush.msra.mxu0 0.0
    %1527 = vmatpush.msra.mxu0 0.0
    %1528 = vmatpush.msra.mxu0 0.0
    %1529 = vmatpush.msra.mxu0 0.0
    %1530 = vmatpush.msra.mxu0 0.0
    %1531 = vmatpush.msra.mxu0 0.0
    %1532 = vmatpush.msra.mxu0 %v1511
    %1533 = vmatpush.msra.mxu0 %v1510
    %1534 = vmatpush.msra.mxu0 %v1509
    %1535 = vmatpush.msra.mxu0 %v1508
    %1536 = vmatmul.f32.gmra.mxu0 %v1518
    %v1537 = vpop.f32.mrf.mxu0
    %v1538 = vadd.f32 %v1515, %v1537
    %1539 = vdwg.mxu0
    %v1540 = vmax.f32 %v1538, 0.0
    %s1541 = scalar_lea.vmem %s25, 64
    %v1542 = vld [vmem:[%s1541] sm:$0xff]
    %v1543 = vld [vmem:[%s1541 + $0x8] sm:$0xff]
    %v1544 = vld [vmem:[%s1541 + $0x10] sm:$0xff]
    %v1545 = vld [vmem:[%s1541 + $0x18] sm:$0xff]
    %v1546 = vld [vmem:[%s1541 + $0x20] sm:$0xff]
    %v1547 = vld [vmem:[%s1541 + $0x28] sm:$0xff]
    %v1548 = vld [vmem:[%s1541 + $0x30] sm:$0xff]
    %v1549 = vld [vmem:[%s1541 + $0x38] sm:$0xff]
    %s1550 = scalar_lea.vmem [#allocation8], 1
    %v1551 = vld [vmem:[%s1550] sm:$0x1]
    %v1553 = vperm.slane %v1551, 0
    %v1556 = vsel %vm969, %v1540, 0
    %1558 = vmatpush.msra.mxu0 0.0
    %1559 = vmatpush.msra.mxu0 0.0
    %1560 = vmatpush.msra.mxu0 0.0
    %1561 = vmatpush.msra.mxu0 0.0
    %1562 = vmatpush.msra.mxu0 0.0
    %1563 = vmatpush.msra.mxu0 0.0
    %1564 = vmatpush.msra.mxu0 0.0
    %1565 = vmatpush.msra.mxu0 0.0
    %1566 = vmatpush.msra.mxu0 %v1549
    %1567 = vmatpush.msra.mxu0 %v1548
    %1568 = vmatpush.msra.mxu0 %v1547
    %1569 = vmatpush.msra.mxu0 %v1546
    %1570 = vmatpush.msra.mxu0 %v1545
    %1571 = vmatpush.msra.mxu0 %v1544
    %1572 = vmatpush.msra.mxu0 %v1543
    %1573 = vmatpush.msra.mxu0 %v1542
    %1574 = vmatmul.f32.gmra.mxu0 %v1556
    %v1575 = vpop.f32.mrf.mxu0
    %v1576 = vadd.f32 %v1553, %v1575
    %1577 = vdwg.mxu0
    %v1578 = vadd.f32 %v1506, %v1576
    %s1579 = scalar_lea.vmem %s29, 2
    %v1580 = vld [vmem:[%s1579] sm:$0x3]
    %v1581 = vsel %vm443, %v1578, 0.0
    %1582 = vadd.xlane.f32.xlu0 %v1581
    %v1583 = vpop.xlane.xlu0 %1582
    %v1584 = vmul.f32 %v1583, %v901
    %v1585 = vsub.f32 %v1578, %v1584
    %v1586 = vmul.f32 %v1585, %v1585
    %v1587 = vsel %vm443, %v1586, 0.0
    %1588 = vadd.xlane.f32.xlu0 %v1587
    %v1589 = vpop.xlane.xlu0 %1588
    %v1590 = vmul.f32 %v1589, %v901
    %v1591 = vadd.f32 %v1590, 1e-05
    %v1592 = vrsqrt.pop %v1591
    %v1593 = vmul.f32 %v1592, %v1591
    %v1594 = vmul.f32 %v1593, %v1592
    %v1595 = vmul.f32 0.5, %v1594
    %v1596 = vsub.f32 1.5, %v1595
    %v1597 = vmul.f32 %v1592, %v1596
    %vm1598 = vweird.f32 %v1591
    %vm1599 = vweird.f32 %v1592
    %vm1600 = vmor %vm1598, %vm1599
    %v1601 = vsel %vm1600, %v1592, %v1597
    %v1602 = vmul.f32 %v1585, %v1601
    %v1603 = vperm.slane %v1580, 0
    %v1604 = vmul.f32 %v1602, %v1603
    %v1605 = vperm.slane %v1580, 1
    %v1606 = vadd.f32 %v1604, %v1605
    %v1607 = vld [vmem:[%s3] sm:$0xff]
    %1608 = vset.pattern.permute.xlu0 0
    %1609 = vperm.xlu0 %1608, %v1607
    %v1610 = vpop.permute.xlu0 %1609
    %vm1611 = vcmp.eq.s32.totalorder %v394, %v1610
    %v1612 = vsel %vm1611, 1, 0
    %v1613 = vcvt.s32.f32 %v1612
    %v1614 = vld [vmem:[%s7] sm:$0xff]
    %v1615 = vld [vmem:[%s7 + $0x8] sm:$0xff]
    %v1616 = vld [vmem:[%s7 + $0x10] sm:$0xff]
    %v1617 = vld [vmem:[%s7 + $0x18] sm:$0xff]
    %v1618 = vld [vmem:[%s7 + $0x20] sm:$0xff]
    %v1619 = vld [vmem:[%s7 + $0x28] sm:$0xff]
    %vm1620 = vcmask 392192
    %v1622 = vsel %vm1620, %v1613, 0
    %1624 = vmatpush.msra.mxu0 0.0
    %1625 = vmatpush.msra.mxu0 0.0
    %1626 = vmatpush.msra.mxu0 0.0
    %1627 = vmatpush.msra.mxu0 0.0
    %1628 = vmatpush.msra.mxu0 0.0
    %1629 = vmatpush.msra.mxu0 0.0
    %1630 = vmatpush.msra.mxu0 0.0
    %1631 = vmatpush.msra.mxu0 0.0
    %1632 = vmatpush.msra.mxu0 0.0
    %1633 = vmatpush.msra.mxu0 0.0
    %1634 = vmatpush.msra.mxu0 %v1619
    %1635 = vmatpush.msra.mxu0 %v1618
    %1636 = vmatpush.msra.mxu0 %v1617
    %1637 = vmatpush.msra.mxu0 %v1616
    %1638 = vmatpush.msra.mxu0 %v1615
    %1639 = vmatpush.msra.mxu0 %v1614
    %1640 = vmatmul.f32.gmra.mxu0 %v1622
    %v1641 = vpop.f32.mrf.mxu0
    %v1642 = vadd.f32 0.0, %v1641
    %1643 = vdwg.mxu0
    %v1644 = vmul.f32 %v1642, 5.656854
    %v1645 = vadd.f32 %v1644, %v390
    %v1646 = vld [vmem:[%s31] sm:$0xff]
    %v1647 = vld [vmem:[%s31 + $0x8] sm:$0xff]
    %v1648 = vld [vmem:[%s31 + $0x10] sm:$0xff]
    %v1649 = vld [vmem:[%s31 + $0x18] sm:$0xff]
    %v1650 = vld [vmem:[#allocation10] sm:$0x1]
    %v1652 = vperm.slane %v1650, 0
    %v1655 = vsel %vm443, %v1645, 0
    %1657 = vmatpush.msra.mxu0 0.0
    %1658 = vmatpush.msra.mxu0 0.0
    %1659 = vmatpush.msra.mxu0 0.0
    %1660 = vmatpush.msra.mxu0 0.0
    %1661 = vmatpush.msra.mxu0 0.0
    %1662 = vmatpush.msra.mxu0 0.0
    %1663 = vmatpush.msra.mxu0 0.0
    %1664 = vmatpush.msra.mxu0 0.0
    %1665 = vmatpush.msra.mxu0 0.0
    %1666 = vmatpush.msra.mxu0 0.0
    %1667 = vmatpush.msra.mxu0 0.0
    %1668 = vmatpush.msra.mxu0 0.0
    %1669 = vmatpush.msra.mxu0 %v1649
    %1670 = vmatpush.msra.mxu0 %v1648
    %1671 = vmatpush.msra.mxu0 %v1647
    %1672 = vmatpush.msra.mxu0 %v1646
    %1673 = vmatmul.f32.gmra.mxu0 %v1655
    %v1674 = vpop.f32.mrf.mxu0
    %v1675 = vadd.f32 %v1652, %v1674
    %1676 = vdwg.mxu0
    %v1677 = vld [vmem:[%s35] sm:$0xff]
    %v1678 = vld [vmem:[%s35 + $0x8] sm:$0xff]
    %v1679 = vld [vmem:[%s35 + $0x10] sm:$0xff]
    %v1680 = vld [vmem:[%s35 + $0x18] sm:$0xff]
    %v1681 = vld [vmem:[#allocation11] sm:$0x1]
    %1683 = vrot.lane.b32.xlu0 %v1675, 96
    %v1684 = vpop.permute.xlu0 %1683
    %v1685 = vsel %vm475, %v1675, 0
    %v1687 = vsel %vm475, %v1684, 0
    %1689 = vmatpush.xpose.msra.mxu0 0.0
    %1690 = vmatpush.xpose.msra.mxu0 0.0
    %1691 = vmatpush.xpose.msra.mxu0 0.0
    %1692 = vmatpush.xpose.msra.mxu0 0.0
    %1693 = vmatpush.xpose.msra.mxu0 0.0
    %1694 = vmatpush.xpose.msra.mxu0 0.0
    %1695 = vmatpush.xpose.msra.mxu0 0.0
    %1696 = vmatpush.xpose.msra.mxu0 0.0
    %1697 = vmatpush.xpose.msra.mxu0 0.0
    %1698 = vmatpush.xpose.msra.mxu0 0.0
    %1699 = vmatpush.xpose.msra.mxu0 0.0
    %1700 = vmatpush.xpose.msra.mxu0 0.0
    %1701 = vmatpush.xpose.msra.mxu0 0.0
    %1702 = vmatpush.xpose.msra.mxu0 0.0
    %1703 = vmatpush.xpose.msra.mxu0 0.0
    %1704 = vmatpush.xpose.msra.mxu0 %v1687
    %1705 = vmatmul.f32.gmra.mxu0 %v1685
    %v1706 = vpop.f32.mrf.mxu0
    %v1707 = vadd.f32 0.0, %v1706
    %1708 = vdwg.mxu0
    %v1709 = vmul.f32 %v1707, 0.35355338
    %v1710 = vadd.f32 %v1709, %v396
    %v1711 = vsel %vm475, %v1710, -inf
    %1712 = vmax.xlane.f32.xlu0 %v1711
    %v1713 = vpop.xlane.xlu0 %1712
    %v1714 = vsub.f32 %v1710, %v1713
    %v1715 = vmul.f32 %v1714, 1.442695
    %v1716 = vpow.pop %v1715
    %v1717 = vsel %vm475, %v1716, 0.0
    %1718 = vadd.xlane.f32.xlu0 %v1717
    %v1719 = vpop.xlane.xlu0 %1718
    %v1720 = vrcp.pop %v1719
    %v1721 = vmul.f32 %v1719, %v1720
    %v1722 = vsub.f32 1.0, %v1721
    %v1723 = vmul.f32 %v1720, %v1722
    %v1724 = vadd.f32 %v1720, %v1723
    %vm1725 = vweird.f32 %v1719
    %vm1726 = vweird.f32 %v1720
    %vm1727 = vmor %vm1725, %vm1726
    %v1728 = vsel %vm1727, %v1720, %v1724
    %v1729 = vand.u32 2147483647, %v1719
    %vm1730 = vcmp.eq.f32.partialorder %v1729, 8.507059e+37
    %v1731 = vand.u32 %v1719, 2147483648
    %v1732 = vor.u32 1.1754944e-38, %v1731
    %v1733 = vsel %vm1730, %v1732, %v1728
    %v1734 = vmul.f32 %v1716, %v1733
    %1735 = vrot.lane.b32.xlu0 %v1675, 64
    %v1736 = vpop.permute.xlu0 %1735
    %v1739 = vsel %vm475, %v1734, 0
    %1741 = vmatpush.msra.mxu0 0.0
    %1742 = vmatpush.msra.mxu0 0.0
    %1743 = vmatpush.msra.mxu0 0.0
    %1744 = vmatpush.msra.mxu0 0.0
    %1745 = vmatpush.msra.mxu0 0.0
    %1746 = vmatpush.msra.mxu0 0.0
    %1747 = vmatpush.msra.mxu0 0.0
    %1748 = vmatpush.msra.mxu0 0.0
    %1749 = vmatpush.msra.mxu0 0.0
    %1750 = vmatpush.msra.mxu0 0.0
    %1751 = vmatpush.msra.mxu0 0.0
    %1752 = vmatpush.msra.mxu0 0.0
    %1753 = vmatpush.msra.mxu0 0.0
    %1754 = vmatpush.msra.mxu0 0.0
    %1755 = vmatpush.msra.mxu0 0.0
    %1756 = vmatpush.msra.mxu0 %v1736
    %1757 = vmatmul.f32.gmra.mxu0 %v1739
    %v1758 = vpop.f32.mrf.mxu0
    %v1759 = vadd.f32 0.0, %v1758
    %1760 = vdwg.mxu0
    %1761 = vrot.lane.b32.xlu0 %v1675, 120
    %v1762 = vpop.permute.xlu0 %1761
    %1763 = vrot.lane.b32.xlu0 %v1675, 88
    %v1764 = vpop.permute.xlu0 %1763
    %v1765 = vsel %vm475, %v1762, 0
    %v1767 = vsel %vm475, %v1764, 0
    %1769 = vmatpush.xpose.msra.mxu0 0.0
    %1770 = vmatpush.xpose.msra.mxu0 0.0
    %1771 = vmatpush.xpose.msra.mxu0 0.0
    %1772 = vmatpush.xpose.msra.mxu0 0.0
    %1773 = vmatpush.xpose.msra.mxu0 0.0
    %1774 = vmatpush.xpose.msra.mxu0 0.0
    %1775 = vmatpush.xpose.msra.mxu0 0.0
    %1776 = vmatpush.xpose.msra.mxu0 0.0
    %1777 = vmatpush.xpose.msra.mxu0 0.0
    %1778 = vmatpush.xpose.msra.mxu0 0.0
    %1779 = vmatpush.xpose.msra.mxu0 0.0
    %1780 = vmatpush.xpose.msra.mxu0 0.0
    %1781 = vmatpush.xpose.msra.mxu0 0.0
    %1782 = vmatpush.xpose.msra.mxu0 0.0
    %1783 = vmatpush.xpose.msra.mxu0 0.0
    %1784 = vmatpush.xpose.msra.mxu0 %v1767
    %1785 = vmatmul.f32.gmra.mxu0 %v1765
    %v1786 = vpop.f32.mrf.mxu0
    %v1787 = vadd.f32 0.0, %v1786
    %1788 = vdwg.mxu0
    %v1789 = vmul.f32 %v1787, 0.35355338
    %v1790 = vadd.f32 %v1789, %v396
    %v1791 = vsel %vm475, %v1790, -inf
    %1792 = vmax.xlane.f32.xlu0 %v1791
    %v1793 = vpop.xlane.xlu0 %1792
    %v1794 = vsub.f32 %v1790, %v1793
    %v1795 = vmul.f32 %v1794, 1.442695
    %v1796 = vpow.pop %v1795
    %v1797 = vsel %vm475, %v1796, 0.0
    %1798 = vadd.xlane.f32.xlu0 %v1797
    %v1799 = vpop.xlane.xlu0 %1798
    %v1800 = vrcp.pop %v1799
    %v1801 = vmul.f32 %v1799, %v1800
    %v1802 = vsub.f32 1.0, %v1801
    %v1803 = vmul.f32 %v1800, %v1802
    %v1804 = vadd.f32 %v1800, %v1803
    %vm1805 = vweird.f32 %v1799
    %vm1806 = vweird.f32 %v1800
    %vm1807 = vmor %vm1805, %vm1806
    %v1808 = vsel %vm1807, %v1800, %v1804
    %v1809 = vand.u32 2147483647, %v1799
    %vm1810 = vcmp.eq.f32.partialorder %v1809, 8.507059e+37
    %v1811 = vand.u32 %v1799, 2147483648
    %v1812 = vor.u32 1.1754944e-38, %v1811
    %v1813 = vsel %vm1810, %v1812, %v1808
    %v1814 = vmul.f32 %v1796, %v1813
    %1815 = vrot.lane.b32.xlu0 %v1675, 56
    %v1816 = vpop.permute.xlu0 %1815
    %v1819 = vsel %vm475, %v1814, 0
    %1821 = vmatpush.msra.mxu0 0.0
    %1822 = vmatpush.msra.mxu0 0.0
    %1823 = vmatpush.msra.mxu0 0.0
    %1824 = vmatpush.msra.mxu0 0.0
    %1825 = vmatpush.msra.mxu0 0.0
    %1826 = vmatpush.msra.mxu0 0.0
    %1827 = vmatpush.msra.mxu0 0.0
    %1828 = vmatpush.msra.mxu0 0.0
    %1829 = vmatpush.msra.mxu0 0.0
    %1830 = vmatpush.msra.mxu0 0.0
    %1831 = vmatpush.msra.mxu0 0.0
    %1832 = vmatpush.msra.mxu0 0.0
    %1833 = vmatpush.msra.mxu0 0.0
    %1834 = vmatpush.msra.mxu0 0.0
    %1835 = vmatpush.msra.mxu0 0.0
    %1836 = vmatpush.msra.mxu0 %v1816
    %1837 = vmatmul.f32.gmra.mxu0 %v1819
    %v1838 = vpop.f32.mrf.mxu0
    %v1839 = vadd.f32 0.0, %v1838
    %1840 = vdwg.mxu0
    %v1842 = vsel %vm475, %v1839, 0
    %1844 = vmatpush.msra.mxu0 0.0
    %1845 = vmatpush.msra.mxu0 0.0
    %1846 = vmatpush.msra.mxu0 0.0
    %1847 = vmatpush.msra.mxu0 0.0
    %1848 = vmatpush.msra.mxu0 0.0
    %1849 = vmatpush.msra.mxu0 0.0
    %1850 = vmatpush.msra.mxu0 0.0
    %1851 = vmatpush.msra.mxu0 0.0
    %1852 = vmatpush.msra.mxu0 0.0
    %1853 = vmatpush.msra.mxu0 0.0
    %1854 = vmatpush.msra.mxu0 0.0
    %1855 = vmatpush.msra.mxu0 0.0
    %1856 = vmatpush.msra.mxu0 0.0
    %1857 = vmatpush.msra.mxu0 0.0
    %1858 = vmatpush.msra.mxu0 0.0
    %1859 = vmatpush.msra.mxu0 %v1678
    %1860 = vmatmul.f32.gmra.mxu0 %v1842
    %v1861 = vpop.f32.mrf.mxu0
    %v1862 = vadd.f32 0.0, %v1861
    %1863 = vdwg.mxu0
    %v1865 = vsel %vm475, %v1759, 0
    %1867 = vmatpush.msra.mxu0 0.0
    %1868 = vmatpush.msra.mxu0 0.0
    %1869 = vmatpush.msra.mxu0 0.0
    %1870 = vmatpush.msra.mxu0 0.0
    %1871 = vmatpush.msra.mxu0 0.0
    %1872 = vmatpush.msra.mxu0 0.0
    %1873 = vmatpush.msra.mxu0 0.0
    %1874 = vmatpush.msra.mxu0 0.0
    %1875 = vmatpush.msra.mxu0 0.0
    %1876 = vmatpush.msra.mxu0 0.0
    %1877 = vmatpush.msra.mxu0 0.0
    %1878 = vmatpush.msra.mxu0 0.0
    %1879 = vmatpush.msra.mxu0 0.0
    %1880 = vmatpush.msra.mxu0 0.0
    %1881 = vmatpush.msra.mxu0 0.0
    %1882 = vmatpush.msra.mxu0 %v1677
    %1883 = vmatmul.f32.gmra.mxu0 %v1865
    %v1884 = vpop.f32.mrf.mxu0
    %v1885 = vadd.f32 %v1862, %v1884
    %1886 = vdwg.mxu0
    %1887 = vrot.lane.b32.xlu0 %v1675, 112
    %v1888 = vpop.permute.xlu0 %1887
    %1889 = vrot.lane.b32.xlu0 %v1675, 80
    %v1890 = vpop.permute.xlu0 %1889
    %v1891 = vsel %vm475, %v1888, 0
    %v1893 = vsel %vm475, %v1890, 0
    %1895 = vmatpush.xpose.msra.mxu0 0.0
    %1896 = vmatpush.xpose.msra.mxu0 0.0
    %1897 = vmatpush.xpose.msra.mxu0 0.0
    %1898 = vmatpush.xpose.msra.mxu0 0.0
    %1899 = vmatpush.xpose.msra.mxu0 0.0
    %1900 = vmatpush.xpose.msra.mxu0 0.0
    %1901 = vmatpush.xpose.msra.mxu0 0.0
    %1902 = vmatpush.xpose.msra.mxu0 0.0
    %1903 = vmatpush.xpose.msra.mxu0 0.0
    %1904 = vmatpush.xpose.msra.mxu0 0.0
    %1905 = vmatpush.xpose.msra.mxu0 0.0
    %1906 = vmatpush.xpose.msra.mxu0 0.0
    %1907 = vmatpush.xpose.msra.mxu0 0.0
    %1908 = vmatpush.xpose.msra.mxu0 0.0
    %1909 = vmatpush.xpose.msra.mxu0 0.0
    %1910 = vmatpush.xpose.msra.mxu0 %v1893
    %1911 = vmatmul.f32.gmra.mxu0 %v1891
    %v1912 = vpop.f32.mrf.mxu0
    %v1913 = vadd.f32 0.0, %v1912
    %1914 = vdwg.mxu0
    %v1915 = vmul.f32 %v1913, 0.35355338
    %v1916 = vadd.f32 %v1915, %v396
    %v1917 = vsel %vm475, %v1916, -inf
    %1918 = vmax.xlane.f32.xlu0 %v1917
    %v1919 = vpop.xlane.xlu0 %1918
    %v1920 = vsub.f32 %v1916, %v1919
    %v1921 = vmul.f32 %v1920, 1.442695
    %v1922 = vpow.pop %v1921
    %v1923 = vsel %vm475, %v1922, 0.0
    %1924 = vadd.xlane.f32.xlu0 %v1923
    %v1925 = vpop.xlane.xlu0 %1924
    %v1926 = vrcp.pop %v1925
    %v1927 = vmul.f32 %v1925, %v1926
    %v1928 = vsub.f32 1.0, %v1927
    %v1929 = vmul.f32 %v1926, %v1928
    %v1930 = vadd.f32 %v1926, %v1929
    %vm1931 = vweird.f32 %v1925
    %vm1932 = vweird.f32 %v1926
    %vm1933 = vmor %vm1931, %vm1932
    %v1934 = vsel %vm1933, %v1926, %v1930
    %v1935 = vand.u32 2147483647, %v1925
    %vm1936 = vcmp.eq.f32.partialorder %v1935, 8.507059e+37
    %v1937 = vand.u32 %v1925, 2147483648
    %v1938 = vor.u32 1.1754944e-38, %v1937
    %v1939 = vsel %vm1936, %v1938, %v1934
    %v1940 = vmul.f32 %v1922, %v1939
    %1941 = vrot.lane.b32.xlu0 %v1675, 48
    %v1942 = vpop.permute.xlu0 %1941
    %v1945 = vsel %vm475, %v1940, 0
    %1947 = vmatpush.msra.mxu0 0.0
    %1948 = vmatpush.msra.mxu0 0.0
    %1949 = vmatpush.msra.mxu0 0.0
    %1950 = vmatpush.msra.mxu0 0.0
    %1951 = vmatpush.msra.mxu0 0.0
    %1952 = vmatpush.msra.mxu0 0.0
    %1953 = vmatpush.msra.mxu0 0.0
    %1954 = vmatpush.msra.mxu0 0.0
    %1955 = vmatpush.msra.mxu0 0.0
    %1956 = vmatpush.msra.mxu0 0.0
    %1957 = vmatpush.msra.mxu0 0.0
    %1958 = vmatpush.msra.mxu0 0.0
    %1959 = vmatpush.msra.mxu0 0.0
    %1960 = vmatpush.msra.mxu0 0.0
    %1961 = vmatpush.msra.mxu0 0.0
    %1962 = vmatpush.msra.mxu0 %v1942
    %1963 = vmatmul.f32.gmra.mxu0 %v1945
    %v1964 = vpop.f32.mrf.mxu0
    %v1965 = vadd.f32 0.0, %v1964
    %1966 = vdwg.mxu0
    %v1968 = vsel %vm475, %v1965, 0
    %1970 = vmatpush.msra.mxu0 0.0
    %1971 = vmatpush.msra.mxu0 0.0
    %1972 = vmatpush.msra.mxu0 0.0
    %1973 = vmatpush.msra.mxu0 0.0
    %1974 = vmatpush.msra.mxu0 0.0
    %1975 = vmatpush.msra.mxu0 0.0
    %1976 = vmatpush.msra.mxu0 0.0
    %1977 = vmatpush.msra.mxu0 0.0
    %1978 = vmatpush.msra.mxu0 0.0
    %1979 = vmatpush.msra.mxu0 0.0
    %1980 = vmatpush.msra.mxu0 0.0
    %1981 = vmatpush.msra.mxu0 0.0
    %1982 = vmatpush.msra.mxu0 0.0
    %1983 = vmatpush.msra.mxu0 0.0
    %1984 = vmatpush.msra.mxu0 0.0
    %1985 = vmatpush.msra.mxu0 %v1679
    %1986 = vmatmul.f32.gmra.mxu0 %v1968
    %v1987 = vpop.f32.mrf.mxu0
    %v1988 = vadd.f32 0.0, %v1987
    %1989 = vdwg.mxu0
    %v1990 = vadd.f32 %v1885, %v1988
    %1991 = vrot.lane.b32.xlu0 %v1675, 104
    %v1992 = vpop.permute.xlu0 %1991
    %1993 = vrot.lane.b32.xlu0 %v1675, 72
    %v1994 = vpop.permute.xlu0 %1993
    %v1995 = vsel %vm475, %v1992, 0
    %v1997 = vsel %vm475, %v1994, 0
    %1999 = vmatpush.xpose.msra.mxu0 0.0
    %2000 = vmatpush.xpose.msra.mxu0 0.0
    %2001 = vmatpush.xpose.msra.mxu0 0.0
    %2002 = vmatpush.xpose.msra.mxu0 0.0
    %2003 = vmatpush.xpose.msra.mxu0 0.0
    %2004 = vmatpush.xpose.msra.mxu0 0.0
    %2005 = vmatpush.xpose.msra.mxu0 0.0
    %2006 = vmatpush.xpose.msra.mxu0 0.0
    %2007 = vmatpush.xpose.msra.mxu0 0.0
    %2008 = vmatpush.xpose.msra.mxu0 0.0
    %2009 = vmatpush.xpose.msra.mxu0 0.0
    %2010 = vmatpush.xpose.msra.mxu0 0.0
    %2011 = vmatpush.xpose.msra.mxu0 0.0
    %2012 = vmatpush.xpose.msra.mxu0 0.0
    %2013 = vmatpush.xpose.msra.mxu0 0.0
    %2014 = vmatpush.xpose.msra.mxu0 %v1997
    %2015 = vmatmul.f32.gmra.mxu0 %v1995
    %v2016 = vpop.f32.mrf.mxu0
    %v2017 = vadd.f32 0.0, %v2016
    %2018 = vdwg.mxu0
    %v2019 = vmul.f32 %v2017, 0.35355338
    %v2020 = vadd.f32 %v2019, %v396
    %v2021 = vsel %vm475, %v2020, -inf
    %2022 = vmax.xlane.f32.xlu0 %v2021
    %v2023 = vpop.xlane.xlu0 %2022
    %v2024 = vsub.f32 %v2020, %v2023
    %v2025 = vmul.f32 %v2024, 1.442695
    %v2026 = vpow.pop %v2025
    %v2027 = vsel %vm475, %v2026, 0.0
    %2028 = vadd.xlane.f32.xlu0 %v2027
    %v2029 = vpop.xlane.xlu0 %2028
    %v2030 = vrcp.pop %v2029
    %v2031 = vmul.f32 %v2029, %v2030
    %v2032 = vsub.f32 1.0, %v2031
    %v2033 = vmul.f32 %v2030, %v2032
    %v2034 = vadd.f32 %v2030, %v2033
    %vm2035 = vweird.f32 %v2029
    %vm2036 = vweird.f32 %v2030
    %vm2037 = vmor %vm2035, %vm2036
    %v2038 = vsel %vm2037, %v2030, %v2034
    %v2039 = vand.u32 2147483647, %v2029
    %vm2040 = vcmp.eq.f32.partialorder %v2039, 8.507059e+37
    %v2041 = vand.u32 %v2029, 2147483648
    %v2042 = vor.u32 1.1754944e-38, %v2041
    %v2043 = vsel %vm2040, %v2042, %v2038
    %v2044 = vmul.f32 %v2026, %v2043
    %2045 = vrot.lane.b32.xlu0 %v1675, 40
    %v2046 = vpop.permute.xlu0 %2045
    %v2049 = vsel %vm475, %v2044, 0
    %2051 = vmatpush.msra.mxu0 0.0
    %2052 = vmatpush.msra.mxu0 0.0
    %2053 = vmatpush.msra.mxu0 0.0
    %2054 = vmatpush.msra.mxu0 0.0
    %2055 = vmatpush.msra.mxu0 0.0
    %2056 = vmatpush.msra.mxu0 0.0
    %2057 = vmatpush.msra.mxu0 0.0
    %2058 = vmatpush.msra.mxu0 0.0
    %2059 = vmatpush.msra.mxu0 0.0
    %2060 = vmatpush.msra.mxu0 0.0
    %2061 = vmatpush.msra.mxu0 0.0
    %2062 = vmatpush.msra.mxu0 0.0
    %2063 = vmatpush.msra.mxu0 0.0
    %2064 = vmatpush.msra.mxu0 0.0
    %2065 = vmatpush.msra.mxu0 0.0
    %2066 = vmatpush.msra.mxu0 %v2046
    %2067 = vmatmul.f32.gmra.mxu0 %v2049
    %v2068 = vpop.f32.mrf.mxu0
    %v2069 = vadd.f32 0.0, %v2068
    %2070 = vdwg.mxu0
    %v2072 = vsel %vm475, %v2069, 0
    %2074 = vmatpush.msra.mxu0 0.0
    %2075 = vmatpush.msra.mxu0 0.0
    %2076 = vmatpush.msra.mxu0 0.0
    %2077 = vmatpush.msra.mxu0 0.0
    %2078 = vmatpush.msra.mxu0 0.0
    %2079 = vmatpush.msra.mxu0 0.0
    %2080 = vmatpush.msra.mxu0 0.0
    %2081 = vmatpush.msra.mxu0 0.0
    %2082 = vmatpush.msra.mxu0 0.0
    %2083 = vmatpush.msra.mxu0 0.0
    %2084 = vmatpush.msra.mxu0 0.0
    %2085 = vmatpush.msra.mxu0 0.0
    %2086 = vmatpush.msra.mxu0 0.0
    %2087 = vmatpush.msra.mxu0 0.0
    %2088 = vmatpush.msra.mxu0 0.0
    %2089 = vmatpush.msra.mxu0 %v1680
    %2090 = vmatmul.f32.gmra.mxu0 %v2072
    %v2091 = vpop.f32.mrf.mxu0
    %v2092 = vadd.f32 0.0, %v2091
    %2093 = vdwg.mxu0
    %v2094 = vadd.f32 %v1990, %v2092
    %v2096 = vperm.slane %v1681, 0
    %v2098 = vadd.f32 %v2094, %v2096
    %v2099 = vadd.f32 %v1645, %v2098
    %v2100 = vld [vmem:[%s51] sm:$0x3]
    %v2101 = vsel %vm443, %v2099, 0.0
    %2102 = vadd.xlane.f32.xlu0 %v2101
    %v2103 = vpop.xlane.xlu0 %2102
    %v2104 = vmul.f32 %v2103, %v901
    %v2105 = vsub.f32 %v2099, %v2104
    %v2106 = vmul.f32 %v2105, %v2105
    %v2107 = vsel %vm443, %v2106, 0.0
    %2108 = vadd.xlane.f32.xlu0 %v2107
    %v2109 = vpop.xlane.xlu0 %2108
    %v2110 = vmul.f32 %v2109, %v901
    %v2111 = vadd.f32 %v2110, 1e-05
    %v2112 = vrsqrt.pop %v2111
    %v2113 = vmul.f32 %v2112, %v2111
    %v2114 = vmul.f32 %v2113, %v2112
    %v2115 = vmul.f32 0.5, %v2114
    %v2116 = vsub.f32 1.5, %v2115
    %v2117 = vmul.f32 %v2112, %v2116
    %vm2118 = vweird.f32 %v2111
    %vm2119 = vweird.f32 %v2112
    %vm2120 = vmor %vm2118, %vm2119
    %v2121 = vsel %vm2120, %v2112, %v2117
    %v2122 = vmul.f32 %v2105, %v2121
    %v2123 = vperm.slane %v2100, 0
    %v2124 = vmul.f32 %v2122, %v2123
    %v2125 = vperm.slane %v2100, 1
    %v2126 = vadd.f32 %v2124, %v2125
    %v2127 = vld [vmem:[%s39] sm:$0xff]
    %v2128 = vld [vmem:[%s39 + $0x8] sm:$0xff]
    %v2129 = vld [vmem:[%s39 + $0x10] sm:$0xff]
    %v2130 = vld [vmem:[%s39 + $0x18] sm:$0xff]
    %v2131 = vld [vmem:[#allocation13] sm:$0x1]
    %v2133 = vperm.slane %v2131, 0
    %v2136 = vsel %vm443, %v2126, 0
    %2138 = vmatpush.msra.mxu0 0.0
    %2139 = vmatpush.msra.mxu0 0.0
    %2140 = vmatpush.msra.mxu0 0.0
    %2141 = vmatpush.msra.mxu0 0.0
    %2142 = vmatpush.msra.mxu0 0.0
    %2143 = vmatpush.msra.mxu0 0.0
    %2144 = vmatpush.msra.mxu0 0.0
    %2145 = vmatpush.msra.mxu0 0.0
    %2146 = vmatpush.msra.mxu0 0.0
    %2147 = vmatpush.msra.mxu0 0.0
    %2148 = vmatpush.msra.mxu0 0.0
    %2149 = vmatpush.msra.mxu0 0.0
    %2150 = vmatpush.msra.mxu0 %v2130
    %2151 = vmatpush.msra.mxu0 %v2129
    %2152 = vmatpush.msra.mxu0 %v2128
    %2153 = vmatpush.msra.mxu0 %v2127
    %2154 = vmatmul.f32.gmra.mxu0 %v2136
    %v2155 = vpop.f32.mrf.mxu0
    %v2156 = vadd.f32 %v2133, %v2155
    %2157 = vdwg.mxu0
    %v2158 = vld [vmem:[#allocation14] sm:$0xff]
    %v2159 = vld [vmem:[#allocation14 + $0x8] sm:$0xff]
    %v2160 = vld [vmem:[#allocation14 + $0x10] sm:$0xff]
    %v2161 = vld [vmem:[#allocation14 + $0x18] sm:$0xff]
    %v2162 = vld [vmem:[#allocation16] sm:$0x1]
    %v2164 = vperm.slane %v2162, 0
    %v2167 = vsel %vm443, %v1606, 0
    %2169 = vmatpush.msra.mxu0 0.0
    %2170 = vmatpush.msra.mxu0 0.0
    %2171 = vmatpush.msra.mxu0 0.0
    %2172 = vmatpush.msra.mxu0 0.0
    %2173 = vmatpush.msra.mxu0 0.0
    %2174 = vmatpush.msra.mxu0 0.0
    %2175 = vmatpush.msra.mxu0 0.0
    %2176 = vmatpush.msra.mxu0 0.0
    %2177 = vmatpush.msra.mxu0 0.0
    %2178 = vmatpush.msra.mxu0 0.0
    %2179 = vmatpush.msra.mxu0 0.0
    %2180 = vmatpush.msra.mxu0 0.0
    %2181 = vmatpush.msra.mxu0 %v2161
    %2182 = vmatpush.msra.mxu0 %v2160
    %2183 = vmatpush.msra.mxu0 %v2159
    %2184 = vmatpush.msra.mxu0 %v2158
    %2185 = vmatmul.f32.gmra.mxu0 %v2167
    %v2186 = vpop.f32.mrf.mxu0
    %v2187 = vadd.f32 %v2164, %v2186
    %2188 = vdwg.mxu0
    %v2189 = vld [vmem:[#allocation17] sm:$0xff]
    %v2190 = vld [vmem:[#allocation17 + $0x8] sm:$0xff]
    %v2191 = vld [vmem:[#allocation17 + $0x10] sm:$0xff]
    %v2192 = vld [vmem:[#allocation17 + $0x18] sm:$0xff]
    %v2193 = vld [vmem:[#allocation19] sm:$0x1]
    %v2195 = vsel %vm475, %v2156, 0
    %v2198 = vsel %vm475, %v2187, 0
    %2200 = vmatpush.xpose.msra.mxu0 0.0
    %2201 = vmatpush.xpose.msra.mxu0 0.0
    %2202 = vmatpush.xpose.msra.mxu0 0.0
    %2203 = vmatpush.xpose.msra.mxu0 0.0
    %2204 = vmatpush.xpose.msra.mxu0 0.0
    %2205 = vmatpush.xpose.msra.mxu0 0.0
    %2206 = vmatpush.xpose.msra.mxu0 0.0
    %2207 = vmatpush.xpose.msra.mxu0 0.0
    %2208 = vmatpush.xpose.msra.mxu0 0.0
    %2209 = vmatpush.xpose.msra.mxu0 0.0
    %2210 = vmatpush.xpose.msra.mxu0 0.0
    %2211 = vmatpush.xpose.msra.mxu0 0.0
    %2212 = vmatpush.xpose.msra.mxu0 0.0
    %2213 = vmatpush.xpose.msra.mxu0 0.0
    %2214 = vmatpush.xpose.msra.mxu0 0.0
    %2215 = vmatpush.xpose.msra.mxu0 %v2198
    %2216 = vmatmul.f32.gmra.mxu0 %v2195
    %v2217 = vpop.f32.mrf.mxu0
    %v2218 = vadd.f32 0.0, %v2217
    %2219 = vdwg.mxu0
    %v2220 = vmul.f32 %v2218, 0.35355338
    %v2221 = vsel %vm475, %v2220, -inf
    %2222 = vmax.xlane.f32.xlu0 %v2221
    %v2223 = vpop.xlane.xlu0 %2222
    %v2224 = vsub.f32 %v2220, %v2223
    %v2225 = vmul.f32 %v2224, 1.442695
    %v2226 = vpow.pop %v2225
    %v2227 = vsel %vm475, %v2226, 0.0
    %2228 = vadd.xlane.f32.xlu0 %v2227
    %v2229 = vpop.xlane.xlu0 %2228
    %v2230 = vrcp.pop %v2229
    %v2231 = vmul.f32 %v2229, %v2230
    %v2232 = vsub.f32 1.0, %v2231
    %v2233 = vmul.f32 %v2230, %v2232
    %v2234 = vadd.f32 %v2230, %v2233
    %vm2235 = vweird.f32 %v2229
    %vm2236 = vweird.f32 %v2230
    %vm2237 = vmor %vm2235, %vm2236
    %v2238 = vsel %vm2237, %v2230, %v2234
    %v2239 = vand.u32 2147483647, %v2229
    %vm2240 = vcmp.eq.f32.partialorder %v2239, 8.507059e+37
    %v2241 = vand.u32 %v2229, 2147483648
    %v2242 = vor.u32 1.1754944e-38, %v2241
    %v2243 = vsel %vm2240, %v2242, %v2238
    %v2244 = vmul.f32 %v2226, %v2243
    %2245 = vrot.lane.b32.xlu0 %v2187, 96
    %v2246 = vpop.permute.xlu0 %2245
    %v2249 = vsel %vm475, %v2244, 0
    %2251 = vmatpush.msra.mxu0 0.0
    %2252 = vmatpush.msra.mxu0 0.0
    %2253 = vmatpush.msra.mxu0 0.0
    %2254 = vmatpush.msra.mxu0 0.0
    %2255 = vmatpush.msra.mxu0 0.0
    %2256 = vmatpush.msra.mxu0 0.0
    %2257 = vmatpush.msra.mxu0 0.0
    %2258 = vmatpush.msra.mxu0 0.0
    %2259 = vmatpush.msra.mxu0 0.0
    %2260 = vmatpush.msra.mxu0 0.0
    %2261 = vmatpush.msra.mxu0 0.0
    %2262 = vmatpush.msra.mxu0 0.0
    %2263 = vmatpush.msra.mxu0 0.0
    %2264 = vmatpush.msra.mxu0 0.0
    %2265 = vmatpush.msra.mxu0 0.0
    %2266 = vmatpush.msra.mxu0 %v2246
    %2267 = vmatmul.f32.gmra.mxu0 %v2249
    %v2268 = vpop.f32.mrf.mxu0
    %v2269 = vadd.f32 0.0, %v2268
    %2270 = vdwg.mxu0
    %2271 = vrot.lane.b32.xlu0 %v2156, 120
    %v2272 = vpop.permute.xlu0 %2271
    %2273 = vrot.lane.b32.xlu0 %v2187, 120
    %v2274 = vpop.permute.xlu0 %2273
    %v2275 = vsel %vm475, %v2272, 0
    %v2277 = vsel %vm475, %v2274, 0
    %2279 = vmatpush.xpose.msra.mxu0 0.0
    %2280 = vmatpush.xpose.msra.mxu0 0.0
    %2281 = vmatpush.xpose.msra.mxu0 0.0
    %2282 = vmatpush.xpose.msra.mxu0 0.0
    %2283 = vmatpush.xpose.msra.mxu0 0.0
    %2284 = vmatpush.xpose.msra.mxu0 0.0
    %2285 = vmatpush.xpose.msra.mxu0 0.0
    %2286 = vmatpush.xpose.msra.mxu0 0.0
    %2287 = vmatpush.xpose.msra.mxu0 0.0
    %2288 = vmatpush.xpose.msra.mxu0 0.0
    %2289 = vmatpush.xpose.msra.mxu0 0.0
    %2290 = vmatpush.xpose.msra.mxu0 0.0
    %2291 = vmatpush.xpose.msra.mxu0 0.0
    %2292 = vmatpush.xpose.msra.mxu0 0.0
    %2293 = vmatpush.xpose.msra.mxu0 0.0
    %2294 = vmatpush.xpose.msra.mxu0 %v2277
    %2295 = vmatmul.f32.gmra.mxu0 %v2275
    %v2296 = vpop.f32.mrf.mxu0
    %v2297 = vadd.f32 0.0, %v2296
    %2298 = vdwg.mxu0
    %v2299 = vmul.f32 %v2297, 0.35355338
    %v2300 = vsel %vm475, %v2299, -inf
    %2301 = vmax.xlane.f32.xlu0 %v2300
    %v2302 = vpop.xlane.xlu0 %2301
    %v2303 = vsub.f32 %v2299, %v2302
    %v2304 = vmul.f32 %v2303, 1.442695
    %v2305 = vpow.pop %v2304
    %v2306 = vsel %vm475, %v2305, 0.0
    %2307 = vadd.xlane.f32.xlu0 %v2306
    %v2308 = vpop.xlane.xlu0 %2307
    %v2309 = vrcp.pop %v2308
    %v2310 = vmul.f32 %v2308, %v2309
    %v2311 = vsub.f32 1.0, %v2310
    %v2312 = vmul.f32 %v2309, %v2311
    %v2313 = vadd.f32 %v2309, %v2312
    %vm2314 = vweird.f32 %v2308
    %vm2315 = vweird.f32 %v2309
    %vm2316 = vmor %vm2314, %vm2315
    %v2317 = vsel %vm2316, %v2309, %v2313
    %v2318 = vand.u32 2147483647, %v2308
    %vm2319 = vcmp.eq.f32.partialorder %v2318, 8.507059e+37
    %v2320 = vand.u32 %v2308, 2147483648
    %v2321 = vor.u32 1.1754944e-38, %v2320
    %v2322 = vsel %vm2319, %v2321, %v2317
    %v2323 = vmul.f32 %v2305, %v2322
    %2324 = vrot.lane.b32.xlu0 %v2187, 88
    %v2325 = vpop.permute.xlu0 %2324
    %v2328 = vsel %vm475, %v2323, 0
    %2330 = vmatpush.msra.mxu0 0.0
    %2331 = vmatpush.msra.mxu0 0.0
    %2332 = vmatpush.msra.mxu0 0.0
    %2333 = vmatpush.msra.mxu0 0.0
    %2334 = vmatpush.msra.mxu0 0.0
    %2335 = vmatpush.msra.mxu0 0.0
    %2336 = vmatpush.msra.mxu0 0.0
    %2337 = vmatpush.msra.mxu0 0.0
    %2338 = vmatpush.msra.mxu0 0.0
    %2339 = vmatpush.msra.mxu0 0.0
    %2340 = vmatpush.msra.mxu0 0.0
    %2341 = vmatpush.msra.mxu0 0.0
    %2342 = vmatpush.msra.mxu0 0.0
    %2343 = vmatpush.msra.mxu0 0.0
    %2344 = vmatpush.msra.mxu0 0.0
    %2345 = vmatpush.msra.mxu0 %v2325
    %2346 = vmatmul.f32.gmra.mxu0 %v2328
    %v2347 = vpop.f32.mrf.mxu0
    %v2348 = vadd.f32 0.0, %v2347
    %2349 = vdwg.mxu0
    %v2351 = vsel %vm475, %v2348, 0
    %2353 = vmatpush.msra.mxu0 0.0
    %2354 = vmatpush.msra.mxu0 0.0
    %2355 = vmatpush.msra.mxu0 0.0
    %2356 = vmatpush.msra.mxu0 0.0
    %2357 = vmatpush.msra.mxu0 0.0
    %2358 = vmatpush.msra.mxu0 0.0
    %2359 = vmatpush.msra.mxu0 0.0
    %2360 = vmatpush.msra.mxu0 0.0
    %2361 = vmatpush.msra.mxu0 0.0
    %2362 = vmatpush.msra.mxu0 0.0
    %2363 = vmatpush.msra.mxu0 0.0
    %2364 = vmatpush.msra.mxu0 0.0
    %2365 = vmatpush.msra.mxu0 0.0
    %2366 = vmatpush.msra.mxu0 0.0
    %2367 = vmatpush.msra.mxu0 0.0
    %2368 = vmatpush.msra.mxu0 %v2190
    %2369 = vmatmul.f32.gmra.mxu0 %v2351
    %v2370 = vpop.f32.mrf.mxu0
    %v2371 = vadd.f32 0.0, %v2370
    %2372 = vdwg.mxu0
    %v2374 = vsel %vm475, %v2269, 0
    %2376 = vmatpush.msra.mxu0 0.0
    %2377 = vmatpush.msra.mxu0 0.0
    %2378 = vmatpush.msra.mxu0 0.0
    %2379 = vmatpush.msra.mxu0 0.0
    %2380 = vmatpush.msra.mxu0 0.0
    %2381 = vmatpush.msra.mxu0 0.0
    %2382 = vmatpush.msra.mxu0 0.0
    %2383 = vmatpush.msra.mxu0 0.0
    %2384 = vmatpush.msra.mxu0 0.0
    %2385 = vmatpush.msra.mxu0 0.0
    %2386 = vmatpush.msra.mxu0 0.0
    %2387 = vmatpush.msra.mxu0 0.0
    %2388 = vmatpush.msra.mxu0 0.0
    %2389 = vmatpush.msra.mxu0 0.0
    %2390 = vmatpush.msra.mxu0 0.0
    %2391 = vmatpush.msra.mxu0 %v2189
    %2392 = vmatmul.f32.gmra.mxu0 %v2374
    %v2393 = vpop.f32.mrf.mxu0
    %v2394 = vadd.f32 %v2371, %v2393
    %2395 = vdwg.mxu0
    %2396 = vrot.lane.b32.xlu0 %v2156, 112
    %v2397 = vpop.permute.xlu0 %2396
    %2398 = vrot.lane.b32.xlu0 %v2187, 112
    %v2399 = vpop.permute.xlu0 %2398
    %v2400 = vsel %vm475, %v2397, 0
    %v2402 = vsel %vm475, %v2399, 0
    %2404 = vmatpush.xpose.msra.mxu0 0.0
    %2405 = vmatpush.xpose.msra.mxu0 0.0
    %2406 = vmatpush.xpose.msra.mxu0 0.0
    %2407 = vmatpush.xpose.msra.mxu0 0.0
    %2408 = vmatpush.xpose.msra.mxu0 0.0
    %2409 = vmatpush.xpose.msra.mxu0 0.0
    %2410 = vmatpush.xpose.msra.mxu0 0.0
    %2411 = vmatpush.xpose.msra.mxu0 0.0
    %2412 = vmatpush.xpose.msra.mxu0 0.0
    %2413 = vmatpush.xpose.msra.mxu0 0.0
    %2414 = vmatpush.xpose.msra.mxu0 0.0
    %2415 = vmatpush.xpose.msra.mxu0 0.0
    %2416 = vmatpush.xpose.msra.mxu0 0.0
    %2417 = vmatpush.xpose.msra.mxu0 0.0
    %2418 = vmatpush.xpose.msra.mxu0 0.0
    %2419 = vmatpush.xpose.msra.mxu0 %v2402
    %2420 = vmatmul.f32.gmra.mxu0 %v2400
    %v2421 = vpop.f32.mrf.mxu0
    %v2422 = vadd.f32 0.0, %v2421
    %2423 = vdwg.mxu0
    %v2424 = vmul.f32 %v2422, 0.35355338
    %v2425 = vsel %vm475, %v2424, -inf
    %2426 = vmax.xlane.f32.xlu0 %v2425
    %v2427 = vpop.xlane.xlu0 %2426
    %v2428 = vsub.f32 %v2424, %v2427
    %v2429 = vmul.f32 %v2428, 1.442695
    %v2430 = vpow.pop %v2429
    %v2431 = vsel %vm475, %v2430, 0.0
    %2432 = vadd.xlane.f32.xlu0 %v2431
    %v2433 = vpop.xlane.xlu0 %2432
    %v2434 = vrcp.pop %v2433
    %v2435 = vmul.f32 %v2433, %v2434
    %v2436 = vsub.f32 1.0, %v2435
    %v2437 = vmul.f32 %v2434, %v2436
    %v2438 = vadd.f32 %v2434, %v2437
    %vm2439 = vweird.f32 %v2433
    %vm2440 = vweird.f32 %v2434
    %vm2441 = vmor %vm2439, %vm2440
    %v2442 = vsel %vm2441, %v2434, %v2438
    %v2443 = vand.u32 2147483647, %v2433
    %vm2444 = vcmp.eq.f32.partialorder %v2443, 8.507059e+37
    %v2445 = vand.u32 %v2433, 2147483648
    %v2446 = vor.u32 1.1754944e-38, %v2445
    %v2447 = vsel %vm2444, %v2446, %v2442
    %v2448 = vmul.f32 %v2430, %v2447
    %2449 = vrot.lane.b32.xlu0 %v2187, 80
    %v2450 = vpop.permute.xlu0 %2449
    %v2453 = vsel %vm475, %v2448, 0
    %2455 = vmatpush.msra.mxu0 0.0
    %2456 = vmatpush.msra.mxu0 0.0
    %2457 = vmatpush.msra.mxu0 0.0
    %2458 = vmatpush.msra.mxu0 0.0
    %2459 = vmatpush.msra.mxu0 0.0
    %2460 = vmatpush.msra.mxu0 0.0
    %2461 = vmatpush.msra.mxu0 0.0
    %2462 = vmatpush.msra.mxu0 0.0
    %2463 = vmatpush.msra.mxu0 0.0
    %2464 = vmatpush.msra.mxu0 0.0
    %2465 = vmatpush.msra.mxu0 0.0
    %2466 = vmatpush.msra.mxu0 0.0
    %2467 = vmatpush.msra.mxu0 0.0
    %2468 = vmatpush.msra.mxu0 0.0
    %2469 = vmatpush.msra.mxu0 0.0
    %2470 = vmatpush.msra.mxu0 %v2450
    %2471 = vmatmul.f32.gmra.mxu0 %v2453
    %v2472 = vpop.f32.mrf.mxu0
    %v2473 = vadd.f32 0.0, %v2472
    %2474 = vdwg.mxu0
    %v2476 = vsel %vm475, %v2473, 0
    %2478 = vmatpush.msra.mxu0 0.0
    %2479 = vmatpush.msra.mxu0 0.0
    %2480 = vmatpush.msra.mxu0 0.0
    %2481 = vmatpush.msra.mxu0 0.0
    %2482 = vmatpush.msra.mxu0 0.0
    %2483 = vmatpush.msra.mxu0 0.0
    %2484 = vmatpush.msra.mxu0 0.0
    %2485 = vmatpush.msra.mxu0 0.0
    %2486 = vmatpush.msra.mxu0 0.0
    %2487 = vmatpush.msra.mxu0 0.0
    %2488 = vmatpush.msra.mxu0 0.0
    %2489 = vmatpush.msra.mxu0 0.0
    %2490 = vmatpush.msra.mxu0 0.0
    %2491 = vmatpush.msra.mxu0 0.0
    %2492 = vmatpush.msra.mxu0 0.0
    %2493 = vmatpush.msra.mxu0 %v2191
    %2494 = vmatmul.f32.gmra.mxu0 %v2476
    %v2495 = vpop.f32.mrf.mxu0
    %v2496 = vadd.f32 0.0, %v2495
    %2497 = vdwg.mxu0
    %v2498 = vadd.f32 %v2394, %v2496
    %2499 = vrot.lane.b32.xlu0 %v2156, 104
    %v2500 = vpop.permute.xlu0 %2499
    %2501 = vrot.lane.b32.xlu0 %v2187, 104
    %v2502 = vpop.permute.xlu0 %2501
    %v2503 = vsel %vm475, %v2500, 0
    %v2505 = vsel %vm475, %v2502, 0
    %2507 = vmatpush.xpose.msra.mxu0 0.0
    %2508 = vmatpush.xpose.msra.mxu0 0.0
    %2509 = vmatpush.xpose.msra.mxu0 0.0
    %2510 = vmatpush.xpose.msra.mxu0 0.0
    %2511 = vmatpush.xpose.msra.mxu0 0.0
    %2512 = vmatpush.xpose.msra.mxu0 0.0
    %2513 = vmatpush.xpose.msra.mxu0 0.0
    %2514 = vmatpush.xpose.msra.mxu0 0.0
    %2515 = vmatpush.xpose.msra.mxu0 0.0
    %2516 = vmatpush.xpose.msra.mxu0 0.0
    %2517 = vmatpush.xpose.msra.mxu0 0.0
    %2518 = vmatpush.xpose.msra.mxu0 0.0
    %2519 = vmatpush.xpose.msra.mxu0 0.0
    %2520 = vmatpush.xpose.msra.mxu0 0.0
    %2521 = vmatpush.xpose.msra.mxu0 0.0
    %2522 = vmatpush.xpose.msra.mxu0 %v2505
    %2523 = vmatmul.f32.gmra.mxu0 %v2503
    %v2524 = vpop.f32.mrf.mxu0
    %v2525 = vadd.f32 0.0, %v2524
    %2526 = vdwg.mxu0
    %v2527 = vmul.f32 %v2525, 0.35355338
    %v2528 = vsel %vm475, %v2527, -inf
    %2529 = vmax.xlane.f32.xlu0 %v2528
    %v2530 = vpop.xlane.xlu0 %2529
    %v2531 = vsub.f32 %v2527, %v2530
    %v2532 = vmul.f32 %v2531, 1.442695
    %v2533 = vpow.pop %v2532
    %v2534 = vsel %vm475, %v2533, 0.0
    %2535 = vadd.xlane.f32.xlu0 %v2534
    %v2536 = vpop.xlane.xlu0 %2535
    %v2537 = vrcp.pop %v2536
    %v2538 = vmul.f32 %v2536, %v2537
    %v2539 = vsub.f32 1.0, %v2538
    %v2540 = vmul.f32 %v2537, %v2539
    %v2541 = vadd.f32 %v2537, %v2540
    %vm2542 = vweird.f32 %v2536
    %vm2543 = vweird.f32 %v2537
    %vm2544 = vmor %vm2542, %vm2543
    %v2545 = vsel %vm2544, %v2537, %v2541
    %v2546 = vand.u32 2147483647, %v2536
    %vm2547 = vcmp.eq.f32.partialorder %v2546, 8.507059e+37
    %v2548 = vand.u32 %v2536, 2147483648
    %v2549 = vor.u32 1.1754944e-38, %v2548
    %v2550 = vsel %vm2547, %v2549, %v2545
    %v2551 = vmul.f32 %v2533, %v2550
    %2552 = vrot.lane.b32.xlu0 %v2187, 72
    %v2553 = vpop.permute.xlu0 %2552
    %v2556 = vsel %vm475, %v2551, 0
    %2558 = vmatpush.msra.mxu0 0.0
    %2559 = vmatpush.msra.mxu0 0.0
    %2560 = vmatpush.msra.mxu0 0.0
    %2561 = vmatpush.msra.mxu0 0.0
    %2562 = vmatpush.msra.mxu0 0.0
    %2563 = vmatpush.msra.mxu0 0.0
    %2564 = vmatpush.msra.mxu0 0.0
    %2565 = vmatpush.msra.mxu0 0.0
    %2566 = vmatpush.msra.mxu0 0.0
    %2567 = vmatpush.msra.mxu0 0.0
    %2568 = vmatpush.msra.mxu0 0.0
    %2569 = vmatpush.msra.mxu0 0.0
    %2570 = vmatpush.msra.mxu0 0.0
    %2571 = vmatpush.msra.mxu0 0.0
    %2572 = vmatpush.msra.mxu0 0.0
    %2573 = vmatpush.msra.mxu0 %v2553
    %2574 = vmatmul.f32.gmra.mxu0 %v2556
    %v2575 = vpop.f32.mrf.mxu0
    %v2576 = vadd.f32 0.0, %v2575
    %2577 = vdwg.mxu0
    %v2579 = vsel %vm475, %v2576, 0
    %2581 = vmatpush.msra.mxu0 0.0
    %2582 = vmatpush.msra.mxu0 0.0
    %2583 = vmatpush.msra.mxu0 0.0
    %2584 = vmatpush.msra.mxu0 0.0
    %2585 = vmatpush.msra.mxu0 0.0
    %2586 = vmatpush.msra.mxu0 0.0
    %2587 = vmatpush.msra.mxu0 0.0
    %2588 = vmatpush.msra.mxu0 0.0
    %2589 = vmatpush.msra.mxu0 0.0
    %2590 = vmatpush.msra.mxu0 0.0
    %2591 = vmatpush.msra.mxu0 0.0
    %2592 = vmatpush.msra.mxu0 0.0
    %2593 = vmatpush.msra.mxu0 0.0
    %2594 = vmatpush.msra.mxu0 0.0
    %2595 = vmatpush.msra.mxu0 0.0
    %2596 = vmatpush.msra.mxu0 %v2192
    %2597 = vmatmul.f32.gmra.mxu0 %v2579
    %v2598 = vpop.f32.mrf.mxu0
    %v2599 = vadd.f32 0.0, %v2598
    %2600 = vdwg.mxu0
    %v2601 = vadd.f32 %v2498, %v2599
    %v2603 = vperm.slane %v2193, 0
    %v2605 = vadd.f32 %v2601, %v2603
    %v2606 = vadd.f32 %v2126, %v2605
    %v2607 = vld [vmem:[%s53] sm:$0x3]
    %v2608 = vsel %vm443, %v2606, 0.0
    %2609 = vadd.xlane.f32.xlu0 %v2608
    %v2610 = vpop.xlane.xlu0 %2609
    %v2611 = vmul.f32 %v2610, %v901
    %v2612 = vsub.f32 %v2606, %v2611
    %v2613 = vmul.f32 %v2612, %v2612
    %v2614 = vsel %vm443, %v2613, 0.0
    %2615 = vadd.xlane.f32.xlu0 %v2614
    %v2616 = vpop.xlane.xlu0 %2615
    %v2617 = vmul.f32 %v2616, %v901
    %v2618 = vadd.f32 %v2617, 1e-05
    %v2619 = vrsqrt.pop %v2618
    %v2620 = vmul.f32 %v2619, %v2618
    %v2621 = vmul.f32 %v2620, %v2619
    %v2622 = vmul.f32 0.5, %v2621
    %v2623 = vsub.f32 1.5, %v2622
    %v2624 = vmul.f32 %v2619, %v2623
    %vm2625 = vweird.f32 %v2618
    %vm2626 = vweird.f32 %v2619
    %vm2627 = vmor %vm2625, %vm2626
    %v2628 = vsel %vm2627, %v2619, %v2624
    %v2629 = vmul.f32 %v2612, %v2628
    %v2630 = vperm.slane %v2607, 0
    %v2631 = vmul.f32 %v2629, %v2630
    %v2632 = vperm.slane %v2607, 1
    %v2633 = vadd.f32 %v2631, %v2632
    %v2634 = vld [vmem:[#allocation20] sm:$0xff]
    %v2635 = vld [vmem:[#allocation20 + $0x8] sm:$0xff]
    %v2636 = vld [vmem:[#allocation20 + $0x10] sm:$0xff]
    %v2637 = vld [vmem:[#allocation20 + $0x18] sm:$0xff]
    %v2638 = vld [vmem:[#allocation22] sm:$0x1]
    %v2640 = vperm.slane %v2638, 0
    %v2643 = vsel %vm443, %v2633, 0
    %2645 = vmatpush.msra.mxu0 0.0
    %2646 = vmatpush.msra.mxu0 0.0
    %2647 = vmatpush.msra.mxu0 0.0
    %2648 = vmatpush.msra.mxu0 0.0
    %2649 = vmatpush.msra.mxu0 0.0
    %2650 = vmatpush.msra.mxu0 0.0
    %2651 = vmatpush.msra.mxu0 0.0
    %2652 = vmatpush.msra.mxu0 0.0
    %2653 = vmatpush.msra.mxu0 0.0
    %2654 = vmatpush.msra.mxu0 0.0
    %2655 = vmatpush.msra.mxu0 0.0
    %2656 = vmatpush.msra.mxu0 0.0
    %2657 = vmatpush.msra.mxu0 %v2637
    %2658 = vmatpush.msra.mxu0 %v2636
    %2659 = vmatpush.msra.mxu0 %v2635
    %2660 = vmatpush.msra.mxu0 %v2634
    %2661 = vmatmul.f32.gmra.mxu0 %v2643
    %v2662 = vpop.f32.mrf.mxu0
    %v2663 = vadd.f32 %v2640, %v2662
    %2664 = vdwg.mxu0
    %v2665 = vmax.f32 %v2663, 0.0
    %v2666 = vld [vmem:[%s61] sm:$0xff]
    %v2667 = vld [vmem:[%s61 + $0x8] sm:$0xff]
    %v2668 = vld [vmem:[%s61 + $0x10] sm:$0xff]
    %v2669 = vld [vmem:[%s61 + $0x18] sm:$0xff]
    %v2670 = vld [vmem:[%s61 + $0x20] sm:$0xff]
    %v2671 = vld [vmem:[%s61 + $0x28] sm:$0xff]
    %v2672 = vld [vmem:[%s61 + $0x30] sm:$0xff]
    %v2673 = vld [vmem:[%s61 + $0x38] sm:$0xff]
    %v2674 = vld [vmem:[#allocation23] sm:$0x1]
    %v2676 = vperm.slane %v2674, 0
    %v2679 = vsel %vm969, %v2665, 0
    %2681 = vmatpush.msra.mxu0 0.0
    %2682 = vmatpush.msra.mxu0 0.0
    %2683 = vmatpush.msra.mxu0 0.0
    %2684 = vmatpush.msra.mxu0 0.0
    %2685 = vmatpush.msra.mxu0 0.0
    %2686 = vmatpush.msra.mxu0 0.0
    %2687 = vmatpush.msra.mxu0 0.0
    %2688 = vmatpush.msra.mxu0 0.0
    %2689 = vmatpush.msra.mxu0 %v2673
    %2690 = vmatpush.msra.mxu0 %v2672
    %2691 = vmatpush.msra.mxu0 %v2671
    %2692 = vmatpush.msra.mxu0 %v2670
    %2693 = vmatpush.msra.mxu0 %v2669
    %2694 = vmatpush.msra.mxu0 %v2668
    %2695 = vmatpush.msra.mxu0 %v2667
    %2696 = vmatpush.msra.mxu0 %v2666
    %2697 = vmatmul.f32.gmra.mxu0 %v2679
    %v2698 = vpop.f32.mrf.mxu0
    %v2699 = vadd.f32 %v2676, %v2698
    %2700 = vdwg.mxu0
    %v2701 = vadd.f32 %v2633, %v2699
    %v2702 = vld [vmem:[%s55] sm:$0x3]
    %v2703 = vsel %vm443, %v2701, 0.0
    %2704 = vadd.xlane.f32.xlu0 %v2703
    %v2705 = vpop.xlane.xlu0 %2704
    %v2706 = vmul.f32 %v2705, %v901
    %v2707 = vsub.f32 %v2701, %v2706
    %v2708 = vmul.f32 %v2707, %v2707
    %v2709 = vsel %vm443, %v2708, 0.0
    %2710 = vadd.xlane.f32.xlu0 %v2709
    %v2711 = vpop.xlane.xlu0 %2710
    %v2712 = vmul.f32 %v2711, %v901
    %v2713 = vadd.f32 %v2712, 1e-05
    %v2714 = vrsqrt.pop %v2713
    %v2715 = vmul.f32 %v2714, %v2713
    %v2716 = vmul.f32 %v2715, %v2714
    %v2717 = vmul.f32 0.5, %v2716
    %v2718 = vsub.f32 1.5, %v2717
    %v2719 = vmul.f32 %v2714, %v2718
    %vm2720 = vweird.f32 %v2713
    %vm2721 = vweird.f32 %v2714
    %vm2722 = vmor %vm2720, %vm2721
    %v2723 = vsel %vm2722, %v2714, %v2719
    %v2724 = vmul.f32 %v2707, %v2723
    %v2725 = vperm.slane %v2702, 0
    %v2726 = vmul.f32 %v2724, %v2725
    %v2727 = vperm.slane %v2702, 1
    %v2728 = vadd.f32 %v2726, %v2727
    %s2729 = scalar_lea.vmem %s31, 32
    %v2730 = vld [vmem:[%s2729] sm:$0xff]
    %v2731 = vld [vmem:[%s2729 + $0x8] sm:$0xff]
    %v2732 = vld [vmem:[%s2729 + $0x10] sm:$0xff]
    %v2733 = vld [vmem:[%s2729 + $0x18] sm:$0xff]
    %s2734 = scalar_lea.vmem [#allocation10], 1
    %v2735 = vld [vmem:[%s2734] sm:$0x1]
    %v2737 = vperm.slane %v2735, 0
    %v2740 = vsel %vm443, %v2728, 0
    %2742 = vmatpush.msra.mxu0 0.0
    %2743 = vmatpush.msra.mxu0 0.0
    %2744 = vmatpush.msra.mxu0 0.0
    %2745 = vmatpush.msra.mxu0 0.0
    %2746 = vmatpush.msra.mxu0 0.0
    %2747 = vmatpush.msra.mxu0 0.0
    %2748 = vmatpush.msra.mxu0 0.0
    %2749 = vmatpush.msra.mxu0 0.0
    %2750 = vmatpush.msra.mxu0 0.0
    %2751 = vmatpush.msra.mxu0 0.0
    %2752 = vmatpush.msra.mxu0 0.0
    %2753 = vmatpush.msra.mxu0 0.0
    %2754 = vmatpush.msra.mxu0 %v2733
    %2755 = vmatpush.msra.mxu0 %v2732
    %2756 = vmatpush.msra.mxu0 %v2731
    %2757 = vmatpush.msra.mxu0 %v2730
    %2758 = vmatmul.f32.gmra.mxu0 %v2740
    %v2759 = vpop.f32.mrf.mxu0
    %v2760 = vadd.f32 %v2737, %v2759
    %2761 = vdwg.mxu0
    %s2762 = scalar_lea.vmem %s35, 32
    %v2763 = vld [vmem:[%s2762] sm:$0xff]
    %v2764 = vld [vmem:[%s2762 + $0x8] sm:$0xff]
    %v2765 = vld [vmem:[%s2762 + $0x10] sm:$0xff]
    %v2766 = vld [vmem:[%s2762 + $0x18] sm:$0xff]
    %s2767 = scalar_lea.vmem [#allocation11], 1
    %v2768 = vld [vmem:[%s2767] sm:$0x1]
    %2770 = vrot.lane.b32.xlu0 %v2760, 96
    %v2771 = vpop.permute.xlu0 %2770
    %v2772 = vsel %vm475, %v2760, 0
    %v2774 = vsel %vm475, %v2771, 0
    %2776 = vmatpush.xpose.msra.mxu0 0.0
    %2777 = vmatpush.xpose.msra.mxu0 0.0
    %2778 = vmatpush.xpose.msra.mxu0 0.0
    %2779 = vmatpush.xpose.msra.mxu0 0.0
    %2780 = vmatpush.xpose.msra.mxu0 0.0
    %2781 = vmatpush.xpose.msra.mxu0 0.0
    %2782 = vmatpush.xpose.msra.mxu0 0.0
    %2783 = vmatpush.xpose.msra.mxu0 0.0
    %2784 = vmatpush.xpose.msra.mxu0 0.0
    %2785 = vmatpush.xpose.msra.mxu0 0.0
    %2786 = vmatpush.xpose.msra.mxu0 0.0
    %2787 = vmatpush.xpose.msra.mxu0 0.0
    %2788 = vmatpush.xpose.msra.mxu0 0.0
    %2789 = vmatpush.xpose.msra.mxu0 0.0
    %2790 = vmatpush.xpose.msra.mxu0 0.0
    %2791 = vmatpush.xpose.msra.mxu0 %v2774
    %2792 = vmatmul.f32.gmra.mxu0 %v2772
    %v2793 = vpop.f32.mrf.mxu0
    %v2794 = vadd.f32 0.0, %v2793
    %2795 = vdwg.mxu0
    %v2796 = vmul.f32 %v2794, 0.35355338
    %v2797 = vadd.f32 %v2796, %v396
    %v2798 = vsel %vm475, %v2797, -inf
    %2799 = vmax.xlane.f32.xlu0 %v2798
    %v2800 = vpop.xlane.xlu0 %2799
    %v2801 = vsub.f32 %v2797, %v2800
    %v2802 = vmul.f32 %v2801, 1.442695
    %v2803 = vpow.pop %v2802
    %v2804 = vsel %vm475, %v2803, 0.0
    %2805 = vadd.xlane.f32.xlu0 %v2804
    %v2806 = vpop.xlane.xlu0 %2805
    %v2807 = vrcp.pop %v2806
    %v2808 = vmul.f32 %v2806, %v2807
    %v2809 = vsub.f32 1.0, %v2808
    %v2810 = vmul.f32 %v2807, %v2809
    %v2811 = vadd.f32 %v2807, %v2810
    %vm2812 = vweird.f32 %v2806
    %vm2813 = vweird.f32 %v2807
    %vm2814 = vmor %vm2812, %vm2813
    %v2815 = vsel %vm2814, %v2807, %v2811
    %v2816 = vand.u32 2147483647, %v2806
    %vm2817 = vcmp.eq.f32.partialorder %v2816, 8.507059e+37
    %v2818 = vand.u32 %v2806, 2147483648
    %v2819 = vor.u32 1.1754944e-38, %v2818
    %v2820 = vsel %vm2817, %v2819, %v2815
    %v2821 = vmul.f32 %v2803, %v2820
    %2822 = vrot.lane.b32.xlu0 %v2760, 64
    %v2823 = vpop.permute.xlu0 %2822
    %v2826 = vsel %vm475, %v2821, 0
    %2828 = vmatpush.msra.mxu0 0.0
    %2829 = vmatpush.msra.mxu0 0.0
    %2830 = vmatpush.msra.mxu0 0.0
    %2831 = vmatpush.msra.mxu0 0.0
    %2832 = vmatpush.msra.mxu0 0.0
    %2833 = vmatpush.msra.mxu0 0.0
    %2834 = vmatpush.msra.mxu0 0.0
    %2835 = vmatpush.msra.mxu0 0.0
    %2836 = vmatpush.msra.mxu0 0.0
    %2837 = vmatpush.msra.mxu0 0.0
    %2838 = vmatpush.msra.mxu0 0.0
    %2839 = vmatpush.msra.mxu0 0.0
    %2840 = vmatpush.msra.mxu0 0.0
    %2841 = vmatpush.msra.mxu0 0.0
    %2842 = vmatpush.msra.mxu0 0.0
    %2843 = vmatpush.msra.mxu0 %v2823
    %2844 = vmatmul.f32.gmra.mxu0 %v2826
    %v2845 = vpop.f32.mrf.mxu0
    %v2846 = vadd.f32 0.0, %v2845
    %2847 = vdwg.mxu0
    %2848 = vrot.lane.b32.xlu0 %v2760, 120
    %v2849 = vpop.permute.xlu0 %2848
    %2850 = vrot.lane.b32.xlu0 %v2760, 88
    %v2851 = vpop.permute.xlu0 %2850
    %v2852 = vsel %vm475, %v2849, 0
    %v2854 = vsel %vm475, %v2851, 0
    %2856 = vmatpush.xpose.msra.mxu0 0.0
    %2857 = vmatpush.xpose.msra.mxu0 0.0
    %2858 = vmatpush.xpose.msra.mxu0 0.0
    %2859 = vmatpush.xpose.msra.mxu0 0.0
    %2860 = vmatpush.xpose.msra.mxu0 0.0
    %2861 = vmatpush.xpose.msra.mxu0 0.0
    %2862 = vmatpush.xpose.msra.mxu0 0.0
    %2863 = vmatpush.xpose.msra.mxu0 0.0
    %2864 = vmatpush.xpose.msra.mxu0 0.0
    %2865 = vmatpush.xpose.msra.mxu0 0.0
    %2866 = vmatpush.xpose.msra.mxu0 0.0
    %2867 = vmatpush.xpose.msra.mxu0 0.0
    %2868 = vmatpush.xpose.msra.mxu0 0.0
    %2869 = vmatpush.xpose.msra.mxu0 0.0
    %2870 = vmatpush.xpose.msra.mxu0 0.0
    %2871 = vmatpush.xpose.msra.mxu0 %v2854
    %2872 = vmatmul.f32.gmra.mxu0 %v2852
    %v2873 = vpop.f32.mrf.mxu0
    %v2874 = vadd.f32 0.0, %v2873
    %2875 = vdwg.mxu0
    %v2876 = vmul.f32 %v2874, 0.35355338
    %v2877 = vadd.f32 %v2876, %v396
    %v2878 = vsel %vm475, %v2877, -inf
    %2879 = vmax.xlane.f32.xlu0 %v2878
    %v2880 = vpop.xlane.xlu0 %2879
    %v2881 = vsub.f32 %v2877, %v2880
    %v2882 = vmul.f32 %v2881, 1.442695
    %v2883 = vpow.pop %v2882
    %v2884 = vsel %vm475, %v2883, 0.0
    %2885 = vadd.xlane.f32.xlu0 %v2884
    %v2886 = vpop.xlane.xlu0 %2885
    %v2887 = vrcp.pop %v2886
    %v2888 = vmul.f32 %v2886, %v2887
    %v2889 = vsub.f32 1.0, %v2888
    %v2890 = vmul.f32 %v2887, %v2889
    %v2891 = vadd.f32 %v2887, %v2890
    %vm2892 = vweird.f32 %v2886
    %vm2893 = vweird.f32 %v2887
    %vm2894 = vmor %vm2892, %vm2893
    %v2895 = vsel %vm2894, %v2887, %v2891
    %v2896 = vand.u32 2147483647, %v2886
    %vm2897 = vcmp.eq.f32.partialorder %v2896, 8.507059e+37
    %v2898 = vand.u32 %v2886, 2147483648
    %v2899 = vor.u32 1.1754944e-38, %v2898
    %v2900 = vsel %vm2897, %v2899, %v2895
    %v2901 = vmul.f32 %v2883, %v2900
    %2902 = vrot.lane.b32.xlu0 %v2760, 56
    %v2903 = vpop.permute.xlu0 %2902
    %v2906 = vsel %vm475, %v2901, 0
    %2908 = vmatpush.msra.mxu0 0.0
    %2909 = vmatpush.msra.mxu0 0.0
    %2910 = vmatpush.msra.mxu0 0.0
    %2911 = vmatpush.msra.mxu0 0.0
    %2912 = vmatpush.msra.mxu0 0.0
    %2913 = vmatpush.msra.mxu0 0.0
    %2914 = vmatpush.msra.mxu0 0.0
    %2915 = vmatpush.msra.mxu0 0.0
    %2916 = vmatpush.msra.mxu0 0.0
    %2917 = vmatpush.msra.mxu0 0.0
    %2918 = vmatpush.msra.mxu0 0.0
    %2919 = vmatpush.msra.mxu0 0.0
    %2920 = vmatpush.msra.mxu0 0.0
    %2921 = vmatpush.msra.mxu0 0.0
    %2922 = vmatpush.msra.mxu0 0.0
    %2923 = vmatpush.msra.mxu0 %v2903
    %2924 = vmatmul.f32.gmra.mxu0 %v2906
    %v2925 = vpop.f32.mrf.mxu0
    %v2926 = vadd.f32 0.0, %v2925
    %2927 = vdwg.mxu0
    %v2929 = vsel %vm475, %v2926, 0
    %2931 = vmatpush.msra.mxu0 0.0
    %2932 = vmatpush.msra.mxu0 0.0
    %2933 = vmatpush.msra.mxu0 0.0
    %2934 = vmatpush.msra.mxu0 0.0
    %2935 = vmatpush.msra.mxu0 0.0
    %2936 = vmatpush.msra.mxu0 0.0
    %2937 = vmatpush.msra.mxu0 0.0
    %2938 = vmatpush.msra.mxu0 0.0
    %2939 = vmatpush.msra.mxu0 0.0
    %2940 = vmatpush.msra.mxu0 0.0
    %2941 = vmatpush.msra.mxu0 0.0
    %2942 = vmatpush.msra.mxu0 0.0
    %2943 = vmatpush.msra.mxu0 0.0
    %2944 = vmatpush.msra.mxu0 0.0
    %2945 = vmatpush.msra.mxu0 0.0
    %2946 = vmatpush.msra.mxu0 %v2764
    %2947 = vmatmul.f32.gmra.mxu0 %v2929
    %v2948 = vpop.f32.mrf.mxu0
    %v2949 = vadd.f32 0.0, %v2948
    %2950 = vdwg.mxu0
    %v2952 = vsel %vm475, %v2846, 0
    %2954 = vmatpush.msra.mxu0 0.0
    %2955 = vmatpush.msra.mxu0 0.0
    %2956 = vmatpush.msra.mxu0 0.0
    %2957 = vmatpush.msra.mxu0 0.0
    %2958 = vmatpush.msra.mxu0 0.0
    %2959 = vmatpush.msra.mxu0 0.0
    %2960 = vmatpush.msra.mxu0 0.0
    %2961 = vmatpush.msra.mxu0 0.0
    %2962 = vmatpush.msra.mxu0 0.0
    %2963 = vmatpush.msra.mxu0 0.0
    %2964 = vmatpush.msra.mxu0 0.0
    %2965 = vmatpush.msra.mxu0 0.0
    %2966 = vmatpush.msra.mxu0 0.0
    %2967 = vmatpush.msra.mxu0 0.0
    %2968 = vmatpush.msra.mxu0 0.0
    %2969 = vmatpush.msra.mxu0 %v2763
    %2970 = vmatmul.f32.gmra.mxu0 %v2952
    %v2971 = vpop.f32.mrf.mxu0
    %v2972 = vadd.f32 %v2949, %v2971
    %2973 = vdwg.mxu0
    %2974 = vrot.lane.b32.xlu0 %v2760, 112
    %v2975 = vpop.permute.xlu0 %2974
    %2976 = vrot.lane.b32.xlu0 %v2760, 80
    %v2977 = vpop.permute.xlu0 %2976
    %v2978 = vsel %vm475, %v2975, 0
    %v2980 = vsel %vm475, %v2977, 0
    %2982 = vmatpush.xpose.msra.mxu0 0.0
    %2983 = vmatpush.xpose.msra.mxu0 0.0
    %2984 = vmatpush.xpose.msra.mxu0 0.0
    %2985 = vmatpush.xpose.msra.mxu0 0.0
    %2986 = vmatpush.xpose.msra.mxu0 0.0
    %2987 = vmatpush.xpose.msra.mxu0 0.0
    %2988 = vmatpush.xpose.msra.mxu0 0.0
    %2989 = vmatpush.xpose.msra.mxu0 0.0
    %2990 = vmatpush.xpose.msra.mxu0 0.0
    %2991 = vmatpush.xpose.msra.mxu0 0.0
    %2992 = vmatpush.xpose.msra.mxu0 0.0
    %2993 = vmatpush.xpose.msra.mxu0 0.0
    %2994 = vmatpush.xpose.msra.mxu0 0.0
    %2995 = vmatpush.xpose.msra.mxu0 0.0
    %2996 = vmatpush.xpose.msra.mxu0 0.0
    %2997 = vmatpush.xpose.msra.mxu0 %v2980
    %2998 = vmatmul.f32.gmra.mxu0 %v2978
    %v2999 = vpop.f32.mrf.mxu0
    %v3000 = vadd.f32 0.0, %v2999
    %3001 = vdwg.mxu0
    %v3002 = vmul.f32 %v3000, 0.35355338
    %v3003 = vadd.f32 %v3002, %v396
    %v3004 = vsel %vm475, %v3003, -inf
    %3005 = vmax.xlane.f32.xlu0 %v3004
    %v3006 = vpop.xlane.xlu0 %3005
    %v3007 = vsub.f32 %v3003, %v3006
    %v3008 = vmul.f32 %v3007, 1.442695
    %v3009 = vpow.pop %v3008
    %v3010 = vsel %vm475, %v3009, 0.0
    %3011 = vadd.xlane.f32.xlu0 %v3010
    %v3012 = vpop.xlane.xlu0 %3011
    %v3013 = vrcp.pop %v3012
    %v3014 = vmul.f32 %v3012, %v3013
    %v3015 = vsub.f32 1.0, %v3014
    %v3016 = vmul.f32 %v3013, %v3015
    %v3017 = vadd.f32 %v3013, %v3016
    %vm3018 = vweird.f32 %v3012
    %vm3019 = vweird.f32 %v3013
    %vm3020 = vmor %vm3018, %vm3019
    %v3021 = vsel %vm3020, %v3013, %v3017
    %v3022 = vand.u32 2147483647, %v3012
    %vm3023 = vcmp.eq.f32.partialorder %v3022, 8.507059e+37
    %v3024 = vand.u32 %v3012, 2147483648
    %v3025 = vor.u32 1.1754944e-38, %v3024
    %v3026 = vsel %vm3023, %v3025, %v3021
    %v3027 = vmul.f32 %v3009, %v3026
    %3028 = vrot.lane.b32.xlu0 %v2760, 48
    %v3029 = vpop.permute.xlu0 %3028
    %v3032 = vsel %vm475, %v3027, 0
    %3034 = vmatpush.msra.mxu0 0.0
    %3035 = vmatpush.msra.mxu0 0.0
    %3036 = vmatpush.msra.mxu0 0.0
    %3037 = vmatpush.msra.mxu0 0.0
    %3038 = vmatpush.msra.mxu0 0.0
    %3039 = vmatpush.msra.mxu0 0.0
    %3040 = vmatpush.msra.mxu0 0.0
    %3041 = vmatpush.msra.mxu0 0.0
    %3042 = vmatpush.msra.mxu0 0.0
    %3043 = vmatpush.msra.mxu0 0.0
    %3044 = vmatpush.msra.mxu0 0.0
    %3045 = vmatpush.msra.mxu0 0.0
    %3046 = vmatpush.msra.mxu0 0.0
    %3047 = vmatpush.msra.mxu0 0.0
    %3048 = vmatpush.msra.mxu0 0.0
    %3049 = vmatpush.msra.mxu0 %v3029
    %3050 = vmatmul.f32.gmra.mxu0 %v3032
    %v3051 = vpop.f32.mrf.mxu0
    %v3052 = vadd.f32 0.0, %v3051
    %3053 = vdwg.mxu0
    %v3055 = vsel %vm475, %v3052, 0
    %3057 = vmatpush.msra.mxu0 0.0
    %3058 = vmatpush.msra.mxu0 0.0
    %3059 = vmatpush.msra.mxu0 0.0
    %3060 = vmatpush.msra.mxu0 0.0
    %3061 = vmatpush.msra.mxu0 0.0
    %3062 = vmatpush.msra.mxu0 0.0
    %3063 = vmatpush.msra.mxu0 0.0
    %3064 = vmatpush.msra.mxu0 0.0
    %3065 = vmatpush.msra.mxu0 0.0
    %3066 = vmatpush.msra.mxu0 0.0
    %3067 = vmatpush.msra.mxu0 0.0
    %3068 = vmatpush.msra.mxu0 0.0
    %3069 = vmatpush.msra.mxu0 0.0
    %3070 = vmatpush.msra.mxu0 0.0
    %3071 = vmatpush.msra.mxu0 0.0
    %3072 = vmatpush.msra.mxu0 %v2765
    %3073 = vmatmul.f32.gmra.mxu0 %v3055
    %v3074 = vpop.f32.mrf.mxu0
    %v3075 = vadd.f32 0.0, %v3074
    %3076 = vdwg.mxu0
    %v3077 = vadd.f32 %v2972, %v3075
    %3078 = vrot.lane.b32.xlu0 %v2760, 104
    %v3079 = vpop.permute.xlu0 %3078
    %3080 = vrot.lane.b32.xlu0 %v2760, 72
    %v3081 = vpop.permute.xlu0 %3080
    %v3082 = vsel %vm475, %v3079, 0
    %v3084 = vsel %vm475, %v3081, 0
    %3086 = vmatpush.xpose.msra.mxu0 0.0
    %3087 = vmatpush.xpose.msra.mxu0 0.0
    %3088 = vmatpush.xpose.msra.mxu0 0.0
    %3089 = vmatpush.xpose.msra.mxu0 0.0
    %3090 = vmatpush.xpose.msra.mxu0 0.0
    %3091 = vmatpush.xpose.msra.mxu0 0.0
    %3092 = vmatpush.xpose.msra.mxu0 0.0
    %3093 = vmatpush.xpose.msra.mxu0 0.0
    %3094 = vmatpush.xpose.msra.mxu0 0.0
    %3095 = vmatpush.xpose.msra.mxu0 0.0
    %3096 = vmatpush.xpose.msra.mxu0 0.0
    %3097 = vmatpush.xpose.msra.mxu0 0.0
    %3098 = vmatpush.xpose.msra.mxu0 0.0
    %3099 = vmatpush.xpose.msra.mxu0 0.0
    %3100 = vmatpush.xpose.msra.mxu0 0.0
    %3101 = vmatpush.xpose.msra.mxu0 %v3084
    %3102 = vmatmul.f32.gmra.mxu0 %v3082
    %v3103 = vpop.f32.mrf.mxu0
    %v3104 = vadd.f32 0.0, %v3103
    %3105 = vdwg.mxu0
    %v3106 = vmul.f32 %v3104, 0.35355338
    %v3107 = vadd.f32 %v3106, %v396
    %v3108 = vsel %vm475, %v3107, -inf
    %3109 = vmax.xlane.f32.xlu0 %v3108
    %v3110 = vpop.xlane.xlu0 %3109
    %v3111 = vsub.f32 %v3107, %v3110
    %v3112 = vmul.f32 %v3111, 1.442695
    %v3113 = vpow.pop %v3112
    %v3114 = vsel %vm475, %v3113, 0.0
    %3115 = vadd.xlane.f32.xlu0 %v3114
    %v3116 = vpop.xlane.xlu0 %3115
    %v3117 = vrcp.pop %v3116
    %v3118 = vmul.f32 %v3116, %v3117
    %v3119 = vsub.f32 1.0, %v3118
    %v3120 = vmul.f32 %v3117, %v3119
    %v3121 = vadd.f32 %v3117, %v3120
    %vm3122 = vweird.f32 %v3116
    %vm3123 = vweird.f32 %v3117
    %vm3124 = vmor %vm3122, %vm3123
    %v3125 = vsel %vm3124, %v3117, %v3121
    %v3126 = vand.u32 2147483647, %v3116
    %vm3127 = vcmp.eq.f32.partialorder %v3126, 8.507059e+37
    %v3128 = vand.u32 %v3116, 2147483648
    %v3129 = vor.u32 1.1754944e-38, %v3128
    %v3130 = vsel %vm3127, %v3129, %v3125
    %v3131 = vmul.f32 %v3113, %v3130
    %3132 = vrot.lane.b32.xlu0 %v2760, 40
    %v3133 = vpop.permute.xlu0 %3132
    %v3136 = vsel %vm475, %v3131, 0
    %3138 = vmatpush.msra.mxu0 0.0
    %3139 = vmatpush.msra.mxu0 0.0
    %3140 = vmatpush.msra.mxu0 0.0
    %3141 = vmatpush.msra.mxu0 0.0
    %3142 = vmatpush.msra.mxu0 0.0
    %3143 = vmatpush.msra.mxu0 0.0
    %3144 = vmatpush.msra.mxu0 0.0
    %3145 = vmatpush.msra.mxu0 0.0
    %3146 = vmatpush.msra.mxu0 0.0
    %3147 = vmatpush.msra.mxu0 0.0
    %3148 = vmatpush.msra.mxu0 0.0
    %3149 = vmatpush.msra.mxu0 0.0
    %3150 = vmatpush.msra.mxu0 0.0
    %3151 = vmatpush.msra.mxu0 0.0
    %3152 = vmatpush.msra.mxu0 0.0
    %3153 = vmatpush.msra.mxu0 %v3133
    %3154 = vmatmul.f32.gmra.mxu0 %v3136
    %v3155 = vpop.f32.mrf.mxu0
    %v3156 = vadd.f32 0.0, %v3155
    %3157 = vdwg.mxu0
    %v3159 = vsel %vm475, %v3156, 0
    %3161 = vmatpush.msra.mxu0 0.0
    %3162 = vmatpush.msra.mxu0 0.0
    %3163 = vmatpush.msra.mxu0 0.0
    %3164 = vmatpush.msra.mxu0 0.0
    %3165 = vmatpush.msra.mxu0 0.0
    %3166 = vmatpush.msra.mxu0 0.0
    %3167 = vmatpush.msra.mxu0 0.0
    %3168 = vmatpush.msra.mxu0 0.0
    %3169 = vmatpush.msra.mxu0 0.0
    %3170 = vmatpush.msra.mxu0 0.0
    %3171 = vmatpush.msra.mxu0 0.0
    %3172 = vmatpush.msra.mxu0 0.0
    %3173 = vmatpush.msra.mxu0 0.0
    %3174 = vmatpush.msra.mxu0 0.0
    %3175 = vmatpush.msra.mxu0 0.0
    %3176 = vmatpush.msra.mxu0 %v2766
    %3177 = vmatmul.f32.gmra.mxu0 %v3159
    %v3178 = vpop.f32.mrf.mxu0
    %v3179 = vadd.f32 0.0, %v3178
    %3180 = vdwg.mxu0
    %v3181 = vadd.f32 %v3077, %v3179
    %v3183 = vperm.slane %v2768, 0
    %v3185 = vadd.f32 %v3181, %v3183
    %v3186 = vadd.f32 %v2728, %v3185
    %s3187 = scalar_lea.vmem %s51, 2
    %v3188 = vld [vmem:[%s3187] sm:$0x3]
    %v3189 = vsel %vm443, %v3186, 0.0
    %3190 = vadd.xlane.f32.xlu0 %v3189
    %v3191 = vpop.xlane.xlu0 %3190
    %v3192 = vmul.f32 %v3191, %v901
    %v3193 = vsub.f32 %v3186, %v3192
    %v3194 = vmul.f32 %v3193, %v3193
    %v3195 = vsel %vm443, %v3194, 0.0
    %3196 = vadd.xlane.f32.xlu0 %v3195
    %v3197 = vpop.xlane.xlu0 %3196
    %v3198 = vmul.f32 %v3197, %v901
    %v3199 = vadd.f32 %v3198, 1e-05
    %v3200 = vrsqrt.pop %v3199
    %v3201 = vmul.f32 %v3200, %v3199
    %v3202 = vmul.f32 %v3201, %v3200
    %v3203 = vmul.f32 0.5, %v3202
    %v3204 = vsub.f32 1.5, %v3203
    %v3205 = vmul.f32 %v3200, %v3204
    %vm3206 = vweird.f32 %v3199
    %vm3207 = vweird.f32 %v3200
    %vm3208 = vmor %vm3206, %vm3207
    %v3209 = vsel %vm3208, %v3200, %v3205
    %v3210 = vmul.f32 %v3193, %v3209
    %v3211 = vperm.slane %v3188, 0
    %v3212 = vmul.f32 %v3210, %v3211
    %v3213 = vperm.slane %v3188, 1
    %v3214 = vadd.f32 %v3212, %v3213
    %s3215 = scalar_lea.vmem %s39, 32
    %v3216 = vld [vmem:[%s3215] sm:$0xff]
    %v3217 = vld [vmem:[%s3215 + $0x8] sm:$0xff]
    %v3218 = vld [vmem:[%s3215 + $0x10] sm:$0xff]
    %v3219 = vld [vmem:[%s3215 + $0x18] sm:$0xff]
    %s3220 = scalar_lea.vmem [#allocation13], 1
    %v3221 = vld [vmem:[%s3220] sm:$0x1]
    %v3223 = vperm.slane %v3221, 0
    %v3226 = vsel %vm443, %v3214, 0
    %3228 = vmatpush.msra.mxu0 0.0
    %3229 = vmatpush.msra.mxu0 0.0
    %3230 = vmatpush.msra.mxu0 0.0
    %3231 = vmatpush.msra.mxu0 0.0
    %3232 = vmatpush.msra.mxu0 0.0
    %3233 = vmatpush.msra.mxu0 0.0
    %3234 = vmatpush.msra.mxu0 0.0
    %3235 = vmatpush.msra.mxu0 0.0
    %3236 = vmatpush.msra.mxu0 0.0
    %3237 = vmatpush.msra.mxu0 0.0
    %3238 = vmatpush.msra.mxu0 0.0
    %3239 = vmatpush.msra.mxu0 0.0
    %3240 = vmatpush.msra.mxu0 %v3219
    %3241 = vmatpush.msra.mxu0 %v3218
    %3242 = vmatpush.msra.mxu0 %v3217
    %3243 = vmatpush.msra.mxu0 %v3216
    %3244 = vmatmul.f32.gmra.mxu0 %v3226
    %v3245 = vpop.f32.mrf.mxu0
    %v3246 = vadd.f32 %v3223, %v3245
    %3247 = vdwg.mxu0
    %s3248 = scalar_lea.vmem [#allocation14], 32
    %v3249 = vld [vmem:[%s3248] sm:$0xff]
    %v3250 = vld [vmem:[%s3248 + $0x8] sm:$0xff]
    %v3251 = vld [vmem:[%s3248 + $0x10] sm:$0xff]
    %v3252 = vld [vmem:[%s3248 + $0x18] sm:$0xff]
    %s3253 = scalar_lea.vmem [#allocation16], 1
    %v3254 = vld [vmem:[%s3253] sm:$0x1]
    %v3256 = vperm.slane %v3254, 0
    %3258 = vmatpush.msra.mxu0 0.0
    %3259 = vmatpush.msra.mxu0 0.0
    %3260 = vmatpush.msra.mxu0 0.0
    %3261 = vmatpush.msra.mxu0 0.0
    %3262 = vmatpush.msra.mxu0 0.0
    %3263 = vmatpush.msra.mxu0 0.0
    %3264 = vmatpush.msra.mxu0 0.0
    %3265 = vmatpush.msra.mxu0 0.0
    %3266 = vmatpush.msra.mxu0 0.0
    %3267 = vmatpush.msra.mxu0 0.0
    %3268 = vmatpush.msra.mxu0 0.0
    %3269 = vmatpush.msra.mxu0 0.0
    %3270 = vmatpush.msra.mxu0 %v3252
    %3271 = vmatpush.msra.mxu0 %v3251
    %3272 = vmatpush.msra.mxu0 %v3250
    %3273 = vmatpush.msra.mxu0 %v3249
    %3274 = vmatmul.f32.gmra.mxu0 %v2167
    %v3275 = vpop.f32.mrf.mxu0
    %v3276 = vadd.f32 %v3256, %v3275
    %3277 = vdwg.mxu0
    %s3278 = scalar_lea.vmem [#allocation17], 32
    %v3279 = vld [vmem:[%s3278] sm:$0xff]
    %v3280 = vld [vmem:[%s3278 + $0x8] sm:$0xff]
    %v3281 = vld [vmem:[%s3278 + $0x10] sm:$0xff]
    %v3282 = vld [vmem:[%s3278 + $0x18] sm:$0xff]
    %s3283 = scalar_lea.vmem [#allocation19], 1
    %v3284 = vld [vmem:[%s3283] sm:$0x1]
    %v3286 = vsel %vm475, %v3246, 0
    %v3289 = vsel %vm475, %v3276, 0
    %3291 = vmatpush.xpose.msra.mxu0 0.0
    %3292 = vmatpush.xpose.msra.mxu0 0.0
    %3293 = vmatpush.xpose.msra.mxu0 0.0
    %3294 = vmatpush.xpose.msra.mxu0 0.0
    %3295 = vmatpush.xpose.msra.mxu0 0.0
    %3296 = vmatpush.xpose.msra.mxu0 0.0
    %3297 = vmatpush.xpose.msra.mxu0 0.0
    %3298 = vmatpush.xpose.msra.mxu0 0.0
    %3299 = vmatpush.xpose.msra.mxu0 0.0
    %3300 = vmatpush.xpose.msra.mxu0 0.0
    %3301 = vmatpush.xpose.msra.mxu0 0.0
    %3302 = vmatpush.xpose.msra.mxu0 0.0
    %3303 = vmatpush.xpose.msra.mxu0 0.0
    %3304 = vmatpush.xpose.msra.mxu0 0.0
    %3305 = vmatpush.xpose.msra.mxu0 0.0
    %3306 = vmatpush.xpose.msra.mxu0 %v3289
    %3307 = vmatmul.f32.gmra.mxu0 %v3286
    %v3308 = vpop.f32.mrf.mxu0
    %v3309 = vadd.f32 0.0, %v3308
    %3310 = vdwg.mxu0
    %v3311 = vmul.f32 %v3309, 0.35355338
    %v3312 = vsel %vm475, %v3311, -inf
    %3313 = vmax.xlane.f32.xlu0 %v3312
    %v3314 = vpop.xlane.xlu0 %3313
    %v3315 = vsub.f32 %v3311, %v3314
    %v3316 = vmul.f32 %v3315, 1.442695
    %v3317 = vpow.pop %v3316
    %v3318 = vsel %vm475, %v3317, 0.0
    %3319 = vadd.xlane.f32.xlu0 %v3318
    %v3320 = vpop.xlane.xlu0 %3319
    %v3321 = vrcp.pop %v3320
    %v3322 = vmul.f32 %v3320, %v3321
    %v3323 = vsub.f32 1.0, %v3322
    %v3324 = vmul.f32 %v3321, %v3323
    %v3325 = vadd.f32 %v3321, %v3324
    %vm3326 = vweird.f32 %v3320
    %vm3327 = vweird.f32 %v3321
    %vm3328 = vmor %vm3326, %vm3327
    %v3329 = vsel %vm3328, %v3321, %v3325
    %v3330 = vand.u32 2147483647, %v3320
    %vm3331 = vcmp.eq.f32.partialorder %v3330, 8.507059e+37
    %v3332 = vand.u32 %v3320, 2147483648
    %v3333 = vor.u32 1.1754944e-38, %v3332
    %v3334 = vsel %vm3331, %v3333, %v3329
    %v3335 = vmul.f32 %v3317, %v3334
    %3336 = vrot.lane.b32.xlu0 %v3276, 96
    %v3337 = vpop.permute.xlu0 %3336
    %v3340 = vsel %vm475, %v3335, 0
    %3342 = vmatpush.msra.mxu0 0.0
    %3343 = vmatpush.msra.mxu0 0.0
    %3344 = vmatpush.msra.mxu0 0.0
    %3345 = vmatpush.msra.mxu0 0.0
    %3346 = vmatpush.msra.mxu0 0.0
    %3347 = vmatpush.msra.mxu0 0.0
    %3348 = vmatpush.msra.mxu0 0.0
    %3349 = vmatpush.msra.mxu0 0.0
    %3350 = vmatpush.msra.mxu0 0.0
    %3351 = vmatpush.msra.mxu0 0.0
    %3352 = vmatpush.msra.mxu0 0.0
    %3353 = vmatpush.msra.mxu0 0.0
    %3354 = vmatpush.msra.mxu0 0.0
    %3355 = vmatpush.msra.mxu0 0.0
    %3356 = vmatpush.msra.mxu0 0.0
    %3357 = vmatpush.msra.mxu0 %v3337
    %3358 = vmatmul.f32.gmra.mxu0 %v3340
    %v3359 = vpop.f32.mrf.mxu0
    %v3360 = vadd.f32 0.0, %v3359
    %3361 = vdwg.mxu0
    %3362 = vrot.lane.b32.xlu0 %v3246, 120
    %v3363 = vpop.permute.xlu0 %3362
    %3364 = vrot.lane.b32.xlu0 %v3276, 120
    %v3365 = vpop.permute.xlu0 %3364
    %v3366 = vsel %vm475, %v3363, 0
    %v3368 = vsel %vm475, %v3365, 0
    %3370 = vmatpush.xpose.msra.mxu0 0.0
    %3371 = vmatpush.xpose.msra.mxu0 0.0
    %3372 = vmatpush.xpose.msra.mxu0 0.0
    %3373 = vmatpush.xpose.msra.mxu0 0.0
    %3374 = vmatpush.xpose.msra.mxu0 0.0
    %3375 = vmatpush.xpose.msra.mxu0 0.0
    %3376 = vmatpush.xpose.msra.mxu0 0.0
    %3377 = vmatpush.xpose.msra.mxu0 0.0
    %3378 = vmatpush.xpose.msra.mxu0 0.0
    %3379 = vmatpush.xpose.msra.mxu0 0.0
    %3380 = vmatpush.xpose.msra.mxu0 0.0
    %3381 = vmatpush.xpose.msra.mxu0 0.0
    %3382 = vmatpush.xpose.msra.mxu0 0.0
    %3383 = vmatpush.xpose.msra.mxu0 0.0
    %3384 = vmatpush.xpose.msra.mxu0 0.0
    %3385 = vmatpush.xpose.msra.mxu0 %v3368
    %3386 = vmatmul.f32.gmra.mxu0 %v3366
    %v3387 = vpop.f32.mrf.mxu0
    %v3388 = vadd.f32 0.0, %v3387
    %3389 = vdwg.mxu0
    %v3390 = vmul.f32 %v3388, 0.35355338
    %v3391 = vsel %vm475, %v3390, -inf
    %3392 = vmax.xlane.f32.xlu0 %v3391
    %v3393 = vpop.xlane.xlu0 %3392
    %v3394 = vsub.f32 %v3390, %v3393
    %v3395 = vmul.f32 %v3394, 1.442695
    %v3396 = vpow.pop %v3395
    %v3397 = vsel %vm475, %v3396, 0.0
    %3398 = vadd.xlane.f32.xlu0 %v3397
    %v3399 = vpop.xlane.xlu0 %3398
    %v3400 = vrcp.pop %v3399
    %v3401 = vmul.f32 %v3399, %v3400
    %v3402 = vsub.f32 1.0, %v3401
    %v3403 = vmul.f32 %v3400, %v3402
    %v3404 = vadd.f32 %v3400, %v3403
    %vm3405 = vweird.f32 %v3399
    %vm3406 = vweird.f32 %v3400
    %vm3407 = vmor %vm3405, %vm3406
    %v3408 = vsel %vm3407, %v3400, %v3404
    %v3409 = vand.u32 2147483647, %v3399
    %vm3410 = vcmp.eq.f32.partialorder %v3409, 8.507059e+37
    %v3411 = vand.u32 %v3399, 2147483648
    %v3412 = vor.u32 1.1754944e-38, %v3411
    %v3413 = vsel %vm3410, %v3412, %v3408
    %v3414 = vmul.f32 %v3396, %v3413
    %3415 = vrot.lane.b32.xlu0 %v3276, 88
    %v3416 = vpop.permute.xlu0 %3415
    %v3419 = vsel %vm475, %v3414, 0
    %3421 = vmatpush.msra.mxu0 0.0
    %3422 = vmatpush.msra.mxu0 0.0
    %3423 = vmatpush.msra.mxu0 0.0
    %3424 = vmatpush.msra.mxu0 0.0
    %3425 = vmatpush.msra.mxu0 0.0
    %3426 = vmatpush.msra.mxu0 0.0
    %3427 = vmatpush.msra.mxu0 0.0
    %3428 = vmatpush.msra.mxu0 0.0
    %3429 = vmatpush.msra.mxu0 0.0
    %3430 = vmatpush.msra.mxu0 0.0
    %3431 = vmatpush.msra.mxu0 0.0
    %3432 = vmatpush.msra.mxu0 0.0
    %3433 = vmatpush.msra.mxu0 0.0
    %3434 = vmatpush.msra.mxu0 0.0
    %3435 = vmatpush.msra.mxu0 0.0
    %3436 = vmatpush.msra.mxu0 %v3416
    %3437 = vmatmul.f32.gmra.mxu0 %v3419
    %v3438 = vpop.f32.mrf.mxu0
    %v3439 = vadd.f32 0.0, %v3438
    %3440 = vdwg.mxu0
    %v3442 = vsel %vm475, %v3439, 0
    %3444 = vmatpush.msra.mxu0 0.0
    %3445 = vmatpush.msra.mxu0 0.0
    %3446 = vmatpush.msra.mxu0 0.0
    %3447 = vmatpush.msra.mxu0 0.0
    %3448 = vmatpush.msra.mxu0 0.0
    %3449 = vmatpush.msra.mxu0 0.0
    %3450 = vmatpush.msra.mxu0 0.0
    %3451 = vmatpush.msra.mxu0 0.0
    %3452 = vmatpush.msra.mxu0 0.0
    %3453 = vmatpush.msra.mxu0 0.0
    %3454 = vmatpush.msra.mxu0 0.0
    %3455 = vmatpush.msra.mxu0 0.0
    %3456 = vmatpush.msra.mxu0 0.0
    %3457 = vmatpush.msra.mxu0 0.0
    %3458 = vmatpush.msra.mxu0 0.0
    %3459 = vmatpush.msra.mxu0 %v3280
    %3460 = vmatmul.f32.gmra.mxu0 %v3442
    %v3461 = vpop.f32.mrf.mxu0
    %v3462 = vadd.f32 0.0, %v3461
    %3463 = vdwg.mxu0
    %v3465 = vsel %vm475, %v3360, 0
    %3467 = vmatpush.msra.mxu0 0.0
    %3468 = vmatpush.msra.mxu0 0.0
    %3469 = vmatpush.msra.mxu0 0.0
    %3470 = vmatpush.msra.mxu0 0.0
    %3471 = vmatpush.msra.mxu0 0.0
    %3472 = vmatpush.msra.mxu0 0.0
    %3473 = vmatpush.msra.mxu0 0.0
    %3474 = vmatpush.msra.mxu0 0.0
    %3475 = vmatpush.msra.mxu0 0.0
    %3476 = vmatpush.msra.mxu0 0.0
    %3477 = vmatpush.msra.mxu0 0.0
    %3478 = vmatpush.msra.mxu0 0.0
    %3479 = vmatpush.msra.mxu0 0.0
    %3480 = vmatpush.msra.mxu0 0.0
    %3481 = vmatpush.msra.mxu0 0.0
    %3482 = vmatpush.msra.mxu0 %v3279
    %3483 = vmatmul.f32.gmra.mxu0 %v3465
    %v3484 = vpop.f32.mrf.mxu0
    %v3485 = vadd.f32 %v3462, %v3484
    %3486 = vdwg.mxu0
    %3487 = vrot.lane.b32.xlu0 %v3246, 112
    %v3488 = vpop.permute.xlu0 %3487
    %3489 = vrot.lane.b32.xlu0 %v3276, 112
    %v3490 = vpop.permute.xlu0 %3489
    %v3491 = vsel %vm475, %v3488, 0
    %v3493 = vsel %vm475, %v3490, 0
    %3495 = vmatpush.xpose.msra.mxu0 0.0
    %3496 = vmatpush.xpose.msra.mxu0 0.0
    %3497 = vmatpush.xpose.msra.mxu0 0.0
    %3498 = vmatpush.xpose.msra.mxu0 0.0
    %3499 = vmatpush.xpose.msra.mxu0 0.0
    %3500 = vmatpush.xpose.msra.mxu0 0.0
    %3501 = vmatpush.xpose.msra.mxu0 0.0
    %3502 = vmatpush.xpose.msra.mxu0 0.0
    %3503 = vmatpush.xpose.msra.mxu0 0.0
    %3504 = vmatpush.xpose.msra.mxu0 0.0
    %3505 = vmatpush.xpose.msra.mxu0 0.0
    %3506 = vmatpush.xpose.msra.mxu0 0.0
    %3507 = vmatpush.xpose.msra.mxu0 0.0
    %3508 = vmatpush.xpose.msra.mxu0 0.0
    %3509 = vmatpush.xpose.msra.mxu0 0.0
    %3510 = vmatpush.xpose.msra.mxu0 %v3493
    %3511 = vmatmul.f32.gmra.mxu0 %v3491
    %v3512 = vpop.f32.mrf.mxu0
    %v3513 = vadd.f32 0.0, %v3512
    %3514 = vdwg.mxu0
    %v3515 = vmul.f32 %v3513, 0.35355338
    %v3516 = vsel %vm475, %v3515, -inf
    %3517 = vmax.xlane.f32.xlu0 %v3516
    %v3518 = vpop.xlane.xlu0 %3517
    %v3519 = vsub.f32 %v3515, %v3518
    %v3520 = vmul.f32 %v3519, 1.442695
    %v3521 = vpow.pop %v3520
    %v3522 = vsel %vm475, %v3521, 0.0
    %3523 = vadd.xlane.f32.xlu0 %v3522
    %v3524 = vpop.xlane.xlu0 %3523
    %v3525 = vrcp.pop %v3524
    %v3526 = vmul.f32 %v3524, %v3525
    %v3527 = vsub.f32 1.0, %v3526
    %v3528 = vmul.f32 %v3525, %v3527
    %v3529 = vadd.f32 %v3525, %v3528
    %vm3530 = vweird.f32 %v3524
    %vm3531 = vweird.f32 %v3525
    %vm3532 = vmor %vm3530, %vm3531
    %v3533 = vsel %vm3532, %v3525, %v3529
    %v3534 = vand.u32 2147483647, %v3524
    %vm3535 = vcmp.eq.f32.partialorder %v3534, 8.507059e+37
    %v3536 = vand.u32 %v3524, 2147483648
    %v3537 = vor.u32 1.1754944e-38, %v3536
    %v3538 = vsel %vm3535, %v3537, %v3533
    %v3539 = vmul.f32 %v3521, %v3538
    %3540 = vrot.lane.b32.xlu0 %v3276, 80
    %v3541 = vpop.permute.xlu0 %3540
    %v3544 = vsel %vm475, %v3539, 0
    %3546 = vmatpush.msra.mxu0 0.0
    %3547 = vmatpush.msra.mxu0 0.0
    %3548 = vmatpush.msra.mxu0 0.0
    %3549 = vmatpush.msra.mxu0 0.0
    %3550 = vmatpush.msra.mxu0 0.0
    %3551 = vmatpush.msra.mxu0 0.0
    %3552 = vmatpush.msra.mxu0 0.0
    %3553 = vmatpush.msra.mxu0 0.0
    %3554 = vmatpush.msra.mxu0 0.0
    %3555 = vmatpush.msra.mxu0 0.0
    %3556 = vmatpush.msra.mxu0 0.0
    %3557 = vmatpush.msra.mxu0 0.0
    %3558 = vmatpush.msra.mxu0 0.0
    %3559 = vmatpush.msra.mxu0 0.0
    %3560 = vmatpush.msra.mxu0 0.0
    %3561 = vmatpush.msra.mxu0 %v3541
    %3562 = vmatmul.f32.gmra.mxu0 %v3544
    %v3563 = vpop.f32.mrf.mxu0
    %v3564 = vadd.f32 0.0, %v3563
    %3565 = vdwg.mxu0
    %v3567 = vsel %vm475, %v3564, 0
    %3569 = vmatpush.msra.mxu0 0.0
    %3570 = vmatpush.msra.mxu0 0.0
    %3571 = vmatpush.msra.mxu0 0.0
    %3572 = vmatpush.msra.mxu0 0.0
    %3573 = vmatpush.msra.mxu0 0.0
    %3574 = vmatpush.msra.mxu0 0.0
    %3575 = vmatpush.msra.mxu0 0.0
    %3576 = vmatpush.msra.mxu0 0.0
    %3577 = vmatpush.msra.mxu0 0.0
    %3578 = vmatpush.msra.mxu0 0.0
    %3579 = vmatpush.msra.mxu0 0.0
    %3580 = vmatpush.msra.mxu0 0.0
    %3581 = vmatpush.msra.mxu0 0.0
    %3582 = vmatpush.msra.mxu0 0.0
    %3583 = vmatpush.msra.mxu0 0.0
    %3584 = vmatpush.msra.mxu0 %v3281
    %3585 = vmatmul.f32.gmra.mxu0 %v3567
    %v3586 = vpop.f32.mrf.mxu0
    %v3587 = vadd.f32 0.0, %v3586
    %3588 = vdwg.mxu0
    %v3589 = vadd.f32 %v3485, %v3587
    %3590 = vrot.lane.b32.xlu0 %v3246, 104
    %v3591 = vpop.permute.xlu0 %3590
    %3592 = vrot.lane.b32.xlu0 %v3276, 104
    %v3593 = vpop.permute.xlu0 %3592
    %v3594 = vsel %vm475, %v3591, 0
    %v3596 = vsel %vm475, %v3593, 0
    %3598 = vmatpush.xpose.msra.mxu0 0.0
    %3599 = vmatpush.xpose.msra.mxu0 0.0
    %3600 = vmatpush.xpose.msra.mxu0 0.0
    %3601 = vmatpush.xpose.msra.mxu0 0.0
    %3602 = vmatpush.xpose.msra.mxu0 0.0
    %3603 = vmatpush.xpose.msra.mxu0 0.0
    %3604 = vmatpush.xpose.msra.mxu0 0.0
    %3605 = vmatpush.xpose.msra.mxu0 0.0
    %3606 = vmatpush.xpose.msra.mxu0 0.0
    %3607 = vmatpush.xpose.msra.mxu0 0.0
    %3608 = vmatpush.xpose.msra.mxu0 0.0
    %3609 = vmatpush.xpose.msra.mxu0 0.0
    %3610 = vmatpush.xpose.msra.mxu0 0.0
    %3611 = vmatpush.xpose.msra.mxu0 0.0
    %3612 = vmatpush.xpose.msra.mxu0 0.0
    %3613 = vmatpush.xpose.msra.mxu0 %v3596
    %3614 = vmatmul.f32.gmra.mxu0 %v3594
    %v3615 = vpop.f32.mrf.mxu0
    %v3616 = vadd.f32 0.0, %v3615
    %3617 = vdwg.mxu0
    %v3618 = vmul.f32 %v3616, 0.35355338
    %v3619 = vsel %vm475, %v3618, -inf
    %3620 = vmax.xlane.f32.xlu0 %v3619
    %v3621 = vpop.xlane.xlu0 %3620
    %v3622 = vsub.f32 %v3618, %v3621
    %v3623 = vmul.f32 %v3622, 1.442695
    %v3624 = vpow.pop %v3623
    %v3625 = vsel %vm475, %v3624, 0.0
    %3626 = vadd.xlane.f32.xlu0 %v3625
    %v3627 = vpop.xlane.xlu0 %3626
    %v3628 = vrcp.pop %v3627
    %v3629 = vmul.f32 %v3627, %v3628
    %v3630 = vsub.f32 1.0, %v3629
    %v3631 = vmul.f32 %v3628, %v3630
    %v3632 = vadd.f32 %v3628, %v3631
    %vm3633 = vweird.f32 %v3627
    %vm3634 = vweird.f32 %v3628
    %vm3635 = vmor %vm3633, %vm3634
    %v3636 = vsel %vm3635, %v3628, %v3632
    %v3637 = vand.u32 2147483647, %v3627
    %vm3638 = vcmp.eq.f32.partialorder %v3637, 8.507059e+37
    %v3639 = vand.u32 %v3627, 2147483648
    %v3640 = vor.u32 1.1754944e-38, %v3639
    %v3641 = vsel %vm3638, %v3640, %v3636
    %v3642 = vmul.f32 %v3624, %v3641
    %3643 = vrot.lane.b32.xlu0 %v3276, 72
    %v3644 = vpop.permute.xlu0 %3643
    %v3647 = vsel %vm475, %v3642, 0
    %3649 = vmatpush.msra.mxu0 0.0
    %3650 = vmatpush.msra.mxu0 0.0
    %3651 = vmatpush.msra.mxu0 0.0
    %3652 = vmatpush.msra.mxu0 0.0
    %3653 = vmatpush.msra.mxu0 0.0
    %3654 = vmatpush.msra.mxu0 0.0
    %3655 = vmatpush.msra.mxu0 0.0
    %3656 = vmatpush.msra.mxu0 0.0
    %3657 = vmatpush.msra.mxu0 0.0
    %3658 = vmatpush.msra.mxu0 0.0
    %3659 = vmatpush.msra.mxu0 0.0
    %3660 = vmatpush.msra.mxu0 0.0
    %3661 = vmatpush.msra.mxu0 0.0
    %3662 = vmatpush.msra.mxu0 0.0
    %3663 = vmatpush.msra.mxu0 0.0
    %3664 = vmatpush.msra.mxu0 %v3644
    %3665 = vmatmul.f32.gmra.mxu0 %v3647
    %v3666 = vpop.f32.mrf.mxu0
    %v3667 = vadd.f32 0.0, %v3666
    %3668 = vdwg.mxu0
    %v3670 = vsel %vm475, %v3667, 0
    %3672 = vmatpush.msra.mxu0 0.0
    %3673 = vmatpush.msra.mxu0 0.0
    %3674 = vmatpush.msra.mxu0 0.0
    %3675 = vmatpush.msra.mxu0 0.0
    %3676 = vmatpush.msra.mxu0 0.0
    %3677 = vmatpush.msra.mxu0 0.0
    %3678 = vmatpush.msra.mxu0 0.0
    %3679 = vmatpush.msra.mxu0 0.0
    %3680 = vmatpush.msra.mxu0 0.0
    %3681 = vmatpush.msra.mxu0 0.0
    %3682 = vmatpush.msra.mxu0 0.0
    %3683 = vmatpush.msra.mxu0 0.0
    %3684 = vmatpush.msra.mxu0 0.0
    %3685 = vmatpush.msra.mxu0 0.0
    %3686 = vmatpush.msra.mxu0 0.0
    %3687 = vmatpush.msra.mxu0 %v3282
    %3688 = vmatmul.f32.gmra.mxu0 %v3670
    %v3689 = vpop.f32.mrf.mxu0
    %v3690 = vadd.f32 0.0, %v3689
    %3691 = vdwg.mxu0
    %v3692 = vadd.f32 %v3589, %v3690
    %v3694 = vperm.slane %v3284, 0
    %v3696 = vadd.f32 %v3692, %v3694
    %v3697 = vadd.f32 %v3214, %v3696
    %s3698 = scalar_lea.vmem %s53, 2
    %v3699 = vld [vmem:[%s3698] sm:$0x3]
    %v3700 = vsel %vm443, %v3697, 0.0
    %3701 = vadd.xlane.f32.xlu0 %v3700
    %v3702 = vpop.xlane.xlu0 %3701
    %v3703 = vmul.f32 %v3702, %v901
    %v3704 = vsub.f32 %v3697, %v3703
    %v3705 = vmul.f32 %v3704, %v3704
    %v3706 = vsel %vm443, %v3705, 0.0
    %3707 = vadd.xlane.f32.xlu0 %v3706
    %v3708 = vpop.xlane.xlu0 %3707
    %v3709 = vmul.f32 %v3708, %v901
    %v3710 = vadd.f32 %v3709, 1e-05
    %v3711 = vrsqrt.pop %v3710
    %v3712 = vmul.f32 %v3711, %v3710
    %v3713 = vmul.f32 %v3712, %v3711
    %v3714 = vmul.f32 0.5, %v3713
    %v3715 = vsub.f32 1.5, %v3714
    %v3716 = vmul.f32 %v3711, %v3715
    %vm3717 = vweird.f32 %v3710
    %vm3718 = vweird.f32 %v3711
    %vm3719 = vmor %vm3717, %vm3718
    %v3720 = vsel %vm3719, %v3711, %v3716
    %v3721 = vmul.f32 %v3704, %v3720
    %v3722 = vperm.slane %v3699, 0
    %v3723 = vmul.f32 %v3721, %v3722
    %v3724 = vperm.slane %v3699, 1
    %v3725 = vadd.f32 %v3723, %v3724
    %s3726 = scalar_lea.vmem [#allocation20], 32
    %v3727 = vld [vmem:[%s3726] sm:$0xff]
    %v3728 = vld [vmem:[%s3726 + $0x8] sm:$0xff]
    %v3729 = vld [vmem:[%s3726 + $0x10] sm:$0xff]
    %v3730 = vld [vmem:[%s3726 + $0x18] sm:$0xff]
    %s3731 = scalar_lea.vmem [#allocation22], 1
    %v3732 = vld [vmem:[%s3731] sm:$0x1]
    %v3734 = vperm.slane %v3732, 0
    %v3737 = vsel %vm443, %v3725, 0
    %3739 = vmatpush.msra.mxu0 0.0
    %3740 = vmatpush.msra.mxu0 0.0
    %3741 = vmatpush.msra.mxu0 0.0
    %3742 = vmatpush.msra.mxu0 0.0
    %3743 = vmatpush.msra.mxu0 0.0
    %3744 = vmatpush.msra.mxu0 0.0
    %3745 = vmatpush.msra.mxu0 0.0
    %3746 = vmatpush.msra.mxu0 0.0
    %3747 = vmatpush.msra.mxu0 0.0
    %3748 = vmatpush.msra.mxu0 0.0
    %3749 = vmatpush.msra.mxu0 0.0
    %3750 = vmatpush.msra.mxu0 0.0
    %3751 = vmatpush.msra.mxu0 %v3730
    %3752 = vmatpush.msra.mxu0 %v3729
    %3753 = vmatpush.msra.mxu0 %v3728
    %3754 = vmatpush.msra.mxu0 %v3727
    %3755 = vmatmul.f32.gmra.mxu0 %v3737
    %v3756 = vpop.f32.mrf.mxu0
    %v3757 = vadd.f32 %v3734, %v3756
    %3758 = vdwg.mxu0
    %v3759 = vmax.f32 %v3757, 0.0
    %s3760 = scalar_lea.vmem %s61, 64
    %v3761 = vld [vmem:[%s3760] sm:$0xff]
    %v3762 = vld [vmem:[%s3760 + $0x8] sm:$0xff]
    %v3763 = vld [vmem:[%s3760 + $0x10] sm:$0xff]
    %v3764 = vld [vmem:[%s3760 + $0x18] sm:$0xff]
    %v3765 = vld [vmem:[%s3760 + $0x20] sm:$0xff]
    %v3766 = vld [vmem:[%s3760 + $0x28] sm:$0xff]
    %v3767 = vld [vmem:[%s3760 + $0x30] sm:$0xff]
    %v3768 = vld [vmem:[%s3760 + $0x38] sm:$0xff]
    %s3769 = scalar_lea.vmem [#allocation23], 1
    %v3770 = vld [vmem:[%s3769] sm:$0x1]
    %v3772 = vperm.slane %v3770, 0
    %v3775 = vsel %vm969, %v3759, 0
    %3777 = vmatpush.msra.mxu0 0.0
    %3778 = vmatpush.msra.mxu0 0.0
    %3779 = vmatpush.msra.mxu0 0.0
    %3780 = vmatpush.msra.mxu0 0.0
    %3781 = vmatpush.msra.mxu0 0.0
    %3782 = vmatpush.msra.mxu0 0.0
    %3783 = vmatpush.msra.mxu0 0.0
    %3784 = vmatpush.msra.mxu0 0.0
    %3785 = vmatpush.msra.mxu0 %v3768
    %3786 = vmatpush.msra.mxu0 %v3767
    %3787 = vmatpush.msra.mxu0 %v3766
    %3788 = vmatpush.msra.mxu0 %v3765
    %3789 = vmatpush.msra.mxu0 %v3764
    %3790 = vmatpush.msra.mxu0 %v3763
    %3791 = vmatpush.msra.mxu0 %v3762
    %3792 = vmatpush.msra.mxu0 %v3761
    %3793 = vmatmul.f32.gmra.mxu0 %v3775
    %v3794 = vpop.f32.mrf.mxu0
    %v3795 = vadd.f32 %v3772, %v3794
    %3796 = vdwg.mxu0
    %v3797 = vadd.f32 %v3725, %v3795
    %s3798 = scalar_lea.vmem %s55, 2
    %v3799 = vld [vmem:[%s3798] sm:$0x3]
    %v3800 = vsel %vm443, %v3797, 0.0
    %3801 = vadd.xlane.f32.xlu0 %v3800
    %v3802 = vpop.xlane.xlu0 %3801
    %v3803 = vmul.f32 %v3802, %v901
    %v3804 = vsub.f32 %v3797, %v3803
    %v3805 = vmul.f32 %v3804, %v3804
    %v3806 = vsel %vm443, %v3805, 0.0
    %3807 = vadd.xlane.f32.xlu0 %v3806
    %v3808 = vpop.xlane.xlu0 %3807
    %v3809 = vmul.f32 %v3808, %v901
    %v3810 = vadd.f32 %v3809, 1e-05
    %v3811 = vrsqrt.pop %v3810
    %v3812 = vmul.f32 %v3811, %v3810
    %v3813 = vmul.f32 %v3812, %v3811
    %v3814 = vmul.f32 0.5, %v3813
    %v3815 = vsub.f32 1.5, %v3814
    %v3816 = vmul.f32 %v3811, %v3815
    %vm3817 = vweird.f32 %v3810
    %vm3818 = vweird.f32 %v3811
    %vm3819 = vmor %vm3817, %vm3818
    %v3820 = vsel %vm3819, %v3811, %v3816
    %v3821 = vmul.f32 %v3804, %v3820
    %v3822 = vperm.slane %v3799, 0
    %v3823 = vmul.f32 %v3821, %v3822
    %v3824 = vperm.slane %v3799, 1
    %v3825 = vadd.f32 %v3823, %v3824
    %v3826 = vld [vmem:[#allocation25] sm:$0xff]
    %v3827 = vld [vmem:[#allocation25 + $0x8] sm:$0xff]
    %v3828 = vld [vmem:[#allocation25 + $0x10] sm:$0xff]
    %v3829 = vld [vmem:[#allocation25 + $0x18] sm:$0xff]
    %v3830 = vld [vmem:[#allocation26] sm:$0x1]
    %v3832 = vperm.slane %v3830, 0
    %v3835 = vsel %vm443, %v3825, 0
    %3837 = vmatpush.msra.mxu0 0.0
    %3838 = vmatpush.msra.mxu0 0.0
    %3839 = vmatpush.msra.mxu0 0.0
    %3840 = vmatpush.msra.mxu0 0.0
    %3841 = vmatpush.msra.mxu0 0.0
    %3842 = vmatpush.msra.mxu0 0.0
    %3843 = vmatpush.msra.mxu0 0.0
    %3844 = vmatpush.msra.mxu0 0.0
    %3845 = vmatpush.msra.mxu0 0.0
    %3846 = vmatpush.msra.mxu0 0.0
    %3847 = vmatpush.msra.mxu0 0.0
    %3848 = vmatpush.msra.mxu0 0.0
    %3849 = vmatpush.msra.mxu0 %v3829
    %3850 = vmatpush.msra.mxu0 %v3828
    %3851 = vmatpush.msra.mxu0 %v3827
    %3852 = vmatpush.msra.mxu0 %v3826
    %3853 = vmatmul.f32.gmra.mxu0 %v3835
    %v3854 = vpop.f32.mrf.mxu0
    %v3855 = vadd.f32 %v3832, %v3854
    %3856 = vdwg.mxu0
    %3857 = vst [vmem:[#allocation28] sm:$0xff] %v3855
    // Predicated region
    $region202: #{transformer_forward.1} parent=1 // pred_check
      _
    $region203: #{transformer_forward.1} parent=1 // pred_check_branch
      %3859 = sbr.rel (0) target = $region205
    $region204: #{transformer_forward.1} parent=1 // pred_region
      %3861 = vsyncadd [#allocation4], 0
      %s3863 = sshll.u32 [#allocation28], 4
      %s3864 = int_to_ptr.vmem [resolvable:$true] %s3863
      %s3865 = sshll.u32 %s69, 4
      %s3866 = int_to_ptr.hbm [resolvable:$true] %s3865
      %3868 = dma.vmem_to_hbm [thread:$0]  %s3864, 128, %s3866, [#allocation4]
    $region205: #{transformer_forward.1} parent=1 // pred_fallthru
      _
    // Predicated region
    $region206: #{transformer_forward.1} parent=1 // pred_check
      _
    $region207: #{transformer_forward.1} parent=1 // pred_check_branch
      %3870 = sbr.rel (0) target = $region209
    $region208: #{transformer_forward.1} parent=1 // pred_region
      %3872 = dma.done [#allocation4], 128
    $region209: #{transformer_forward.1} parent=1 // pred_fallthru
      _
    %3873 = vsyncpa [#allocation3], 1
    %3874 = vsyncpa [#allocation6], 1
    %3875 = vsyncpa [#allocation9], 1
    %3876 = vsyncpa [#allocation12], 1
    %3877 = vsyncpa [#allocation15], 1
    %3878 = vsyncpa [#allocation18], 1
    %3879 = vsyncpa [#allocation21], 1
    %3880 = vsyncpa [#allocation24], 1
    %3881 = vsyncpa [#allocation27], 1
    %3882 = vsyncpa [#allocation4], 1

</llo_original>
